<compile_context>
chip_gen: v5e
topology: v5e:2x2
jax: 0.10.0
libtpu: 0.0.40
codegen_flags: <defaults>
</compile_context>

<pallas_src>
import functools

import jax
import jax.numpy as jnp
from jax.experimental import pallas as pl
from jax.experimental.pallas import tpu as pltpu


def slot_tagger_kernel(mask_ref, emb_ref, h0_ref, c0_ref,
                       wi0_ref, wh0_ref, b0_ref,
                       wi1_ref, wh1_ref, b1_ref,
                       wi2_ref, wh2_ref, b2_ref,
                       wout_ref, bout_ref,
                       out_ref, seq_ref, gates_ref,
                       *, T, B, H):
    """Everything resident in VMEM (single grid point; footprint << 1 MiB).

    mask_ref  : (T*B, 1)  f32   1.0 where t < length[b] else 0.0 (time-major flat)
    emb_ref   : (T*B, D)  bf16  time-major flattened embedded tokens
    h0 / c0   : (L, B, H) f32   initial hidden / cell state per layer
    wiX / whX : (Din,4H) / (H,4H) bf16  gate order (i, f, o, g)
    bX        : (1, 4H)   f32   b_ih + b_hh, gate order (i, f, o, g)
    wout      : (H, O) bf16, bout: (1, O) f32
    out_ref   : (T*B, O)  f32   log-probabilities
    seq_ref   : (T*B, H)  f32   current layer's (masked) output sequence
    gates_ref : (T*B, 4H) f32   bulk input-to-hidden projections for the layer
    """

    def run_layer(layer_idx, wi_ref, wh_ref, b_ref, is_first):
        # Bulk input projection for the whole sequence (one big MXU push).
        x_seq = (emb_ref[...] if is_first else seq_ref[...]).astype(jnp.bfloat16)
        gates_ref[...] = (
            jnp.dot(x_seq, wi_ref[...], preferred_element_type=jnp.float32)
            + b_ref[...])

        wh = wh_ref[...]                       # (H, 4H) bf16, hoisted
        h = h0_ref[layer_idx]                  # (B, H) f32
        c = c0_ref[layer_idx]

        # Fully unrolled recurrence: static, sublane-aligned slices (B % 8 == 0).
        for t in range(T):
            row = t * B
            gates = (gates_ref[pl.ds(row, B), :]
                     + jnp.dot(h.astype(jnp.bfloat16), wh,
                               preferred_element_type=jnp.float32))   # (B, 4H)
            # gate order (i, f, o, g): one sigmoid over 3H, one tanh over H.
            sig = jax.nn.sigmoid(gates[:, 0:3 * H])
            i_g = sig[:, 0:H]
            f_g = sig[:, H:2 * H]
            o_g = sig[:, 2 * H:3 * H]
            g_g = jnp.tanh(gates[:, 3 * H:4 * H])
            c_new = f_g * c + i_g * g_g
            h_new = o_g * jnp.tanh(c_new)

            mb = mask_ref[pl.ds(row, B), :] > 0.0                     # (B, 1) bool
            seq_ref[pl.ds(row, B), :] = jnp.where(mb, h_new, 0.0)     # pads -> zero
            h = jnp.where(mb, h_new, h)                               # freeze on pads
            c = jnp.where(mb, c_new, c)

    run_layer(0, wi0_ref, wh0_ref, b0_ref, True)
    run_layer(1, wi1_ref, wh1_ref, b1_ref, False)
    run_layer(2, wi2_ref, wh2_ref, b2_ref, False)

    # Hoisted output projection + log_softmax: one matmul, one bulk store.
    logits = (jnp.dot(seq_ref[...].astype(jnp.bfloat16), wout_ref[...],
                      preferred_element_type=jnp.float32)
              + bout_ref[...])                                        # (T*B, O)
    mx = jnp.max(logits, axis=-1, keepdims=True)
    lse = mx + jnp.log(jnp.sum(jnp.exp(logits - mx), axis=-1, keepdims=True))
    out_ref[...] = logits - lse


def slot_tagger_forward(tokens, lengths, params):
    """tokens: (B, T) int32, lengths: (B,) int32.  Returns (B*T, O) log-probs."""
    B, T = tokens.shape
    L, _, H = params['h0'].shape
    O = params['w_out'].shape[1]
    D = params['embedding'].shape[1]
    Bp = ((B + 7) // 8) * 8                    # pad batch to a sublane multiple

    # Embedding gather + layout glue (no clean rectangular BlockSpec for gather).
    emb = jnp.take(params['embedding'], tokens, axis=0)            # (B, T, D)
    emb_tm = jnp.transpose(emb, (1, 0, 2))                         # (T, B, D)
    emb_tm = jnp.pad(emb_tm, ((0, 0), (0, Bp - B), (0, 0)))
    emb_flat = emb_tm.reshape(T * Bp, D).astype(jnp.bfloat16)

    mask = (jnp.arange(T)[:, None] < lengths[None, :]).astype(jnp.float32)  # (T, B)
    mask = jnp.pad(mask, ((0, 0), (0, Bp - B)))                    # pads masked out
    mask_flat = mask.reshape(T * Bp, 1)

    h0 = jnp.pad(params['h0'], ((0, 0), (0, Bp - B), (0, 0)))
    c0 = jnp.pad(params['c0'], ((0, 0), (0, Bp - B), (0, 0)))

    bf16 = lambda a: a.astype(jnp.bfloat16)
    args = (mask_flat, emb_flat, h0, c0,
            bf16(params['wi0']), bf16(params['wh0']), params['b0'],
            bf16(params['wi1']), bf16(params['wh1']), params['b1'],
            bf16(params['wi2']), bf16(params['wh2']), params['b2'],
            bf16(params['w_out']), params['b_out'])

    vmem = functools.partial(pl.BlockSpec, memory_space=pltpu.MemorySpace.VMEM)
    out_flat = pl.pallas_call(
        functools.partial(slot_tagger_kernel, T=T, B=Bp, H=H),
        out_shape=jax.ShapeDtypeStruct((T * Bp, O), jnp.float32),
        in_specs=[vmem() for _ in args],
        out_specs=vmem(),
        scratch_shapes=[pltpu.VMEM((T * Bp, H), jnp.float32),      # seq_ref
                        pltpu.VMEM((T * Bp, 4 * H), jnp.float32)], # gates_ref
    )(*args)

    # Back to PyTorch's batch-major flattened view: (B, T, O) -> (B*T, O).
    out_tm = out_flat.reshape(T, Bp, O)[:, :B, :]                  # (T, B, O)
    return jnp.transpose(out_tm, (1, 0, 2)).reshape(B * T, O)


def init_params(key, vocab_size, pad_idx, n_tags, D=20, H=32, L=3, B=3):
    """Deterministic synthetic parameters (shapes match the nn.Module)."""
    keys = iter(jax.random.split(key, 20))
    scale = 1.0 / float(H) ** 0.5

    emb = jax.random.normal(next(keys), (vocab_size, D), jnp.float32) * 0.1
    emb = emb.at[pad_idx].set(0.0)                                 # padding_idx row
    params = {'embedding': emb}

    # PyTorch packs LSTM gates in order (i, f, g, o); repack to (i, f, o, g) so
    # sigmoid covers one contiguous 3H slice and tanh one H slice in the kernel.
    def reorder(w):
        return jnp.concatenate([w[0:H], w[H:2 * H], w[3 * H:4 * H], w[2 * H:3 * H]],
                               axis=0)

    in_dims = [D] + [H] * (L - 1)
    for l in range(L):
        w_ih = jax.random.uniform(next(keys), (4 * H, in_dims[l]), jnp.float32, -scale, scale)
        w_hh = jax.random.uniform(next(keys), (4 * H, H), jnp.float32, -scale, scale)
        b_ih = jax.random.uniform(next(keys), (4 * H,), jnp.float32, -scale, scale)
        b_hh = jax.random.uniform(next(keys), (4 * H,), jnp.float32, -scale, scale)
        params[f'wi{l}'] = reorder(w_ih).T                         # (Din, 4H)
        params[f'wh{l}'] = reorder(w_hh).T                         # (H, 4H)
        params[f'b{l}'] = reorder(b_ih + b_hh).reshape(1, 4 * H)

    w = jax.random.uniform(next(keys), (n_tags, H), jnp.float32, -scale, scale)
    b = jax.random.uniform(next(keys), (n_tags,), jnp.float32, -scale, scale)
    params['w_out'] = w.T                                          # (H, O)
    params['b_out'] = b.reshape(1, n_tags)

    # init_hidden (xavier_uniform in torch) -> deterministic small random here.
    params['h0'] = jax.random.normal(next(keys), (L, B, H), jnp.float32) * 0.1
    params['c0'] = jax.random.normal(next(keys), (L, B, H), jnp.float32) * 0.1
    return params


if __name__ == "__main__":
    sentences = [
        'BOS on april first i need a ticket from tacoma to san jose departing before 7 am EOS',
        'BOS what ground transportation is available from dallas fort worth airport to downtown dallas EOS',
        'BOS what does not sa mean EOS',
    ]
    tokenized = [s.split() for s in sentences]
    vocab = ['<PAD>'] + sorted({w for s in tokenized for w in s})
    word_to_ix = {w: i for i, w in enumerate(vocab)}
    tag_to_ix = {t: i for i, t in enumerate(
        ['<PAD>', 'O', 'B-fromloc', 'I-fromloc', 'B-toloc', 'I-toloc', 'B-time', 'I-time'])}

    lengths_py = [len(s) for s in tokenized]                       # [18, 15, 7]
    B = len(tokenized)
    T = max(lengths_py)
    pad = word_to_ix['<PAD>']
    ids = [[word_to_ix[w] for w in s] + [pad] * (T - len(s)) for s in tokenized]

    tokens = jnp.array(ids, dtype=jnp.int32)                       # (B, T)
    lengths = jnp.array(lengths_py, dtype=jnp.int32)               # (B,)

    key = jax.random.PRNGKey(0)
    params = init_params(key, len(vocab), pad, len(tag_to_ix),
                         D=20, H=32, L=3, B=B)

    out = slot_tagger_forward(tokens, lengths, params)
    out = jax.block_until_ready(out)

    assert out.shape == (B * T, len(tag_to_ix))
    # rows are valid log-probabilities (exp sums to 1)
    assert bool(jnp.all(jnp.abs(jnp.sum(jnp.exp(out), axis=-1) - 1.0) < 1e-3))
    print("KERNEL_OK")
</pallas_src>

<mosaic_0001>
module attributes {stable_mosaic.version = 11 : i64} {
  func.func @slot_tagger_kernel(%arg0: memref<144x1xf32, #tpu.memory_space<vmem>>, %arg1: memref<144x20xbf16, #tpu.memory_space<vmem>>, %arg2: memref<3x8x32xf32, #tpu.memory_space<vmem>>, %arg3: memref<3x8x32xf32, #tpu.memory_space<vmem>>, %arg4: memref<20x128xbf16, #tpu.memory_space<vmem>>, %arg5: memref<32x128xbf16, #tpu.memory_space<vmem>>, %arg6: memref<1x128xf32, #tpu.memory_space<vmem>>, %arg7: memref<32x128xbf16, #tpu.memory_space<vmem>>, %arg8: memref<32x128xbf16, #tpu.memory_space<vmem>>, %arg9: memref<1x128xf32, #tpu.memory_space<vmem>>, %arg10: memref<32x128xbf16, #tpu.memory_space<vmem>>, %arg11: memref<32x128xbf16, #tpu.memory_space<vmem>>, %arg12: memref<1x128xf32, #tpu.memory_space<vmem>>, %arg13: memref<32x8xbf16, #tpu.memory_space<vmem>>, %arg14: memref<1x8xf32, #tpu.memory_space<vmem>>, %arg15: memref<144x8xf32, #tpu.memory_space<vmem>>, %arg16: memref<144x32xf32, #tpu.memory_space<vmem>>, %arg17: memref<144x128xf32, #tpu.memory_space<vmem>>) attributes {dimension_semantics = [], scalar_prefetch = 0 : i64, scratch_operands = 2 : i64, tpu.core_type = #tpu.core_type<tc>} {
    %c0 = arith.constant 0 : index
    %c0_0 = arith.constant 0 : index
    %0 = vector.load %arg1[%c0, %c0_0] : memref<144x20xbf16, #tpu.memory_space<vmem>>, vector<144x20xbf16>
    %c0_1 = arith.constant 0 : index
    %c0_2 = arith.constant 0 : index
    %1 = vector.load %arg4[%c0_1, %c0_2] : memref<20x128xbf16, #tpu.memory_space<vmem>>, vector<20x128xbf16>
    %cst = arith.constant dense<0.000000e+00> : vector<144x128xf32>
    %2 = tpu.matmul %0, %1, %cst {dimension_numbers = #tpu.dot_dimension_numbers<[1], [0], [0], [1], [0, 0, 1, 1], [], []>} : vector<144x20xbf16>, vector<20x128xbf16>, vector<144x128xf32> -> vector<144x128xf32>
    %c0_3 = arith.constant 0 : index
    %c0_4 = arith.constant 0 : index
    %3 = vector.load %arg6[%c0_3, %c0_4] : memref<1x128xf32, #tpu.memory_space<vmem>>, vector<1x128xf32>
    %4 = vector.broadcast %3 : vector<1x128xf32> to vector<144x128xf32>
    %5 = arith.addf %2, %4 : vector<144x128xf32>
    %c0_5 = arith.constant 0 : index
    %c0_6 = arith.constant 0 : index
    %6 = vector.load %arg17[%c0_5, %c0_6] : memref<144x128xf32, #tpu.memory_space<vmem>>, vector<144x128xf32>
    tpu.vector_store %arg17[%c0_5, %c0_6], %5 {strides = array<i32>} : memref<144x128xf32, #tpu.memory_space<vmem>>, vector<144x128xf32>,
    %c0_7 = arith.constant 0 : index
    %c0_8 = arith.constant 0 : index
    %7 = vector.load %arg5[%c0_7, %c0_8] : memref<32x128xbf16, #tpu.memory_space<vmem>>, vector<32x128xbf16>
    %c0_9 = arith.constant 0 : index
    %c0_10 = arith.constant 0 : index
    %c0_11 = arith.constant 0 : index
    %8 = vector.load %arg2[%c0_9, %c0_10, %c0_11] : memref<3x8x32xf32, #tpu.memory_space<vmem>>, vector<1x8x32xf32>
    %9 = vector.shape_cast %8 : vector<1x8x32xf32> to vector<8x32xf32>
    %c0_12 = arith.constant 0 : index
    %c0_13 = arith.constant 0 : index
    %c0_14 = arith.constant 0 : index
    %10 = vector.load %arg3[%c0_12, %c0_13, %c0_14] : memref<3x8x32xf32, #tpu.memory_space<vmem>>, vector<1x8x32xf32>
    %11 = vector.shape_cast %10 : vector<1x8x32xf32> to vector<8x32xf32>
    %c0_15 = arith.constant 0 : index
    %c0_16 = arith.constant 0 : index
    %12 = vector.load %arg17[%c0_15, %c0_16] : memref<144x128xf32, #tpu.memory_space<vmem>>, vector<8x128xf32>
    %13 = arith.truncf %9 : vector<8x32xf32> to vector<8x32xbf16>
    %cst_17 = arith.constant dense<0.000000e+00> : vector<8x128xf32>
    %14 = tpu.matmul %13, %7, %cst_17 {dimension_numbers = #tpu.dot_dimension_numbers<[1], [0], [0], [1], [0, 0, 1, 1], [], []>} : vector<8x32xbf16>, vector<32x128xbf16>, vector<8x128xf32> -> vector<8x128xf32>
    %15 = arith.addf %12, %14 : vector<8x128xf32>
    %16 = vector.extract_strided_slice %15 {offsets = [0, 0], sizes = [8, 96], strides = [1, 1]} : vector<8x128xf32> to vector<8x96xf32>
    %17 = arith.negf %16 : vector<8x96xf32>
    %18 = math.exp %17 : vector<8x96xf32>
    %cst_18 = arith.constant 1.000000e+00 : f32
    %19 = vector.broadcast %cst_18 : f32 to vector<8x96xf32>
    %20 = arith.addf %19, %18 : vector<8x96xf32>
    %21 = arith.divf %19, %20 : vector<8x96xf32>
    %22 = vector.extract_strided_slice %21 {offsets = [0, 0], sizes = [8, 32], strides = [1, 1]} : vector<8x96xf32> to vector<8x32xf32>
    %23 = vector.extract_strided_slice %21 {offsets = [0, 32], sizes = [8, 32], strides = [1, 1]} : vector<8x96xf32> to vector<8x32xf32>
    %24 = vector.extract_strided_slice %21 {offsets = [0, 64], sizes = [8, 32], strides = [1, 1]} : vector<8x96xf32> to vector<8x32xf32>
    %25 = vector.extract_strided_slice %15 {offsets = [0, 96], sizes = [8, 32], strides = [1, 1]} : vector<8x128xf32> to vector<8x32xf32>
    %26 = math.tanh %25 : vector<8x32xf32>
    %27 = arith.mulf %23, %11 : vector<8x32xf32>
    %28 = arith.mulf %22, %26 : vector<8x32xf32>
    %29 = arith.addf %27, %28 : vector<8x32xf32>
    %30 = math.tanh %29 : vector<8x32xf32>
    %31 = arith.mulf %24, %30 : vector<8x32xf32>
    %c0_19 = arith.constant 0 : index
    %c0_20 = arith.constant 0 : index
    %32 = vector.load %arg0[%c0_19, %c0_20] : memref<144x1xf32, #tpu.memory_space<vmem>>, vector<8x1xf32>
    %cst_21 = arith.constant 0.000000e+00 : f32
    %33 = vector.broadcast %cst_21 : f32 to vector<8x1xf32>
    %34 = arith.cmpf ogt, %32, %33 : vector<8x1xf32>
    %cst_22 = arith.constant 0.000000e+00 : f32
    %35 = vector.shape_cast %34 : vector<8x1xi1> to vector<8x1xi1>
    %36 = vector.broadcast %35 : vector<8x1xi1> to vector<8x32xi1>
    %37 = vector.broadcast %cst_22 : f32 to vector<8x32xf32>
    %38 = arith.select %36, %31, %37 : vector<8x32xi1>, vector<8x32xf32>
    %c0_23 = arith.constant 0 : index
    %c0_24 = arith.constant 0 : index
    %39 = vector.load %arg16[%c0_23, %c0_24] : memref<144x32xf32, #tpu.memory_space<vmem>>, vector<8x32xf32>
    tpu.vector_store %arg16[%c0_23, %c0_24], %38 {strides = array<i32>} : memref<144x32xf32, #tpu.memory_space<vmem>>, vector<8x32xf32>,
    %40 = vector.shape_cast %34 : vector<8x1xi1> to vector<8x1xi1>
    %41 = vector.broadcast %40 : vector<8x1xi1> to vector<8x32xi1>
    %42 = arith.select %41, %31, %9 : vector<8x32xi1>, vector<8x32xf32>
    %43 = vector.shape_cast %34 : vector<8x1xi1> to vector<8x1xi1>
    %44 = vector.broadcast %43 : vector<8x1xi1> to vector<8x32xi1>
    %45 = arith.select %44, %29, %11 : vector<8x32xi1>, vector<8x32xf32>
    %c8 = arith.constant 8 : index
    %c0_25 = arith.constant 0 : index
    %46 = vector.load %arg17[%c8, %c0_25] : memref<144x128xf32, #tpu.memory_space<vmem>>, vector<8x128xf32>
    %47 = arith.truncf %42 : vector<8x32xf32> to vector<8x32xbf16>
    %cst_26 = arith.constant dense<0.000000e+00> : vector<8x128xf32>
    %48 = tpu.matmul %47, %7, %cst_26 {dimension_numbers = #tpu.dot_dimension_numbers<[1], [0], [0], [1], [0, 0, 1, 1], [], []>} : vector<8x32xbf16>, vector<32x128xbf16>, vector<8x128xf32> -> vector<8x128xf32>
    %49 = arith.addf %46, %48 : vector<8x128xf32>
    %50 = vector.extract_strided_slice %49 {offsets = [0, 0], sizes = [8, 96], strides = [1, 1]} : vector<8x128xf32> to vector<8x96xf32>
    %51 = arith.negf %50 : vector<8x96xf32>
    %52 = math.exp %51 : vector<8x96xf32>
    %cst_27 = arith.constant 1.000000e+00 : f32
    %53 = vector.broadcast %cst_27 : f32 to vector<8x96xf32>
    %54 = arith.addf %53, %52 : vector<8x96xf32>
    %55 = arith.divf %53, %54 : vector<8x96xf32>
    %56 = vector.extract_strided_slice %55 {offsets = [0, 0], sizes = [8, 32], strides = [1, 1]} : vector<8x96xf32> to vector<8x32xf32>
    %57 = vector.extract_strided_slice %55 {offsets = [0, 32], sizes = [8, 32], strides = [1, 1]} : vector<8x96xf32> to vector<8x32xf32>
    %58 = vector.extract_strided_slice %55 {offsets = [0, 64], sizes = [8, 32], strides = [1, 1]} : vector<8x96xf32> to vector<8x32xf32>
    %59 = vector.extract_strided_slice %49 {offsets = [0, 96], sizes = [8, 32], strides = [1, 1]} : vector<8x128xf32> to vector<8x32xf32>
    %60 = math.tanh %59 : vector<8x32xf32>
    %61 = arith.mulf %57, %45 : vector<8x32xf32>
    %62 = arith.mulf %56, %60 : vector<8x32xf32>
    %63 = arith.addf %61, %62 : vector<8x32xf32>
    %64 = math.tanh %63 : vector<8x32xf32>
    %65 = arith.mulf %58, %64 : vector<8x32xf32>
    %c8_28 = arith.constant 8 : index
    %c0_29 = arith.constant 0 : index
    %66 = vector.load %arg0[%c8_28, %c0_29] : memref<144x1xf32, #tpu.memory_space<vmem>>, vector<8x1xf32>
    %cst_30 = arith.constant 0.000000e+00 : f32
    %67 = vector.broadcast %cst_30 : f32 to vector<8x1xf32>
    %68 = arith.cmpf ogt, %66, %67 : vector<8x1xf32>
    %cst_31 = arith.constant 0.000000e+00 : f32
    %69 = vector.shape_cast %68 : vector<8x1xi1> to vector<8x1xi1>
    %70 = vector.broadcast %69 : vector<8x1xi1> to vector<8x32xi1>
    %71 = vector.broadcast %cst_31 : f32 to vector<8x32xf32>
    %72 = arith.select %70, %65, %71 : vector<8x32xi1>, vector<8x32xf32>
    %c8_32 = arith.constant 8 : index
    %c0_33 = arith.constant 0 : index
    %73 = vector.load %arg16[%c8_32, %c0_33] : memref<144x32xf32, #tpu.memory_space<vmem>>, vector<8x32xf32>
    tpu.vector_store %arg16[%c8_32, %c0_33], %72 {strides = array<i32>} : memref<144x32xf32, #tpu.memory_space<vmem>>, vector<8x32xf32>,
    %74 = vector.shape_cast %68 : vector<8x1xi1> to vector<8x1xi1>
    %75 = vector.broadcast %74 : vector<8x1xi1> to vector<8x32xi1>
    %76 = arith.select %75, %65, %42 : vector<8x32xi1>, vector<8x32xf32>
    %77 = vector.shape_cast %68 : vector<8x1xi1> to vector<8x1xi1>
    %78 = vector.broadcast %77 : vector<8x1xi1> to vector<8x32xi1>
    %79 = arith.select %78, %63, %45 : vector<8x32xi1>, vector<8x32xf32>
    %c16 = arith.constant 16 : index
    %c0_34 = arith.constant 0 : index
    %80 = vector.load %arg17[%c16, %c0_34] : memref<144x128xf32, #tpu.memory_space<vmem>>, vector<8x128xf32>
    %81 = arith.truncf %76 : vector<8x32xf32> to vector<8x32xbf16>
    %cst_35 = arith.constant dense<0.000000e+00> : vector<8x128xf32>
    %82 = tpu.matmul %81, %7, %cst_35 {dimension_numbers = #tpu.dot_dimension_numbers<[1], [0], [0], [1], [0, 0, 1, 1], [], []>} : vector<8x32xbf16>, vector<32x128xbf16>, vector<8x128xf32> -> vector<8x128xf32>
    %83 = arith.addf %80, %82 : vector<8x128xf32>
    %84 = vector.extract_strided_slice %83 {offsets = [0, 0], sizes = [8, 96], strides = [1, 1]} : vector<8x128xf32> to vector<8x96xf32>
    %85 = arith.negf %84 : vector<8x96xf32>
    %86 = math.exp %85 : vector<8x96xf32>
    %cst_36 = arith.constant 1.000000e+00 : f32
    %87 = vector.broadcast %cst_36 : f32 to vector<8x96xf32>
    %88 = arith.addf %87, %86 : vector<8x96xf32>
    %89 = arith.divf %87, %88 : vector<8x96xf32>
    %90 = vector.extract_strided_slice %89 {offsets = [0, 0], sizes = [8, 32], strides = [1, 1]} : vector<8x96xf32> to vector<8x32xf32>
    %91 = vector.extract_strided_slice %89 {offsets = [0, 32], sizes = [8, 32], strides = [1, 1]} : vector<8x96xf32> to vector<8x32xf32>
    %92 = vector.extract_strided_slice %89 {offsets = [0, 64], sizes = [8, 32], strides = [1, 1]} : vector<8x96xf32> to vector<8x32xf32>
    %93 = vector.extract_strided_slice %83 {offsets = [0, 96], sizes = [8, 32], strides = [1, 1]} : vector<8x128xf32> to vector<8x32xf32>
    %94 = math.tanh %93 : vector<8x32xf32>
    %95 = arith.mulf %91, %79 : vector<8x32xf32>
    %96 = arith.mulf %90, %94 : vector<8x32xf32>
    %97 = arith.addf %95, %96 : vector<8x32xf32>
    %98 = math.tanh %97 : vector<8x32xf32>
    %99 = arith.mulf %92, %98 : vector<8x32xf32>
    %c16_37 = arith.constant 16 : index
    %c0_38 = arith.constant 0 : index
    %100 = vector.load %arg0[%c16_37, %c0_38] : memref<144x1xf32, #tpu.memory_space<vmem>>, vector<8x1xf32>
    %cst_39 = arith.constant 0.000000e+00 : f32
    %101 = vector.broadcast %cst_39 : f32 to vector<8x1xf32>
    %102 = arith.cmpf ogt, %100, %101 : vector<8x1xf32>
    %cst_40 = arith.constant 0.000000e+00 : f32
    %103 = vector.shape_cast %102 : vector<8x1xi1> to vector<8x1xi1>
    %104 = vector.broadcast %103 : vector<8x1xi1> to vector<8x32xi1>
    %105 = vector.broadcast %cst_40 : f32 to vector<8x32xf32>
    %106 = arith.select %104, %99, %105 : vector<8x32xi1>, vector<8x32xf32>
    %c16_41 = arith.constant 16 : index
    %c0_42 = arith.constant 0 : index
    %107 = vector.load %arg16[%c16_41, %c0_42] : memref<144x32xf32, #tpu.memory_space<vmem>>, vector<8x32xf32>
    tpu.vector_store %arg16[%c16_41, %c0_42], %106 {strides = array<i32>} : memref<144x32xf32, #tpu.memory_space<vmem>>, vector<8x32xf32>,
    %108 = vector.shape_cast %102 : vector<8x1xi1> to vector<8x1xi1>
    %109 = vector.broadcast %108 : vector<8x1xi1> to vector<8x32xi1>
    %110 = arith.select %109, %99, %76 : vector<8x32xi1>, vector<8x32xf32>
    %111 = vector.shape_cast %102 : vector<8x1xi1> to vector<8x1xi1>
    %112 = vector.broadcast %111 : vector<8x1xi1> to vector<8x32xi1>
    %113 = arith.select %112, %97, %79 : vector<8x32xi1>, vector<8x32xf32>
    %c24 = arith.constant 24 : index
    %c0_43 = arith.constant 0 : index
    %114 = vector.load %arg17[%c24, %c0_43] : memref<144x128xf32, #tpu.memory_space<vmem>>, vector<8x128xf32>
    %115 = arith.truncf %110 : vector<8x32xf32> to vector<8x32xbf16>
    %cst_44 = arith.constant dense<0.000000e+00> : vector<8x128xf32>
    %116 = tpu.matmul %115, %7, %cst_44 {dimension_numbers = #tpu.dot_dimension_numbers<[1], [0], [0], [1], [0, 0, 1, 1], [], []>} : vector<8x32xbf16>, vector<32x128xbf16>, vector<8x128xf32> -> vector<8x128xf32>
    %117 = arith.addf %114, %116 : vector<8x128xf32>
    %118 = vector.extract_strided_slice %117 {offsets = [0, 0], sizes = [8, 96], strides = [1, 1]} : vector<8x128xf32> to vector<8x96xf32>
    %119 = arith.negf %118 : vector<8x96xf32>
    %120 = math.exp %119 : vector<8x96xf32>
    %cst_45 = arith.constant 1.000000e+00 : f32
    %121 = vector.broadcast %cst_45 : f32 to vector<8x96xf32>
    %122 = arith.addf %121, %120 : vector<8x96xf32>
    %123 = arith.divf %121, %122 : vector<8x96xf32>
    %124 = vector.extract_strided_slice %123 {offsets = [0, 0], sizes = [8, 32], strides = [1, 1]} : vector<8x96xf32> to vector<8x32xf32>
    %125 = vector.extract_strided_slice %123 {offsets = [0, 32], sizes = [8, 32], strides = [1, 1]} : vector<8x96xf32> to vector<8x32xf32>
    %126 = vector.extract_strided_slice %123 {offsets = [0, 64], sizes = [8, 32], strides = [1, 1]} : vector<8x96xf32> to vector<8x32xf32>
    %127 = vector.extract_strided_slice %117 {offsets = [0, 96], sizes = [8, 32], strides = [1, 1]} : vector<8x128xf32> to vector<8x32xf32>
    %128 = math.tanh %127 : vector<8x32xf32>
    %129 = arith.mulf %125, %113 : vector<8x32xf32>
    %130 = arith.mulf %124, %128 : vector<8x32xf32>
    %131 = arith.addf %129, %130 : vector<8x32xf32>
    %132 = math.tanh %131 : vector<8x32xf32>
    %133 = arith.mulf %126, %132 : vector<8x32xf32>
    %c24_46 = arith.constant 24 : index
    %c0_47 = arith.constant 0 : index
    %134 = vector.load %arg0[%c24_46, %c0_47] : memref<144x1xf32, #tpu.memory_space<vmem>>, vector<8x1xf32>
    %cst_48 = arith.constant 0.000000e+00 : f32
    %135 = vector.broadcast %cst_48 : f32 to vector<8x1xf32>
    %136 = arith.cmpf ogt, %134, %135 : vector<8x1xf32>
    %cst_49 = arith.constant 0.000000e+00 : f32
    %137 = vector.shape_cast %136 : vector<8x1xi1> to vector<8x1xi1>
    %138 = vector.broadcast %137 : vector<8x1xi1> to vector<8x32xi1>
    %139 = vector.broadcast %cst_49 : f32 to vector<8x32xf32>
    %140 = arith.select %138, %133, %139 : vector<8x32xi1>, vector<8x32xf32>
    %c24_50 = arith.constant 24 : index
    %c0_51 = arith.constant 0 : index
    %141 = vector.load %arg16[%c24_50, %c0_51] : memref<144x32xf32, #tpu.memory_space<vmem>>, vector<8x32xf32>
    tpu.vector_store %arg16[%c24_50, %c0_51], %140 {strides = array<i32>} : memref<144x32xf32, #tpu.memory_space<vmem>>, vector<8x32xf32>,
    %142 = vector.shape_cast %136 : vector<8x1xi1> to vector<8x1xi1>
    %143 = vector.broadcast %142 : vector<8x1xi1> to vector<8x32xi1>
    %144 = arith.select %143, %133, %110 : vector<8x32xi1>, vector<8x32xf32>
    %145 = vector.shape_cast %136 : vector<8x1xi1> to vector<8x1xi1>
    %146 = vector.broadcast %145 : vector<8x1xi1> to vector<8x32xi1>
    %147 = arith.select %146, %131, %113 : vector<8x32xi1>, vector<8x32xf32>
    %c32 = arith.constant 32 : index
    %c0_52 = arith.constant 0 : index
    %148 = vector.load %arg17[%c32, %c0_52] : memref<144x128xf32, #tpu.memory_space<vmem>>, vector<8x128xf32>
    %149 = arith.truncf %144 : vector<8x32xf32> to vector<8x32xbf16>
    %cst_53 = arith.constant dense<0.000000e+00> : vector<8x128xf32>
    %150 = tpu.matmul %149, %7, %cst_53 {dimension_numbers = #tpu.dot_dimension_numbers<[1], [0], [0], [1], [0, 0, 1, 1], [], []>} : vector<8x32xbf16>, vector<32x128xbf16>, vector<8x128xf32> -> vector<8x128xf32>
    %151 = arith.addf %148, %150 : vector<8x128xf32>
    %152 = vector.extract_strided_slice %151 {offsets = [0, 0], sizes = [8, 96], strides = [1, 1]} : vector<8x128xf32> to vector<8x96xf32>
    %153 = arith.negf %152 : vector<8x96xf32>
    %154 = math.exp %153 : vector<8x96xf32>
    %cst_54 = arith.constant 1.000000e+00 : f32
    %155 = vector.broadcast %cst_54 : f32 to vector<8x96xf32>
    %156 = arith.addf %155, %154 : vector<8x96xf32>
    %157 = arith.divf %155, %156 : vector<8x96xf32>
    %158 = vector.extract_strided_slice %157 {offsets = [0, 0], sizes = [8, 32], strides = [1, 1]} : vector<8x96xf32> to vector<8x32xf32>
    %159 = vector.extract_strided_slice %157 {offsets = [0, 32], sizes = [8, 32], strides = [1, 1]} : vector<8x96xf32> to vector<8x32xf32>
    %160 = vector.extract_strided_slice %157 {offsets = [0, 64], sizes = [8, 32], strides = [1, 1]} : vector<8x96xf32> to vector<8x32xf32>
    %161 = vector.extract_strided_slice %151 {offsets = [0, 96], sizes = [8, 32], strides = [1, 1]} : vector<8x128xf32> to vector<8x32xf32>
    %162 = math.tanh %161 : vector<8x32xf32>
    %163 = arith.mulf %159, %147 : vector<8x32xf32>
    %164 = arith.mulf %158, %162 : vector<8x32xf32>
    %165 = arith.addf %163, %164 : vector<8x32xf32>
    %166 = math.tanh %165 : vector<8x32xf32>
    %167 = arith.mulf %160, %166 : vector<8x32xf32>
    %c32_55 = arith.constant 32 : index
    %c0_56 = arith.constant 0 : index
    %168 = vector.load %arg0[%c32_55, %c0_56] : memref<144x1xf32, #tpu.memory_space<vmem>>, vector<8x1xf32>
    %cst_57 = arith.constant 0.000000e+00 : f32
    %169 = vector.broadcast %cst_57 : f32 to vector<8x1xf32>
    %170 = arith.cmpf ogt, %168, %169 : vector<8x1xf32>
    %cst_58 = arith.constant 0.000000e+00 : f32
    %171 = vector.shape_cast %170 : vector<8x1xi1> to vector<8x1xi1>
    %172 = vector.broadcast %171 : vector<8x1xi1> to vector<8x32xi1>
    %173 = vector.broadcast %cst_58 : f32 to vector<8x32xf32>
    %174 = arith.select %172, %167, %173 : vector<8x32xi1>, vector<8x32xf32>
    %c32_59 = arith.constant 32 : index
    %c0_60 = arith.constant 0 : index
    %175 = vector.load %arg16[%c32_59, %c0_60] : memref<144x32xf32, #tpu.memory_space<vmem>>, vector<8x32xf32>
    tpu.vector_store %arg16[%c32_59, %c0_60], %174 {strides = array<i32>} : memref<144x32xf32, #tpu.memory_space<vmem>>, vector<8x32xf32>,
    %176 = vector.shape_cast %170 : vector<8x1xi1> to vector<8x1xi1>
    %177 = vector.broadcast %176 : vector<8x1xi1> to vector<8x32xi1>
    %178 = arith.select %177, %167, %144 : vector<8x32xi1>, vector<8x32xf32>
    %179 = vector.shape_cast %170 : vector<8x1xi1> to vector<8x1xi1>
    %180 = vector.broadcast %179 : vector<8x1xi1> to vector<8x32xi1>
    %181 = arith.select %180, %165, %147 : vector<8x32xi1>, vector<8x32xf32>
    %c40 = arith.constant 40 : index
    %c0_61 = arith.constant 0 : index
    %182 = vector.load %arg17[%c40, %c0_61] : memref<144x128xf32, #tpu.memory_space<vmem>>, vector<8x128xf32>
    %183 = arith.truncf %178 : vector<8x32xf32> to vector<8x32xbf16>
    %cst_62 = arith.constant dense<0.000000e+00> : vector<8x128xf32>
    %184 = tpu.matmul %183, %7, %cst_62 {dimension_numbers = #tpu.dot_dimension_numbers<[1], [0], [0], [1], [0, 0, 1, 1], [], []>} : vector<8x32xbf16>, vector<32x128xbf16>, vector<8x128xf32> -> vector<8x128xf32>
    %185 = arith.addf %182, %184 : vector<8x128xf32>
    %186 = vector.extract_strided_slice %185 {offsets = [0, 0], sizes = [8, 96], strides = [1, 1]} : vector<8x128xf32> to vector<8x96xf32>
    %187 = arith.negf %186 : vector<8x96xf32>
    %188 = math.exp %187 : vector<8x96xf32>
    %cst_63 = arith.constant 1.000000e+00 : f32
    %189 = vector.broadcast %cst_63 : f32 to vector<8x96xf32>
    %190 = arith.addf %189, %188 : vector<8x96xf32>
    %191 = arith.divf %189, %190 : vector<8x96xf32>
    %192 = vector.extract_strided_slice %191 {offsets = [0, 0], sizes = [8, 32], strides = [1, 1]} : vector<8x96xf32> to vector<8x32xf32>
    %193 = vector.extract_strided_slice %191 {offsets = [0, 32], sizes = [8, 32], strides = [1, 1]} : vector<8x96xf32> to vector<8x32xf32>
    %194 = vector.extract_strided_slice %191 {offsets = [0, 64], sizes = [8, 32], strides = [1, 1]} : vector<8x96xf32> to vector<8x32xf32>
    %195 = vector.extract_strided_slice %185 {offsets = [0, 96], sizes = [8, 32], strides = [1, 1]} : vector<8x128xf32> to vector<8x32xf32>
    %196 = math.tanh %195 : vector<8x32xf32>
    %197 = arith.mulf %193, %181 : vector<8x32xf32>
    %198 = arith.mulf %192, %196 : vector<8x32xf32>
    %199 = arith.addf %197, %198 : vector<8x32xf32>
    %200 = math.tanh %199 : vector<8x32xf32>
    %201 = arith.mulf %194, %200 : vector<8x32xf32>
    %c40_64 = arith.constant 40 : index
    %c0_65 = arith.constant 0 : index
    %202 = vector.load %arg0[%c40_64, %c0_65] : memref<144x1xf32, #tpu.memory_space<vmem>>, vector<8x1xf32>
    %cst_66 = arith.constant 0.000000e+00 : f32
    %203 = vector.broadcast %cst_66 : f32 to vector<8x1xf32>
    %204 = arith.cmpf ogt, %202, %203 : vector<8x1xf32>
    %cst_67 = arith.constant 0.000000e+00 : f32
    %205 = vector.shape_cast %204 : vector<8x1xi1> to vector<8x1xi1>
    %206 = vector.broadcast %205 : vector<8x1xi1> to vector<8x32xi1>
    %207 = vector.broadcast %cst_67 : f32 to vector<8x32xf32>
    %208 = arith.select %206, %201, %207 : vector<8x32xi1>, vector<8x32xf32>
    %c40_68 = arith.constant 40 : index
    %c0_69 = arith.constant 0 : index
    %209 = vector.load %arg16[%c40_68, %c0_69] : memref<144x32xf32, #tpu.memory_space<vmem>>, vector<8x32xf32>
    tpu.vector_store %arg16[%c40_68, %c0_69], %208 {strides = array<i32>} : memref<144x32xf32, #tpu.memory_space<vmem>>, vector<8x32xf32>,
    %210 = vector.shape_cast %204 : vector<8x1xi1> to vector<8x1xi1>
    %211 = vector.broadcast %210 : vector<8x1xi1> to vector<8x32xi1>
    %212 = arith.select %211, %201, %178 : vector<8x32xi1>, vector<8x32xf32>
    %213 = vector.shape_cast %204 : vector<8x1xi1> to vector<8x1xi1>
    %214 = vector.broadcast %213 : vector<8x1xi1> to vector<8x32xi1>
    %215 = arith.select %214, %199, %181 : vector<8x32xi1>, vector<8x32xf32>
    %c48 = arith.constant 48 : index
    %c0_70 = arith.constant 0 : index
    %216 = vector.load %arg17[%c48, %c0_70] : memref<144x128xf32, #tpu.memory_space<vmem>>, vector<8x128xf32>
    %217 = arith.truncf %212 : vector<8x32xf32> to vector<8x32xbf16>
    %cst_71 = arith.constant dense<0.000000e+00> : vector<8x128xf32>
    %218 = tpu.matmul %217, %7, %cst_71 {dimension_numbers = #tpu.dot_dimension_numbers<[1], [0], [0], [1], [0, 0, 1, 1], [], []>} : vector<8x32xbf16>, vector<32x128xbf16>, vector<8x128xf32> -> vector<8x128xf32>
    %219 = arith.addf %216, %218 : vector<8x128xf32>
    %220 = vector.extract_strided_slice %219 {offsets = [0, 0], sizes = [8, 96], strides = [1, 1]} : vector<8x128xf32> to vector<8x96xf32>
    %221 = arith.negf %220 : vector<8x96xf32>
    %222 = math.exp %221 : vector<8x96xf32>
    %cst_72 = arith.constant 1.000000e+00 : f32
    %223 = vector.broadcast %cst_72 : f32 to vector<8x96xf32>
    %224 = arith.addf %223, %222 : vector<8x96xf32>
    %225 = arith.divf %223, %224 : vector<8x96xf32>
    %226 = vector.extract_strided_slice %225 {offsets = [0, 0], sizes = [8, 32], strides = [1, 1]} : vector<8x96xf32> to vector<8x32xf32>
    %227 = vector.extract_strided_slice %225 {offsets = [0, 32], sizes = [8, 32], strides = [1, 1]} : vector<8x96xf32> to vector<8x32xf32>
    %228 = vector.extract_strided_slice %225 {offsets = [0, 64], sizes = [8, 32], strides = [1, 1]} : vector<8x96xf32> to vector<8x32xf32>
    %229 = vector.extract_strided_slice %219 {offsets = [0, 96], sizes = [8, 32], strides = [1, 1]} : vector<8x128xf32> to vector<8x32xf32>
    %230 = math.tanh %229 : vector<8x32xf32>
    %231 = arith.mulf %227, %215 : vector<8x32xf32>
    %232 = arith.mulf %226, %230 : vector<8x32xf32>
    %233 = arith.addf %231, %232 : vector<8x32xf32>
    %234 = math.tanh %233 : vector<8x32xf32>
    %235 = arith.mulf %228, %234 : vector<8x32xf32>
    %c48_73 = arith.constant 48 : index
    %c0_74 = arith.constant 0 : index
    %236 = vector.load %arg0[%c48_73, %c0_74] : memref<144x1xf32, #tpu.memory_space<vmem>>, vector<8x1xf32>
    %cst_75 = arith.constant 0.000000e+00 : f32
    %237 = vector.broadcast %cst_75 : f32 to vector<8x1xf32>
    %238 = arith.cmpf ogt, %236, %237 : vector<8x1xf32>
    %cst_76 = arith.constant 0.000000e+00 : f32
    %239 = vector.shape_cast %238 : vector<8x1xi1> to vector<8x1xi1>
    %240 = vector.broadcast %239 : vector<8x1xi1> to vector<8x32xi1>
    %241 = vector.broadcast %cst_76 : f32 to vector<8x32xf32>
    %242 = arith.select %240, %235, %241 : vector<8x32xi1>, vector<8x32xf32>
    %c48_77 = arith.constant 48 : index
    %c0_78 = arith.constant 0 : index
    %243 = vector.load %arg16[%c48_77, %c0_78] : memref<144x32xf32, #tpu.memory_space<vmem>>, vector<8x32xf32>
    tpu.vector_store %arg16[%c48_77, %c0_78], %242 {strides = array<i32>} : memref<144x32xf32, #tpu.memory_space<vmem>>, vector<8x32xf32>,
    %244 = vector.shape_cast %238 : vector<8x1xi1> to vector<8x1xi1>
    %245 = vector.broadcast %244 : vector<8x1xi1> to vector<8x32xi1>
    %246 = arith.select %245, %235, %212 : vector<8x32xi1>, vector<8x32xf32>
    %247 = vector.shape_cast %238 : vector<8x1xi1> to vector<8x1xi1>
    %248 = vector.broadcast %247 : vector<8x1xi1> to vector<8x32xi1>
    %249 = arith.select %248, %233, %215 : vector<8x32xi1>, vector<8x32xf32>
    %c56 = arith.constant 56 : index
    %c0_79 = arith.constant 0 : index
    %250 = vector.load %arg17[%c56, %c0_79] : memref<144x128xf32, #tpu.memory_space<vmem>>, vector<8x128xf32>
    %251 = arith.truncf %246 : vector<8x32xf32> to vector<8x32xbf16>
    %cst_80 = arith.constant dense<0.000000e+00> : vector<8x128xf32>
    %252 = tpu.matmul %251, %7, %cst_80 {dimension_numbers = #tpu.dot_dimension_numbers<[1], [0], [0], [1], [0, 0, 1, 1], [], []>} : vector<8x32xbf16>, vector<32x128xbf16>, vector<8x128xf32> -> vector<8x128xf32>
    %253 = arith.addf %250, %252 : vector<8x128xf32>
    %254 = vector.extract_strided_slice %253 {offsets = [0, 0], sizes = [8, 96], strides = [1, 1]} : vector<8x128xf32> to vector<8x96xf32>
    %255 = arith.negf %254 : vector<8x96xf32>
    %256 = math.exp %255 : vector<8x96xf32>
    %cst_81 = arith.constant 1.000000e+00 : f32
    %257 = vector.broadcast %cst_81 : f32 to vector<8x96xf32>
    %258 = arith.addf %257, %256 : vector<8x96xf32>
    %259 = arith.divf %257, %258 : vector<8x96xf32>
    %260 = vector.extract_strided_slice %259 {offsets = [0, 0], sizes = [8, 32], strides = [1, 1]} : vector<8x96xf32> to vector<8x32xf32>
    %261 = vector.extract_strided_slice %259 {offsets = [0, 32], sizes = [8, 32], strides = [1, 1]} : vector<8x96xf32> to vector<8x32xf32>
    %262 = vector.extract_strided_slice %259 {offsets = [0, 64], sizes = [8, 32], strides = [1, 1]} : vector<8x96xf32> to vector<8x32xf32>
    %263 = vector.extract_strided_slice %253 {offsets = [0, 96], sizes = [8, 32], strides = [1, 1]} : vector<8x128xf32> to vector<8x32xf32>
    %264 = math.tanh %263 : vector<8x32xf32>
    %265 = arith.mulf %261, %249 : vector<8x32xf32>
    %266 = arith.mulf %260, %264 : vector<8x32xf32>
    %267 = arith.addf %265, %266 : vector<8x32xf32>
    %268 = math.tanh %267 : vector<8x32xf32>
    %269 = arith.mulf %262, %268 : vector<8x32xf32>
    %c56_82 = arith.constant 56 : index
    %c0_83 = arith.constant 0 : index
    %270 = vector.load %arg0[%c56_82, %c0_83] : memref<144x1xf32, #tpu.memory_space<vmem>>, vector<8x1xf32>
    %cst_84 = arith.constant 0.000000e+00 : f32
    %271 = vector.broadcast %cst_84 : f32 to vector<8x1xf32>
    %272 = arith.cmpf ogt, %270, %271 : vector<8x1xf32>
    %cst_85 = arith.constant 0.000000e+00 : f32
    %273 = vector.shape_cast %272 : vector<8x1xi1> to vector<8x1xi1>
    %274 = vector.broadcast %273 : vector<8x1xi1> to vector<8x32xi1>
    %275 = vector.broadcast %cst_85 : f32 to vector<8x32xf32>
    %276 = arith.select %274, %269, %275 : vector<8x32xi1>, vector<8x32xf32>
    %c56_86 = arith.constant 56 : index
    %c0_87 = arith.constant 0 : index
    %277 = vector.load %arg16[%c56_86, %c0_87] : memref<144x32xf32, #tpu.memory_space<vmem>>, vector<8x32xf32>
    tpu.vector_store %arg16[%c56_86, %c0_87], %276 {strides = array<i32>} : memref<144x32xf32, #tpu.memory_space<vmem>>, vector<8x32xf32>,
    %278 = vector.shape_cast %272 : vector<8x1xi1> to vector<8x1xi1>
    %279 = vector.broadcast %278 : vector<8x1xi1> to vector<8x32xi1>
    %280 = arith.select %279, %269, %246 : vector<8x32xi1>, vector<8x32xf32>
    %281 = vector.shape_cast %272 : vector<8x1xi1> to vector<8x1xi1>
    %282 = vector.broadcast %281 : vector<8x1xi1> to vector<8x32xi1>
    %283 = arith.select %282, %267, %249 : vector<8x32xi1>, vector<8x32xf32>
    %c64 = arith.constant 64 : index
    %c0_88 = arith.constant 0 : index
    %284 = vector.load %arg17[%c64, %c0_88] : memref<144x128xf32, #tpu.memory_space<vmem>>, vector<8x128xf32>
    %285 = arith.truncf %280 : vector<8x32xf32> to vector<8x32xbf16>
    %cst_89 = arith.constant dense<0.000000e+00> : vector<8x128xf32>
    %286 = tpu.matmul %285, %7, %cst_89 {dimension_numbers = #tpu.dot_dimension_numbers<[1], [0], [0], [1], [0, 0, 1, 1], [], []>} : vector<8x32xbf16>, vector<32x128xbf16>, vector<8x128xf32> -> vector<8x128xf32>
    %287 = arith.addf %284, %286 : vector<8x128xf32>
    %288 = vector.extract_strided_slice %287 {offsets = [0, 0], sizes = [8, 96], strides = [1, 1]} : vector<8x128xf32> to vector<8x96xf32>
    %289 = arith.negf %288 : vector<8x96xf32>
    %290 = math.exp %289 : vector<8x96xf32>
    %cst_90 = arith.constant 1.000000e+00 : f32
    %291 = vector.broadcast %cst_90 : f32 to vector<8x96xf32>
    %292 = arith.addf %291, %290 : vector<8x96xf32>
    %293 = arith.divf %291, %292 : vector<8x96xf32>
    %294 = vector.extract_strided_slice %293 {offsets = [0, 0], sizes = [8, 32], strides = [1, 1]} : vector<8x96xf32> to vector<8x32xf32>
    %295 = vector.extract_strided_slice %293 {offsets = [0, 32], sizes = [8, 32], strides = [1, 1]} : vector<8x96xf32> to vector<8x32xf32>
    %296 = vector.extract_strided_slice %293 {offsets = [0, 64], sizes = [8, 32], strides = [1, 1]} : vector<8x96xf32> to vector<8x32xf32>
    %297 = vector.extract_strided_slice %287 {offsets = [0, 96], sizes = [8, 32], strides = [1, 1]} : vector<8x128xf32> to vector<8x32xf32>
    %298 = math.tanh %297 : vector<8x32xf32>
    %299 = arith.mulf %295, %283 : vector<8x32xf32>
    %300 = arith.mulf %294, %298 : vector<8x32xf32>
    %301 = arith.addf %299, %300 : vector<8x32xf32>
    %302 = math.tanh %301 : vector<8x32xf32>
    %303 = arith.mulf %296, %302 : vector<8x32xf32>
    %c64_91 = arith.constant 64 : index
    %c0_92 = arith.constant 0 : index
    %304 = vector.load %arg0[%c64_91, %c0_92] : memref<144x1xf32, #tpu.memory_space<vmem>>, vector<8x1xf32>
    %cst_93 = arith.constant 0.000000e+00 : f32
    %305 = vector.broadcast %cst_93 : f32 to vector<8x1xf32>
    %306 = arith.cmpf ogt, %304, %305 : vector<8x1xf32>
    %cst_94 = arith.constant 0.000000e+00 : f32
    %307 = vector.shape_cast %306 : vector<8x1xi1> to vector<8x1xi1>
    %308 = vector.broadcast %307 : vector<8x1xi1> to vector<8x32xi1>
    %309 = vector.broadcast %cst_94 : f32 to vector<8x32xf32>
    %310 = arith.select %308, %303, %309 : vector<8x32xi1>, vector<8x32xf32>
    %c64_95 = arith.constant 64 : index
    %c0_96 = arith.constant 0 : index
    %311 = vector.load %arg16[%c64_95, %c0_96] : memref<144x32xf32, #tpu.memory_space<vmem>>, vector<8x32xf32>
    tpu.vector_store %arg16[%c64_95, %c0_96], %310 {strides = array<i32>} : memref<144x32xf32, #tpu.memory_space<vmem>>, vector<8x32xf32>,
    %312 = vector.shape_cast %306 : vector<8x1xi1> to vector<8x1xi1>
    %313 = vector.broadcast %312 : vector<8x1xi1> to vector<8x32xi1>
    %314 = arith.select %313, %303, %280 : vector<8x32xi1>, vector<8x32xf32>
    %315 = vector.shape_cast %306 : vector<8x1xi1> to vector<8x1xi1>
    %316 = vector.broadcast %315 : vector<8x1xi1> to vector<8x32xi1>
    %317 = arith.select %316, %301, %283 : vector<8x32xi1>, vector<8x32xf32>
    %c72 = arith.constant 72 : index
    %c0_97 = arith.constant 0 : index
    %318 = vector.load %arg17[%c72, %c0_97] : memref<144x128xf32, #tpu.memory_space<vmem>>, vector<8x128xf32>
    %319 = arith.truncf %314 : vector<8x32xf32> to vector<8x32xbf16>
    %cst_98 = arith.constant dense<0.000000e+00> : vector<8x128xf32>
    %320 = tpu.matmul %319, %7, %cst_98 {dimension_numbers = #tpu.dot_dimension_numbers<[1], [0], [0], [1], [0, 0, 1, 1], [], []>} : vector<8x32xbf16>, vector<32x128xbf16>, vector<8x128xf32> -> vector<8x128xf32>
    %321 = arith.addf %318, %320 : vector<8x128xf32>
    %322 = vector.extract_strided_slice %321 {offsets = [0, 0], sizes = [8, 96], strides = [1, 1]} : vector<8x128xf32> to vector<8x96xf32>
    %323 = arith.negf %322 : vector<8x96xf32>
    %324 = math.exp %323 : vector<8x96xf32>
    %cst_99 = arith.constant 1.000000e+00 : f32
    %325 = vector.broadcast %cst_99 : f32 to vector<8x96xf32>
    %326 = arith.addf %325, %324 : vector<8x96xf32>
    %327 = arith.divf %325, %326 : vector<8x96xf32>
    %328 = vector.extract_strided_slice %327 {offsets = [0, 0], sizes = [8, 32], strides = [1, 1]} : vector<8x96xf32> to vector<8x32xf32>
    %329 = vector.extract_strided_slice %327 {offsets = [0, 32], sizes = [8, 32], strides = [1, 1]} : vector<8x96xf32> to vector<8x32xf32>
    %330 = vector.extract_strided_slice %327 {offsets = [0, 64], sizes = [8, 32], strides = [1, 1]} : vector<8x96xf32> to vector<8x32xf32>
    %331 = vector.extract_strided_slice %321 {offsets = [0, 96], sizes = [8, 32], strides = [1, 1]} : vector<8x128xf32> to vector<8x32xf32>
    %332 = math.tanh %331 : vector<8x32xf32>
    %333 = arith.mulf %329, %317 : vector<8x32xf32>
    %334 = arith.mulf %328, %332 : vector<8x32xf32>
    %335 = arith.addf %333, %334 : vector<8x32xf32>
    %336 = math.tanh %335 : vector<8x32xf32>
    %337 = arith.mulf %330, %336 : vector<8x32xf32>
    %c72_100 = arith.constant 72 : index
    %c0_101 = arith.constant 0 : index
    %338 = vector.load %arg0[%c72_100, %c0_101] : memref<144x1xf32, #tpu.memory_space<vmem>>, vector<8x1xf32>
    %cst_102 = arith.constant 0.000000e+00 : f32
    %339 = vector.broadcast %cst_102 : f32 to vector<8x1xf32>
    %340 = arith.cmpf ogt, %338, %339 : vector<8x1xf32>
    %cst_103 = arith.constant 0.000000e+00 : f32
    %341 = vector.shape_cast %340 : vector<8x1xi1> to vector<8x1xi1>
    %342 = vector.broadcast %341 : vector<8x1xi1> to vector<8x32xi1>
    %343 = vector.broadcast %cst_103 : f32 to vector<8x32xf32>
    %344 = arith.select %342, %337, %343 : vector<8x32xi1>, vector<8x32xf32>
    %c72_104 = arith.constant 72 : index
    %c0_105 = arith.constant 0 : index
    %345 = vector.load %arg16[%c72_104, %c0_105] : memref<144x32xf32, #tpu.memory_space<vmem>>, vector<8x32xf32>
    tpu.vector_store %arg16[%c72_104, %c0_105], %344 {strides = array<i32>} : memref<144x32xf32, #tpu.memory_space<vmem>>, vector<8x32xf32>,
    %346 = vector.shape_cast %340 : vector<8x1xi1> to vector<8x1xi1>
    %347 = vector.broadcast %346 : vector<8x1xi1> to vector<8x32xi1>
    %348 = arith.select %347, %337, %314 : vector<8x32xi1>, vector<8x32xf32>
    %349 = vector.shape_cast %340 : vector<8x1xi1> to vector<8x1xi1>
    %350 = vector.broadcast %349 : vector<8x1xi1> to vector<8x32xi1>
    %351 = arith.select %350, %335, %317 : vector<8x32xi1>, vector<8x32xf32>
    %c80 = arith.constant 80 : index
    %c0_106 = arith.constant 0 : index
    %352 = vector.load %arg17[%c80, %c0_106] : memref<144x128xf32, #tpu.memory_space<vmem>>, vector<8x128xf32>
    %353 = arith.truncf %348 : vector<8x32xf32> to vector<8x32xbf16>
    %cst_107 = arith.constant dense<0.000000e+00> : vector<8x128xf32>
    %354 = tpu.matmul %353, %7, %cst_107 {dimension_numbers = #tpu.dot_dimension_numbers<[1], [0], [0], [1], [0, 0, 1, 1], [], []>} : vector<8x32xbf16>, vector<32x128xbf16>, vector<8x128xf32> -> vector<8x128xf32>
    %355 = arith.addf %352, %354 : vector<8x128xf32>
    %356 = vector.extract_strided_slice %355 {offsets = [0, 0], sizes = [8, 96], strides = [1, 1]} : vector<8x128xf32> to vector<8x96xf32>
    %357 = arith.negf %356 : vector<8x96xf32>
    %358 = math.exp %357 : vector<8x96xf32>
    %cst_108 = arith.constant 1.000000e+00 : f32
    %359 = vector.broadcast %cst_108 : f32 to vector<8x96xf32>
    %360 = arith.addf %359, %358 : vector<8x96xf32>
    %361 = arith.divf %359, %360 : vector<8x96xf32>
    %362 = vector.extract_strided_slice %361 {offsets = [0, 0], sizes = [8, 32], strides = [1, 1]} : vector<8x96xf32> to vector<8x32xf32>
    %363 = vector.extract_strided_slice %361 {offsets = [0, 32], sizes = [8, 32], strides = [1, 1]} : vector<8x96xf32> to vector<8x32xf32>
    %364 = vector.extract_strided_slice %361 {offsets = [0, 64], sizes = [8, 32], strides = [1, 1]} : vector<8x96xf32> to vector<8x32xf32>
    %365 = vector.extract_strided_slice %355 {offsets = [0, 96], sizes = [8, 32], strides = [1, 1]} : vector<8x128xf32> to vector<8x32xf32>
    %366 = math.tanh %365 : vector<8x32xf32>
    %367 = arith.mulf %363, %351 : vector<8x32xf32>
    %368 = arith.mulf %362, %366 : vector<8x32xf32>
    %369 = arith.addf %367, %368 : vector<8x32xf32>
    %370 = math.tanh %369 : vector<8x32xf32>
    %371 = arith.mulf %364, %370 : vector<8x32xf32>
    %c80_109 = arith.constant 80 : index
    %c0_110 = arith.constant 0 : index
    %372 = vector.load %arg0[%c80_109, %c0_110] : memref<144x1xf32, #tpu.memory_space<vmem>>, vector<8x1xf32>
    %cst_111 = arith.constant 0.000000e+00 : f32
    %373 = vector.broadcast %cst_111 : f32 to vector<8x1xf32>
    %374 = arith.cmpf ogt, %372, %373 : vector<8x1xf32>
    %cst_112 = arith.constant 0.000000e+00 : f32
    %375 = vector.shape_cast %374 : vector<8x1xi1> to vector<8x1xi1>
    %376 = vector.broadcast %375 : vector<8x1xi1> to vector<8x32xi1>
    %377 = vector.broadcast %cst_112 : f32 to vector<8x32xf32>
    %378 = arith.select %376, %371, %377 : vector<8x32xi1>, vector<8x32xf32>
    %c80_113 = arith.constant 80 : index
    %c0_114 = arith.constant 0 : index
    %379 = vector.load %arg16[%c80_113, %c0_114] : memref<144x32xf32, #tpu.memory_space<vmem>>, vector<8x32xf32>
    tpu.vector_store %arg16[%c80_113, %c0_114], %378 {strides = array<i32>} : memref<144x32xf32, #tpu.memory_space<vmem>>, vector<8x32xf32>,
    %380 = vector.shape_cast %374 : vector<8x1xi1> to vector<8x1xi1>
    %381 = vector.broadcast %380 : vector<8x1xi1> to vector<8x32xi1>
    %382 = arith.select %381, %371, %348 : vector<8x32xi1>, vector<8x32xf32>
    %383 = vector.shape_cast %374 : vector<8x1xi1> to vector<8x1xi1>
    %384 = vector.broadcast %383 : vector<8x1xi1> to vector<8x32xi1>
    %385 = arith.select %384, %369, %351 : vector<8x32xi1>, vector<8x32xf32>
    %c88 = arith.constant 88 : index
    %c0_115 = arith.constant 0 : index
    %386 = vector.load %arg17[%c88, %c0_115] : memref<144x128xf32, #tpu.memory_space<vmem>>, vector<8x128xf32>
    %387 = arith.truncf %382 : vector<8x32xf32> to vector<8x32xbf16>
    %cst_116 = arith.constant dense<0.000000e+00> : vector<8x128xf32>
    %388 = tpu.matmul %387, %7, %cst_116 {dimension_numbers = #tpu.dot_dimension_numbers<[1], [0], [0], [1], [0, 0, 1, 1], [], []>} : vector<8x32xbf16>, vector<32x128xbf16>, vector<8x128xf32> -> vector<8x128xf32>
    %389 = arith.addf %386, %388 : vector<8x128xf32>
    %390 = vector.extract_strided_slice %389 {offsets = [0, 0], sizes = [8, 96], strides = [1, 1]} : vector<8x128xf32> to vector<8x96xf32>
    %391 = arith.negf %390 : vector<8x96xf32>
    %392 = math.exp %391 : vector<8x96xf32>
    %cst_117 = arith.constant 1.000000e+00 : f32
    %393 = vector.broadcast %cst_117 : f32 to vector<8x96xf32>
    %394 = arith.addf %393, %392 : vector<8x96xf32>
    %395 = arith.divf %393, %394 : vector<8x96xf32>
    %396 = vector.extract_strided_slice %395 {offsets = [0, 0], sizes = [8, 32], strides = [1, 1]} : vector<8x96xf32> to vector<8x32xf32>
    %397 = vector.extract_strided_slice %395 {offsets = [0, 32], sizes = [8, 32], strides = [1, 1]} : vector<8x96xf32> to vector<8x32xf32>
    %398 = vector.extract_strided_slice %395 {offsets = [0, 64], sizes = [8, 32], strides = [1, 1]} : vector<8x96xf32> to vector<8x32xf32>
    %399 = vector.extract_strided_slice %389 {offsets = [0, 96], sizes = [8, 32], strides = [1, 1]} : vector<8x128xf32> to vector<8x32xf32>
    %400 = math.tanh %399 : vector<8x32xf32>
    %401 = arith.mulf %397, %385 : vector<8x32xf32>
    %402 = arith.mulf %396, %400 : vector<8x32xf32>
    %403 = arith.addf %401, %402 : vector<8x32xf32>
    %404 = math.tanh %403 : vector<8x32xf32>
    %405 = arith.mulf %398, %404 : vector<8x32xf32>
    %c88_118 = arith.constant 88 : index
    %c0_119 = arith.constant 0 : index
    %406 = vector.load %arg0[%c88_118, %c0_119] : memref<144x1xf32, #tpu.memory_space<vmem>>, vector<8x1xf32>
    %cst_120 = arith.constant 0.000000e+00 : f32
    %407 = vector.broadcast %cst_120 : f32 to vector<8x1xf32>
    %408 = arith.cmpf ogt, %406, %407 : vector<8x1xf32>
    %cst_121 = arith.constant 0.000000e+00 : f32
    %409 = vector.shape_cast %408 : vector<8x1xi1> to vector<8x1xi1>
    %410 = vector.broadcast %409 : vector<8x1xi1> to vector<8x32xi1>
    %411 = vector.broadcast %cst_121 : f32 to vector<8x32xf32>
    %412 = arith.select %410, %405, %411 : vector<8x32xi1>, vector<8x32xf32>
    %c88_122 = arith.constant 88 : index
    %c0_123 = arith.constant 0 : index
    %413 = vector.load %arg16[%c88_122, %c0_123] : memref<144x32xf32, #tpu.memory_space<vmem>>, vector<8x32xf32>
    tpu.vector_store %arg16[%c88_122, %c0_123], %412 {strides = array<i32>} : memref<144x32xf32, #tpu.memory_space<vmem>>, vector<8x32xf32>,
    %414 = vector.shape_cast %408 : vector<8x1xi1> to vector<8x1xi1>
    %415 = vector.broadcast %414 : vector<8x1xi1> to vector<8x32xi1>
    %416 = arith.select %415, %405, %382 : vector<8x32xi1>, vector<8x32xf32>
    %417 = vector.shape_cast %408 : vector<8x1xi1> to vector<8x1xi1>
    %418 = vector.broadcast %417 : vector<8x1xi1> to vector<8x32xi1>
    %419 = arith.select %418, %403, %385 : vector<8x32xi1>, vector<8x32xf32>
    %c96 = arith.constant 96 : index
    %c0_124 = arith.constant 0 : index
    %420 = vector.load %arg17[%c96, %c0_124] : memref<144x128xf32, #tpu.memory_space<vmem>>, vector<8x128xf32>
    %421 = arith.truncf %416 : vector<8x32xf32> to vector<8x32xbf16>
    %cst_125 = arith.constant dense<0.000000e+00> : vector<8x128xf32>
    %422 = tpu.matmul %421, %7, %cst_125 {dimension_numbers = #tpu.dot_dimension_numbers<[1], [0], [0], [1], [0, 0, 1, 1], [], []>} : vector<8x32xbf16>, vector<32x128xbf16>, vector<8x128xf32> -> vector<8x128xf32>
    %423 = arith.addf %420, %422 : vector<8x128xf32>
    %424 = vector.extract_strided_slice %423 {offsets = [0, 0], sizes = [8, 96], strides = [1, 1]} : vector<8x128xf32> to vector<8x96xf32>
    %425 = arith.negf %424 : vector<8x96xf32>
    %426 = math.exp %425 : vector<8x96xf32>
    %cst_126 = arith.constant 1.000000e+00 : f32
    %427 = vector.broadcast %cst_126 : f32 to vector<8x96xf32>
    %428 = arith.addf %427, %426 : vector<8x96xf32>
    %429 = arith.divf %427, %428 : vector<8x96xf32>
    %430 = vector.extract_strided_slice %429 {offsets = [0, 0], sizes = [8, 32], strides = [1, 1]} : vector<8x96xf32> to vector<8x32xf32>
    %431 = vector.extract_strided_slice %429 {offsets = [0, 32], sizes = [8, 32], strides = [1, 1]} : vector<8x96xf32> to vector<8x32xf32>
    %432 = vector.extract_strided_slice %429 {offsets = [0, 64], sizes = [8, 32], strides = [1, 1]} : vector<8x96xf32> to vector<8x32xf32>
    %433 = vector.extract_strided_slice %423 {offsets = [0, 96], sizes = [8, 32], strides = [1, 1]} : vector<8x128xf32> to vector<8x32xf32>
    %434 = math.tanh %433 : vector<8x32xf32>
    %435 = arith.mulf %431, %419 : vector<8x32xf32>
    %436 = arith.mulf %430, %434 : vector<8x32xf32>
    %437 = arith.addf %435, %436 : vector<8x32xf32>
    %438 = math.tanh %437 : vector<8x32xf32>
    %439 = arith.mulf %432, %438 : vector<8x32xf32>
    %c96_127 = arith.constant 96 : index
    %c0_128 = arith.constant 0 : index
    %440 = vector.load %arg0[%c96_127, %c0_128] : memref<144x1xf32, #tpu.memory_space<vmem>>, vector<8x1xf32>
    %cst_129 = arith.constant 0.000000e+00 : f32
    %441 = vector.broadcast %cst_129 : f32 to vector<8x1xf32>
    %442 = arith.cmpf ogt, %440, %441 : vector<8x1xf32>
    %cst_130 = arith.constant 0.000000e+00 : f32
    %443 = vector.shape_cast %442 : vector<8x1xi1> to vector<8x1xi1>
    %444 = vector.broadcast %443 : vector<8x1xi1> to vector<8x32xi1>
    %445 = vector.broadcast %cst_130 : f32 to vector<8x32xf32>
    %446 = arith.select %444, %439, %445 : vector<8x32xi1>, vector<8x32xf32>
    %c96_131 = arith.constant 96 : index
    %c0_132 = arith.constant 0 : index
    %447 = vector.load %arg16[%c96_131, %c0_132] : memref<144x32xf32, #tpu.memory_space<vmem>>, vector<8x32xf32>
    tpu.vector_store %arg16[%c96_131, %c0_132], %446 {strides = array<i32>} : memref<144x32xf32, #tpu.memory_space<vmem>>, vector<8x32xf32>,
    %448 = vector.shape_cast %442 : vector<8x1xi1> to vector<8x1xi1>
    %449 = vector.broadcast %448 : vector<8x1xi1> to vector<8x32xi1>
    %450 = arith.select %449, %439, %416 : vector<8x32xi1>, vector<8x32xf32>
    %451 = vector.shape_cast %442 : vector<8x1xi1> to vector<8x1xi1>
    %452 = vector.broadcast %451 : vector<8x1xi1> to vector<8x32xi1>
    %453 = arith.select %452, %437, %419 : vector<8x32xi1>, vector<8x32xf32>
    %c104 = arith.constant 104 : index
    %c0_133 = arith.constant 0 : index
    %454 = vector.load %arg17[%c104, %c0_133] : memref<144x128xf32, #tpu.memory_space<vmem>>, vector<8x128xf32>
    %455 = arith.truncf %450 : vector<8x32xf32> to vector<8x32xbf16>
    %cst_134 = arith.constant dense<0.000000e+00> : vector<8x128xf32>
    %456 = tpu.matmul %455, %7, %cst_134 {dimension_numbers = #tpu.dot_dimension_numbers<[1], [0], [0], [1], [0, 0, 1, 1], [], []>} : vector<8x32xbf16>, vector<32x128xbf16>, vector<8x128xf32> -> vector<8x128xf32>
    %457 = arith.addf %454, %456 : vector<8x128xf32>
    %458 = vector.extract_strided_slice %457 {offsets = [0, 0], sizes = [8, 96], strides = [1, 1]} : vector<8x128xf32> to vector<8x96xf32>
    %459 = arith.negf %458 : vector<8x96xf32>
    %460 = math.exp %459 : vector<8x96xf32>
    %cst_135 = arith.constant 1.000000e+00 : f32
    %461 = vector.broadcast %cst_135 : f32 to vector<8x96xf32>
    %462 = arith.addf %461, %460 : vector<8x96xf32>
    %463 = arith.divf %461, %462 : vector<8x96xf32>
    %464 = vector.extract_strided_slice %463 {offsets = [0, 0], sizes = [8, 32], strides = [1, 1]} : vector<8x96xf32> to vector<8x32xf32>
    %465 = vector.extract_strided_slice %463 {offsets = [0, 32], sizes = [8, 32], strides = [1, 1]} : vector<8x96xf32> to vector<8x32xf32>
    %466 = vector.extract_strided_slice %463 {offsets = [0, 64], sizes = [8, 32], strides = [1, 1]} : vector<8x96xf32> to vector<8x32xf32>
    %467 = vector.extract_strided_slice %457 {offsets = [0, 96], sizes = [8, 32], strides = [1, 1]} : vector<8x128xf32> to vector<8x32xf32>
    %468 = math.tanh %467 : vector<8x32xf32>
    %469 = arith.mulf %465, %453 : vector<8x32xf32>
    %470 = arith.mulf %464, %468 : vector<8x32xf32>
    %471 = arith.addf %469, %470 : vector<8x32xf32>
    %472 = math.tanh %471 : vector<8x32xf32>
    %473 = arith.mulf %466, %472 : vector<8x32xf32>
    %c104_136 = arith.constant 104 : index
    %c0_137 = arith.constant 0 : index
    %474 = vector.load %arg0[%c104_136, %c0_137] : memref<144x1xf32, #tpu.memory_space<vmem>>, vector<8x1xf32>
    %cst_138 = arith.constant 0.000000e+00 : f32
    %475 = vector.broadcast %cst_138 : f32 to vector<8x1xf32>
    %476 = arith.cmpf ogt, %474, %475 : vector<8x1xf32>
    %cst_139 = arith.constant 0.000000e+00 : f32
    %477 = vector.shape_cast %476 : vector<8x1xi1> to vector<8x1xi1>
    %478 = vector.broadcast %477 : vector<8x1xi1> to vector<8x32xi1>
    %479 = vector.broadcast %cst_139 : f32 to vector<8x32xf32>
    %480 = arith.select %478, %473, %479 : vector<8x32xi1>, vector<8x32xf32>
    %c104_140 = arith.constant 104 : index
    %c0_141 = arith.constant 0 : index
    %481 = vector.load %arg16[%c104_140, %c0_141] : memref<144x32xf32, #tpu.memory_space<vmem>>, vector<8x32xf32>
    tpu.vector_store %arg16[%c104_140, %c0_141], %480 {strides = array<i32>} : memref<144x32xf32, #tpu.memory_space<vmem>>, vector<8x32xf32>,
    %482 = vector.shape_cast %476 : vector<8x1xi1> to vector<8x1xi1>
    %483 = vector.broadcast %482 : vector<8x1xi1> to vector<8x32xi1>
    %484 = arith.select %483, %473, %450 : vector<8x32xi1>, vector<8x32xf32>
    %485 = vector.shape_cast %476 : vector<8x1xi1> to vector<8x1xi1>
    %486 = vector.broadcast %485 : vector<8x1xi1> to vector<8x32xi1>
    %487 = arith.select %486, %471, %453 : vector<8x32xi1>, vector<8x32xf32>
    %c112 = arith.constant 112 : index
    %c0_142 = arith.constant 0 : index
    %488 = vector.load %arg17[%c112, %c0_142] : memref<144x128xf32, #tpu.memory_space<vmem>>, vector<8x128xf32>
    %489 = arith.truncf %484 : vector<8x32xf32> to vector<8x32xbf16>
    %cst_143 = arith.constant dense<0.000000e+00> : vector<8x128xf32>
    %490 = tpu.matmul %489, %7, %cst_143 {dimension_numbers = #tpu.dot_dimension_numbers<[1], [0], [0], [1], [0, 0, 1, 1], [], []>} : vector<8x32xbf16>, vector<32x128xbf16>, vector<8x128xf32> -> vector<8x128xf32>
    %491 = arith.addf %488, %490 : vector<8x128xf32>
    %492 = vector.extract_strided_slice %491 {offsets = [0, 0], sizes = [8, 96], strides = [1, 1]} : vector<8x128xf32> to vector<8x96xf32>
    %493 = arith.negf %492 : vector<8x96xf32>
    %494 = math.exp %493 : vector<8x96xf32>
    %cst_144 = arith.constant 1.000000e+00 : f32
    %495 = vector.broadcast %cst_144 : f32 to vector<8x96xf32>
    %496 = arith.addf %495, %494 : vector<8x96xf32>
    %497 = arith.divf %495, %496 : vector<8x96xf32>
    %498 = vector.extract_strided_slice %497 {offsets = [0, 0], sizes = [8, 32], strides = [1, 1]} : vector<8x96xf32> to vector<8x32xf32>
    %499 = vector.extract_strided_slice %497 {offsets = [0, 32], sizes = [8, 32], strides = [1, 1]} : vector<8x96xf32> to vector<8x32xf32>
    %500 = vector.extract_strided_slice %497 {offsets = [0, 64], sizes = [8, 32], strides = [1, 1]} : vector<8x96xf32> to vector<8x32xf32>
    %501 = vector.extract_strided_slice %491 {offsets = [0, 96], sizes = [8, 32], strides = [1, 1]} : vector<8x128xf32> to vector<8x32xf32>
    %502 = math.tanh %501 : vector<8x32xf32>
    %503 = arith.mulf %499, %487 : vector<8x32xf32>
    %504 = arith.mulf %498, %502 : vector<8x32xf32>
    %505 = arith.addf %503, %504 : vector<8x32xf32>
    %506 = math.tanh %505 : vector<8x32xf32>
    %507 = arith.mulf %500, %506 : vector<8x32xf32>
    %c112_145 = arith.constant 112 : index
    %c0_146 = arith.constant 0 : index
    %508 = vector.load %arg0[%c112_145, %c0_146] : memref<144x1xf32, #tpu.memory_space<vmem>>, vector<8x1xf32>
    %cst_147 = arith.constant 0.000000e+00 : f32
    %509 = vector.broadcast %cst_147 : f32 to vector<8x1xf32>
    %510 = arith.cmpf ogt, %508, %509 : vector<8x1xf32>
    %cst_148 = arith.constant 0.000000e+00 : f32
    %511 = vector.shape_cast %510 : vector<8x1xi1> to vector<8x1xi1>
    %512 = vector.broadcast %511 : vector<8x1xi1> to vector<8x32xi1>
    %513 = vector.broadcast %cst_148 : f32 to vector<8x32xf32>
    %514 = arith.select %512, %507, %513 : vector<8x32xi1>, vector<8x32xf32>
    %c112_149 = arith.constant 112 : index
    %c0_150 = arith.constant 0 : index
    %515 = vector.load %arg16[%c112_149, %c0_150] : memref<144x32xf32, #tpu.memory_space<vmem>>, vector<8x32xf32>
    tpu.vector_store %arg16[%c112_149, %c0_150], %514 {strides = array<i32>} : memref<144x32xf32, #tpu.memory_space<vmem>>, vector<8x32xf32>,
    %516 = vector.shape_cast %510 : vector<8x1xi1> to vector<8x1xi1>
    %517 = vector.broadcast %516 : vector<8x1xi1> to vector<8x32xi1>
    %518 = arith.select %517, %507, %484 : vector<8x32xi1>, vector<8x32xf32>
    %519 = vector.shape_cast %510 : vector<8x1xi1> to vector<8x1xi1>
    %520 = vector.broadcast %519 : vector<8x1xi1> to vector<8x32xi1>
    %521 = arith.select %520, %505, %487 : vector<8x32xi1>, vector<8x32xf32>
    %c120 = arith.constant 120 : index
    %c0_151 = arith.constant 0 : index
    %522 = vector.load %arg17[%c120, %c0_151] : memref<144x128xf32, #tpu.memory_space<vmem>>, vector<8x128xf32>
    %523 = arith.truncf %518 : vector<8x32xf32> to vector<8x32xbf16>
    %cst_152 = arith.constant dense<0.000000e+00> : vector<8x128xf32>
    %524 = tpu.matmul %523, %7, %cst_152 {dimension_numbers = #tpu.dot_dimension_numbers<[1], [0], [0], [1], [0, 0, 1, 1], [], []>} : vector<8x32xbf16>, vector<32x128xbf16>, vector<8x128xf32> -> vector<8x128xf32>
    %525 = arith.addf %522, %524 : vector<8x128xf32>
    %526 = vector.extract_strided_slice %525 {offsets = [0, 0], sizes = [8, 96], strides = [1, 1]} : vector<8x128xf32> to vector<8x96xf32>
    %527 = arith.negf %526 : vector<8x96xf32>
    %528 = math.exp %527 : vector<8x96xf32>
    %cst_153 = arith.constant 1.000000e+00 : f32
    %529 = vector.broadcast %cst_153 : f32 to vector<8x96xf32>
    %530 = arith.addf %529, %528 : vector<8x96xf32>
    %531 = arith.divf %529, %530 : vector<8x96xf32>
    %532 = vector.extract_strided_slice %531 {offsets = [0, 0], sizes = [8, 32], strides = [1, 1]} : vector<8x96xf32> to vector<8x32xf32>
    %533 = vector.extract_strided_slice %531 {offsets = [0, 32], sizes = [8, 32], strides = [1, 1]} : vector<8x96xf32> to vector<8x32xf32>
    %534 = vector.extract_strided_slice %531 {offsets = [0, 64], sizes = [8, 32], strides = [1, 1]} : vector<8x96xf32> to vector<8x32xf32>
    %535 = vector.extract_strided_slice %525 {offsets = [0, 96], sizes = [8, 32], strides = [1, 1]} : vector<8x128xf32> to vector<8x32xf32>
    %536 = math.tanh %535 : vector<8x32xf32>
    %537 = arith.mulf %533, %521 : vector<8x32xf32>
    %538 = arith.mulf %532, %536 : vector<8x32xf32>
    %539 = arith.addf %537, %538 : vector<8x32xf32>
    %540 = math.tanh %539 : vector<8x32xf32>
    %541 = arith.mulf %534, %540 : vector<8x32xf32>
    %c120_154 = arith.constant 120 : index
    %c0_155 = arith.constant 0 : index
    %542 = vector.load %arg0[%c120_154, %c0_155] : memref<144x1xf32, #tpu.memory_space<vmem>>, vector<8x1xf32>
    %cst_156 = arith.constant 0.000000e+00 : f32
    %543 = vector.broadcast %cst_156 : f32 to vector<8x1xf32>
    %544 = arith.cmpf ogt, %542, %543 : vector<8x1xf32>
    %cst_157 = arith.constant 0.000000e+00 : f32
    %545 = vector.shape_cast %544 : vector<8x1xi1> to vector<8x1xi1>
    %546 = vector.broadcast %545 : vector<8x1xi1> to vector<8x32xi1>
    %547 = vector.broadcast %cst_157 : f32 to vector<8x32xf32>
    %548 = arith.select %546, %541, %547 : vector<8x32xi1>, vector<8x32xf32>
    %c120_158 = arith.constant 120 : index
    %c0_159 = arith.constant 0 : index
    %549 = vector.load %arg16[%c120_158, %c0_159] : memref<144x32xf32, #tpu.memory_space<vmem>>, vector<8x32xf32>
    tpu.vector_store %arg16[%c120_158, %c0_159], %548 {strides = array<i32>} : memref<144x32xf32, #tpu.memory_space<vmem>>, vector<8x32xf32>,
    %550 = vector.shape_cast %544 : vector<8x1xi1> to vector<8x1xi1>
    %551 = vector.broadcast %550 : vector<8x1xi1> to vector<8x32xi1>
    %552 = arith.select %551, %541, %518 : vector<8x32xi1>, vector<8x32xf32>
    %553 = vector.shape_cast %544 : vector<8x1xi1> to vector<8x1xi1>
    %554 = vector.broadcast %553 : vector<8x1xi1> to vector<8x32xi1>
    %555 = arith.select %554, %539, %521 : vector<8x32xi1>, vector<8x32xf32>
    %c128 = arith.constant 128 : index
    %c0_160 = arith.constant 0 : index
    %556 = vector.load %arg17[%c128, %c0_160] : memref<144x128xf32, #tpu.memory_space<vmem>>, vector<8x128xf32>
    %557 = arith.truncf %552 : vector<8x32xf32> to vector<8x32xbf16>
    %cst_161 = arith.constant dense<0.000000e+00> : vector<8x128xf32>
    %558 = tpu.matmul %557, %7, %cst_161 {dimension_numbers = #tpu.dot_dimension_numbers<[1], [0], [0], [1], [0, 0, 1, 1], [], []>} : vector<8x32xbf16>, vector<32x128xbf16>, vector<8x128xf32> -> vector<8x128xf32>
    %559 = arith.addf %556, %558 : vector<8x128xf32>
    %560 = vector.extract_strided_slice %559 {offsets = [0, 0], sizes = [8, 96], strides = [1, 1]} : vector<8x128xf32> to vector<8x96xf32>
    %561 = arith.negf %560 : vector<8x96xf32>
    %562 = math.exp %561 : vector<8x96xf32>
    %cst_162 = arith.constant 1.000000e+00 : f32
    %563 = vector.broadcast %cst_162 : f32 to vector<8x96xf32>
    %564 = arith.addf %563, %562 : vector<8x96xf32>
    %565 = arith.divf %563, %564 : vector<8x96xf32>
    %566 = vector.extract_strided_slice %565 {offsets = [0, 0], sizes = [8, 32], strides = [1, 1]} : vector<8x96xf32> to vector<8x32xf32>
    %567 = vector.extract_strided_slice %565 {offsets = [0, 32], sizes = [8, 32], strides = [1, 1]} : vector<8x96xf32> to vector<8x32xf32>
    %568 = vector.extract_strided_slice %565 {offsets = [0, 64], sizes = [8, 32], strides = [1, 1]} : vector<8x96xf32> to vector<8x32xf32>
    %569 = vector.extract_strided_slice %559 {offsets = [0, 96], sizes = [8, 32], strides = [1, 1]} : vector<8x128xf32> to vector<8x32xf32>
    %570 = math.tanh %569 : vector<8x32xf32>
    %571 = arith.mulf %567, %555 : vector<8x32xf32>
    %572 = arith.mulf %566, %570 : vector<8x32xf32>
    %573 = arith.addf %571, %572 : vector<8x32xf32>
    %574 = math.tanh %573 : vector<8x32xf32>
    %575 = arith.mulf %568, %574 : vector<8x32xf32>
    %c128_163 = arith.constant 128 : index
    %c0_164 = arith.constant 0 : index
    %576 = vector.load %arg0[%c128_163, %c0_164] : memref<144x1xf32, #tpu.memory_space<vmem>>, vector<8x1xf32>
    %cst_165 = arith.constant 0.000000e+00 : f32
    %577 = vector.broadcast %cst_165 : f32 to vector<8x1xf32>
    %578 = arith.cmpf ogt, %576, %577 : vector<8x1xf32>
    %cst_166 = arith.constant 0.000000e+00 : f32
    %579 = vector.shape_cast %578 : vector<8x1xi1> to vector<8x1xi1>
    %580 = vector.broadcast %579 : vector<8x1xi1> to vector<8x32xi1>
    %581 = vector.broadcast %cst_166 : f32 to vector<8x32xf32>
    %582 = arith.select %580, %575, %581 : vector<8x32xi1>, vector<8x32xf32>
    %c128_167 = arith.constant 128 : index
    %c0_168 = arith.constant 0 : index
    %583 = vector.load %arg16[%c128_167, %c0_168] : memref<144x32xf32, #tpu.memory_space<vmem>>, vector<8x32xf32>
    tpu.vector_store %arg16[%c128_167, %c0_168], %582 {strides = array<i32>} : memref<144x32xf32, #tpu.memory_space<vmem>>, vector<8x32xf32>,
    %584 = vector.shape_cast %578 : vector<8x1xi1> to vector<8x1xi1>
    %585 = vector.broadcast %584 : vector<8x1xi1> to vector<8x32xi1>
    %586 = arith.select %585, %575, %552 : vector<8x32xi1>, vector<8x32xf32>
    %587 = vector.shape_cast %578 : vector<8x1xi1> to vector<8x1xi1>
    %588 = vector.broadcast %587 : vector<8x1xi1> to vector<8x32xi1>
    %589 = arith.select %588, %573, %555 : vector<8x32xi1>, vector<8x32xf32>
    %c136 = arith.constant 136 : index
    %c0_169 = arith.constant 0 : index
    %590 = vector.load %arg17[%c136, %c0_169] : memref<144x128xf32, #tpu.memory_space<vmem>>, vector<8x128xf32>
    %591 = arith.truncf %586 : vector<8x32xf32> to vector<8x32xbf16>
    %cst_170 = arith.constant dense<0.000000e+00> : vector<8x128xf32>
    %592 = tpu.matmul %591, %7, %cst_170 {dimension_numbers = #tpu.dot_dimension_numbers<[1], [0], [0], [1], [0, 0, 1, 1], [], []>} : vector<8x32xbf16>, vector<32x128xbf16>, vector<8x128xf32> -> vector<8x128xf32>
    %593 = arith.addf %590, %592 : vector<8x128xf32>
    %594 = vector.extract_strided_slice %593 {offsets = [0, 0], sizes = [8, 96], strides = [1, 1]} : vector<8x128xf32> to vector<8x96xf32>
    %595 = arith.negf %594 : vector<8x96xf32>
    %596 = math.exp %595 : vector<8x96xf32>
    %cst_171 = arith.constant 1.000000e+00 : f32
    %597 = vector.broadcast %cst_171 : f32 to vector<8x96xf32>
    %598 = arith.addf %597, %596 : vector<8x96xf32>
    %599 = arith.divf %597, %598 : vector<8x96xf32>
    %600 = vector.extract_strided_slice %599 {offsets = [0, 0], sizes = [8, 32], strides = [1, 1]} : vector<8x96xf32> to vector<8x32xf32>
    %601 = vector.extract_strided_slice %599 {offsets = [0, 32], sizes = [8, 32], strides = [1, 1]} : vector<8x96xf32> to vector<8x32xf32>
    %602 = vector.extract_strided_slice %599 {offsets = [0, 64], sizes = [8, 32], strides = [1, 1]} : vector<8x96xf32> to vector<8x32xf32>
    %603 = vector.extract_strided_slice %593 {offsets = [0, 96], sizes = [8, 32], strides = [1, 1]} : vector<8x128xf32> to vector<8x32xf32>
    %604 = math.tanh %603 : vector<8x32xf32>
    %605 = arith.mulf %601, %589 : vector<8x32xf32>
    %606 = arith.mulf %600, %604 : vector<8x32xf32>
    %607 = arith.addf %605, %606 : vector<8x32xf32>
    %608 = math.tanh %607 : vector<8x32xf32>
    %609 = arith.mulf %602, %608 : vector<8x32xf32>
    %c136_172 = arith.constant 136 : index
    %c0_173 = arith.constant 0 : index
    %610 = vector.load %arg0[%c136_172, %c0_173] : memref<144x1xf32, #tpu.memory_space<vmem>>, vector<8x1xf32>
    %cst_174 = arith.constant 0.000000e+00 : f32
    %611 = vector.broadcast %cst_174 : f32 to vector<8x1xf32>
    %612 = arith.cmpf ogt, %610, %611 : vector<8x1xf32>
    %cst_175 = arith.constant 0.000000e+00 : f32
    %613 = vector.shape_cast %612 : vector<8x1xi1> to vector<8x1xi1>
    %614 = vector.broadcast %613 : vector<8x1xi1> to vector<8x32xi1>
    %615 = vector.broadcast %cst_175 : f32 to vector<8x32xf32>
    %616 = arith.select %614, %609, %615 : vector<8x32xi1>, vector<8x32xf32>
    %c136_176 = arith.constant 136 : index
    %c0_177 = arith.constant 0 : index
    %617 = vector.load %arg16[%c136_176, %c0_177] : memref<144x32xf32, #tpu.memory_space<vmem>>, vector<8x32xf32>
    tpu.vector_store %arg16[%c136_176, %c0_177], %616 {strides = array<i32>} : memref<144x32xf32, #tpu.memory_space<vmem>>, vector<8x32xf32>,
    %c0_178 = arith.constant 0 : index
    %c0_179 = arith.constant 0 : index
    %618 = vector.load %arg16[%c0_178, %c0_179] : memref<144x32xf32, #tpu.memory_space<vmem>>, vector<144x32xf32>
    %619 = arith.truncf %618 : vector<144x32xf32> to vector<144x32xbf16>
    %c0_180 = arith.constant 0 : index
    %c0_181 = arith.constant 0 : index
    %620 = vector.load %arg7[%c0_180, %c0_181] : memref<32x128xbf16, #tpu.memory_space<vmem>>, vector<32x128xbf16>
    %cst_182 = arith.constant dense<0.000000e+00> : vector<144x128xf32>
    %621 = tpu.matmul %619, %620, %cst_182 {dimension_numbers = #tpu.dot_dimension_numbers<[1], [0], [0], [1], [0, 0, 1, 1], [], []>} : vector<144x32xbf16>, vector<32x128xbf16>, vector<144x128xf32> -> vector<144x128xf32>
    %c0_183 = arith.constant 0 : index
    %c0_184 = arith.constant 0 : index
    %622 = vector.load %arg9[%c0_183, %c0_184] : memref<1x128xf32, #tpu.memory_space<vmem>>, vector<1x128xf32>
    %623 = vector.broadcast %622 : vector<1x128xf32> to vector<144x128xf32>
    %624 = arith.addf %621, %623 : vector<144x128xf32>
    %c0_185 = arith.constant 0 : index
    %c0_186 = arith.constant 0 : index
    %625 = vector.load %arg17[%c0_185, %c0_186] : memref<144x128xf32, #tpu.memory_space<vmem>>, vector<144x128xf32>
    tpu.vector_store %arg17[%c0_185, %c0_186], %624 {strides = array<i32>} : memref<144x128xf32, #tpu.memory_space<vmem>>, vector<144x128xf32>,
    %c0_187 = arith.constant 0 : index
    %c0_188 = arith.constant 0 : index
    %626 = vector.load %arg8[%c0_187, %c0_188] : memref<32x128xbf16, #tpu.memory_space<vmem>>, vector<32x128xbf16>
    %c1 = arith.constant 1 : index
    %c0_189 = arith.constant 0 : index
    %c0_190 = arith.constant 0 : index
    %627 = vector.load %arg2[%c1, %c0_189, %c0_190] : memref<3x8x32xf32, #tpu.memory_space<vmem>>, vector<1x8x32xf32>
    %628 = vector.shape_cast %627 : vector<1x8x32xf32> to vector<8x32xf32>
    %c1_191 = arith.constant 1 : index
    %c0_192 = arith.constant 0 : index
    %c0_193 = arith.constant 0 : index
    %629 = vector.load %arg3[%c1_191, %c0_192, %c0_193] : memref<3x8x32xf32, #tpu.memory_space<vmem>>, vector<1x8x32xf32>
    %630 = vector.shape_cast %629 : vector<1x8x32xf32> to vector<8x32xf32>
    %c0_194 = arith.constant 0 : index
    %c0_195 = arith.constant 0 : index
    %631 = vector.load %arg17[%c0_194, %c0_195] : memref<144x128xf32, #tpu.memory_space<vmem>>, vector<8x128xf32>
    %632 = arith.truncf %628 : vector<8x32xf32> to vector<8x32xbf16>
    %cst_196 = arith.constant dense<0.000000e+00> : vector<8x128xf32>
    %633 = tpu.matmul %632, %626, %cst_196 {dimension_numbers = #tpu.dot_dimension_numbers<[1], [0], [0], [1], [0, 0, 1, 1], [], []>} : vector<8x32xbf16>, vector<32x128xbf16>, vector<8x128xf32> -> vector<8x128xf32>
    %634 = arith.addf %631, %633 : vector<8x128xf32>
    %635 = vector.extract_strided_slice %634 {offsets = [0, 0], sizes = [8, 96], strides = [1, 1]} : vector<8x128xf32> to vector<8x96xf32>
    %636 = arith.negf %635 : vector<8x96xf32>
    %637 = math.exp %636 : vector<8x96xf32>
    %cst_197 = arith.constant 1.000000e+00 : f32
    %638 = vector.broadcast %cst_197 : f32 to vector<8x96xf32>
    %639 = arith.addf %638, %637 : vector<8x96xf32>
    %640 = arith.divf %638, %639 : vector<8x96xf32>
    %641 = vector.extract_strided_slice %640 {offsets = [0, 0], sizes = [8, 32], strides = [1, 1]} : vector<8x96xf32> to vector<8x32xf32>
    %642 = vector.extract_strided_slice %640 {offsets = [0, 32], sizes = [8, 32], strides = [1, 1]} : vector<8x96xf32> to vector<8x32xf32>
    %643 = vector.extract_strided_slice %640 {offsets = [0, 64], sizes = [8, 32], strides = [1, 1]} : vector<8x96xf32> to vector<8x32xf32>
    %644 = vector.extract_strided_slice %634 {offsets = [0, 96], sizes = [8, 32], strides = [1, 1]} : vector<8x128xf32> to vector<8x32xf32>
    %645 = math.tanh %644 : vector<8x32xf32>
    %646 = arith.mulf %642, %630 : vector<8x32xf32>
    %647 = arith.mulf %641, %645 : vector<8x32xf32>
    %648 = arith.addf %646, %647 : vector<8x32xf32>
    %649 = math.tanh %648 : vector<8x32xf32>
    %650 = arith.mulf %643, %649 : vector<8x32xf32>
    %c0_198 = arith.constant 0 : index
    %c0_199 = arith.constant 0 : index
    %651 = vector.load %arg0[%c0_198, %c0_199] : memref<144x1xf32, #tpu.memory_space<vmem>>, vector<8x1xf32>
    %cst_200 = arith.constant 0.000000e+00 : f32
    %652 = vector.broadcast %cst_200 : f32 to vector<8x1xf32>
    %653 = arith.cmpf ogt, %651, %652 : vector<8x1xf32>
    %cst_201 = arith.constant 0.000000e+00 : f32
    %654 = vector.shape_cast %653 : vector<8x1xi1> to vector<8x1xi1>
    %655 = vector.broadcast %654 : vector<8x1xi1> to vector<8x32xi1>
    %656 = vector.broadcast %cst_201 : f32 to vector<8x32xf32>
    %657 = arith.select %655, %650, %656 : vector<8x32xi1>, vector<8x32xf32>
    %c0_202 = arith.constant 0 : index
    %c0_203 = arith.constant 0 : index
    %658 = vector.load %arg16[%c0_202, %c0_203] : memref<144x32xf32, #tpu.memory_space<vmem>>, vector<8x32xf32>
    tpu.vector_store %arg16[%c0_202, %c0_203], %657 {strides = array<i32>} : memref<144x32xf32, #tpu.memory_space<vmem>>, vector<8x32xf32>,
    %659 = vector.shape_cast %653 : vector<8x1xi1> to vector<8x1xi1>
    %660 = vector.broadcast %659 : vector<8x1xi1> to vector<8x32xi1>
    %661 = arith.select %660, %650, %628 : vector<8x32xi1>, vector<8x32xf32>
    %662 = vector.shape_cast %653 : vector<8x1xi1> to vector<8x1xi1>
    %663 = vector.broadcast %662 : vector<8x1xi1> to vector<8x32xi1>
    %664 = arith.select %663, %648, %630 : vector<8x32xi1>, vector<8x32xf32>
    %c8_204 = arith.constant 8 : index
    %c0_205 = arith.constant 0 : index
    %665 = vector.load %arg17[%c8_204, %c0_205] : memref<144x128xf32, #tpu.memory_space<vmem>>, vector<8x128xf32>
    %666 = arith.truncf %661 : vector<8x32xf32> to vector<8x32xbf16>
    %cst_206 = arith.constant dense<0.000000e+00> : vector<8x128xf32>
    %667 = tpu.matmul %666, %626, %cst_206 {dimension_numbers = #tpu.dot_dimension_numbers<[1], [0], [0], [1], [0, 0, 1, 1], [], []>} : vector<8x32xbf16>, vector<32x128xbf16>, vector<8x128xf32> -> vector<8x128xf32>
    %668 = arith.addf %665, %667 : vector<8x128xf32>
    %669 = vector.extract_strided_slice %668 {offsets = [0, 0], sizes = [8, 96], strides = [1, 1]} : vector<8x128xf32> to vector<8x96xf32>
    %670 = arith.negf %669 : vector<8x96xf32>
    %671 = math.exp %670 : vector<8x96xf32>
    %cst_207 = arith.constant 1.000000e+00 : f32
    %672 = vector.broadcast %cst_207 : f32 to vector<8x96xf32>
    %673 = arith.addf %672, %671 : vector<8x96xf32>
    %674 = arith.divf %672, %673 : vector<8x96xf32>
    %675 = vector.extract_strided_slice %674 {offsets = [0, 0], sizes = [8, 32], strides = [1, 1]} : vector<8x96xf32> to vector<8x32xf32>
    %676 = vector.extract_strided_slice %674 {offsets = [0, 32], sizes = [8, 32], strides = [1, 1]} : vector<8x96xf32> to vector<8x32xf32>
    %677 = vector.extract_strided_slice %674 {offsets = [0, 64], sizes = [8, 32], strides = [1, 1]} : vector<8x96xf32> to vector<8x32xf32>
    %678 = vector.extract_strided_slice %668 {offsets = [0, 96], sizes = [8, 32], strides = [1, 1]} : vector<8x128xf32> to vector<8x32xf32>
    %679 = math.tanh %678 : vector<8x32xf32>
    %680 = arith.mulf %676, %664 : vector<8x32xf32>
    %681 = arith.mulf %675, %679 : vector<8x32xf32>
    %682 = arith.addf %680, %681 : vector<8x32xf32>
    %683 = math.tanh %682 : vector<8x32xf32>
    %684 = arith.mulf %677, %683 : vector<8x32xf32>
    %c8_208 = arith.constant 8 : index
    %c0_209 = arith.constant 0 : index
    %685 = vector.load %arg0[%c8_208, %c0_209] : memref<144x1xf32, #tpu.memory_space<vmem>>, vector<8x1xf32>
    %cst_210 = arith.constant 0.000000e+00 : f32
    %686 = vector.broadcast %cst_210 : f32 to vector<8x1xf32>
    %687 = arith.cmpf ogt, %685, %686 : vector<8x1xf32>
    %cst_211 = arith.constant 0.000000e+00 : f32
    %688 = vector.shape_cast %687 : vector<8x1xi1> to vector<8x1xi1>
    %689 = vector.broadcast %688 : vector<8x1xi1> to vector<8x32xi1>
    %690 = vector.broadcast %cst_211 : f32 to vector<8x32xf32>
    %691 = arith.select %689, %684, %690 : vector<8x32xi1>, vector<8x32xf32>
    %c8_212 = arith.constant 8 : index
    %c0_213 = arith.constant 0 : index
    %692 = vector.load %arg16[%c8_212, %c0_213] : memref<144x32xf32, #tpu.memory_space<vmem>>, vector<8x32xf32>
    tpu.vector_store %arg16[%c8_212, %c0_213], %691 {strides = array<i32>} : memref<144x32xf32, #tpu.memory_space<vmem>>, vector<8x32xf32>,
    %693 = vector.shape_cast %687 : vector<8x1xi1> to vector<8x1xi1>
    %694 = vector.broadcast %693 : vector<8x1xi1> to vector<8x32xi1>
    %695 = arith.select %694, %684, %661 : vector<8x32xi1>, vector<8x32xf32>
    %696 = vector.shape_cast %687 : vector<8x1xi1> to vector<8x1xi1>
    %697 = vector.broadcast %696 : vector<8x1xi1> to vector<8x32xi1>
    %698 = arith.select %697, %682, %664 : vector<8x32xi1>, vector<8x32xf32>
    %c16_214 = arith.constant 16 : index
    %c0_215 = arith.constant 0 : index
    %699 = vector.load %arg17[%c16_214, %c0_215] : memref<144x128xf32, #tpu.memory_space<vmem>>, vector<8x128xf32>
    %700 = arith.truncf %695 : vector<8x32xf32> to vector<8x32xbf16>
    %cst_216 = arith.constant dense<0.000000e+00> : vector<8x128xf32>
    %701 = tpu.matmul %700, %626, %cst_216 {dimension_numbers = #tpu.dot_dimension_numbers<[1], [0], [0], [1], [0, 0, 1, 1], [], []>} : vector<8x32xbf16>, vector<32x128xbf16>, vector<8x128xf32> -> vector<8x128xf32>
    %702 = arith.addf %699, %701 : vector<8x128xf32>
    %703 = vector.extract_strided_slice %702 {offsets = [0, 0], sizes = [8, 96], strides = [1, 1]} : vector<8x128xf32> to vector<8x96xf32>
    %704 = arith.negf %703 : vector<8x96xf32>
    %705 = math.exp %704 : vector<8x96xf32>
    %cst_217 = arith.constant 1.000000e+00 : f32
    %706 = vector.broadcast %cst_217 : f32 to vector<8x96xf32>
    %707 = arith.addf %706, %705 : vector<8x96xf32>
    %708 = arith.divf %706, %707 : vector<8x96xf32>
    %709 = vector.extract_strided_slice %708 {offsets = [0, 0], sizes = [8, 32], strides = [1, 1]} : vector<8x96xf32> to vector<8x32xf32>
    %710 = vector.extract_strided_slice %708 {offsets = [0, 32], sizes = [8, 32], strides = [1, 1]} : vector<8x96xf32> to vector<8x32xf32>
    %711 = vector.extract_strided_slice %708 {offsets = [0, 64], sizes = [8, 32], strides = [1, 1]} : vector<8x96xf32> to vector<8x32xf32>
    %712 = vector.extract_strided_slice %702 {offsets = [0, 96], sizes = [8, 32], strides = [1, 1]} : vector<8x128xf32> to vector<8x32xf32>
    %713 = math.tanh %712 : vector<8x32xf32>
    %714 = arith.mulf %710, %698 : vector<8x32xf32>
    %715 = arith.mulf %709, %713 : vector<8x32xf32>
    %716 = arith.addf %714, %715 : vector<8x32xf32>
    %717 = math.tanh %716 : vector<8x32xf32>
    %718 = arith.mulf %711, %717 : vector<8x32xf32>
    %c16_218 = arith.constant 16 : index
    %c0_219 = arith.constant 0 : index
    %719 = vector.load %arg0[%c16_218, %c0_219] : memref<144x1xf32, #tpu.memory_space<vmem>>, vector<8x1xf32>
    %cst_220 = arith.constant 0.000000e+00 : f32
    %720 = vector.broadcast %cst_220 : f32 to vector<8x1xf32>
    %721 = arith.cmpf ogt, %719, %720 : vector<8x1xf32>
    %cst_221 = arith.constant 0.000000e+00 : f32
    %722 = vector.shape_cast %721 : vector<8x1xi1> to vector<8x1xi1>
    %723 = vector.broadcast %722 : vector<8x1xi1> to vector<8x32xi1>
    %724 = vector.broadcast %cst_221 : f32 to vector<8x32xf32>
    %725 = arith.select %723, %718, %724 : vector<8x32xi1>, vector<8x32xf32>
    %c16_222 = arith.constant 16 : index
    %c0_223 = arith.constant 0 : index
    %726 = vector.load %arg16[%c16_222, %c0_223] : memref<144x32xf32, #tpu.memory_space<vmem>>, vector<8x32xf32>
    tpu.vector_store %arg16[%c16_222, %c0_223], %725 {strides = array<i32>} : memref<144x32xf32, #tpu.memory_space<vmem>>, vector<8x32xf32>,
    %727 = vector.shape_cast %721 : vector<8x1xi1> to vector<8x1xi1>
    %728 = vector.broadcast %727 : vector<8x1xi1> to vector<8x32xi1>
    %729 = arith.select %728, %718, %695 : vector<8x32xi1>, vector<8x32xf32>
    %730 = vector.shape_cast %721 : vector<8x1xi1> to vector<8x1xi1>
    %731 = vector.broadcast %730 : vector<8x1xi1> to vector<8x32xi1>
    %732 = arith.select %731, %716, %698 : vector<8x32xi1>, vector<8x32xf32>
    %c24_224 = arith.constant 24 : index
    %c0_225 = arith.constant 0 : index
    %733 = vector.load %arg17[%c24_224, %c0_225] : memref<144x128xf32, #tpu.memory_space<vmem>>, vector<8x128xf32>
    %734 = arith.truncf %729 : vector<8x32xf32> to vector<8x32xbf16>
    %cst_226 = arith.constant dense<0.000000e+00> : vector<8x128xf32>
    %735 = tpu.matmul %734, %626, %cst_226 {dimension_numbers = #tpu.dot_dimension_numbers<[1], [0], [0], [1], [0, 0, 1, 1], [], []>} : vector<8x32xbf16>, vector<32x128xbf16>, vector<8x128xf32> -> vector<8x128xf32>
    %736 = arith.addf %733, %735 : vector<8x128xf32>
    %737 = vector.extract_strided_slice %736 {offsets = [0, 0], sizes = [8, 96], strides = [1, 1]} : vector<8x128xf32> to vector<8x96xf32>
    %738 = arith.negf %737 : vector<8x96xf32>
    %739 = math.exp %738 : vector<8x96xf32>
    %cst_227 = arith.constant 1.000000e+00 : f32
    %740 = vector.broadcast %cst_227 : f32 to vector<8x96xf32>
    %741 = arith.addf %740, %739 : vector<8x96xf32>
    %742 = arith.divf %740, %741 : vector<8x96xf32>
    %743 = vector.extract_strided_slice %742 {offsets = [0, 0], sizes = [8, 32], strides = [1, 1]} : vector<8x96xf32> to vector<8x32xf32>
    %744 = vector.extract_strided_slice %742 {offsets = [0, 32], sizes = [8, 32], strides = [1, 1]} : vector<8x96xf32> to vector<8x32xf32>
    %745 = vector.extract_strided_slice %742 {offsets = [0, 64], sizes = [8, 32], strides = [1, 1]} : vector<8x96xf32> to vector<8x32xf32>
    %746 = vector.extract_strided_slice %736 {offsets = [0, 96], sizes = [8, 32], strides = [1, 1]} : vector<8x128xf32> to vector<8x32xf32>
    %747 = math.tanh %746 : vector<8x32xf32>
    %748 = arith.mulf %744, %732 : vector<8x32xf32>
    %749 = arith.mulf %743, %747 : vector<8x32xf32>
    %750 = arith.addf %748, %749 : vector<8x32xf32>
    %751 = math.tanh %750 : vector<8x32xf32>
    %752 = arith.mulf %745, %751 : vector<8x32xf32>
    %c24_228 = arith.constant 24 : index
    %c0_229 = arith.constant 0 : index
    %753 = vector.load %arg0[%c24_228, %c0_229] : memref<144x1xf32, #tpu.memory_space<vmem>>, vector<8x1xf32>
    %cst_230 = arith.constant 0.000000e+00 : f32
    %754 = vector.broadcast %cst_230 : f32 to vector<8x1xf32>
    %755 = arith.cmpf ogt, %753, %754 : vector<8x1xf32>
    %cst_231 = arith.constant 0.000000e+00 : f32
    %756 = vector.shape_cast %755 : vector<8x1xi1> to vector<8x1xi1>
    %757 = vector.broadcast %756 : vector<8x1xi1> to vector<8x32xi1>
    %758 = vector.broadcast %cst_231 : f32 to vector<8x32xf32>
    %759 = arith.select %757, %752, %758 : vector<8x32xi1>, vector<8x32xf32>
    %c24_232 = arith.constant 24 : index
    %c0_233 = arith.constant 0 : index
    %760 = vector.load %arg16[%c24_232, %c0_233] : memref<144x32xf32, #tpu.memory_space<vmem>>, vector<8x32xf32>
    tpu.vector_store %arg16[%c24_232, %c0_233], %759 {strides = array<i32>} : memref<144x32xf32, #tpu.memory_space<vmem>>, vector<8x32xf32>,
    %761 = vector.shape_cast %755 : vector<8x1xi1> to vector<8x1xi1>
    %762 = vector.broadcast %761 : vector<8x1xi1> to vector<8x32xi1>
    %763 = arith.select %762, %752, %729 : vector<8x32xi1>, vector<8x32xf32>
    %764 = vector.shape_cast %755 : vector<8x1xi1> to vector<8x1xi1>
    %765 = vector.broadcast %764 : vector<8x1xi1> to vector<8x32xi1>
    %766 = arith.select %765, %750, %732 : vector<8x32xi1>, vector<8x32xf32>
    %c32_234 = arith.constant 32 : index
    %c0_235 = arith.constant 0 : index
    %767 = vector.load %arg17[%c32_234, %c0_235] : memref<144x128xf32, #tpu.memory_space<vmem>>, vector<8x128xf32>
    %768 = arith.truncf %763 : vector<8x32xf32> to vector<8x32xbf16>
    %cst_236 = arith.constant dense<0.000000e+00> : vector<8x128xf32>
    %769 = tpu.matmul %768, %626, %cst_236 {dimension_numbers = #tpu.dot_dimension_numbers<[1], [0], [0], [1], [0, 0, 1, 1], [], []>} : vector<8x32xbf16>, vector<32x128xbf16>, vector<8x128xf32> -> vector<8x128xf32>
    %770 = arith.addf %767, %769 : vector<8x128xf32>
    %771 = vector.extract_strided_slice %770 {offsets = [0, 0], sizes = [8, 96], strides = [1, 1]} : vector<8x128xf32> to vector<8x96xf32>
    %772 = arith.negf %771 : vector<8x96xf32>
    %773 = math.exp %772 : vector<8x96xf32>
    %cst_237 = arith.constant 1.000000e+00 : f32
    %774 = vector.broadcast %cst_237 : f32 to vector<8x96xf32>
    %775 = arith.addf %774, %773 : vector<8x96xf32>
    %776 = arith.divf %774, %775 : vector<8x96xf32>
    %777 = vector.extract_strided_slice %776 {offsets = [0, 0], sizes = [8, 32], strides = [1, 1]} : vector<8x96xf32> to vector<8x32xf32>
    %778 = vector.extract_strided_slice %776 {offsets = [0, 32], sizes = [8, 32], strides = [1, 1]} : vector<8x96xf32> to vector<8x32xf32>
    %779 = vector.extract_strided_slice %776 {offsets = [0, 64], sizes = [8, 32], strides = [1, 1]} : vector<8x96xf32> to vector<8x32xf32>
    %780 = vector.extract_strided_slice %770 {offsets = [0, 96], sizes = [8, 32], strides = [1, 1]} : vector<8x128xf32> to vector<8x32xf32>
    %781 = math.tanh %780 : vector<8x32xf32>
    %782 = arith.mulf %778, %766 : vector<8x32xf32>
    %783 = arith.mulf %777, %781 : vector<8x32xf32>
    %784 = arith.addf %782, %783 : vector<8x32xf32>
    %785 = math.tanh %784 : vector<8x32xf32>
    %786 = arith.mulf %779, %785 : vector<8x32xf32>
    %c32_238 = arith.constant 32 : index
    %c0_239 = arith.constant 0 : index
    %787 = vector.load %arg0[%c32_238, %c0_239] : memref<144x1xf32, #tpu.memory_space<vmem>>, vector<8x1xf32>
    %cst_240 = arith.constant 0.000000e+00 : f32
    %788 = vector.broadcast %cst_240 : f32 to vector<8x1xf32>
    %789 = arith.cmpf ogt, %787, %788 : vector<8x1xf32>
    %cst_241 = arith.constant 0.000000e+00 : f32
    %790 = vector.shape_cast %789 : vector<8x1xi1> to vector<8x1xi1>
    %791 = vector.broadcast %790 : vector<8x1xi1> to vector<8x32xi1>
    %792 = vector.broadcast %cst_241 : f32 to vector<8x32xf32>
    %793 = arith.select %791, %786, %792 : vector<8x32xi1>, vector<8x32xf32>
    %c32_242 = arith.constant 32 : index
    %c0_243 = arith.constant 0 : index
    %794 = vector.load %arg16[%c32_242, %c0_243] : memref<144x32xf32, #tpu.memory_space<vmem>>, vector<8x32xf32>
    tpu.vector_store %arg16[%c32_242, %c0_243], %793 {strides = array<i32>} : memref<144x32xf32, #tpu.memory_space<vmem>>, vector<8x32xf32>,
    %795 = vector.shape_cast %789 : vector<8x1xi1> to vector<8x1xi1>
    %796 = vector.broadcast %795 : vector<8x1xi1> to vector<8x32xi1>
    %797 = arith.select %796, %786, %763 : vector<8x32xi1>, vector<8x32xf32>
    %798 = vector.shape_cast %789 : vector<8x1xi1> to vector<8x1xi1>
    %799 = vector.broadcast %798 : vector<8x1xi1> to vector<8x32xi1>
    %800 = arith.select %799, %784, %766 : vector<8x32xi1>, vector<8x32xf32>
    %c40_244 = arith.constant 40 : index
    %c0_245 = arith.constant 0 : index
    %801 = vector.load %arg17[%c40_244, %c0_245] : memref<144x128xf32, #tpu.memory_space<vmem>>, vector<8x128xf32>
    %802 = arith.truncf %797 : vector<8x32xf32> to vector<8x32xbf16>
    %cst_246 = arith.constant dense<0.000000e+00> : vector<8x128xf32>
    %803 = tpu.matmul %802, %626, %cst_246 {dimension_numbers = #tpu.dot_dimension_numbers<[1], [0], [0], [1], [0, 0, 1, 1], [], []>} : vector<8x32xbf16>, vector<32x128xbf16>, vector<8x128xf32> -> vector<8x128xf32>
    %804 = arith.addf %801, %803 : vector<8x128xf32>
    %805 = vector.extract_strided_slice %804 {offsets = [0, 0], sizes = [8, 96], strides = [1, 1]} : vector<8x128xf32> to vector<8x96xf32>
    %806 = arith.negf %805 : vector<8x96xf32>
    %807 = math.exp %806 : vector<8x96xf32>
    %cst_247 = arith.constant 1.000000e+00 : f32
    %808 = vector.broadcast %cst_247 : f32 to vector<8x96xf32>
    %809 = arith.addf %808, %807 : vector<8x96xf32>
    %810 = arith.divf %808, %809 : vector<8x96xf32>
    %811 = vector.extract_strided_slice %810 {offsets = [0, 0], sizes = [8, 32], strides = [1, 1]} : vector<8x96xf32> to vector<8x32xf32>
    %812 = vector.extract_strided_slice %810 {offsets = [0, 32], sizes = [8, 32], strides = [1, 1]} : vector<8x96xf32> to vector<8x32xf32>
    %813 = vector.extract_strided_slice %810 {offsets = [0, 64], sizes = [8, 32], strides = [1, 1]} : vector<8x96xf32> to vector<8x32xf32>
    %814 = vector.extract_strided_slice %804 {offsets = [0, 96], sizes = [8, 32], strides = [1, 1]} : vector<8x128xf32> to vector<8x32xf32>
    %815 = math.tanh %814 : vector<8x32xf32>
    %816 = arith.mulf %812, %800 : vector<8x32xf32>
    %817 = arith.mulf %811, %815 : vector<8x32xf32>
    %818 = arith.addf %816, %817 : vector<8x32xf32>
    %819 = math.tanh %818 : vector<8x32xf32>
    %820 = arith.mulf %813, %819 : vector<8x32xf32>
    %c40_248 = arith.constant 40 : index
    %c0_249 = arith.constant 0 : index
    %821 = vector.load %arg0[%c40_248, %c0_249] : memref<144x1xf32, #tpu.memory_space<vmem>>, vector<8x1xf32>
    %cst_250 = arith.constant 0.000000e+00 : f32
    %822 = vector.broadcast %cst_250 : f32 to vector<8x1xf32>
    %823 = arith.cmpf ogt, %821, %822 : vector<8x1xf32>
    %cst_251 = arith.constant 0.000000e+00 : f32
    %824 = vector.shape_cast %823 : vector<8x1xi1> to vector<8x1xi1>
    %825 = vector.broadcast %824 : vector<8x1xi1> to vector<8x32xi1>
    %826 = vector.broadcast %cst_251 : f32 to vector<8x32xf32>
    %827 = arith.select %825, %820, %826 : vector<8x32xi1>, vector<8x32xf32>
    %c40_252 = arith.constant 40 : index
    %c0_253 = arith.constant 0 : index
    %828 = vector.load %arg16[%c40_252, %c0_253] : memref<144x32xf32, #tpu.memory_space<vmem>>, vector<8x32xf32>
    tpu.vector_store %arg16[%c40_252, %c0_253], %827 {strides = array<i32>} : memref<144x32xf32, #tpu.memory_space<vmem>>, vector<8x32xf32>,
    %829 = vector.shape_cast %823 : vector<8x1xi1> to vector<8x1xi1>
    %830 = vector.broadcast %829 : vector<8x1xi1> to vector<8x32xi1>
    %831 = arith.select %830, %820, %797 : vector<8x32xi1>, vector<8x32xf32>
    %832 = vector.shape_cast %823 : vector<8x1xi1> to vector<8x1xi1>
    %833 = vector.broadcast %832 : vector<8x1xi1> to vector<8x32xi1>
    %834 = arith.select %833, %818, %800 : vector<8x32xi1>, vector<8x32xf32>
    %c48_254 = arith.constant 48 : index
    %c0_255 = arith.constant 0 : index
    %835 = vector.load %arg17[%c48_254, %c0_255] : memref<144x128xf32, #tpu.memory_space<vmem>>, vector<8x128xf32>
    %836 = arith.truncf %831 : vector<8x32xf32> to vector<8x32xbf16>
    %cst_256 = arith.constant dense<0.000000e+00> : vector<8x128xf32>
    %837 = tpu.matmul %836, %626, %cst_256 {dimension_numbers = #tpu.dot_dimension_numbers<[1], [0], [0], [1], [0, 0, 1, 1], [], []>} : vector<8x32xbf16>, vector<32x128xbf16>, vector<8x128xf32> -> vector<8x128xf32>
    %838 = arith.addf %835, %837 : vector<8x128xf32>
    %839 = vector.extract_strided_slice %838 {offsets = [0, 0], sizes = [8, 96], strides = [1, 1]} : vector<8x128xf32> to vector<8x96xf32>
    %840 = arith.negf %839 : vector<8x96xf32>
    %841 = math.exp %840 : vector<8x96xf32>
    %cst_257 = arith.constant 1.000000e+00 : f32
    %842 = vector.broadcast %cst_257 : f32 to vector<8x96xf32>
    %843 = arith.addf %842, %841 : vector<8x96xf32>
    %844 = arith.divf %842, %843 : vector<8x96xf32>
    %845 = vector.extract_strided_slice %844 {offsets = [0, 0], sizes = [8, 32], strides = [1, 1]} : vector<8x96xf32> to vector<8x32xf32>
    %846 = vector.extract_strided_slice %844 {offsets = [0, 32], sizes = [8, 32], strides = [1, 1]} : vector<8x96xf32> to vector<8x32xf32>
    %847 = vector.extract_strided_slice %844 {offsets = [0, 64], sizes = [8, 32], strides = [1, 1]} : vector<8x96xf32> to vector<8x32xf32>
    %848 = vector.extract_strided_slice %838 {offsets = [0, 96], sizes = [8, 32], strides = [1, 1]} : vector<8x128xf32> to vector<8x32xf32>
    %849 = math.tanh %848 : vector<8x32xf32>
    %850 = arith.mulf %846, %834 : vector<8x32xf32>
    %851 = arith.mulf %845, %849 : vector<8x32xf32>
    %852 = arith.addf %850, %851 : vector<8x32xf32>
    %853 = math.tanh %852 : vector<8x32xf32>
    %854 = arith.mulf %847, %853 : vector<8x32xf32>
    %c48_258 = arith.constant 48 : index
    %c0_259 = arith.constant 0 : index
    %855 = vector.load %arg0[%c48_258, %c0_259] : memref<144x1xf32, #tpu.memory_space<vmem>>, vector<8x1xf32>
    %cst_260 = arith.constant 0.000000e+00 : f32
    %856 = vector.broadcast %cst_260 : f32 to vector<8x1xf32>
    %857 = arith.cmpf ogt, %855, %856 : vector<8x1xf32>
    %cst_261 = arith.constant 0.000000e+00 : f32
    %858 = vector.shape_cast %857 : vector<8x1xi1> to vector<8x1xi1>
    %859 = vector.broadcast %858 : vector<8x1xi1> to vector<8x32xi1>
    %860 = vector.broadcast %cst_261 : f32 to vector<8x32xf32>
    %861 = arith.select %859, %854, %860 : vector<8x32xi1>, vector<8x32xf32>
    %c48_262 = arith.constant 48 : index
    %c0_263 = arith.constant 0 : index
    %862 = vector.load %arg16[%c48_262, %c0_263] : memref<144x32xf32, #tpu.memory_space<vmem>>, vector<8x32xf32>
    tpu.vector_store %arg16[%c48_262, %c0_263], %861 {strides = array<i32>} : memref<144x32xf32, #tpu.memory_space<vmem>>, vector<8x32xf32>,
    %863 = vector.shape_cast %857 : vector<8x1xi1> to vector<8x1xi1>
    %864 = vector.broadcast %863 : vector<8x1xi1> to vector<8x32xi1>
    %865 = arith.select %864, %854, %831 : vector<8x32xi1>, vector<8x32xf32>
    %866 = vector.shape_cast %857 : vector<8x1xi1> to vector<8x1xi1>
    %867 = vector.broadcast %866 : vector<8x1xi1> to vector<8x32xi1>
    %868 = arith.select %867, %852, %834 : vector<8x32xi1>, vector<8x32xf32>
    %c56_264 = arith.constant 56 : index
    %c0_265 = arith.constant 0 : index
    %869 = vector.load %arg17[%c56_264, %c0_265] : memref<144x128xf32, #tpu.memory_space<vmem>>, vector<8x128xf32>
    %870 = arith.truncf %865 : vector<8x32xf32> to vector<8x32xbf16>
    %cst_266 = arith.constant dense<0.000000e+00> : vector<8x128xf32>
    %871 = tpu.matmul %870, %626, %cst_266 {dimension_numbers = #tpu.dot_dimension_numbers<[1], [0], [0], [1], [0, 0, 1, 1], [], []>} : vector<8x32xbf16>, vector<32x128xbf16>, vector<8x128xf32> -> vector<8x128xf32>
    %872 = arith.addf %869, %871 : vector<8x128xf32>
    %873 = vector.extract_strided_slice %872 {offsets = [0, 0], sizes = [8, 96], strides = [1, 1]} : vector<8x128xf32> to vector<8x96xf32>
    %874 = arith.negf %873 : vector<8x96xf32>
    %875 = math.exp %874 : vector<8x96xf32>
    %cst_267 = arith.constant 1.000000e+00 : f32
    %876 = vector.broadcast %cst_267 : f32 to vector<8x96xf32>
    %877 = arith.addf %876, %875 : vector<8x96xf32>
    %878 = arith.divf %876, %877 : vector<8x96xf32>
    %879 = vector.extract_strided_slice %878 {offsets = [0, 0], sizes = [8, 32], strides = [1, 1]} : vector<8x96xf32> to vector<8x32xf32>
    %880 = vector.extract_strided_slice %878 {offsets = [0, 32], sizes = [8, 32], strides = [1, 1]} : vector<8x96xf32> to vector<8x32xf32>
    %881 = vector.extract_strided_slice %878 {offsets = [0, 64], sizes = [8, 32], strides = [1, 1]} : vector<8x96xf32> to vector<8x32xf32>
    %882 = vector.extract_strided_slice %872 {offsets = [0, 96], sizes = [8, 32], strides = [1, 1]} : vector<8x128xf32> to vector<8x32xf32>
    %883 = math.tanh %882 : vector<8x32xf32>
    %884 = arith.mulf %880, %868 : vector<8x32xf32>
    %885 = arith.mulf %879, %883 : vector<8x32xf32>
    %886 = arith.addf %884, %885 : vector<8x32xf32>
    %887 = math.tanh %886 : vector<8x32xf32>
    %888 = arith.mulf %881, %887 : vector<8x32xf32>
    %c56_268 = arith.constant 56 : index
    %c0_269 = arith.constant 0 : index
    %889 = vector.load %arg0[%c56_268, %c0_269] : memref<144x1xf32, #tpu.memory_space<vmem>>, vector<8x1xf32>
    %cst_270 = arith.constant 0.000000e+00 : f32
    %890 = vector.broadcast %cst_270 : f32 to vector<8x1xf32>
    %891 = arith.cmpf ogt, %889, %890 : vector<8x1xf32>
    %cst_271 = arith.constant 0.000000e+00 : f32
    %892 = vector.shape_cast %891 : vector<8x1xi1> to vector<8x1xi1>
    %893 = vector.broadcast %892 : vector<8x1xi1> to vector<8x32xi1>
    %894 = vector.broadcast %cst_271 : f32 to vector<8x32xf32>
    %895 = arith.select %893, %888, %894 : vector<8x32xi1>, vector<8x32xf32>
    %c56_272 = arith.constant 56 : index
    %c0_273 = arith.constant 0 : index
    %896 = vector.load %arg16[%c56_272, %c0_273] : memref<144x32xf32, #tpu.memory_space<vmem>>, vector<8x32xf32>
    tpu.vector_store %arg16[%c56_272, %c0_273], %895 {strides = array<i32>} : memref<144x32xf32, #tpu.memory_space<vmem>>, vector<8x32xf32>,
    %897 = vector.shape_cast %891 : vector<8x1xi1> to vector<8x1xi1>
    %898 = vector.broadcast %897 : vector<8x1xi1> to vector<8x32xi1>
    %899 = arith.select %898, %888, %865 : vector<8x32xi1>, vector<8x32xf32>
    %900 = vector.shape_cast %891 : vector<8x1xi1> to vector<8x1xi1>
    %901 = vector.broadcast %900 : vector<8x1xi1> to vector<8x32xi1>
    %902 = arith.select %901, %886, %868 : vector<8x32xi1>, vector<8x32xf32>
    %c64_274 = arith.constant 64 : index
    %c0_275 = arith.constant 0 : index
    %903 = vector.load %arg17[%c64_274, %c0_275] : memref<144x128xf32, #tpu.memory_space<vmem>>, vector<8x128xf32>
    %904 = arith.truncf %899 : vector<8x32xf32> to vector<8x32xbf16>
    %cst_276 = arith.constant dense<0.000000e+00> : vector<8x128xf32>
    %905 = tpu.matmul %904, %626, %cst_276 {dimension_numbers = #tpu.dot_dimension_numbers<[1], [0], [0], [1], [0, 0, 1, 1], [], []>} : vector<8x32xbf16>, vector<32x128xbf16>, vector<8x128xf32> -> vector<8x128xf32>
    %906 = arith.addf %903, %905 : vector<8x128xf32>
    %907 = vector.extract_strided_slice %906 {offsets = [0, 0], sizes = [8, 96], strides = [1, 1]} : vector<8x128xf32> to vector<8x96xf32>
    %908 = arith.negf %907 : vector<8x96xf32>
    %909 = math.exp %908 : vector<8x96xf32>
    %cst_277 = arith.constant 1.000000e+00 : f32
    %910 = vector.broadcast %cst_277 : f32 to vector<8x96xf32>
    %911 = arith.addf %910, %909 : vector<8x96xf32>
    %912 = arith.divf %910, %911 : vector<8x96xf32>
    %913 = vector.extract_strided_slice %912 {offsets = [0, 0], sizes = [8, 32], strides = [1, 1]} : vector<8x96xf32> to vector<8x32xf32>
    %914 = vector.extract_strided_slice %912 {offsets = [0, 32], sizes = [8, 32], strides = [1, 1]} : vector<8x96xf32> to vector<8x32xf32>
    %915 = vector.extract_strided_slice %912 {offsets = [0, 64], sizes = [8, 32], strides = [1, 1]} : vector<8x96xf32> to vector<8x32xf32>
    %916 = vector.extract_strided_slice %906 {offsets = [0, 96], sizes = [8, 32], strides = [1, 1]} : vector<8x128xf32> to vector<8x32xf32>
    %917 = math.tanh %916 : vector<8x32xf32>
    %918 = arith.mulf %914, %902 : vector<8x32xf32>
    %919 = arith.mulf %913, %917 : vector<8x32xf32>
    %920 = arith.addf %918, %919 : vector<8x32xf32>
    %921 = math.tanh %920 : vector<8x32xf32>
    %922 = arith.mulf %915, %921 : vector<8x32xf32>
    %c64_278 = arith.constant 64 : index
    %c0_279 = arith.constant 0 : index
    %923 = vector.load %arg0[%c64_278, %c0_279] : memref<144x1xf32, #tpu.memory_space<vmem>>, vector<8x1xf32>
    %cst_280 = arith.constant 0.000000e+00 : f32
    %924 = vector.broadcast %cst_280 : f32 to vector<8x1xf32>
    %925 = arith.cmpf ogt, %923, %924 : vector<8x1xf32>
    %cst_281 = arith.constant 0.000000e+00 : f32
    %926 = vector.shape_cast %925 : vector<8x1xi1> to vector<8x1xi1>
    %927 = vector.broadcast %926 : vector<8x1xi1> to vector<8x32xi1>
    %928 = vector.broadcast %cst_281 : f32 to vector<8x32xf32>
    %929 = arith.select %927, %922, %928 : vector<8x32xi1>, vector<8x32xf32>
    %c64_282 = arith.constant 64 : index
    %c0_283 = arith.constant 0 : index
    %930 = vector.load %arg16[%c64_282, %c0_283] : memref<144x32xf32, #tpu.memory_space<vmem>>, vector<8x32xf32>
    tpu.vector_store %arg16[%c64_282, %c0_283], %929 {strides = array<i32>} : memref<144x32xf32, #tpu.memory_space<vmem>>, vector<8x32xf32>,
    %931 = vector.shape_cast %925 : vector<8x1xi1> to vector<8x1xi1>
    %932 = vector.broadcast %931 : vector<8x1xi1> to vector<8x32xi1>
    %933 = arith.select %932, %922, %899 : vector<8x32xi1>, vector<8x32xf32>
    %934 = vector.shape_cast %925 : vector<8x1xi1> to vector<8x1xi1>
    %935 = vector.broadcast %934 : vector<8x1xi1> to vector<8x32xi1>
    %936 = arith.select %935, %920, %902 : vector<8x32xi1>, vector<8x32xf32>
    %c72_284 = arith.constant 72 : index
    %c0_285 = arith.constant 0 : index
    %937 = vector.load %arg17[%c72_284, %c0_285] : memref<144x128xf32, #tpu.memory_space<vmem>>, vector<8x128xf32>
    %938 = arith.truncf %933 : vector<8x32xf32> to vector<8x32xbf16>
    %cst_286 = arith.constant dense<0.000000e+00> : vector<8x128xf32>
    %939 = tpu.matmul %938, %626, %cst_286 {dimension_numbers = #tpu.dot_dimension_numbers<[1], [0], [0], [1], [0, 0, 1, 1], [], []>} : vector<8x32xbf16>, vector<32x128xbf16>, vector<8x128xf32> -> vector<8x128xf32>
    %940 = arith.addf %937, %939 : vector<8x128xf32>
    %941 = vector.extract_strided_slice %940 {offsets = [0, 0], sizes = [8, 96], strides = [1, 1]} : vector<8x128xf32> to vector<8x96xf32>
    %942 = arith.negf %941 : vector<8x96xf32>
    %943 = math.exp %942 : vector<8x96xf32>
    %cst_287 = arith.constant 1.000000e+00 : f32
    %944 = vector.broadcast %cst_287 : f32 to vector<8x96xf32>
    %945 = arith.addf %944, %943 : vector<8x96xf32>
    %946 = arith.divf %944, %945 : vector<8x96xf32>
    %947 = vector.extract_strided_slice %946 {offsets = [0, 0], sizes = [8, 32], strides = [1, 1]} : vector<8x96xf32> to vector<8x32xf32>
    %948 = vector.extract_strided_slice %946 {offsets = [0, 32], sizes = [8, 32], strides = [1, 1]} : vector<8x96xf32> to vector<8x32xf32>
    %949 = vector.extract_strided_slice %946 {offsets = [0, 64], sizes = [8, 32], strides = [1, 1]} : vector<8x96xf32> to vector<8x32xf32>
    %950 = vector.extract_strided_slice %940 {offsets = [0, 96], sizes = [8, 32], strides = [1, 1]} : vector<8x128xf32> to vector<8x32xf32>
    %951 = math.tanh %950 : vector<8x32xf32>
    %952 = arith.mulf %948, %936 : vector<8x32xf32>
    %953 = arith.mulf %947, %951 : vector<8x32xf32>
    %954 = arith.addf %952, %953 : vector<8x32xf32>
    %955 = math.tanh %954 : vector<8x32xf32>
    %956 = arith.mulf %949, %955 : vector<8x32xf32>
    %c72_288 = arith.constant 72 : index
    %c0_289 = arith.constant 0 : index
    %957 = vector.load %arg0[%c72_288, %c0_289] : memref<144x1xf32, #tpu.memory_space<vmem>>, vector<8x1xf32>
    %cst_290 = arith.constant 0.000000e+00 : f32
    %958 = vector.broadcast %cst_290 : f32 to vector<8x1xf32>
    %959 = arith.cmpf ogt, %957, %958 : vector<8x1xf32>
    %cst_291 = arith.constant 0.000000e+00 : f32
    %960 = vector.shape_cast %959 : vector<8x1xi1> to vector<8x1xi1>
    %961 = vector.broadcast %960 : vector<8x1xi1> to vector<8x32xi1>
    %962 = vector.broadcast %cst_291 : f32 to vector<8x32xf32>
    %963 = arith.select %961, %956, %962 : vector<8x32xi1>, vector<8x32xf32>
    %c72_292 = arith.constant 72 : index
    %c0_293 = arith.constant 0 : index
    %964 = vector.load %arg16[%c72_292, %c0_293] : memref<144x32xf32, #tpu.memory_space<vmem>>, vector<8x32xf32>
    tpu.vector_store %arg16[%c72_292, %c0_293], %963 {strides = array<i32>} : memref<144x32xf32, #tpu.memory_space<vmem>>, vector<8x32xf32>,
    %965 = vector.shape_cast %959 : vector<8x1xi1> to vector<8x1xi1>
    %966 = vector.broadcast %965 : vector<8x1xi1> to vector<8x32xi1>
    %967 = arith.select %966, %956, %933 : vector<8x32xi1>, vector<8x32xf32>
    %968 = vector.shape_cast %959 : vector<8x1xi1> to vector<8x1xi1>
    %969 = vector.broadcast %968 : vector<8x1xi1> to vector<8x32xi1>
    %970 = arith.select %969, %954, %936 : vector<8x32xi1>, vector<8x32xf32>
    %c80_294 = arith.constant 80 : index
    %c0_295 = arith.constant 0 : index
    %971 = vector.load %arg17[%c80_294, %c0_295] : memref<144x128xf32, #tpu.memory_space<vmem>>, vector<8x128xf32>
    %972 = arith.truncf %967 : vector<8x32xf32> to vector<8x32xbf16>
    %cst_296 = arith.constant dense<0.000000e+00> : vector<8x128xf32>
    %973 = tpu.matmul %972, %626, %cst_296 {dimension_numbers = #tpu.dot_dimension_numbers<[1], [0], [0], [1], [0, 0, 1, 1], [], []>} : vector<8x32xbf16>, vector<32x128xbf16>, vector<8x128xf32> -> vector<8x128xf32>
    %974 = arith.addf %971, %973 : vector<8x128xf32>
    %975 = vector.extract_strided_slice %974 {offsets = [0, 0], sizes = [8, 96], strides = [1, 1]} : vector<8x128xf32> to vector<8x96xf32>
    %976 = arith.negf %975 : vector<8x96xf32>
    %977 = math.exp %976 : vector<8x96xf32>
    %cst_297 = arith.constant 1.000000e+00 : f32
    %978 = vector.broadcast %cst_297 : f32 to vector<8x96xf32>
    %979 = arith.addf %978, %977 : vector<8x96xf32>
    %980 = arith.divf %978, %979 : vector<8x96xf32>
    %981 = vector.extract_strided_slice %980 {offsets = [0, 0], sizes = [8, 32], strides = [1, 1]} : vector<8x96xf32> to vector<8x32xf32>
    %982 = vector.extract_strided_slice %980 {offsets = [0, 32], sizes = [8, 32], strides = [1, 1]} : vector<8x96xf32> to vector<8x32xf32>
    %983 = vector.extract_strided_slice %980 {offsets = [0, 64], sizes = [8, 32], strides = [1, 1]} : vector<8x96xf32> to vector<8x32xf32>
    %984 = vector.extract_strided_slice %974 {offsets = [0, 96], sizes = [8, 32], strides = [1, 1]} : vector<8x128xf32> to vector<8x32xf32>
    %985 = math.tanh %984 : vector<8x32xf32>
    %986 = arith.mulf %982, %970 : vector<8x32xf32>
    %987 = arith.mulf %981, %985 : vector<8x32xf32>
    %988 = arith.addf %986, %987 : vector<8x32xf32>
    %989 = math.tanh %988 : vector<8x32xf32>
    %990 = arith.mulf %983, %989 : vector<8x32xf32>
    %c80_298 = arith.constant 80 : index
    %c0_299 = arith.constant 0 : index
    %991 = vector.load %arg0[%c80_298, %c0_299] : memref<144x1xf32, #tpu.memory_space<vmem>>, vector<8x1xf32>
    %cst_300 = arith.constant 0.000000e+00 : f32
    %992 = vector.broadcast %cst_300 : f32 to vector<8x1xf32>
    %993 = arith.cmpf ogt, %991, %992 : vector<8x1xf32>
    %cst_301 = arith.constant 0.000000e+00 : f32
    %994 = vector.shape_cast %993 : vector<8x1xi1> to vector<8x1xi1>
    %995 = vector.broadcast %994 : vector<8x1xi1> to vector<8x32xi1>
    %996 = vector.broadcast %cst_301 : f32 to vector<8x32xf32>
    %997 = arith.select %995, %990, %996 : vector<8x32xi1>, vector<8x32xf32>
    %c80_302 = arith.constant 80 : index
    %c0_303 = arith.constant 0 : index
    %998 = vector.load %arg16[%c80_302, %c0_303] : memref<144x32xf32, #tpu.memory_space<vmem>>, vector<8x32xf32>
    tpu.vector_store %arg16[%c80_302, %c0_303], %997 {strides = array<i32>} : memref<144x32xf32, #tpu.memory_space<vmem>>, vector<8x32xf32>,
    %999 = vector.shape_cast %993 : vector<8x1xi1> to vector<8x1xi1>
    %1000 = vector.broadcast %999 : vector<8x1xi1> to vector<8x32xi1>
    %1001 = arith.select %1000, %990, %967 : vector<8x32xi1>, vector<8x32xf32>
    %1002 = vector.shape_cast %993 : vector<8x1xi1> to vector<8x1xi1>
    %1003 = vector.broadcast %1002 : vector<8x1xi1> to vector<8x32xi1>
    %1004 = arith.select %1003, %988, %970 : vector<8x32xi1>, vector<8x32xf32>
    %c88_304 = arith.constant 88 : index
    %c0_305 = arith.constant 0 : index
    %1005 = vector.load %arg17[%c88_304, %c0_305] : memref<144x128xf32, #tpu.memory_space<vmem>>, vector<8x128xf32>
    %1006 = arith.truncf %1001 : vector<8x32xf32> to vector<8x32xbf16>
    %cst_306 = arith.constant dense<0.000000e+00> : vector<8x128xf32>
    %1007 = tpu.matmul %1006, %626, %cst_306 {dimension_numbers = #tpu.dot_dimension_numbers<[1], [0], [0], [1], [0, 0, 1, 1], [], []>} : vector<8x32xbf16>, vector<32x128xbf16>, vector<8x128xf32> -> vector<8x128xf32>
    %1008 = arith.addf %1005, %1007 : vector<8x128xf32>
    %1009 = vector.extract_strided_slice %1008 {offsets = [0, 0], sizes = [8, 96], strides = [1, 1]} : vector<8x128xf32> to vector<8x96xf32>
    %1010 = arith.negf %1009 : vector<8x96xf32>
    %1011 = math.exp %1010 : vector<8x96xf32>
    %cst_307 = arith.constant 1.000000e+00 : f32
    %1012 = vector.broadcast %cst_307 : f32 to vector<8x96xf32>
    %1013 = arith.addf %1012, %1011 : vector<8x96xf32>
    %1014 = arith.divf %1012, %1013 : vector<8x96xf32>
    %1015 = vector.extract_strided_slice %1014 {offsets = [0, 0], sizes = [8, 32], strides = [1, 1]} : vector<8x96xf32> to vector<8x32xf32>
    %1016 = vector.extract_strided_slice %1014 {offsets = [0, 32], sizes = [8, 32], strides = [1, 1]} : vector<8x96xf32> to vector<8x32xf32>
    %1017 = vector.extract_strided_slice %1014 {offsets = [0, 64], sizes = [8, 32], strides = [1, 1]} : vector<8x96xf32> to vector<8x32xf32>
    %1018 = vector.extract_strided_slice %1008 {offsets = [0, 96], sizes = [8, 32], strides = [1, 1]} : vector<8x128xf32> to vector<8x32xf32>
    %1019 = math.tanh %1018 : vector<8x32xf32>
    %1020 = arith.mulf %1016, %1004 : vector<8x32xf32>
    %1021 = arith.mulf %1015, %1019 : vector<8x32xf32>
    %1022 = arith.addf %1020, %1021 : vector<8x32xf32>
    %1023 = math.tanh %1022 : vector<8x32xf32>
    %1024 = arith.mulf %1017, %1023 : vector<8x32xf32>
    %c88_308 = arith.constant 88 : index
    %c0_309 = arith.constant 0 : index
    %1025 = vector.load %arg0[%c88_308, %c0_309] : memref<144x1xf32, #tpu.memory_space<vmem>>, vector<8x1xf32>
    %cst_310 = arith.constant 0.000000e+00 : f32
    %1026 = vector.broadcast %cst_310 : f32 to vector<8x1xf32>
    %1027 = arith.cmpf ogt, %1025, %1026 : vector<8x1xf32>
    %cst_311 = arith.constant 0.000000e+00 : f32
    %1028 = vector.shape_cast %1027 : vector<8x1xi1> to vector<8x1xi1>
    %1029 = vector.broadcast %1028 : vector<8x1xi1> to vector<8x32xi1>
    %1030 = vector.broadcast %cst_311 : f32 to vector<8x32xf32>
    %1031 = arith.select %1029, %1024, %1030 : vector<8x32xi1>, vector<8x32xf32>
    %c88_312 = arith.constant 88 : index
    %c0_313 = arith.constant 0 : index
    %1032 = vector.load %arg16[%c88_312, %c0_313] : memref<144x32xf32, #tpu.memory_space<vmem>>, vector<8x32xf32>
    tpu.vector_store %arg16[%c88_312, %c0_313], %1031 {strides = array<i32>} : memref<144x32xf32, #tpu.memory_space<vmem>>, vector<8x32xf32>,
    %1033 = vector.shape_cast %1027 : vector<8x1xi1> to vector<8x1xi1>
    %1034 = vector.broadcast %1033 : vector<8x1xi1> to vector<8x32xi1>
    %1035 = arith.select %1034, %1024, %1001 : vector<8x32xi1>, vector<8x32xf32>
    %1036 = vector.shape_cast %1027 : vector<8x1xi1> to vector<8x1xi1>
    %1037 = vector.broadcast %1036 : vector<8x1xi1> to vector<8x32xi1>
    %1038 = arith.select %1037, %1022, %1004 : vector<8x32xi1>, vector<8x32xf32>
    %c96_314 = arith.constant 96 : index
    %c0_315 = arith.constant 0 : index
    %1039 = vector.load %arg17[%c96_314, %c0_315] : memref<144x128xf32, #tpu.memory_space<vmem>>, vector<8x128xf32>
    %1040 = arith.truncf %1035 : vector<8x32xf32> to vector<8x32xbf16>
    %cst_316 = arith.constant dense<0.000000e+00> : vector<8x128xf32>
    %1041 = tpu.matmul %1040, %626, %cst_316 {dimension_numbers = #tpu.dot_dimension_numbers<[1], [0], [0], [1], [0, 0, 1, 1], [], []>} : vector<8x32xbf16>, vector<32x128xbf16>, vector<8x128xf32> -> vector<8x128xf32>
    %1042 = arith.addf %1039, %1041 : vector<8x128xf32>
    %1043 = vector.extract_strided_slice %1042 {offsets = [0, 0], sizes = [8, 96], strides = [1, 1]} : vector<8x128xf32> to vector<8x96xf32>
    %1044 = arith.negf %1043 : vector<8x96xf32>
    %1045 = math.exp %1044 : vector<8x96xf32>
    %cst_317 = arith.constant 1.000000e+00 : f32
    %1046 = vector.broadcast %cst_317 : f32 to vector<8x96xf32>
    %1047 = arith.addf %1046, %1045 : vector<8x96xf32>
    %1048 = arith.divf %1046, %1047 : vector<8x96xf32>
    %1049 = vector.extract_strided_slice %1048 {offsets = [0, 0], sizes = [8, 32], strides = [1, 1]} : vector<8x96xf32> to vector<8x32xf32>
    %1050 = vector.extract_strided_slice %1048 {offsets = [0, 32], sizes = [8, 32], strides = [1, 1]} : vector<8x96xf32> to vector<8x32xf32>
    %1051 = vector.extract_strided_slice %1048 {offsets = [0, 64], sizes = [8, 32], strides = [1, 1]} : vector<8x96xf32> to vector<8x32xf32>
    %1052 = vector.extract_strided_slice %1042 {offsets = [0, 96], sizes = [8, 32], strides = [1, 1]} : vector<8x128xf32> to vector<8x32xf32>
    %1053 = math.tanh %1052 : vector<8x32xf32>
    %1054 = arith.mulf %1050, %1038 : vector<8x32xf32>
    %1055 = arith.mulf %1049, %1053 : vector<8x32xf32>
    %1056 = arith.addf %1054, %1055 : vector<8x32xf32>
    %1057 = math.tanh %1056 : vector<8x32xf32>
    %1058 = arith.mulf %1051, %1057 : vector<8x32xf32>
    %c96_318 = arith.constant 96 : index
    %c0_319 = arith.constant 0 : index
    %1059 = vector.load %arg0[%c96_318, %c0_319] : memref<144x1xf32, #tpu.memory_space<vmem>>, vector<8x1xf32>
    %cst_320 = arith.constant 0.000000e+00 : f32
    %1060 = vector.broadcast %cst_320 : f32 to vector<8x1xf32>
    %1061 = arith.cmpf ogt, %1059, %1060 : vector<8x1xf32>
    %cst_321 = arith.constant 0.000000e+00 : f32
    %1062 = vector.shape_cast %1061 : vector<8x1xi1> to vector<8x1xi1>
    %1063 = vector.broadcast %1062 : vector<8x1xi1> to vector<8x32xi1>
    %1064 = vector.broadcast %cst_321 : f32 to vector<8x32xf32>
    %1065 = arith.select %1063, %1058, %1064 : vector<8x32xi1>, vector<8x32xf32>
    %c96_322 = arith.constant 96 : index
    %c0_323 = arith.constant 0 : index
    %1066 = vector.load %arg16[%c96_322, %c0_323] : memref<144x32xf32, #tpu.memory_space<vmem>>, vector<8x32xf32>
    tpu.vector_store %arg16[%c96_322, %c0_323], %1065 {strides = array<i32>} : memref<144x32xf32, #tpu.memory_space<vmem>>, vector<8x32xf32>,
    %1067 = vector.shape_cast %1061 : vector<8x1xi1> to vector<8x1xi1>
    %1068 = vector.broadcast %1067 : vector<8x1xi1> to vector<8x32xi1>
    %1069 = arith.select %1068, %1058, %1035 : vector<8x32xi1>, vector<8x32xf32>
    %1070 = vector.shape_cast %1061 : vector<8x1xi1> to vector<8x1xi1>
    %1071 = vector.broadcast %1070 : vector<8x1xi1> to vector<8x32xi1>
    %1072 = arith.select %1071, %1056, %1038 : vector<8x32xi1>, vector<8x32xf32>
    %c104_324 = arith.constant 104 : index
    %c0_325 = arith.constant 0 : index
    %1073 = vector.load %arg17[%c104_324, %c0_325] : memref<144x128xf32, #tpu.memory_space<vmem>>, vector<8x128xf32>
    %1074 = arith.truncf %1069 : vector<8x32xf32> to vector<8x32xbf16>
    %cst_326 = arith.constant dense<0.000000e+00> : vector<8x128xf32>
    %1075 = tpu.matmul %1074, %626, %cst_326 {dimension_numbers = #tpu.dot_dimension_numbers<[1], [0], [0], [1], [0, 0, 1, 1], [], []>} : vector<8x32xbf16>, vector<32x128xbf16>, vector<8x128xf32> -> vector<8x128xf32>
    %1076 = arith.addf %1073, %1075 : vector<8x128xf32>
    %1077 = vector.extract_strided_slice %1076 {offsets = [0, 0], sizes = [8, 96], strides = [1, 1]} : vector<8x128xf32> to vector<8x96xf32>
    %1078 = arith.negf %1077 : vector<8x96xf32>
    %1079 = math.exp %1078 : vector<8x96xf32>
    %cst_327 = arith.constant 1.000000e+00 : f32
    %1080 = vector.broadcast %cst_327 : f32 to vector<8x96xf32>
    %1081 = arith.addf %1080, %1079 : vector<8x96xf32>
    %1082 = arith.divf %1080, %1081 : vector<8x96xf32>
    %1083 = vector.extract_strided_slice %1082 {offsets = [0, 0], sizes = [8, 32], strides = [1, 1]} : vector<8x96xf32> to vector<8x32xf32>
    %1084 = vector.extract_strided_slice %1082 {offsets = [0, 32], sizes = [8, 32], strides = [1, 1]} : vector<8x96xf32> to vector<8x32xf32>
    %1085 = vector.extract_strided_slice %1082 {offsets = [0, 64], sizes = [8, 32], strides = [1, 1]} : vector<8x96xf32> to vector<8x32xf32>
    %1086 = vector.extract_strided_slice %1076 {offsets = [0, 96], sizes = [8, 32], strides = [1, 1]} : vector<8x128xf32> to vector<8x32xf32>
    %1087 = math.tanh %1086 : vector<8x32xf32>
    %1088 = arith.mulf %1084, %1072 : vector<8x32xf32>
    %1089 = arith.mulf %1083, %1087 : vector<8x32xf32>
    %1090 = arith.addf %1088, %1089 : vector<8x32xf32>
    %1091 = math.tanh %1090 : vector<8x32xf32>
    %1092 = arith.mulf %1085, %1091 : vector<8x32xf32>
    %c104_328 = arith.constant 104 : index
    %c0_329 = arith.constant 0 : index
    %1093 = vector.load %arg0[%c104_328, %c0_329] : memref<144x1xf32, #tpu.memory_space<vmem>>, vector<8x1xf32>
    %cst_330 = arith.constant 0.000000e+00 : f32
    %1094 = vector.broadcast %cst_330 : f32 to vector<8x1xf32>
    %1095 = arith.cmpf ogt, %1093, %1094 : vector<8x1xf32>
    %cst_331 = arith.constant 0.000000e+00 : f32
    %1096 = vector.shape_cast %1095 : vector<8x1xi1> to vector<8x1xi1>
    %1097 = vector.broadcast %1096 : vector<8x1xi1> to vector<8x32xi1>
    %1098 = vector.broadcast %cst_331 : f32 to vector<8x32xf32>
    %1099 = arith.select %1097, %1092, %1098 : vector<8x32xi1>, vector<8x32xf32>
    %c104_332 = arith.constant 104 : index
    %c0_333 = arith.constant 0 : index
    %1100 = vector.load %arg16[%c104_332, %c0_333] : memref<144x32xf32, #tpu.memory_space<vmem>>, vector<8x32xf32>
    tpu.vector_store %arg16[%c104_332, %c0_333], %1099 {strides = array<i32>} : memref<144x32xf32, #tpu.memory_space<vmem>>, vector<8x32xf32>,
    %1101 = vector.shape_cast %1095 : vector<8x1xi1> to vector<8x1xi1>
    %1102 = vector.broadcast %1101 : vector<8x1xi1> to vector<8x32xi1>
    %1103 = arith.select %1102, %1092, %1069 : vector<8x32xi1>, vector<8x32xf32>
    %1104 = vector.shape_cast %1095 : vector<8x1xi1> to vector<8x1xi1>
    %1105 = vector.broadcast %1104 : vector<8x1xi1> to vector<8x32xi1>
    %1106 = arith.select %1105, %1090, %1072 : vector<8x32xi1>, vector<8x32xf32>
    %c112_334 = arith.constant 112 : index
    %c0_335 = arith.constant 0 : index
    %1107 = vector.load %arg17[%c112_334, %c0_335] : memref<144x128xf32, #tpu.memory_space<vmem>>, vector<8x128xf32>
    %1108 = arith.truncf %1103 : vector<8x32xf32> to vector<8x32xbf16>
    %cst_336 = arith.constant dense<0.000000e+00> : vector<8x128xf32>
    %1109 = tpu.matmul %1108, %626, %cst_336 {dimension_numbers = #tpu.dot_dimension_numbers<[1], [0], [0], [1], [0, 0, 1, 1], [], []>} : vector<8x32xbf16>, vector<32x128xbf16>, vector<8x128xf32> -> vector<8x128xf32>
    %1110 = arith.addf %1107, %1109 : vector<8x128xf32>
    %1111 = vector.extract_strided_slice %1110 {offsets = [0, 0], sizes = [8, 96], strides = [1, 1]} : vector<8x128xf32> to vector<8x96xf32>
    %1112 = arith.negf %1111 : vector<8x96xf32>
    %1113 = math.exp %1112 : vector<8x96xf32>
    %cst_337 = arith.constant 1.000000e+00 : f32
    %1114 = vector.broadcast %cst_337 : f32 to vector<8x96xf32>
    %1115 = arith.addf %1114, %1113 : vector<8x96xf32>
    %1116 = arith.divf %1114, %1115 : vector<8x96xf32>
    %1117 = vector.extract_strided_slice %1116 {offsets = [0, 0], sizes = [8, 32], strides = [1, 1]} : vector<8x96xf32> to vector<8x32xf32>
    %1118 = vector.extract_strided_slice %1116 {offsets = [0, 32], sizes = [8, 32], strides = [1, 1]} : vector<8x96xf32> to vector<8x32xf32>
    %1119 = vector.extract_strided_slice %1116 {offsets = [0, 64], sizes = [8, 32], strides = [1, 1]} : vector<8x96xf32> to vector<8x32xf32>
    %1120 = vector.extract_strided_slice %1110 {offsets = [0, 96], sizes = [8, 32], strides = [1, 1]} : vector<8x128xf32> to vector<8x32xf32>
    %1121 = math.tanh %1120 : vector<8x32xf32>
    %1122 = arith.mulf %1118, %1106 : vector<8x32xf32>
    %1123 = arith.mulf %1117, %1121 : vector<8x32xf32>
    %1124 = arith.addf %1122, %1123 : vector<8x32xf32>
    %1125 = math.tanh %1124 : vector<8x32xf32>
    %1126 = arith.mulf %1119, %1125 : vector<8x32xf32>
    %c112_338 = arith.constant 112 : index
    %c0_339 = arith.constant 0 : index
    %1127 = vector.load %arg0[%c112_338, %c0_339] : memref<144x1xf32, #tpu.memory_space<vmem>>, vector<8x1xf32>
    %cst_340 = arith.constant 0.000000e+00 : f32
    %1128 = vector.broadcast %cst_340 : f32 to vector<8x1xf32>
    %1129 = arith.cmpf ogt, %1127, %1128 : vector<8x1xf32>
    %cst_341 = arith.constant 0.000000e+00 : f32
    %1130 = vector.shape_cast %1129 : vector<8x1xi1> to vector<8x1xi1>
    %1131 = vector.broadcast %1130 : vector<8x1xi1> to vector<8x32xi1>
    %1132 = vector.broadcast %cst_341 : f32 to vector<8x32xf32>
    %1133 = arith.select %1131, %1126, %1132 : vector<8x32xi1>, vector<8x32xf32>
    %c112_342 = arith.constant 112 : index
    %c0_343 = arith.constant 0 : index
    %1134 = vector.load %arg16[%c112_342, %c0_343] : memref<144x32xf32, #tpu.memory_space<vmem>>, vector<8x32xf32>
    tpu.vector_store %arg16[%c112_342, %c0_343], %1133 {strides = array<i32>} : memref<144x32xf32, #tpu.memory_space<vmem>>, vector<8x32xf32>,
    %1135 = vector.shape_cast %1129 : vector<8x1xi1> to vector<8x1xi1>
    %1136 = vector.broadcast %1135 : vector<8x1xi1> to vector<8x32xi1>
    %1137 = arith.select %1136, %1126, %1103 : vector<8x32xi1>, vector<8x32xf32>
    %1138 = vector.shape_cast %1129 : vector<8x1xi1> to vector<8x1xi1>
    %1139 = vector.broadcast %1138 : vector<8x1xi1> to vector<8x32xi1>
    %1140 = arith.select %1139, %1124, %1106 : vector<8x32xi1>, vector<8x32xf32>
    %c120_344 = arith.constant 120 : index
    %c0_345 = arith.constant 0 : index
    %1141 = vector.load %arg17[%c120_344, %c0_345] : memref<144x128xf32, #tpu.memory_space<vmem>>, vector<8x128xf32>
    %1142 = arith.truncf %1137 : vector<8x32xf32> to vector<8x32xbf16>
    %cst_346 = arith.constant dense<0.000000e+00> : vector<8x128xf32>
    %1143 = tpu.matmul %1142, %626, %cst_346 {dimension_numbers = #tpu.dot_dimension_numbers<[1], [0], [0], [1], [0, 0, 1, 1], [], []>} : vector<8x32xbf16>, vector<32x128xbf16>, vector<8x128xf32> -> vector<8x128xf32>
    %1144 = arith.addf %1141, %1143 : vector<8x128xf32>
    %1145 = vector.extract_strided_slice %1144 {offsets = [0, 0], sizes = [8, 96], strides = [1, 1]} : vector<8x128xf32> to vector<8x96xf32>
    %1146 = arith.negf %1145 : vector<8x96xf32>
    %1147 = math.exp %1146 : vector<8x96xf32>
    %cst_347 = arith.constant 1.000000e+00 : f32
    %1148 = vector.broadcast %cst_347 : f32 to vector<8x96xf32>
    %1149 = arith.addf %1148, %1147 : vector<8x96xf32>
    %1150 = arith.divf %1148, %1149 : vector<8x96xf32>
    %1151 = vector.extract_strided_slice %1150 {offsets = [0, 0], sizes = [8, 32], strides = [1, 1]} : vector<8x96xf32> to vector<8x32xf32>
    %1152 = vector.extract_strided_slice %1150 {offsets = [0, 32], sizes = [8, 32], strides = [1, 1]} : vector<8x96xf32> to vector<8x32xf32>
    %1153 = vector.extract_strided_slice %1150 {offsets = [0, 64], sizes = [8, 32], strides = [1, 1]} : vector<8x96xf32> to vector<8x32xf32>
    %1154 = vector.extract_strided_slice %1144 {offsets = [0, 96], sizes = [8, 32], strides = [1, 1]} : vector<8x128xf32> to vector<8x32xf32>
    %1155 = math.tanh %1154 : vector<8x32xf32>
    %1156 = arith.mulf %1152, %1140 : vector<8x32xf32>
    %1157 = arith.mulf %1151, %1155 : vector<8x32xf32>
    %1158 = arith.addf %1156, %1157 : vector<8x32xf32>
    %1159 = math.tanh %1158 : vector<8x32xf32>
    %1160 = arith.mulf %1153, %1159 : vector<8x32xf32>
    %c120_348 = arith.constant 120 : index
    %c0_349 = arith.constant 0 : index
    %1161 = vector.load %arg0[%c120_348, %c0_349] : memref<144x1xf32, #tpu.memory_space<vmem>>, vector<8x1xf32>
    %cst_350 = arith.constant 0.000000e+00 : f32
    %1162 = vector.broadcast %cst_350 : f32 to vector<8x1xf32>
    %1163 = arith.cmpf ogt, %1161, %1162 : vector<8x1xf32>
    %cst_351 = arith.constant 0.000000e+00 : f32
    %1164 = vector.shape_cast %1163 : vector<8x1xi1> to vector<8x1xi1>
    %1165 = vector.broadcast %1164 : vector<8x1xi1> to vector<8x32xi1>
    %1166 = vector.broadcast %cst_351 : f32 to vector<8x32xf32>
    %1167 = arith.select %1165, %1160, %1166 : vector<8x32xi1>, vector<8x32xf32>
    %c120_352 = arith.constant 120 : index
    %c0_353 = arith.constant 0 : index
    %1168 = vector.load %arg16[%c120_352, %c0_353] : memref<144x32xf32, #tpu.memory_space<vmem>>, vector<8x32xf32>
    tpu.vector_store %arg16[%c120_352, %c0_353], %1167 {strides = array<i32>} : memref<144x32xf32, #tpu.memory_space<vmem>>, vector<8x32xf32>,
    %1169 = vector.shape_cast %1163 : vector<8x1xi1> to vector<8x1xi1>
    %1170 = vector.broadcast %1169 : vector<8x1xi1> to vector<8x32xi1>
    %1171 = arith.select %1170, %1160, %1137 : vector<8x32xi1>, vector<8x32xf32>
    %1172 = vector.shape_cast %1163 : vector<8x1xi1> to vector<8x1xi1>
    %1173 = vector.broadcast %1172 : vector<8x1xi1> to vector<8x32xi1>
    %1174 = arith.select %1173, %1158, %1140 : vector<8x32xi1>, vector<8x32xf32>
    %c128_354 = arith.constant 128 : index
    %c0_355 = arith.constant 0 : index
    %1175 = vector.load %arg17[%c128_354, %c0_355] : memref<144x128xf32, #tpu.memory_space<vmem>>, vector<8x128xf32>
    %1176 = arith.truncf %1171 : vector<8x32xf32> to vector<8x32xbf16>
    %cst_356 = arith.constant dense<0.000000e+00> : vector<8x128xf32>
    %1177 = tpu.matmul %1176, %626, %cst_356 {dimension_numbers = #tpu.dot_dimension_numbers<[1], [0], [0], [1], [0, 0, 1, 1], [], []>} : vector<8x32xbf16>, vector<32x128xbf16>, vector<8x128xf32> -> vector<8x128xf32>
    %1178 = arith.addf %1175, %1177 : vector<8x128xf32>
    %1179 = vector.extract_strided_slice %1178 {offsets = [0, 0], sizes = [8, 96], strides = [1, 1]} : vector<8x128xf32> to vector<8x96xf32>
    %1180 = arith.negf %1179 : vector<8x96xf32>
    %1181 = math.exp %1180 : vector<8x96xf32>
    %cst_357 = arith.constant 1.000000e+00 : f32
    %1182 = vector.broadcast %cst_357 : f32 to vector<8x96xf32>
    %1183 = arith.addf %1182, %1181 : vector<8x96xf32>
    %1184 = arith.divf %1182, %1183 : vector<8x96xf32>
    %1185 = vector.extract_strided_slice %1184 {offsets = [0, 0], sizes = [8, 32], strides = [1, 1]} : vector<8x96xf32> to vector<8x32xf32>
    %1186 = vector.extract_strided_slice %1184 {offsets = [0, 32], sizes = [8, 32], strides = [1, 1]} : vector<8x96xf32> to vector<8x32xf32>
    %1187 = vector.extract_strided_slice %1184 {offsets = [0, 64], sizes = [8, 32], strides = [1, 1]} : vector<8x96xf32> to vector<8x32xf32>
    %1188 = vector.extract_strided_slice %1178 {offsets = [0, 96], sizes = [8, 32], strides = [1, 1]} : vector<8x128xf32> to vector<8x32xf32>
    %1189 = math.tanh %1188 : vector<8x32xf32>
    %1190 = arith.mulf %1186, %1174 : vector<8x32xf32>
    %1191 = arith.mulf %1185, %1189 : vector<8x32xf32>
    %1192 = arith.addf %1190, %1191 : vector<8x32xf32>
    %1193 = math.tanh %1192 : vector<8x32xf32>
    %1194 = arith.mulf %1187, %1193 : vector<8x32xf32>
    %c128_358 = arith.constant 128 : index
    %c0_359 = arith.constant 0 : index
    %1195 = vector.load %arg0[%c128_358, %c0_359] : memref<144x1xf32, #tpu.memory_space<vmem>>, vector<8x1xf32>
    %cst_360 = arith.constant 0.000000e+00 : f32
    %1196 = vector.broadcast %cst_360 : f32 to vector<8x1xf32>
    %1197 = arith.cmpf ogt, %1195, %1196 : vector<8x1xf32>
    %cst_361 = arith.constant 0.000000e+00 : f32
    %1198 = vector.shape_cast %1197 : vector<8x1xi1> to vector<8x1xi1>
    %1199 = vector.broadcast %1198 : vector<8x1xi1> to vector<8x32xi1>
    %1200 = vector.broadcast %cst_361 : f32 to vector<8x32xf32>
    %1201 = arith.select %1199, %1194, %1200 : vector<8x32xi1>, vector<8x32xf32>
    %c128_362 = arith.constant 128 : index
    %c0_363 = arith.constant 0 : index
    %1202 = vector.load %arg16[%c128_362, %c0_363] : memref<144x32xf32, #tpu.memory_space<vmem>>, vector<8x32xf32>
    tpu.vector_store %arg16[%c128_362, %c0_363], %1201 {strides = array<i32>} : memref<144x32xf32, #tpu.memory_space<vmem>>, vector<8x32xf32>,
    %1203 = vector.shape_cast %1197 : vector<8x1xi1> to vector<8x1xi1>
    %1204 = vector.broadcast %1203 : vector<8x1xi1> to vector<8x32xi1>
    %1205 = arith.select %1204, %1194, %1171 : vector<8x32xi1>, vector<8x32xf32>
    %1206 = vector.shape_cast %1197 : vector<8x1xi1> to vector<8x1xi1>
    %1207 = vector.broadcast %1206 : vector<8x1xi1> to vector<8x32xi1>
    %1208 = arith.select %1207, %1192, %1174 : vector<8x32xi1>, vector<8x32xf32>
    %c136_364 = arith.constant 136 : index
    %c0_365 = arith.constant 0 : index
    %1209 = vector.load %arg17[%c136_364, %c0_365] : memref<144x128xf32, #tpu.memory_space<vmem>>, vector<8x128xf32>
    %1210 = arith.truncf %1205 : vector<8x32xf32> to vector<8x32xbf16>
    %cst_366 = arith.constant dense<0.000000e+00> : vector<8x128xf32>
    %1211 = tpu.matmul %1210, %626, %cst_366 {dimension_numbers = #tpu.dot_dimension_numbers<[1], [0], [0], [1], [0, 0, 1, 1], [], []>} : vector<8x32xbf16>, vector<32x128xbf16>, vector<8x128xf32> -> vector<8x128xf32>
    %1212 = arith.addf %1209, %1211 : vector<8x128xf32>
    %1213 = vector.extract_strided_slice %1212 {offsets = [0, 0], sizes = [8, 96], strides = [1, 1]} : vector<8x128xf32> to vector<8x96xf32>
    %1214 = arith.negf %1213 : vector<8x96xf32>
    %1215 = math.exp %1214 : vector<8x96xf32>
    %cst_367 = arith.constant 1.000000e+00 : f32
    %1216 = vector.broadcast %cst_367 : f32 to vector<8x96xf32>
    %1217 = arith.addf %1216, %1215 : vector<8x96xf32>
    %1218 = arith.divf %1216, %1217 : vector<8x96xf32>
    %1219 = vector.extract_strided_slice %1218 {offsets = [0, 0], sizes = [8, 32], strides = [1, 1]} : vector<8x96xf32> to vector<8x32xf32>
    %1220 = vector.extract_strided_slice %1218 {offsets = [0, 32], sizes = [8, 32], strides = [1, 1]} : vector<8x96xf32> to vector<8x32xf32>
    %1221 = vector.extract_strided_slice %1218 {offsets = [0, 64], sizes = [8, 32], strides = [1, 1]} : vector<8x96xf32> to vector<8x32xf32>
    %1222 = vector.extract_strided_slice %1212 {offsets = [0, 96], sizes = [8, 32], strides = [1, 1]} : vector<8x128xf32> to vector<8x32xf32>
    %1223 = math.tanh %1222 : vector<8x32xf32>
    %1224 = arith.mulf %1220, %1208 : vector<8x32xf32>
    %1225 = arith.mulf %1219, %1223 : vector<8x32xf32>
    %1226 = arith.addf %1224, %1225 : vector<8x32xf32>
    %1227 = math.tanh %1226 : vector<8x32xf32>
    %1228 = arith.mulf %1221, %1227 : vector<8x32xf32>
    %c136_368 = arith.constant 136 : index
    %c0_369 = arith.constant 0 : index
    %1229 = vector.load %arg0[%c136_368, %c0_369] : memref<144x1xf32, #tpu.memory_space<vmem>>, vector<8x1xf32>
    %cst_370 = arith.constant 0.000000e+00 : f32
    %1230 = vector.broadcast %cst_370 : f32 to vector<8x1xf32>
    %1231 = arith.cmpf ogt, %1229, %1230 : vector<8x1xf32>
    %cst_371 = arith.constant 0.000000e+00 : f32
    %1232 = vector.shape_cast %1231 : vector<8x1xi1> to vector<8x1xi1>
    %1233 = vector.broadcast %1232 : vector<8x1xi1> to vector<8x32xi1>
    %1234 = vector.broadcast %cst_371 : f32 to vector<8x32xf32>
    %1235 = arith.select %1233, %1228, %1234 : vector<8x32xi1>, vector<8x32xf32>
    %c136_372 = arith.constant 136 : index
    %c0_373 = arith.constant 0 : index
    %1236 = vector.load %arg16[%c136_372, %c0_373] : memref<144x32xf32, #tpu.memory_space<vmem>>, vector<8x32xf32>
    tpu.vector_store %arg16[%c136_372, %c0_373], %1235 {strides = array<i32>} : memref<144x32xf32, #tpu.memory_space<vmem>>, vector<8x32xf32>,
    %c0_374 = arith.constant 0 : index
    %c0_375 = arith.constant 0 : index
    %1237 = vector.load %arg16[%c0_374, %c0_375] : memref<144x32xf32, #tpu.memory_space<vmem>>, vector<144x32xf32>
    %1238 = arith.truncf %1237 : vector<144x32xf32> to vector<144x32xbf16>
    %c0_376 = arith.constant 0 : index
    %c0_377 = arith.constant 0 : index
    %1239 = vector.load %arg10[%c0_376, %c0_377] : memref<32x128xbf16, #tpu.memory_space<vmem>>, vector<32x128xbf16>
    %cst_378 = arith.constant dense<0.000000e+00> : vector<144x128xf32>
    %1240 = tpu.matmul %1238, %1239, %cst_378 {dimension_numbers = #tpu.dot_dimension_numbers<[1], [0], [0], [1], [0, 0, 1, 1], [], []>} : vector<144x32xbf16>, vector<32x128xbf16>, vector<144x128xf32> -> vector<144x128xf32>
    %c0_379 = arith.constant 0 : index
    %c0_380 = arith.constant 0 : index
    %1241 = vector.load %arg12[%c0_379, %c0_380] : memref<1x128xf32, #tpu.memory_space<vmem>>, vector<1x128xf32>
    %1242 = vector.broadcast %1241 : vector<1x128xf32> to vector<144x128xf32>
    %1243 = arith.addf %1240, %1242 : vector<144x128xf32>
    %c0_381 = arith.constant 0 : index
    %c0_382 = arith.constant 0 : index
    %1244 = vector.load %arg17[%c0_381, %c0_382] : memref<144x128xf32, #tpu.memory_space<vmem>>, vector<144x128xf32>
    tpu.vector_store %arg17[%c0_381, %c0_382], %1243 {strides = array<i32>} : memref<144x128xf32, #tpu.memory_space<vmem>>, vector<144x128xf32>,
    %c0_383 = arith.constant 0 : index
    %c0_384 = arith.constant 0 : index
    %1245 = vector.load %arg11[%c0_383, %c0_384] : memref<32x128xbf16, #tpu.memory_space<vmem>>, vector<32x128xbf16>
    %c2 = arith.constant 2 : index
    %c0_385 = arith.constant 0 : index
    %c0_386 = arith.constant 0 : index
    %1246 = vector.load %arg2[%c2, %c0_385, %c0_386] : memref<3x8x32xf32, #tpu.memory_space<vmem>>, vector<1x8x32xf32>
    %1247 = vector.shape_cast %1246 : vector<1x8x32xf32> to vector<8x32xf32>
    %c2_387 = arith.constant 2 : index
    %c0_388 = arith.constant 0 : index
    %c0_389 = arith.constant 0 : index
    %1248 = vector.load %arg3[%c2_387, %c0_388, %c0_389] : memref<3x8x32xf32, #tpu.memory_space<vmem>>, vector<1x8x32xf32>
    %1249 = vector.shape_cast %1248 : vector<1x8x32xf32> to vector<8x32xf32>
    %c0_390 = arith.constant 0 : index
    %c0_391 = arith.constant 0 : index
    %1250 = vector.load %arg17[%c0_390, %c0_391] : memref<144x128xf32, #tpu.memory_space<vmem>>, vector<8x128xf32>
    %1251 = arith.truncf %1247 : vector<8x32xf32> to vector<8x32xbf16>
    %cst_392 = arith.constant dense<0.000000e+00> : vector<8x128xf32>
    %1252 = tpu.matmul %1251, %1245, %cst_392 {dimension_numbers = #tpu.dot_dimension_numbers<[1], [0], [0], [1], [0, 0, 1, 1], [], []>} : vector<8x32xbf16>, vector<32x128xbf16>, vector<8x128xf32> -> vector<8x128xf32>
    %1253 = arith.addf %1250, %1252 : vector<8x128xf32>
    %1254 = vector.extract_strided_slice %1253 {offsets = [0, 0], sizes = [8, 96], strides = [1, 1]} : vector<8x128xf32> to vector<8x96xf32>
    %1255 = arith.negf %1254 : vector<8x96xf32>
    %1256 = math.exp %1255 : vector<8x96xf32>
    %cst_393 = arith.constant 1.000000e+00 : f32
    %1257 = vector.broadcast %cst_393 : f32 to vector<8x96xf32>
    %1258 = arith.addf %1257, %1256 : vector<8x96xf32>
    %1259 = arith.divf %1257, %1258 : vector<8x96xf32>
    %1260 = vector.extract_strided_slice %1259 {offsets = [0, 0], sizes = [8, 32], strides = [1, 1]} : vector<8x96xf32> to vector<8x32xf32>
    %1261 = vector.extract_strided_slice %1259 {offsets = [0, 32], sizes = [8, 32], strides = [1, 1]} : vector<8x96xf32> to vector<8x32xf32>
    %1262 = vector.extract_strided_slice %1259 {offsets = [0, 64], sizes = [8, 32], strides = [1, 1]} : vector<8x96xf32> to vector<8x32xf32>
    %1263 = vector.extract_strided_slice %1253 {offsets = [0, 96], sizes = [8, 32], strides = [1, 1]} : vector<8x128xf32> to vector<8x32xf32>
    %1264 = math.tanh %1263 : vector<8x32xf32>
    %1265 = arith.mulf %1261, %1249 : vector<8x32xf32>
    %1266 = arith.mulf %1260, %1264 : vector<8x32xf32>
    %1267 = arith.addf %1265, %1266 : vector<8x32xf32>
    %1268 = math.tanh %1267 : vector<8x32xf32>
    %1269 = arith.mulf %1262, %1268 : vector<8x32xf32>
    %c0_394 = arith.constant 0 : index
    %c0_395 = arith.constant 0 : index
    %1270 = vector.load %arg0[%c0_394, %c0_395] : memref<144x1xf32, #tpu.memory_space<vmem>>, vector<8x1xf32>
    %cst_396 = arith.constant 0.000000e+00 : f32
    %1271 = vector.broadcast %cst_396 : f32 to vector<8x1xf32>
    %1272 = arith.cmpf ogt, %1270, %1271 : vector<8x1xf32>
    %cst_397 = arith.constant 0.000000e+00 : f32
    %1273 = vector.shape_cast %1272 : vector<8x1xi1> to vector<8x1xi1>
    %1274 = vector.broadcast %1273 : vector<8x1xi1> to vector<8x32xi1>
    %1275 = vector.broadcast %cst_397 : f32 to vector<8x32xf32>
    %1276 = arith.select %1274, %1269, %1275 : vector<8x32xi1>, vector<8x32xf32>
    %c0_398 = arith.constant 0 : index
    %c0_399 = arith.constant 0 : index
    %1277 = vector.load %arg16[%c0_398, %c0_399] : memref<144x32xf32, #tpu.memory_space<vmem>>, vector<8x32xf32>
    tpu.vector_store %arg16[%c0_398, %c0_399], %1276 {strides = array<i32>} : memref<144x32xf32, #tpu.memory_space<vmem>>, vector<8x32xf32>,
    %1278 = vector.shape_cast %1272 : vector<8x1xi1> to vector<8x1xi1>
    %1279 = vector.broadcast %1278 : vector<8x1xi1> to vector<8x32xi1>
    %1280 = arith.select %1279, %1269, %1247 : vector<8x32xi1>, vector<8x32xf32>
    %1281 = vector.shape_cast %1272 : vector<8x1xi1> to vector<8x1xi1>
    %1282 = vector.broadcast %1281 : vector<8x1xi1> to vector<8x32xi1>
    %1283 = arith.select %1282, %1267, %1249 : vector<8x32xi1>, vector<8x32xf32>
    %c8_400 = arith.constant 8 : index
    %c0_401 = arith.constant 0 : index
    %1284 = vector.load %arg17[%c8_400, %c0_401] : memref<144x128xf32, #tpu.memory_space<vmem>>, vector<8x128xf32>
    %1285 = arith.truncf %1280 : vector<8x32xf32> to vector<8x32xbf16>
    %cst_402 = arith.constant dense<0.000000e+00> : vector<8x128xf32>
    %1286 = tpu.matmul %1285, %1245, %cst_402 {dimension_numbers = #tpu.dot_dimension_numbers<[1], [0], [0], [1], [0, 0, 1, 1], [], []>} : vector<8x32xbf16>, vector<32x128xbf16>, vector<8x128xf32> -> vector<8x128xf32>
    %1287 = arith.addf %1284, %1286 : vector<8x128xf32>
    %1288 = vector.extract_strided_slice %1287 {offsets = [0, 0], sizes = [8, 96], strides = [1, 1]} : vector<8x128xf32> to vector<8x96xf32>
    %1289 = arith.negf %1288 : vector<8x96xf32>
    %1290 = math.exp %1289 : vector<8x96xf32>
    %cst_403 = arith.constant 1.000000e+00 : f32
    %1291 = vector.broadcast %cst_403 : f32 to vector<8x96xf32>
    %1292 = arith.addf %1291, %1290 : vector<8x96xf32>
    %1293 = arith.divf %1291, %1292 : vector<8x96xf32>
    %1294 = vector.extract_strided_slice %1293 {offsets = [0, 0], sizes = [8, 32], strides = [1, 1]} : vector<8x96xf32> to vector<8x32xf32>
    %1295 = vector.extract_strided_slice %1293 {offsets = [0, 32], sizes = [8, 32], strides = [1, 1]} : vector<8x96xf32> to vector<8x32xf32>
    %1296 = vector.extract_strided_slice %1293 {offsets = [0, 64], sizes = [8, 32], strides = [1, 1]} : vector<8x96xf32> to vector<8x32xf32>
    %1297 = vector.extract_strided_slice %1287 {offsets = [0, 96], sizes = [8, 32], strides = [1, 1]} : vector<8x128xf32> to vector<8x32xf32>
    %1298 = math.tanh %1297 : vector<8x32xf32>
    %1299 = arith.mulf %1295, %1283 : vector<8x32xf32>
    %1300 = arith.mulf %1294, %1298 : vector<8x32xf32>
    %1301 = arith.addf %1299, %1300 : vector<8x32xf32>
    %1302 = math.tanh %1301 : vector<8x32xf32>
    %1303 = arith.mulf %1296, %1302 : vector<8x32xf32>
    %c8_404 = arith.constant 8 : index
    %c0_405 = arith.constant 0 : index
    %1304 = vector.load %arg0[%c8_404, %c0_405] : memref<144x1xf32, #tpu.memory_space<vmem>>, vector<8x1xf32>
    %cst_406 = arith.constant 0.000000e+00 : f32
    %1305 = vector.broadcast %cst_406 : f32 to vector<8x1xf32>
    %1306 = arith.cmpf ogt, %1304, %1305 : vector<8x1xf32>
    %cst_407 = arith.constant 0.000000e+00 : f32
    %1307 = vector.shape_cast %1306 : vector<8x1xi1> to vector<8x1xi1>
    %1308 = vector.broadcast %1307 : vector<8x1xi1> to vector<8x32xi1>
    %1309 = vector.broadcast %cst_407 : f32 to vector<8x32xf32>
    %1310 = arith.select %1308, %1303, %1309 : vector<8x32xi1>, vector<8x32xf32>
    %c8_408 = arith.constant 8 : index
    %c0_409 = arith.constant 0 : index
    %1311 = vector.load %arg16[%c8_408, %c0_409] : memref<144x32xf32, #tpu.memory_space<vmem>>, vector<8x32xf32>
    tpu.vector_store %arg16[%c8_408, %c0_409], %1310 {strides = array<i32>} : memref<144x32xf32, #tpu.memory_space<vmem>>, vector<8x32xf32>,
    %1312 = vector.shape_cast %1306 : vector<8x1xi1> to vector<8x1xi1>
    %1313 = vector.broadcast %1312 : vector<8x1xi1> to vector<8x32xi1>
    %1314 = arith.select %1313, %1303, %1280 : vector<8x32xi1>, vector<8x32xf32>
    %1315 = vector.shape_cast %1306 : vector<8x1xi1> to vector<8x1xi1>
    %1316 = vector.broadcast %1315 : vector<8x1xi1> to vector<8x32xi1>
    %1317 = arith.select %1316, %1301, %1283 : vector<8x32xi1>, vector<8x32xf32>
    %c16_410 = arith.constant 16 : index
    %c0_411 = arith.constant 0 : index
    %1318 = vector.load %arg17[%c16_410, %c0_411] : memref<144x128xf32, #tpu.memory_space<vmem>>, vector<8x128xf32>
    %1319 = arith.truncf %1314 : vector<8x32xf32> to vector<8x32xbf16>
    %cst_412 = arith.constant dense<0.000000e+00> : vector<8x128xf32>
    %1320 = tpu.matmul %1319, %1245, %cst_412 {dimension_numbers = #tpu.dot_dimension_numbers<[1], [0], [0], [1], [0, 0, 1, 1], [], []>} : vector<8x32xbf16>, vector<32x128xbf16>, vector<8x128xf32> -> vector<8x128xf32>
    %1321 = arith.addf %1318, %1320 : vector<8x128xf32>
    %1322 = vector.extract_strided_slice %1321 {offsets = [0, 0], sizes = [8, 96], strides = [1, 1]} : vector<8x128xf32> to vector<8x96xf32>
    %1323 = arith.negf %1322 : vector<8x96xf32>
    %1324 = math.exp %1323 : vector<8x96xf32>
    %cst_413 = arith.constant 1.000000e+00 : f32
    %1325 = vector.broadcast %cst_413 : f32 to vector<8x96xf32>
    %1326 = arith.addf %1325, %1324 : vector<8x96xf32>
    %1327 = arith.divf %1325, %1326 : vector<8x96xf32>
    %1328 = vector.extract_strided_slice %1327 {offsets = [0, 0], sizes = [8, 32], strides = [1, 1]} : vector<8x96xf32> to vector<8x32xf32>
    %1329 = vector.extract_strided_slice %1327 {offsets = [0, 32], sizes = [8, 32], strides = [1, 1]} : vector<8x96xf32> to vector<8x32xf32>
    %1330 = vector.extract_strided_slice %1327 {offsets = [0, 64], sizes = [8, 32], strides = [1, 1]} : vector<8x96xf32> to vector<8x32xf32>
    %1331 = vector.extract_strided_slice %1321 {offsets = [0, 96], sizes = [8, 32], strides = [1, 1]} : vector<8x128xf32> to vector<8x32xf32>
    %1332 = math.tanh %1331 : vector<8x32xf32>
    %1333 = arith.mulf %1329, %1317 : vector<8x32xf32>
    %1334 = arith.mulf %1328, %1332 : vector<8x32xf32>
    %1335 = arith.addf %1333, %1334 : vector<8x32xf32>
    %1336 = math.tanh %1335 : vector<8x32xf32>
    %1337 = arith.mulf %1330, %1336 : vector<8x32xf32>
    %c16_414 = arith.constant 16 : index
    %c0_415 = arith.constant 0 : index
    %1338 = vector.load %arg0[%c16_414, %c0_415] : memref<144x1xf32, #tpu.memory_space<vmem>>, vector<8x1xf32>
    %cst_416 = arith.constant 0.000000e+00 : f32
    %1339 = vector.broadcast %cst_416 : f32 to vector<8x1xf32>
    %1340 = arith.cmpf ogt, %1338, %1339 : vector<8x1xf32>
    %cst_417 = arith.constant 0.000000e+00 : f32
    %1341 = vector.shape_cast %1340 : vector<8x1xi1> to vector<8x1xi1>
    %1342 = vector.broadcast %1341 : vector<8x1xi1> to vector<8x32xi1>
    %1343 = vector.broadcast %cst_417 : f32 to vector<8x32xf32>
    %1344 = arith.select %1342, %1337, %1343 : vector<8x32xi1>, vector<8x32xf32>
    %c16_418 = arith.constant 16 : index
    %c0_419 = arith.constant 0 : index
    %1345 = vector.load %arg16[%c16_418, %c0_419] : memref<144x32xf32, #tpu.memory_space<vmem>>, vector<8x32xf32>
    tpu.vector_store %arg16[%c16_418, %c0_419], %1344 {strides = array<i32>} : memref<144x32xf32, #tpu.memory_space<vmem>>, vector<8x32xf32>,
    %1346 = vector.shape_cast %1340 : vector<8x1xi1> to vector<8x1xi1>
    %1347 = vector.broadcast %1346 : vector<8x1xi1> to vector<8x32xi1>
    %1348 = arith.select %1347, %1337, %1314 : vector<8x32xi1>, vector<8x32xf32>
    %1349 = vector.shape_cast %1340 : vector<8x1xi1> to vector<8x1xi1>
    %1350 = vector.broadcast %1349 : vector<8x1xi1> to vector<8x32xi1>
    %1351 = arith.select %1350, %1335, %1317 : vector<8x32xi1>, vector<8x32xf32>
    %c24_420 = arith.constant 24 : index
    %c0_421 = arith.constant 0 : index
    %1352 = vector.load %arg17[%c24_420, %c0_421] : memref<144x128xf32, #tpu.memory_space<vmem>>, vector<8x128xf32>
    %1353 = arith.truncf %1348 : vector<8x32xf32> to vector<8x32xbf16>
    %cst_422 = arith.constant dense<0.000000e+00> : vector<8x128xf32>
    %1354 = tpu.matmul %1353, %1245, %cst_422 {dimension_numbers = #tpu.dot_dimension_numbers<[1], [0], [0], [1], [0, 0, 1, 1], [], []>} : vector<8x32xbf16>, vector<32x128xbf16>, vector<8x128xf32> -> vector<8x128xf32>
    %1355 = arith.addf %1352, %1354 : vector<8x128xf32>
    %1356 = vector.extract_strided_slice %1355 {offsets = [0, 0], sizes = [8, 96], strides = [1, 1]} : vector<8x128xf32> to vector<8x96xf32>
    %1357 = arith.negf %1356 : vector<8x96xf32>
    %1358 = math.exp %1357 : vector<8x96xf32>
    %cst_423 = arith.constant 1.000000e+00 : f32
    %1359 = vector.broadcast %cst_423 : f32 to vector<8x96xf32>
    %1360 = arith.addf %1359, %1358 : vector<8x96xf32>
    %1361 = arith.divf %1359, %1360 : vector<8x96xf32>
    %1362 = vector.extract_strided_slice %1361 {offsets = [0, 0], sizes = [8, 32], strides = [1, 1]} : vector<8x96xf32> to vector<8x32xf32>
    %1363 = vector.extract_strided_slice %1361 {offsets = [0, 32], sizes = [8, 32], strides = [1, 1]} : vector<8x96xf32> to vector<8x32xf32>
    %1364 = vector.extract_strided_slice %1361 {offsets = [0, 64], sizes = [8, 32], strides = [1, 1]} : vector<8x96xf32> to vector<8x32xf32>
    %1365 = vector.extract_strided_slice %1355 {offsets = [0, 96], sizes = [8, 32], strides = [1, 1]} : vector<8x128xf32> to vector<8x32xf32>
    %1366 = math.tanh %1365 : vector<8x32xf32>
    %1367 = arith.mulf %1363, %1351 : vector<8x32xf32>
    %1368 = arith.mulf %1362, %1366 : vector<8x32xf32>
    %1369 = arith.addf %1367, %1368 : vector<8x32xf32>
    %1370 = math.tanh %1369 : vector<8x32xf32>
    %1371 = arith.mulf %1364, %1370 : vector<8x32xf32>
    %c24_424 = arith.constant 24 : index
    %c0_425 = arith.constant 0 : index
    %1372 = vector.load %arg0[%c24_424, %c0_425] : memref<144x1xf32, #tpu.memory_space<vmem>>, vector<8x1xf32>
    %cst_426 = arith.constant 0.000000e+00 : f32
    %1373 = vector.broadcast %cst_426 : f32 to vector<8x1xf32>
    %1374 = arith.cmpf ogt, %1372, %1373 : vector<8x1xf32>
    %cst_427 = arith.constant 0.000000e+00 : f32
    %1375 = vector.shape_cast %1374 : vector<8x1xi1> to vector<8x1xi1>
    %1376 = vector.broadcast %1375 : vector<8x1xi1> to vector<8x32xi1>
    %1377 = vector.broadcast %cst_427 : f32 to vector<8x32xf32>
    %1378 = arith.select %1376, %1371, %1377 : vector<8x32xi1>, vector<8x32xf32>
    %c24_428 = arith.constant 24 : index
    %c0_429 = arith.constant 0 : index
    %1379 = vector.load %arg16[%c24_428, %c0_429] : memref<144x32xf32, #tpu.memory_space<vmem>>, vector<8x32xf32>
    tpu.vector_store %arg16[%c24_428, %c0_429], %1378 {strides = array<i32>} : memref<144x32xf32, #tpu.memory_space<vmem>>, vector<8x32xf32>,
    %1380 = vector.shape_cast %1374 : vector<8x1xi1> to vector<8x1xi1>
    %1381 = vector.broadcast %1380 : vector<8x1xi1> to vector<8x32xi1>
    %1382 = arith.select %1381, %1371, %1348 : vector<8x32xi1>, vector<8x32xf32>
    %1383 = vector.shape_cast %1374 : vector<8x1xi1> to vector<8x1xi1>
    %1384 = vector.broadcast %1383 : vector<8x1xi1> to vector<8x32xi1>
    %1385 = arith.select %1384, %1369, %1351 : vector<8x32xi1>, vector<8x32xf32>
    %c32_430 = arith.constant 32 : index
    %c0_431 = arith.constant 0 : index
    %1386 = vector.load %arg17[%c32_430, %c0_431] : memref<144x128xf32, #tpu.memory_space<vmem>>, vector<8x128xf32>
    %1387 = arith.truncf %1382 : vector<8x32xf32> to vector<8x32xbf16>
    %cst_432 = arith.constant dense<0.000000e+00> : vector<8x128xf32>
    %1388 = tpu.matmul %1387, %1245, %cst_432 {dimension_numbers = #tpu.dot_dimension_numbers<[1], [0], [0], [1], [0, 0, 1, 1], [], []>} : vector<8x32xbf16>, vector<32x128xbf16>, vector<8x128xf32> -> vector<8x128xf32>
    %1389 = arith.addf %1386, %1388 : vector<8x128xf32>
    %1390 = vector.extract_strided_slice %1389 {offsets = [0, 0], sizes = [8, 96], strides = [1, 1]} : vector<8x128xf32> to vector<8x96xf32>
    %1391 = arith.negf %1390 : vector<8x96xf32>
    %1392 = math.exp %1391 : vector<8x96xf32>
    %cst_433 = arith.constant 1.000000e+00 : f32
    %1393 = vector.broadcast %cst_433 : f32 to vector<8x96xf32>
    %1394 = arith.addf %1393, %1392 : vector<8x96xf32>
    %1395 = arith.divf %1393, %1394 : vector<8x96xf32>
    %1396 = vector.extract_strided_slice %1395 {offsets = [0, 0], sizes = [8, 32], strides = [1, 1]} : vector<8x96xf32> to vector<8x32xf32>
    %1397 = vector.extract_strided_slice %1395 {offsets = [0, 32], sizes = [8, 32], strides = [1, 1]} : vector<8x96xf32> to vector<8x32xf32>
    %1398 = vector.extract_strided_slice %1395 {offsets = [0, 64], sizes = [8, 32], strides = [1, 1]} : vector<8x96xf32> to vector<8x32xf32>
    %1399 = vector.extract_strided_slice %1389 {offsets = [0, 96], sizes = [8, 32], strides = [1, 1]} : vector<8x128xf32> to vector<8x32xf32>
    %1400 = math.tanh %1399 : vector<8x32xf32>
    %1401 = arith.mulf %1397, %1385 : vector<8x32xf32>
    %1402 = arith.mulf %1396, %1400 : vector<8x32xf32>
    %1403 = arith.addf %1401, %1402 : vector<8x32xf32>
    %1404 = math.tanh %1403 : vector<8x32xf32>
    %1405 = arith.mulf %1398, %1404 : vector<8x32xf32>
    %c32_434 = arith.constant 32 : index
    %c0_435 = arith.constant 0 : index
    %1406 = vector.load %arg0[%c32_434, %c0_435] : memref<144x1xf32, #tpu.memory_space<vmem>>, vector<8x1xf32>
    %cst_436 = arith.constant 0.000000e+00 : f32
    %1407 = vector.broadcast %cst_436 : f32 to vector<8x1xf32>
    %1408 = arith.cmpf ogt, %1406, %1407 : vector<8x1xf32>
    %cst_437 = arith.constant 0.000000e+00 : f32
    %1409 = vector.shape_cast %1408 : vector<8x1xi1> to vector<8x1xi1>
    %1410 = vector.broadcast %1409 : vector<8x1xi1> to vector<8x32xi1>
    %1411 = vector.broadcast %cst_437 : f32 to vector<8x32xf32>
    %1412 = arith.select %1410, %1405, %1411 : vector<8x32xi1>, vector<8x32xf32>
    %c32_438 = arith.constant 32 : index
    %c0_439 = arith.constant 0 : index
    %1413 = vector.load %arg16[%c32_438, %c0_439] : memref<144x32xf32, #tpu.memory_space<vmem>>, vector<8x32xf32>
    tpu.vector_store %arg16[%c32_438, %c0_439], %1412 {strides = array<i32>} : memref<144x32xf32, #tpu.memory_space<vmem>>, vector<8x32xf32>,
    %1414 = vector.shape_cast %1408 : vector<8x1xi1> to vector<8x1xi1>
    %1415 = vector.broadcast %1414 : vector<8x1xi1> to vector<8x32xi1>
    %1416 = arith.select %1415, %1405, %1382 : vector<8x32xi1>, vector<8x32xf32>
    %1417 = vector.shape_cast %1408 : vector<8x1xi1> to vector<8x1xi1>
    %1418 = vector.broadcast %1417 : vector<8x1xi1> to vector<8x32xi1>
    %1419 = arith.select %1418, %1403, %1385 : vector<8x32xi1>, vector<8x32xf32>
    %c40_440 = arith.constant 40 : index
    %c0_441 = arith.constant 0 : index
    %1420 = vector.load %arg17[%c40_440, %c0_441] : memref<144x128xf32, #tpu.memory_space<vmem>>, vector<8x128xf32>
    %1421 = arith.truncf %1416 : vector<8x32xf32> to vector<8x32xbf16>
    %cst_442 = arith.constant dense<0.000000e+00> : vector<8x128xf32>
    %1422 = tpu.matmul %1421, %1245, %cst_442 {dimension_numbers = #tpu.dot_dimension_numbers<[1], [0], [0], [1], [0, 0, 1, 1], [], []>} : vector<8x32xbf16>, vector<32x128xbf16>, vector<8x128xf32> -> vector<8x128xf32>
    %1423 = arith.addf %1420, %1422 : vector<8x128xf32>
    %1424 = vector.extract_strided_slice %1423 {offsets = [0, 0], sizes = [8, 96], strides = [1, 1]} : vector<8x128xf32> to vector<8x96xf32>
    %1425 = arith.negf %1424 : vector<8x96xf32>
    %1426 = math.exp %1425 : vector<8x96xf32>
    %cst_443 = arith.constant 1.000000e+00 : f32
    %1427 = vector.broadcast %cst_443 : f32 to vector<8x96xf32>
    %1428 = arith.addf %1427, %1426 : vector<8x96xf32>
    %1429 = arith.divf %1427, %1428 : vector<8x96xf32>
    %1430 = vector.extract_strided_slice %1429 {offsets = [0, 0], sizes = [8, 32], strides = [1, 1]} : vector<8x96xf32> to vector<8x32xf32>
    %1431 = vector.extract_strided_slice %1429 {offsets = [0, 32], sizes = [8, 32], strides = [1, 1]} : vector<8x96xf32> to vector<8x32xf32>
    %1432 = vector.extract_strided_slice %1429 {offsets = [0, 64], sizes = [8, 32], strides = [1, 1]} : vector<8x96xf32> to vector<8x32xf32>
    %1433 = vector.extract_strided_slice %1423 {offsets = [0, 96], sizes = [8, 32], strides = [1, 1]} : vector<8x128xf32> to vector<8x32xf32>
    %1434 = math.tanh %1433 : vector<8x32xf32>
    %1435 = arith.mulf %1431, %1419 : vector<8x32xf32>
    %1436 = arith.mulf %1430, %1434 : vector<8x32xf32>
    %1437 = arith.addf %1435, %1436 : vector<8x32xf32>
    %1438 = math.tanh %1437 : vector<8x32xf32>
    %1439 = arith.mulf %1432, %1438 : vector<8x32xf32>
    %c40_444 = arith.constant 40 : index
    %c0_445 = arith.constant 0 : index
    %1440 = vector.load %arg0[%c40_444, %c0_445] : memref<144x1xf32, #tpu.memory_space<vmem>>, vector<8x1xf32>
    %cst_446 = arith.constant 0.000000e+00 : f32
    %1441 = vector.broadcast %cst_446 : f32 to vector<8x1xf32>
    %1442 = arith.cmpf ogt, %1440, %1441 : vector<8x1xf32>
    %cst_447 = arith.constant 0.000000e+00 : f32
    %1443 = vector.shape_cast %1442 : vector<8x1xi1> to vector<8x1xi1>
    %1444 = vector.broadcast %1443 : vector<8x1xi1> to vector<8x32xi1>
    %1445 = vector.broadcast %cst_447 : f32 to vector<8x32xf32>
    %1446 = arith.select %1444, %1439, %1445 : vector<8x32xi1>, vector<8x32xf32>
    %c40_448 = arith.constant 40 : index
    %c0_449 = arith.constant 0 : index
    %1447 = vector.load %arg16[%c40_448, %c0_449] : memref<144x32xf32, #tpu.memory_space<vmem>>, vector<8x32xf32>
    tpu.vector_store %arg16[%c40_448, %c0_449], %1446 {strides = array<i32>} : memref<144x32xf32, #tpu.memory_space<vmem>>, vector<8x32xf32>,
    %1448 = vector.shape_cast %1442 : vector<8x1xi1> to vector<8x1xi1>
    %1449 = vector.broadcast %1448 : vector<8x1xi1> to vector<8x32xi1>
    %1450 = arith.select %1449, %1439, %1416 : vector<8x32xi1>, vector<8x32xf32>
    %1451 = vector.shape_cast %1442 : vector<8x1xi1> to vector<8x1xi1>
    %1452 = vector.broadcast %1451 : vector<8x1xi1> to vector<8x32xi1>
    %1453 = arith.select %1452, %1437, %1419 : vector<8x32xi1>, vector<8x32xf32>
    %c48_450 = arith.constant 48 : index
    %c0_451 = arith.constant 0 : index
    %1454 = vector.load %arg17[%c48_450, %c0_451] : memref<144x128xf32, #tpu.memory_space<vmem>>, vector<8x128xf32>
    %1455 = arith.truncf %1450 : vector<8x32xf32> to vector<8x32xbf16>
    %cst_452 = arith.constant dense<0.000000e+00> : vector<8x128xf32>
    %1456 = tpu.matmul %1455, %1245, %cst_452 {dimension_numbers = #tpu.dot_dimension_numbers<[1], [0], [0], [1], [0, 0, 1, 1], [], []>} : vector<8x32xbf16>, vector<32x128xbf16>, vector<8x128xf32> -> vector<8x128xf32>
    %1457 = arith.addf %1454, %1456 : vector<8x128xf32>
    %1458 = vector.extract_strided_slice %1457 {offsets = [0, 0], sizes = [8, 96], strides = [1, 1]} : vector<8x128xf32> to vector<8x96xf32>
    %1459 = arith.negf %1458 : vector<8x96xf32>
    %1460 = math.exp %1459 : vector<8x96xf32>
    %cst_453 = arith.constant 1.000000e+00 : f32
    %1461 = vector.broadcast %cst_453 : f32 to vector<8x96xf32>
    %1462 = arith.addf %1461, %1460 : vector<8x96xf32>
    %1463 = arith.divf %1461, %1462 : vector<8x96xf32>
    %1464 = vector.extract_strided_slice %1463 {offsets = [0, 0], sizes = [8, 32], strides = [1, 1]} : vector<8x96xf32> to vector<8x32xf32>
    %1465 = vector.extract_strided_slice %1463 {offsets = [0, 32], sizes = [8, 32], strides = [1, 1]} : vector<8x96xf32> to vector<8x32xf32>
    %1466 = vector.extract_strided_slice %1463 {offsets = [0, 64], sizes = [8, 32], strides = [1, 1]} : vector<8x96xf32> to vector<8x32xf32>
    %1467 = vector.extract_strided_slice %1457 {offsets = [0, 96], sizes = [8, 32], strides = [1, 1]} : vector<8x128xf32> to vector<8x32xf32>
    %1468 = math.tanh %1467 : vector<8x32xf32>
    %1469 = arith.mulf %1465, %1453 : vector<8x32xf32>
    %1470 = arith.mulf %1464, %1468 : vector<8x32xf32>
    %1471 = arith.addf %1469, %1470 : vector<8x32xf32>
    %1472 = math.tanh %1471 : vector<8x32xf32>
    %1473 = arith.mulf %1466, %1472 : vector<8x32xf32>
    %c48_454 = arith.constant 48 : index
    %c0_455 = arith.constant 0 : index
    %1474 = vector.load %arg0[%c48_454, %c0_455] : memref<144x1xf32, #tpu.memory_space<vmem>>, vector<8x1xf32>
    %cst_456 = arith.constant 0.000000e+00 : f32
    %1475 = vector.broadcast %cst_456 : f32 to vector<8x1xf32>
    %1476 = arith.cmpf ogt, %1474, %1475 : vector<8x1xf32>
    %cst_457 = arith.constant 0.000000e+00 : f32
    %1477 = vector.shape_cast %1476 : vector<8x1xi1> to vector<8x1xi1>
    %1478 = vector.broadcast %1477 : vector<8x1xi1> to vector<8x32xi1>
    %1479 = vector.broadcast %cst_457 : f32 to vector<8x32xf32>
    %1480 = arith.select %1478, %1473, %1479 : vector<8x32xi1>, vector<8x32xf32>
    %c48_458 = arith.constant 48 : index
    %c0_459 = arith.constant 0 : index
    %1481 = vector.load %arg16[%c48_458, %c0_459] : memref<144x32xf32, #tpu.memory_space<vmem>>, vector<8x32xf32>
    tpu.vector_store %arg16[%c48_458, %c0_459], %1480 {strides = array<i32>} : memref<144x32xf32, #tpu.memory_space<vmem>>, vector<8x32xf32>,
    %1482 = vector.shape_cast %1476 : vector<8x1xi1> to vector<8x1xi1>
    %1483 = vector.broadcast %1482 : vector<8x1xi1> to vector<8x32xi1>
    %1484 = arith.select %1483, %1473, %1450 : vector<8x32xi1>, vector<8x32xf32>
    %1485 = vector.shape_cast %1476 : vector<8x1xi1> to vector<8x1xi1>
    %1486 = vector.broadcast %1485 : vector<8x1xi1> to vector<8x32xi1>
    %1487 = arith.select %1486, %1471, %1453 : vector<8x32xi1>, vector<8x32xf32>
    %c56_460 = arith.constant 56 : index
    %c0_461 = arith.constant 0 : index
    %1488 = vector.load %arg17[%c56_460, %c0_461] : memref<144x128xf32, #tpu.memory_space<vmem>>, vector<8x128xf32>
    %1489 = arith.truncf %1484 : vector<8x32xf32> to vector<8x32xbf16>
    %cst_462 = arith.constant dense<0.000000e+00> : vector<8x128xf32>
    %1490 = tpu.matmul %1489, %1245, %cst_462 {dimension_numbers = #tpu.dot_dimension_numbers<[1], [0], [0], [1], [0, 0, 1, 1], [], []>} : vector<8x32xbf16>, vector<32x128xbf16>, vector<8x128xf32> -> vector<8x128xf32>
    %1491 = arith.addf %1488, %1490 : vector<8x128xf32>
    %1492 = vector.extract_strided_slice %1491 {offsets = [0, 0], sizes = [8, 96], strides = [1, 1]} : vector<8x128xf32> to vector<8x96xf32>
    %1493 = arith.negf %1492 : vector<8x96xf32>
    %1494 = math.exp %1493 : vector<8x96xf32>
    %cst_463 = arith.constant 1.000000e+00 : f32
    %1495 = vector.broadcast %cst_463 : f32 to vector<8x96xf32>
    %1496 = arith.addf %1495, %1494 : vector<8x96xf32>
    %1497 = arith.divf %1495, %1496 : vector<8x96xf32>
    %1498 = vector.extract_strided_slice %1497 {offsets = [0, 0], sizes = [8, 32], strides = [1, 1]} : vector<8x96xf32> to vector<8x32xf32>
    %1499 = vector.extract_strided_slice %1497 {offsets = [0, 32], sizes = [8, 32], strides = [1, 1]} : vector<8x96xf32> to vector<8x32xf32>
    %1500 = vector.extract_strided_slice %1497 {offsets = [0, 64], sizes = [8, 32], strides = [1, 1]} : vector<8x96xf32> to vector<8x32xf32>
    %1501 = vector.extract_strided_slice %1491 {offsets = [0, 96], sizes = [8, 32], strides = [1, 1]} : vector<8x128xf32> to vector<8x32xf32>
    %1502 = math.tanh %1501 : vector<8x32xf32>
    %1503 = arith.mulf %1499, %1487 : vector<8x32xf32>
    %1504 = arith.mulf %1498, %1502 : vector<8x32xf32>
    %1505 = arith.addf %1503, %1504 : vector<8x32xf32>
    %1506 = math.tanh %1505 : vector<8x32xf32>
    %1507 = arith.mulf %1500, %1506 : vector<8x32xf32>
    %c56_464 = arith.constant 56 : index
    %c0_465 = arith.constant 0 : index
    %1508 = vector.load %arg0[%c56_464, %c0_465] : memref<144x1xf32, #tpu.memory_space<vmem>>, vector<8x1xf32>
    %cst_466 = arith.constant 0.000000e+00 : f32
    %1509 = vector.broadcast %cst_466 : f32 to vector<8x1xf32>
    %1510 = arith.cmpf ogt, %1508, %1509 : vector<8x1xf32>
    %cst_467 = arith.constant 0.000000e+00 : f32
    %1511 = vector.shape_cast %1510 : vector<8x1xi1> to vector<8x1xi1>
    %1512 = vector.broadcast %1511 : vector<8x1xi1> to vector<8x32xi1>
    %1513 = vector.broadcast %cst_467 : f32 to vector<8x32xf32>
    %1514 = arith.select %1512, %1507, %1513 : vector<8x32xi1>, vector<8x32xf32>
    %c56_468 = arith.constant 56 : index
    %c0_469 = arith.constant 0 : index
    %1515 = vector.load %arg16[%c56_468, %c0_469] : memref<144x32xf32, #tpu.memory_space<vmem>>, vector<8x32xf32>
    tpu.vector_store %arg16[%c56_468, %c0_469], %1514 {strides = array<i32>} : memref<144x32xf32, #tpu.memory_space<vmem>>, vector<8x32xf32>,
    %1516 = vector.shape_cast %1510 : vector<8x1xi1> to vector<8x1xi1>
    %1517 = vector.broadcast %1516 : vector<8x1xi1> to vector<8x32xi1>
    %1518 = arith.select %1517, %1507, %1484 : vector<8x32xi1>, vector<8x32xf32>
    %1519 = vector.shape_cast %1510 : vector<8x1xi1> to vector<8x1xi1>
    %1520 = vector.broadcast %1519 : vector<8x1xi1> to vector<8x32xi1>
    %1521 = arith.select %1520, %1505, %1487 : vector<8x32xi1>, vector<8x32xf32>
    %c64_470 = arith.constant 64 : index
    %c0_471 = arith.constant 0 : index
    %1522 = vector.load %arg17[%c64_470, %c0_471] : memref<144x128xf32, #tpu.memory_space<vmem>>, vector<8x128xf32>
    %1523 = arith.truncf %1518 : vector<8x32xf32> to vector<8x32xbf16>
    %cst_472 = arith.constant dense<0.000000e+00> : vector<8x128xf32>
    %1524 = tpu.matmul %1523, %1245, %cst_472 {dimension_numbers = #tpu.dot_dimension_numbers<[1], [0], [0], [1], [0, 0, 1, 1], [], []>} : vector<8x32xbf16>, vector<32x128xbf16>, vector<8x128xf32> -> vector<8x128xf32>
    %1525 = arith.addf %1522, %1524 : vector<8x128xf32>
    %1526 = vector.extract_strided_slice %1525 {offsets = [0, 0], sizes = [8, 96], strides = [1, 1]} : vector<8x128xf32> to vector<8x96xf32>
    %1527 = arith.negf %1526 : vector<8x96xf32>
    %1528 = math.exp %1527 : vector<8x96xf32>
    %cst_473 = arith.constant 1.000000e+00 : f32
    %1529 = vector.broadcast %cst_473 : f32 to vector<8x96xf32>
    %1530 = arith.addf %1529, %1528 : vector<8x96xf32>
    %1531 = arith.divf %1529, %1530 : vector<8x96xf32>
    %1532 = vector.extract_strided_slice %1531 {offsets = [0, 0], sizes = [8, 32], strides = [1, 1]} : vector<8x96xf32> to vector<8x32xf32>
    %1533 = vector.extract_strided_slice %1531 {offsets = [0, 32], sizes = [8, 32], strides = [1, 1]} : vector<8x96xf32> to vector<8x32xf32>
    %1534 = vector.extract_strided_slice %1531 {offsets = [0, 64], sizes = [8, 32], strides = [1, 1]} : vector<8x96xf32> to vector<8x32xf32>
    %1535 = vector.extract_strided_slice %1525 {offsets = [0, 96], sizes = [8, 32], strides = [1, 1]} : vector<8x128xf32> to vector<8x32xf32>
    %1536 = math.tanh %1535 : vector<8x32xf32>
    %1537 = arith.mulf %1533, %1521 : vector<8x32xf32>
    %1538 = arith.mulf %1532, %1536 : vector<8x32xf32>
    %1539 = arith.addf %1537, %1538 : vector<8x32xf32>
    %1540 = math.tanh %1539 : vector<8x32xf32>
    %1541 = arith.mulf %1534, %1540 : vector<8x32xf32>
    %c64_474 = arith.constant 64 : index
    %c0_475 = arith.constant 0 : index
    %1542 = vector.load %arg0[%c64_474, %c0_475] : memref<144x1xf32, #tpu.memory_space<vmem>>, vector<8x1xf32>
    %cst_476 = arith.constant 0.000000e+00 : f32
    %1543 = vector.broadcast %cst_476 : f32 to vector<8x1xf32>
    %1544 = arith.cmpf ogt, %1542, %1543 : vector<8x1xf32>
    %cst_477 = arith.constant 0.000000e+00 : f32
    %1545 = vector.shape_cast %1544 : vector<8x1xi1> to vector<8x1xi1>
    %1546 = vector.broadcast %1545 : vector<8x1xi1> to vector<8x32xi1>
    %1547 = vector.broadcast %cst_477 : f32 to vector<8x32xf32>
    %1548 = arith.select %1546, %1541, %1547 : vector<8x32xi1>, vector<8x32xf32>
    %c64_478 = arith.constant 64 : index
    %c0_479 = arith.constant 0 : index
    %1549 = vector.load %arg16[%c64_478, %c0_479] : memref<144x32xf32, #tpu.memory_space<vmem>>, vector<8x32xf32>
    tpu.vector_store %arg16[%c64_478, %c0_479], %1548 {strides = array<i32>} : memref<144x32xf32, #tpu.memory_space<vmem>>, vector<8x32xf32>,
    %1550 = vector.shape_cast %1544 : vector<8x1xi1> to vector<8x1xi1>
    %1551 = vector.broadcast %1550 : vector<8x1xi1> to vector<8x32xi1>
    %1552 = arith.select %1551, %1541, %1518 : vector<8x32xi1>, vector<8x32xf32>
    %1553 = vector.shape_cast %1544 : vector<8x1xi1> to vector<8x1xi1>
    %1554 = vector.broadcast %1553 : vector<8x1xi1> to vector<8x32xi1>
    %1555 = arith.select %1554, %1539, %1521 : vector<8x32xi1>, vector<8x32xf32>
    %c72_480 = arith.constant 72 : index
    %c0_481 = arith.constant 0 : index
    %1556 = vector.load %arg17[%c72_480, %c0_481] : memref<144x128xf32, #tpu.memory_space<vmem>>, vector<8x128xf32>
    %1557 = arith.truncf %1552 : vector<8x32xf32> to vector<8x32xbf16>
    %cst_482 = arith.constant dense<0.000000e+00> : vector<8x128xf32>
    %1558 = tpu.matmul %1557, %1245, %cst_482 {dimension_numbers = #tpu.dot_dimension_numbers<[1], [0], [0], [1], [0, 0, 1, 1], [], []>} : vector<8x32xbf16>, vector<32x128xbf16>, vector<8x128xf32> -> vector<8x128xf32>
    %1559 = arith.addf %1556, %1558 : vector<8x128xf32>
    %1560 = vector.extract_strided_slice %1559 {offsets = [0, 0], sizes = [8, 96], strides = [1, 1]} : vector<8x128xf32> to vector<8x96xf32>
    %1561 = arith.negf %1560 : vector<8x96xf32>
    %1562 = math.exp %1561 : vector<8x96xf32>
    %cst_483 = arith.constant 1.000000e+00 : f32
    %1563 = vector.broadcast %cst_483 : f32 to vector<8x96xf32>
    %1564 = arith.addf %1563, %1562 : vector<8x96xf32>
    %1565 = arith.divf %1563, %1564 : vector<8x96xf32>
    %1566 = vector.extract_strided_slice %1565 {offsets = [0, 0], sizes = [8, 32], strides = [1, 1]} : vector<8x96xf32> to vector<8x32xf32>
    %1567 = vector.extract_strided_slice %1565 {offsets = [0, 32], sizes = [8, 32], strides = [1, 1]} : vector<8x96xf32> to vector<8x32xf32>
    %1568 = vector.extract_strided_slice %1565 {offsets = [0, 64], sizes = [8, 32], strides = [1, 1]} : vector<8x96xf32> to vector<8x32xf32>
    %1569 = vector.extract_strided_slice %1559 {offsets = [0, 96], sizes = [8, 32], strides = [1, 1]} : vector<8x128xf32> to vector<8x32xf32>
    %1570 = math.tanh %1569 : vector<8x32xf32>
    %1571 = arith.mulf %1567, %1555 : vector<8x32xf32>
    %1572 = arith.mulf %1566, %1570 : vector<8x32xf32>
    %1573 = arith.addf %1571, %1572 : vector<8x32xf32>
    %1574 = math.tanh %1573 : vector<8x32xf32>
    %1575 = arith.mulf %1568, %1574 : vector<8x32xf32>
    %c72_484 = arith.constant 72 : index
    %c0_485 = arith.constant 0 : index
    %1576 = vector.load %arg0[%c72_484, %c0_485] : memref<144x1xf32, #tpu.memory_space<vmem>>, vector<8x1xf32>
    %cst_486 = arith.constant 0.000000e+00 : f32
    %1577 = vector.broadcast %cst_486 : f32 to vector<8x1xf32>
    %1578 = arith.cmpf ogt, %1576, %1577 : vector<8x1xf32>
    %cst_487 = arith.constant 0.000000e+00 : f32
    %1579 = vector.shape_cast %1578 : vector<8x1xi1> to vector<8x1xi1>
    %1580 = vector.broadcast %1579 : vector<8x1xi1> to vector<8x32xi1>
    %1581 = vector.broadcast %cst_487 : f32 to vector<8x32xf32>
    %1582 = arith.select %1580, %1575, %1581 : vector<8x32xi1>, vector<8x32xf32>
    %c72_488 = arith.constant 72 : index
    %c0_489 = arith.constant 0 : index
    %1583 = vector.load %arg16[%c72_488, %c0_489] : memref<144x32xf32, #tpu.memory_space<vmem>>, vector<8x32xf32>
    tpu.vector_store %arg16[%c72_488, %c0_489], %1582 {strides = array<i32>} : memref<144x32xf32, #tpu.memory_space<vmem>>, vector<8x32xf32>,
    %1584 = vector.shape_cast %1578 : vector<8x1xi1> to vector<8x1xi1>
    %1585 = vector.broadcast %1584 : vector<8x1xi1> to vector<8x32xi1>
    %1586 = arith.select %1585, %1575, %1552 : vector<8x32xi1>, vector<8x32xf32>
    %1587 = vector.shape_cast %1578 : vector<8x1xi1> to vector<8x1xi1>
    %1588 = vector.broadcast %1587 : vector<8x1xi1> to vector<8x32xi1>
    %1589 = arith.select %1588, %1573, %1555 : vector<8x32xi1>, vector<8x32xf32>
    %c80_490 = arith.constant 80 : index
    %c0_491 = arith.constant 0 : index
    %1590 = vector.load %arg17[%c80_490, %c0_491] : memref<144x128xf32, #tpu.memory_space<vmem>>, vector<8x128xf32>
    %1591 = arith.truncf %1586 : vector<8x32xf32> to vector<8x32xbf16>
    %cst_492 = arith.constant dense<0.000000e+00> : vector<8x128xf32>
    %1592 = tpu.matmul %1591, %1245, %cst_492 {dimension_numbers = #tpu.dot_dimension_numbers<[1], [0], [0], [1], [0, 0, 1, 1], [], []>} : vector<8x32xbf16>, vector<32x128xbf16>, vector<8x128xf32> -> vector<8x128xf32>
    %1593 = arith.addf %1590, %1592 : vector<8x128xf32>
    %1594 = vector.extract_strided_slice %1593 {offsets = [0, 0], sizes = [8, 96], strides = [1, 1]} : vector<8x128xf32> to vector<8x96xf32>
    %1595 = arith.negf %1594 : vector<8x96xf32>
    %1596 = math.exp %1595 : vector<8x96xf32>
    %cst_493 = arith.constant 1.000000e+00 : f32
    %1597 = vector.broadcast %cst_493 : f32 to vector<8x96xf32>
    %1598 = arith.addf %1597, %1596 : vector<8x96xf32>
    %1599 = arith.divf %1597, %1598 : vector<8x96xf32>
    %1600 = vector.extract_strided_slice %1599 {offsets = [0, 0], sizes = [8, 32], strides = [1, 1]} : vector<8x96xf32> to vector<8x32xf32>
    %1601 = vector.extract_strided_slice %1599 {offsets = [0, 32], sizes = [8, 32], strides = [1, 1]} : vector<8x96xf32> to vector<8x32xf32>
    %1602 = vector.extract_strided_slice %1599 {offsets = [0, 64], sizes = [8, 32], strides = [1, 1]} : vector<8x96xf32> to vector<8x32xf32>
    %1603 = vector.extract_strided_slice %1593 {offsets = [0, 96], sizes = [8, 32], strides = [1, 1]} : vector<8x128xf32> to vector<8x32xf32>
    %1604 = math.tanh %1603 : vector<8x32xf32>
    %1605 = arith.mulf %1601, %1589 : vector<8x32xf32>
    %1606 = arith.mulf %1600, %1604 : vector<8x32xf32>
    %1607 = arith.addf %1605, %1606 : vector<8x32xf32>
    %1608 = math.tanh %1607 : vector<8x32xf32>
    %1609 = arith.mulf %1602, %1608 : vector<8x32xf32>
    %c80_494 = arith.constant 80 : index
    %c0_495 = arith.constant 0 : index
    %1610 = vector.load %arg0[%c80_494, %c0_495] : memref<144x1xf32, #tpu.memory_space<vmem>>, vector<8x1xf32>
    %cst_496 = arith.constant 0.000000e+00 : f32
    %1611 = vector.broadcast %cst_496 : f32 to vector<8x1xf32>
    %1612 = arith.cmpf ogt, %1610, %1611 : vector<8x1xf32>
    %cst_497 = arith.constant 0.000000e+00 : f32
    %1613 = vector.shape_cast %1612 : vector<8x1xi1> to vector<8x1xi1>
    %1614 = vector.broadcast %1613 : vector<8x1xi1> to vector<8x32xi1>
    %1615 = vector.broadcast %cst_497 : f32 to vector<8x32xf32>
    %1616 = arith.select %1614, %1609, %1615 : vector<8x32xi1>, vector<8x32xf32>
    %c80_498 = arith.constant 80 : index
    %c0_499 = arith.constant 0 : index
    %1617 = vector.load %arg16[%c80_498, %c0_499] : memref<144x32xf32, #tpu.memory_space<vmem>>, vector<8x32xf32>
    tpu.vector_store %arg16[%c80_498, %c0_499], %1616 {strides = array<i32>} : memref<144x32xf32, #tpu.memory_space<vmem>>, vector<8x32xf32>,
    %1618 = vector.shape_cast %1612 : vector<8x1xi1> to vector<8x1xi1>
    %1619 = vector.broadcast %1618 : vector<8x1xi1> to vector<8x32xi1>
    %1620 = arith.select %1619, %1609, %1586 : vector<8x32xi1>, vector<8x32xf32>
    %1621 = vector.shape_cast %1612 : vector<8x1xi1> to vector<8x1xi1>
    %1622 = vector.broadcast %1621 : vector<8x1xi1> to vector<8x32xi1>
    %1623 = arith.select %1622, %1607, %1589 : vector<8x32xi1>, vector<8x32xf32>
    %c88_500 = arith.constant 88 : index
    %c0_501 = arith.constant 0 : index
    %1624 = vector.load %arg17[%c88_500, %c0_501] : memref<144x128xf32, #tpu.memory_space<vmem>>, vector<8x128xf32>
    %1625 = arith.truncf %1620 : vector<8x32xf32> to vector<8x32xbf16>
    %cst_502 = arith.constant dense<0.000000e+00> : vector<8x128xf32>
    %1626 = tpu.matmul %1625, %1245, %cst_502 {dimension_numbers = #tpu.dot_dimension_numbers<[1], [0], [0], [1], [0, 0, 1, 1], [], []>} : vector<8x32xbf16>, vector<32x128xbf16>, vector<8x128xf32> -> vector<8x128xf32>
    %1627 = arith.addf %1624, %1626 : vector<8x128xf32>
    %1628 = vector.extract_strided_slice %1627 {offsets = [0, 0], sizes = [8, 96], strides = [1, 1]} : vector<8x128xf32> to vector<8x96xf32>
    %1629 = arith.negf %1628 : vector<8x96xf32>
    %1630 = math.exp %1629 : vector<8x96xf32>
    %cst_503 = arith.constant 1.000000e+00 : f32
    %1631 = vector.broadcast %cst_503 : f32 to vector<8x96xf32>
    %1632 = arith.addf %1631, %1630 : vector<8x96xf32>
    %1633 = arith.divf %1631, %1632 : vector<8x96xf32>
    %1634 = vector.extract_strided_slice %1633 {offsets = [0, 0], sizes = [8, 32], strides = [1, 1]} : vector<8x96xf32> to vector<8x32xf32>
    %1635 = vector.extract_strided_slice %1633 {offsets = [0, 32], sizes = [8, 32], strides = [1, 1]} : vector<8x96xf32> to vector<8x32xf32>
    %1636 = vector.extract_strided_slice %1633 {offsets = [0, 64], sizes = [8, 32], strides = [1, 1]} : vector<8x96xf32> to vector<8x32xf32>
    %1637 = vector.extract_strided_slice %1627 {offsets = [0, 96], sizes = [8, 32], strides = [1, 1]} : vector<8x128xf32> to vector<8x32xf32>
    %1638 = math.tanh %1637 : vector<8x32xf32>
    %1639 = arith.mulf %1635, %1623 : vector<8x32xf32>
    %1640 = arith.mulf %1634, %1638 : vector<8x32xf32>
    %1641 = arith.addf %1639, %1640 : vector<8x32xf32>
    %1642 = math.tanh %1641 : vector<8x32xf32>
    %1643 = arith.mulf %1636, %1642 : vector<8x32xf32>
    %c88_504 = arith.constant 88 : index
    %c0_505 = arith.constant 0 : index
    %1644 = vector.load %arg0[%c88_504, %c0_505] : memref<144x1xf32, #tpu.memory_space<vmem>>, vector<8x1xf32>
    %cst_506 = arith.constant 0.000000e+00 : f32
    %1645 = vector.broadcast %cst_506 : f32 to vector<8x1xf32>
    %1646 = arith.cmpf ogt, %1644, %1645 : vector<8x1xf32>
    %cst_507 = arith.constant 0.000000e+00 : f32
    %1647 = vector.shape_cast %1646 : vector<8x1xi1> to vector<8x1xi1>
    %1648 = vector.broadcast %1647 : vector<8x1xi1> to vector<8x32xi1>
    %1649 = vector.broadcast %cst_507 : f32 to vector<8x32xf32>
    %1650 = arith.select %1648, %1643, %1649 : vector<8x32xi1>, vector<8x32xf32>
    %c88_508 = arith.constant 88 : index
    %c0_509 = arith.constant 0 : index
    %1651 = vector.load %arg16[%c88_508, %c0_509] : memref<144x32xf32, #tpu.memory_space<vmem>>, vector<8x32xf32>
    tpu.vector_store %arg16[%c88_508, %c0_509], %1650 {strides = array<i32>} : memref<144x32xf32, #tpu.memory_space<vmem>>, vector<8x32xf32>,
    %1652 = vector.shape_cast %1646 : vector<8x1xi1> to vector<8x1xi1>
    %1653 = vector.broadcast %1652 : vector<8x1xi1> to vector<8x32xi1>
    %1654 = arith.select %1653, %1643, %1620 : vector<8x32xi1>, vector<8x32xf32>
    %1655 = vector.shape_cast %1646 : vector<8x1xi1> to vector<8x1xi1>
    %1656 = vector.broadcast %1655 : vector<8x1xi1> to vector<8x32xi1>
    %1657 = arith.select %1656, %1641, %1623 : vector<8x32xi1>, vector<8x32xf32>
    %c96_510 = arith.constant 96 : index
    %c0_511 = arith.constant 0 : index
    %1658 = vector.load %arg17[%c96_510, %c0_511] : memref<144x128xf32, #tpu.memory_space<vmem>>, vector<8x128xf32>
    %1659 = arith.truncf %1654 : vector<8x32xf32> to vector<8x32xbf16>
    %cst_512 = arith.constant dense<0.000000e+00> : vector<8x128xf32>
    %1660 = tpu.matmul %1659, %1245, %cst_512 {dimension_numbers = #tpu.dot_dimension_numbers<[1], [0], [0], [1], [0, 0, 1, 1], [], []>} : vector<8x32xbf16>, vector<32x128xbf16>, vector<8x128xf32> -> vector<8x128xf32>
    %1661 = arith.addf %1658, %1660 : vector<8x128xf32>
    %1662 = vector.extract_strided_slice %1661 {offsets = [0, 0], sizes = [8, 96], strides = [1, 1]} : vector<8x128xf32> to vector<8x96xf32>
    %1663 = arith.negf %1662 : vector<8x96xf32>
    %1664 = math.exp %1663 : vector<8x96xf32>
    %cst_513 = arith.constant 1.000000e+00 : f32
    %1665 = vector.broadcast %cst_513 : f32 to vector<8x96xf32>
    %1666 = arith.addf %1665, %1664 : vector<8x96xf32>
    %1667 = arith.divf %1665, %1666 : vector<8x96xf32>
    %1668 = vector.extract_strided_slice %1667 {offsets = [0, 0], sizes = [8, 32], strides = [1, 1]} : vector<8x96xf32> to vector<8x32xf32>
    %1669 = vector.extract_strided_slice %1667 {offsets = [0, 32], sizes = [8, 32], strides = [1, 1]} : vector<8x96xf32> to vector<8x32xf32>
    %1670 = vector.extract_strided_slice %1667 {offsets = [0, 64], sizes = [8, 32], strides = [1, 1]} : vector<8x96xf32> to vector<8x32xf32>
    %1671 = vector.extract_strided_slice %1661 {offsets = [0, 96], sizes = [8, 32], strides = [1, 1]} : vector<8x128xf32> to vector<8x32xf32>
    %1672 = math.tanh %1671 : vector<8x32xf32>
    %1673 = arith.mulf %1669, %1657 : vector<8x32xf32>
    %1674 = arith.mulf %1668, %1672 : vector<8x32xf32>
    %1675 = arith.addf %1673, %1674 : vector<8x32xf32>
    %1676 = math.tanh %1675 : vector<8x32xf32>
    %1677 = arith.mulf %1670, %1676 : vector<8x32xf32>
    %c96_514 = arith.constant 96 : index
    %c0_515 = arith.constant 0 : index
    %1678 = vector.load %arg0[%c96_514, %c0_515] : memref<144x1xf32, #tpu.memory_space<vmem>>, vector<8x1xf32>
    %cst_516 = arith.constant 0.000000e+00 : f32
    %1679 = vector.broadcast %cst_516 : f32 to vector<8x1xf32>
    %1680 = arith.cmpf ogt, %1678, %1679 : vector<8x1xf32>
    %cst_517 = arith.constant 0.000000e+00 : f32
    %1681 = vector.shape_cast %1680 : vector<8x1xi1> to vector<8x1xi1>
    %1682 = vector.broadcast %1681 : vector<8x1xi1> to vector<8x32xi1>
    %1683 = vector.broadcast %cst_517 : f32 to vector<8x32xf32>
    %1684 = arith.select %1682, %1677, %1683 : vector<8x32xi1>, vector<8x32xf32>
    %c96_518 = arith.constant 96 : index
    %c0_519 = arith.constant 0 : index
    %1685 = vector.load %arg16[%c96_518, %c0_519] : memref<144x32xf32, #tpu.memory_space<vmem>>, vector<8x32xf32>
    tpu.vector_store %arg16[%c96_518, %c0_519], %1684 {strides = array<i32>} : memref<144x32xf32, #tpu.memory_space<vmem>>, vector<8x32xf32>,
    %1686 = vector.shape_cast %1680 : vector<8x1xi1> to vector<8x1xi1>
    %1687 = vector.broadcast %1686 : vector<8x1xi1> to vector<8x32xi1>
    %1688 = arith.select %1687, %1677, %1654 : vector<8x32xi1>, vector<8x32xf32>
    %1689 = vector.shape_cast %1680 : vector<8x1xi1> to vector<8x1xi1>
    %1690 = vector.broadcast %1689 : vector<8x1xi1> to vector<8x32xi1>
    %1691 = arith.select %1690, %1675, %1657 : vector<8x32xi1>, vector<8x32xf32>
    %c104_520 = arith.constant 104 : index
    %c0_521 = arith.constant 0 : index
    %1692 = vector.load %arg17[%c104_520, %c0_521] : memref<144x128xf32, #tpu.memory_space<vmem>>, vector<8x128xf32>
    %1693 = arith.truncf %1688 : vector<8x32xf32> to vector<8x32xbf16>
    %cst_522 = arith.constant dense<0.000000e+00> : vector<8x128xf32>
    %1694 = tpu.matmul %1693, %1245, %cst_522 {dimension_numbers = #tpu.dot_dimension_numbers<[1], [0], [0], [1], [0, 0, 1, 1], [], []>} : vector<8x32xbf16>, vector<32x128xbf16>, vector<8x128xf32> -> vector<8x128xf32>
    %1695 = arith.addf %1692, %1694 : vector<8x128xf32>
    %1696 = vector.extract_strided_slice %1695 {offsets = [0, 0], sizes = [8, 96], strides = [1, 1]} : vector<8x128xf32> to vector<8x96xf32>
    %1697 = arith.negf %1696 : vector<8x96xf32>
    %1698 = math.exp %1697 : vector<8x96xf32>
    %cst_523 = arith.constant 1.000000e+00 : f32
    %1699 = vector.broadcast %cst_523 : f32 to vector<8x96xf32>
    %1700 = arith.addf %1699, %1698 : vector<8x96xf32>
    %1701 = arith.divf %1699, %1700 : vector<8x96xf32>
    %1702 = vector.extract_strided_slice %1701 {offsets = [0, 0], sizes = [8, 32], strides = [1, 1]} : vector<8x96xf32> to vector<8x32xf32>
    %1703 = vector.extract_strided_slice %1701 {offsets = [0, 32], sizes = [8, 32], strides = [1, 1]} : vector<8x96xf32> to vector<8x32xf32>
    %1704 = vector.extract_strided_slice %1701 {offsets = [0, 64], sizes = [8, 32], strides = [1, 1]} : vector<8x96xf32> to vector<8x32xf32>
    %1705 = vector.extract_strided_slice %1695 {offsets = [0, 96], sizes = [8, 32], strides = [1, 1]} : vector<8x128xf32> to vector<8x32xf32>
    %1706 = math.tanh %1705 : vector<8x32xf32>
    %1707 = arith.mulf %1703, %1691 : vector<8x32xf32>
    %1708 = arith.mulf %1702, %1706 : vector<8x32xf32>
    %1709 = arith.addf %1707, %1708 : vector<8x32xf32>
    %1710 = math.tanh %1709 : vector<8x32xf32>
    %1711 = arith.mulf %1704, %1710 : vector<8x32xf32>
    %c104_524 = arith.constant 104 : index
    %c0_525 = arith.constant 0 : index
    %1712 = vector.load %arg0[%c104_524, %c0_525] : memref<144x1xf32, #tpu.memory_space<vmem>>, vector<8x1xf32>
    %cst_526 = arith.constant 0.000000e+00 : f32
    %1713 = vector.broadcast %cst_526 : f32 to vector<8x1xf32>
    %1714 = arith.cmpf ogt, %1712, %1713 : vector<8x1xf32>
    %cst_527 = arith.constant 0.000000e+00 : f32
    %1715 = vector.shape_cast %1714 : vector<8x1xi1> to vector<8x1xi1>
    %1716 = vector.broadcast %1715 : vector<8x1xi1> to vector<8x32xi1>
    %1717 = vector.broadcast %cst_527 : f32 to vector<8x32xf32>
    %1718 = arith.select %1716, %1711, %1717 : vector<8x32xi1>, vector<8x32xf32>
    %c104_528 = arith.constant 104 : index
    %c0_529 = arith.constant 0 : index
    %1719 = vector.load %arg16[%c104_528, %c0_529] : memref<144x32xf32, #tpu.memory_space<vmem>>, vector<8x32xf32>
    tpu.vector_store %arg16[%c104_528, %c0_529], %1718 {strides = array<i32>} : memref<144x32xf32, #tpu.memory_space<vmem>>, vector<8x32xf32>,
    %1720 = vector.shape_cast %1714 : vector<8x1xi1> to vector<8x1xi1>
    %1721 = vector.broadcast %1720 : vector<8x1xi1> to vector<8x32xi1>
    %1722 = arith.select %1721, %1711, %1688 : vector<8x32xi1>, vector<8x32xf32>
    %1723 = vector.shape_cast %1714 : vector<8x1xi1> to vector<8x1xi1>
    %1724 = vector.broadcast %1723 : vector<8x1xi1> to vector<8x32xi1>
    %1725 = arith.select %1724, %1709, %1691 : vector<8x32xi1>, vector<8x32xf32>
    %c112_530 = arith.constant 112 : index
    %c0_531 = arith.constant 0 : index
    %1726 = vector.load %arg17[%c112_530, %c0_531] : memref<144x128xf32, #tpu.memory_space<vmem>>, vector<8x128xf32>
    %1727 = arith.truncf %1722 : vector<8x32xf32> to vector<8x32xbf16>
    %cst_532 = arith.constant dense<0.000000e+00> : vector<8x128xf32>
    %1728 = tpu.matmul %1727, %1245, %cst_532 {dimension_numbers = #tpu.dot_dimension_numbers<[1], [0], [0], [1], [0, 0, 1, 1], [], []>} : vector<8x32xbf16>, vector<32x128xbf16>, vector<8x128xf32> -> vector<8x128xf32>
    %1729 = arith.addf %1726, %1728 : vector<8x128xf32>
    %1730 = vector.extract_strided_slice %1729 {offsets = [0, 0], sizes = [8, 96], strides = [1, 1]} : vector<8x128xf32> to vector<8x96xf32>
    %1731 = arith.negf %1730 : vector<8x96xf32>
    %1732 = math.exp %1731 : vector<8x96xf32>
    %cst_533 = arith.constant 1.000000e+00 : f32
    %1733 = vector.broadcast %cst_533 : f32 to vector<8x96xf32>
    %1734 = arith.addf %1733, %1732 : vector<8x96xf32>
    %1735 = arith.divf %1733, %1734 : vector<8x96xf32>
    %1736 = vector.extract_strided_slice %1735 {offsets = [0, 0], sizes = [8, 32], strides = [1, 1]} : vector<8x96xf32> to vector<8x32xf32>
    %1737 = vector.extract_strided_slice %1735 {offsets = [0, 32], sizes = [8, 32], strides = [1, 1]} : vector<8x96xf32> to vector<8x32xf32>
    %1738 = vector.extract_strided_slice %1735 {offsets = [0, 64], sizes = [8, 32], strides = [1, 1]} : vector<8x96xf32> to vector<8x32xf32>
    %1739 = vector.extract_strided_slice %1729 {offsets = [0, 96], sizes = [8, 32], strides = [1, 1]} : vector<8x128xf32> to vector<8x32xf32>
    %1740 = math.tanh %1739 : vector<8x32xf32>
    %1741 = arith.mulf %1737, %1725 : vector<8x32xf32>
    %1742 = arith.mulf %1736, %1740 : vector<8x32xf32>
    %1743 = arith.addf %1741, %1742 : vector<8x32xf32>
    %1744 = math.tanh %1743 : vector<8x32xf32>
    %1745 = arith.mulf %1738, %1744 : vector<8x32xf32>
    %c112_534 = arith.constant 112 : index
    %c0_535 = arith.constant 0 : index
    %1746 = vector.load %arg0[%c112_534, %c0_535] : memref<144x1xf32, #tpu.memory_space<vmem>>, vector<8x1xf32>
    %cst_536 = arith.constant 0.000000e+00 : f32
    %1747 = vector.broadcast %cst_536 : f32 to vector<8x1xf32>
    %1748 = arith.cmpf ogt, %1746, %1747 : vector<8x1xf32>
    %cst_537 = arith.constant 0.000000e+00 : f32
    %1749 = vector.shape_cast %1748 : vector<8x1xi1> to vector<8x1xi1>
    %1750 = vector.broadcast %1749 : vector<8x1xi1> to vector<8x32xi1>
    %1751 = vector.broadcast %cst_537 : f32 to vector<8x32xf32>
    %1752 = arith.select %1750, %1745, %1751 : vector<8x32xi1>, vector<8x32xf32>
    %c112_538 = arith.constant 112 : index
    %c0_539 = arith.constant 0 : index
    %1753 = vector.load %arg16[%c112_538, %c0_539] : memref<144x32xf32, #tpu.memory_space<vmem>>, vector<8x32xf32>
    tpu.vector_store %arg16[%c112_538, %c0_539], %1752 {strides = array<i32>} : memref<144x32xf32, #tpu.memory_space<vmem>>, vector<8x32xf32>,
    %1754 = vector.shape_cast %1748 : vector<8x1xi1> to vector<8x1xi1>
    %1755 = vector.broadcast %1754 : vector<8x1xi1> to vector<8x32xi1>
    %1756 = arith.select %1755, %1745, %1722 : vector<8x32xi1>, vector<8x32xf32>
    %1757 = vector.shape_cast %1748 : vector<8x1xi1> to vector<8x1xi1>
    %1758 = vector.broadcast %1757 : vector<8x1xi1> to vector<8x32xi1>
    %1759 = arith.select %1758, %1743, %1725 : vector<8x32xi1>, vector<8x32xf32>
    %c120_540 = arith.constant 120 : index
    %c0_541 = arith.constant 0 : index
    %1760 = vector.load %arg17[%c120_540, %c0_541] : memref<144x128xf32, #tpu.memory_space<vmem>>, vector<8x128xf32>
    %1761 = arith.truncf %1756 : vector<8x32xf32> to vector<8x32xbf16>
    %cst_542 = arith.constant dense<0.000000e+00> : vector<8x128xf32>
    %1762 = tpu.matmul %1761, %1245, %cst_542 {dimension_numbers = #tpu.dot_dimension_numbers<[1], [0], [0], [1], [0, 0, 1, 1], [], []>} : vector<8x32xbf16>, vector<32x128xbf16>, vector<8x128xf32> -> vector<8x128xf32>
    %1763 = arith.addf %1760, %1762 : vector<8x128xf32>
    %1764 = vector.extract_strided_slice %1763 {offsets = [0, 0], sizes = [8, 96], strides = [1, 1]} : vector<8x128xf32> to vector<8x96xf32>
    %1765 = arith.negf %1764 : vector<8x96xf32>
    %1766 = math.exp %1765 : vector<8x96xf32>
    %cst_543 = arith.constant 1.000000e+00 : f32
    %1767 = vector.broadcast %cst_543 : f32 to vector<8x96xf32>
    %1768 = arith.addf %1767, %1766 : vector<8x96xf32>
    %1769 = arith.divf %1767, %1768 : vector<8x96xf32>
    %1770 = vector.extract_strided_slice %1769 {offsets = [0, 0], sizes = [8, 32], strides = [1, 1]} : vector<8x96xf32> to vector<8x32xf32>
    %1771 = vector.extract_strided_slice %1769 {offsets = [0, 32], sizes = [8, 32], strides = [1, 1]} : vector<8x96xf32> to vector<8x32xf32>
    %1772 = vector.extract_strided_slice %1769 {offsets = [0, 64], sizes = [8, 32], strides = [1, 1]} : vector<8x96xf32> to vector<8x32xf32>
    %1773 = vector.extract_strided_slice %1763 {offsets = [0, 96], sizes = [8, 32], strides = [1, 1]} : vector<8x128xf32> to vector<8x32xf32>
    %1774 = math.tanh %1773 : vector<8x32xf32>
    %1775 = arith.mulf %1771, %1759 : vector<8x32xf32>
    %1776 = arith.mulf %1770, %1774 : vector<8x32xf32>
    %1777 = arith.addf %1775, %1776 : vector<8x32xf32>
    %1778 = math.tanh %1777 : vector<8x32xf32>
    %1779 = arith.mulf %1772, %1778 : vector<8x32xf32>
    %c120_544 = arith.constant 120 : index
    %c0_545 = arith.constant 0 : index
    %1780 = vector.load %arg0[%c120_544, %c0_545] : memref<144x1xf32, #tpu.memory_space<vmem>>, vector<8x1xf32>
    %cst_546 = arith.constant 0.000000e+00 : f32
    %1781 = vector.broadcast %cst_546 : f32 to vector<8x1xf32>
    %1782 = arith.cmpf ogt, %1780, %1781 : vector<8x1xf32>
    %cst_547 = arith.constant 0.000000e+00 : f32
    %1783 = vector.shape_cast %1782 : vector<8x1xi1> to vector<8x1xi1>
    %1784 = vector.broadcast %1783 : vector<8x1xi1> to vector<8x32xi1>
    %1785 = vector.broadcast %cst_547 : f32 to vector<8x32xf32>
    %1786 = arith.select %1784, %1779, %1785 : vector<8x32xi1>, vector<8x32xf32>
    %c120_548 = arith.constant 120 : index
    %c0_549 = arith.constant 0 : index
    %1787 = vector.load %arg16[%c120_548, %c0_549] : memref<144x32xf32, #tpu.memory_space<vmem>>, vector<8x32xf32>
    tpu.vector_store %arg16[%c120_548, %c0_549], %1786 {strides = array<i32>} : memref<144x32xf32, #tpu.memory_space<vmem>>, vector<8x32xf32>,
    %1788 = vector.shape_cast %1782 : vector<8x1xi1> to vector<8x1xi1>
    %1789 = vector.broadcast %1788 : vector<8x1xi1> to vector<8x32xi1>
    %1790 = arith.select %1789, %1779, %1756 : vector<8x32xi1>, vector<8x32xf32>
    %1791 = vector.shape_cast %1782 : vector<8x1xi1> to vector<8x1xi1>
    %1792 = vector.broadcast %1791 : vector<8x1xi1> to vector<8x32xi1>
    %1793 = arith.select %1792, %1777, %1759 : vector<8x32xi1>, vector<8x32xf32>
    %c128_550 = arith.constant 128 : index
    %c0_551 = arith.constant 0 : index
    %1794 = vector.load %arg17[%c128_550, %c0_551] : memref<144x128xf32, #tpu.memory_space<vmem>>, vector<8x128xf32>
    %1795 = arith.truncf %1790 : vector<8x32xf32> to vector<8x32xbf16>
    %cst_552 = arith.constant dense<0.000000e+00> : vector<8x128xf32>
    %1796 = tpu.matmul %1795, %1245, %cst_552 {dimension_numbers = #tpu.dot_dimension_numbers<[1], [0], [0], [1], [0, 0, 1, 1], [], []>} : vector<8x32xbf16>, vector<32x128xbf16>, vector<8x128xf32> -> vector<8x128xf32>
    %1797 = arith.addf %1794, %1796 : vector<8x128xf32>
    %1798 = vector.extract_strided_slice %1797 {offsets = [0, 0], sizes = [8, 96], strides = [1, 1]} : vector<8x128xf32> to vector<8x96xf32>
    %1799 = arith.negf %1798 : vector<8x96xf32>
    %1800 = math.exp %1799 : vector<8x96xf32>
    %cst_553 = arith.constant 1.000000e+00 : f32
    %1801 = vector.broadcast %cst_553 : f32 to vector<8x96xf32>
    %1802 = arith.addf %1801, %1800 : vector<8x96xf32>
    %1803 = arith.divf %1801, %1802 : vector<8x96xf32>
    %1804 = vector.extract_strided_slice %1803 {offsets = [0, 0], sizes = [8, 32], strides = [1, 1]} : vector<8x96xf32> to vector<8x32xf32>
    %1805 = vector.extract_strided_slice %1803 {offsets = [0, 32], sizes = [8, 32], strides = [1, 1]} : vector<8x96xf32> to vector<8x32xf32>
    %1806 = vector.extract_strided_slice %1803 {offsets = [0, 64], sizes = [8, 32], strides = [1, 1]} : vector<8x96xf32> to vector<8x32xf32>
    %1807 = vector.extract_strided_slice %1797 {offsets = [0, 96], sizes = [8, 32], strides = [1, 1]} : vector<8x128xf32> to vector<8x32xf32>
    %1808 = math.tanh %1807 : vector<8x32xf32>
    %1809 = arith.mulf %1805, %1793 : vector<8x32xf32>
    %1810 = arith.mulf %1804, %1808 : vector<8x32xf32>
    %1811 = arith.addf %1809, %1810 : vector<8x32xf32>
    %1812 = math.tanh %1811 : vector<8x32xf32>
    %1813 = arith.mulf %1806, %1812 : vector<8x32xf32>
    %c128_554 = arith.constant 128 : index
    %c0_555 = arith.constant 0 : index
    %1814 = vector.load %arg0[%c128_554, %c0_555] : memref<144x1xf32, #tpu.memory_space<vmem>>, vector<8x1xf32>
    %cst_556 = arith.constant 0.000000e+00 : f32
    %1815 = vector.broadcast %cst_556 : f32 to vector<8x1xf32>
    %1816 = arith.cmpf ogt, %1814, %1815 : vector<8x1xf32>
    %cst_557 = arith.constant 0.000000e+00 : f32
    %1817 = vector.shape_cast %1816 : vector<8x1xi1> to vector<8x1xi1>
    %1818 = vector.broadcast %1817 : vector<8x1xi1> to vector<8x32xi1>
    %1819 = vector.broadcast %cst_557 : f32 to vector<8x32xf32>
    %1820 = arith.select %1818, %1813, %1819 : vector<8x32xi1>, vector<8x32xf32>
    %c128_558 = arith.constant 128 : index
    %c0_559 = arith.constant 0 : index
    %1821 = vector.load %arg16[%c128_558, %c0_559] : memref<144x32xf32, #tpu.memory_space<vmem>>, vector<8x32xf32>
    tpu.vector_store %arg16[%c128_558, %c0_559], %1820 {strides = array<i32>} : memref<144x32xf32, #tpu.memory_space<vmem>>, vector<8x32xf32>,
    %1822 = vector.shape_cast %1816 : vector<8x1xi1> to vector<8x1xi1>
    %1823 = vector.broadcast %1822 : vector<8x1xi1> to vector<8x32xi1>
    %1824 = arith.select %1823, %1813, %1790 : vector<8x32xi1>, vector<8x32xf32>
    %1825 = vector.shape_cast %1816 : vector<8x1xi1> to vector<8x1xi1>
    %1826 = vector.broadcast %1825 : vector<8x1xi1> to vector<8x32xi1>
    %1827 = arith.select %1826, %1811, %1793 : vector<8x32xi1>, vector<8x32xf32>
    %c136_560 = arith.constant 136 : index
    %c0_561 = arith.constant 0 : index
    %1828 = vector.load %arg17[%c136_560, %c0_561] : memref<144x128xf32, #tpu.memory_space<vmem>>, vector<8x128xf32>
    %1829 = arith.truncf %1824 : vector<8x32xf32> to vector<8x32xbf16>
    %cst_562 = arith.constant dense<0.000000e+00> : vector<8x128xf32>
    %1830 = tpu.matmul %1829, %1245, %cst_562 {dimension_numbers = #tpu.dot_dimension_numbers<[1], [0], [0], [1], [0, 0, 1, 1], [], []>} : vector<8x32xbf16>, vector<32x128xbf16>, vector<8x128xf32> -> vector<8x128xf32>
    %1831 = arith.addf %1828, %1830 : vector<8x128xf32>
    %1832 = vector.extract_strided_slice %1831 {offsets = [0, 0], sizes = [8, 96], strides = [1, 1]} : vector<8x128xf32> to vector<8x96xf32>
    %1833 = arith.negf %1832 : vector<8x96xf32>
    %1834 = math.exp %1833 : vector<8x96xf32>
    %cst_563 = arith.constant 1.000000e+00 : f32
    %1835 = vector.broadcast %cst_563 : f32 to vector<8x96xf32>
    %1836 = arith.addf %1835, %1834 : vector<8x96xf32>
    %1837 = arith.divf %1835, %1836 : vector<8x96xf32>
    %1838 = vector.extract_strided_slice %1837 {offsets = [0, 0], sizes = [8, 32], strides = [1, 1]} : vector<8x96xf32> to vector<8x32xf32>
    %1839 = vector.extract_strided_slice %1837 {offsets = [0, 32], sizes = [8, 32], strides = [1, 1]} : vector<8x96xf32> to vector<8x32xf32>
    %1840 = vector.extract_strided_slice %1837 {offsets = [0, 64], sizes = [8, 32], strides = [1, 1]} : vector<8x96xf32> to vector<8x32xf32>
    %1841 = vector.extract_strided_slice %1831 {offsets = [0, 96], sizes = [8, 32], strides = [1, 1]} : vector<8x128xf32> to vector<8x32xf32>
    %1842 = math.tanh %1841 : vector<8x32xf32>
    %1843 = arith.mulf %1839, %1827 : vector<8x32xf32>
    %1844 = arith.mulf %1838, %1842 : vector<8x32xf32>
    %1845 = arith.addf %1843, %1844 : vector<8x32xf32>
    %1846 = math.tanh %1845 : vector<8x32xf32>
    %1847 = arith.mulf %1840, %1846 : vector<8x32xf32>
    %c136_564 = arith.constant 136 : index
    %c0_565 = arith.constant 0 : index
    %1848 = vector.load %arg0[%c136_564, %c0_565] : memref<144x1xf32, #tpu.memory_space<vmem>>, vector<8x1xf32>
    %cst_566 = arith.constant 0.000000e+00 : f32
    %1849 = vector.broadcast %cst_566 : f32 to vector<8x1xf32>
    %1850 = arith.cmpf ogt, %1848, %1849 : vector<8x1xf32>
    %cst_567 = arith.constant 0.000000e+00 : f32
    %1851 = vector.shape_cast %1850 : vector<8x1xi1> to vector<8x1xi1>
    %1852 = vector.broadcast %1851 : vector<8x1xi1> to vector<8x32xi1>
    %1853 = vector.broadcast %cst_567 : f32 to vector<8x32xf32>
    %1854 = arith.select %1852, %1847, %1853 : vector<8x32xi1>, vector<8x32xf32>
    %c136_568 = arith.constant 136 : index
    %c0_569 = arith.constant 0 : index
    %1855 = vector.load %arg16[%c136_568, %c0_569] : memref<144x32xf32, #tpu.memory_space<vmem>>, vector<8x32xf32>
    tpu.vector_store %arg16[%c136_568, %c0_569], %1854 {strides = array<i32>} : memref<144x32xf32, #tpu.memory_space<vmem>>, vector<8x32xf32>,
    %c0_570 = arith.constant 0 : index
    %c0_571 = arith.constant 0 : index
    %1856 = vector.load %arg16[%c0_570, %c0_571] : memref<144x32xf32, #tpu.memory_space<vmem>>, vector<144x32xf32>
    %1857 = arith.truncf %1856 : vector<144x32xf32> to vector<144x32xbf16>
    %c0_572 = arith.constant 0 : index
    %c0_573 = arith.constant 0 : index
    %1858 = vector.load %arg13[%c0_572, %c0_573] : memref<32x8xbf16, #tpu.memory_space<vmem>>, vector<32x8xbf16>
    %cst_574 = arith.constant dense<0.000000e+00> : vector<144x8xf32>
    %1859 = tpu.matmul %1857, %1858, %cst_574 {dimension_numbers = #tpu.dot_dimension_numbers<[1], [0], [0], [1], [0, 0, 1, 1], [], []>} : vector<144x32xbf16>, vector<32x8xbf16>, vector<144x8xf32> -> vector<144x8xf32>
    %c0_575 = arith.constant 0 : index
    %c0_576 = arith.constant 0 : index
    %1860 = vector.load %arg14[%c0_575, %c0_576] : memref<1x8xf32, #tpu.memory_space<vmem>>, vector<1x8xf32>
    %1861 = vector.broadcast %1860 : vector<1x8xf32> to vector<144x8xf32>
    %1862 = arith.addf %1859, %1861 : vector<144x8xf32>
    %cst_577 = arith.constant dense<0xFF800000> : vector<144xf32>
    %1863 = vector.multi_reduction <maximumf>, %1862, %cst_577 [1] : vector<144x8xf32> to vector<144xf32>
    %1864 = vector.shape_cast %1863 : vector<144xf32> to vector<144x1xf32>
    %1865 = vector.broadcast %1864 : vector<144x1xf32> to vector<144x8xf32>
    %1866 = arith.subf %1862, %1865 : vector<144x8xf32>
    %1867 = math.exp %1866 : vector<144x8xf32>
    %cst_578 = arith.constant dense<0.000000e+00> : vector<144xf32>
    %1868 = vector.multi_reduction <add>, %1867, %cst_578 [1] : vector<144x8xf32> to vector<144xf32>
    %1869 = vector.shape_cast %1868 : vector<144xf32> to vector<144x1xf32>
    %1870 = math.log %1869 : vector<144x1xf32>
    %1871 = arith.addf %1864, %1870 : vector<144x1xf32>
    %1872 = vector.broadcast %1871 : vector<144x1xf32> to vector<144x8xf32>
    %1873 = arith.subf %1862, %1872 : vector<144x8xf32>
    %c0_579 = arith.constant 0 : index
    %c0_580 = arith.constant 0 : index
    %1874 = vector.load %arg15[%c0_579, %c0_580] : memref<144x8xf32, #tpu.memory_space<vmem>>, vector<144x8xf32>
    tpu.vector_store %arg15[%c0_579, %c0_580], %1873 {strides = array<i32>} : memref<144x8xf32, #tpu.memory_space<vmem>>, vector<144x8xf32>,
    return
  }
}

</mosaic_0001>

<llo_original>
// kernel: tpu_custom_call.1
$region0: #{tpu_custom_call.1}
  #allocation0 [shape = 'u32[]', space=smem, size = 0x4, offset = 0x4, fixed_abs, tag = 'smem constant byte address 0x4 - core index']
  #allocation1 [shape = 'u32[72,128]{1,0:T(1,128)}', space=vmem, size = 0x9000, scoped, tag = 'internal scratch']
  #allocation2 [shape = 'f32[144,32]{1,0:T(8,128)}', space=vmem, size = 0x12000, scoped, tag = 'scratch operand']
  #allocation3 [shape = 'f32[144,128]{1,0:T(8,128)}', space=vmem, size = 0x12000, scoped, tag = 'scratch operand']
  %s0 = inlined_call_operand.vmem [shape: f32[144,1], index: 0, kind: input, shape index: {}]
  %s1 = inlined_call_operand.vmem [shape: bf16[144,20], index: 1, kind: input, shape index: {}]
  %s2 = inlined_call_operand.vmem [shape: f32[3,8,32], index: 2, kind: input, shape index: {}]
  %s3 = inlined_call_operand.vmem [shape: f32[3,8,32], index: 3, kind: input, shape index: {}]
  %s4 = inlined_call_operand.vmem [shape: bf16[20,128], index: 4, kind: input, shape index: {}]
  %s5 = inlined_call_operand.vmem [shape: bf16[32,128], index: 5, kind: input, shape index: {}]
  %s6 = inlined_call_operand.vmem [shape: f32[1,128], index: 6, kind: input, shape index: {}]
  %s7 = inlined_call_operand.vmem [shape: bf16[32,128], index: 7, kind: input, shape index: {}]
  %s8 = inlined_call_operand.vmem [shape: bf16[32,128], index: 8, kind: input, shape index: {}]
  %s9 = inlined_call_operand.vmem [shape: f32[1,128], index: 9, kind: input, shape index: {}]
  %s10 = inlined_call_operand.vmem [shape: bf16[32,128], index: 10, kind: input, shape index: {}]
  %s11 = inlined_call_operand.vmem [shape: bf16[32,128], index: 11, kind: input, shape index: {}]
  %s12 = inlined_call_operand.vmem [shape: f32[1,128], index: 12, kind: input, shape index: {}]
  %s13 = inlined_call_operand.vmem [shape: bf16[32,8], index: 13, kind: input, shape index: {}]
  %s14 = inlined_call_operand.vmem [shape: f32[1,8], index: 14, kind: input, shape index: {}]
  %s15 = inlined_call_operand.vmem [shape: f32[144,8], index: 15, kind: output, shape index: {}]
  %s16 = sld [smem:[#allocation0]]
  $region70: #{tpu_custom_call.1} parent=0
    _
  %s18 = ssub.s32 1, %s16
  %s19 = scalar_select 0, %s18, %s16
  // Predicated region
  $region2: #{tpu_custom_call.1} parent=0 // pred_check
    _
  $region3: #{tpu_custom_call.1} parent=0 // pred_check_branch
    %21 = sbr.rel (0) target = $region5
  $region4: #{tpu_custom_call.1} parent=0 // pred_region
    _
  $region5: #{tpu_custom_call.1} parent=0 // pred_fallthru
    _
  // Predicated region
  $region6: #{tpu_custom_call.1} parent=0 // pred_check
    _
  $region7: #{tpu_custom_call.1} parent=0 // pred_check_branch
    %23 = sbr.rel (0) target = $region9
  $region8: #{tpu_custom_call.1} parent=0 // pred_region
    _
  $region9: #{tpu_custom_call.1} parent=0 // pred_fallthru
    _
  // Predicated region
  $region10: #{tpu_custom_call.1} parent=0 // pred_check
    _
  $region11: #{tpu_custom_call.1} parent=0 // pred_check_branch
    %25 = sbr.rel (0) target = $region13
  $region12: #{tpu_custom_call.1} parent=0 // pred_region
    _
  $region13: #{tpu_custom_call.1} parent=0 // pred_fallthru
    _
  // Predicated region
  $region14: #{tpu_custom_call.1} parent=0 // pred_check
    _
  $region15: #{tpu_custom_call.1} parent=0 // pred_check_branch
    %27 = sbr.rel (0) target = $region17
  $region16: #{tpu_custom_call.1} parent=0 // pred_region
    _
  $region17: #{tpu_custom_call.1} parent=0 // pred_fallthru
    _
  // Predicated region
  $region18: #{tpu_custom_call.1} parent=0 // pred_check
    _
  $region19: #{tpu_custom_call.1} parent=0 // pred_check_branch
    %29 = sbr.rel (0) target = $region21
  $region20: #{tpu_custom_call.1} parent=0 // pred_region
    _
  $region21: #{tpu_custom_call.1} parent=0 // pred_fallthru
    _
  // Predicated region
  $region22: #{tpu_custom_call.1} parent=0 // pred_check
    _
  $region23: #{tpu_custom_call.1} parent=0 // pred_check_branch
    %31 = sbr.rel (0) target = $region25
  $region24: #{tpu_custom_call.1} parent=0 // pred_region
    _
  $region25: #{tpu_custom_call.1} parent=0 // pred_fallthru
    _
  // Predicated region
  $region26: #{tpu_custom_call.1} parent=0 // pred_check
    _
  $region27: #{tpu_custom_call.1} parent=0 // pred_check_branch
    %33 = sbr.rel (0) target = $region29
  $region28: #{tpu_custom_call.1} parent=0 // pred_region
    _
  $region29: #{tpu_custom_call.1} parent=0 // pred_fallthru
    _
  // Predicated region
  $region30: #{tpu_custom_call.1} parent=0 // pred_check
    _
  $region31: #{tpu_custom_call.1} parent=0 // pred_check_branch
    %35 = sbr.rel (0) target = $region33
  $region32: #{tpu_custom_call.1} parent=0 // pred_region
    _
  $region33: #{tpu_custom_call.1} parent=0 // pred_fallthru
    _
  // Predicated region
  $region34: #{tpu_custom_call.1} parent=0 // pred_check
    _
  $region35: #{tpu_custom_call.1} parent=0 // pred_check_branch
    %37 = sbr.rel (0) target = $region37
  $region36: #{tpu_custom_call.1} parent=0 // pred_region
    _
  $region37: #{tpu_custom_call.1} parent=0 // pred_fallthru
    _
  // Predicated region
  $region38: #{tpu_custom_call.1} parent=0 // pred_check
    _
  $region39: #{tpu_custom_call.1} parent=0 // pred_check_branch
    %39 = sbr.rel (0) target = $region41
  $region40: #{tpu_custom_call.1} parent=0 // pred_region
    _
  $region41: #{tpu_custom_call.1} parent=0 // pred_fallthru
    _
  // Predicated region
  $region42: #{tpu_custom_call.1} parent=0 // pred_check
    _
  $region43: #{tpu_custom_call.1} parent=0 // pred_check_branch
    %41 = sbr.rel (0) target = $region45
  $region44: #{tpu_custom_call.1} parent=0 // pred_region
    _
  $region45: #{tpu_custom_call.1} parent=0 // pred_fallthru
    _
  // Predicated region
  $region46: #{tpu_custom_call.1} parent=0 // pred_check
    _
  $region47: #{tpu_custom_call.1} parent=0 // pred_check_branch
    %43 = sbr.rel (0) target = $region49
  $region48: #{tpu_custom_call.1} parent=0 // pred_region
    _
  $region49: #{tpu_custom_call.1} parent=0 // pred_fallthru
    _
  // Predicated region
  $region50: #{tpu_custom_call.1} parent=0 // pred_check
    _
  $region51: #{tpu_custom_call.1} parent=0 // pred_check_branch
    %45 = sbr.rel (0) target = $region53
  $region52: #{tpu_custom_call.1} parent=0 // pred_region
    _
  $region53: #{tpu_custom_call.1} parent=0 // pred_fallthru
    _
  // Predicated region
  $region54: #{tpu_custom_call.1} parent=0 // pred_check
    _
  $region55: #{tpu_custom_call.1} parent=0 // pred_check_branch
    %47 = sbr.rel (0) target = $region57
  $region56: #{tpu_custom_call.1} parent=0 // pred_region
    _
  $region57: #{tpu_custom_call.1} parent=0 // pred_fallthru
    _
  // Predicated region
  $region58: #{tpu_custom_call.1} parent=0 // pred_check
    _
  $region59: #{tpu_custom_call.1} parent=0 // pred_check_branch
    %49 = sbr.rel (0) target = $region61
  $region60: #{tpu_custom_call.1} parent=0 // pred_region
    _
  $region61: #{tpu_custom_call.1} parent=0 // pred_fallthru
    _
  %v51 = vld [vmem:[%s1] sm:$0xf]
  %v52 = vld [vmem:[%s1 + $0x4] sm:$0xf]
  %v53 = vld [vmem:[%s1 + $0x8] sm:$0xf]
  %v54 = vld [vmem:[%s1 + $0xc] sm:$0xf]
  %v55 = vld [vmem:[%s1 + $0x10] sm:$0xf]
  %v56 = vld [vmem:[%s1 + $0x14] sm:$0xf]
  %v57 = vld [vmem:[%s1 + $0x18] sm:$0xf]
  %v58 = vld [vmem:[%s1 + $0x1c] sm:$0xf]
  %v59 = vld [vmem:[%s1 + $0x20] sm:$0xf]
  %v60 = vld [vmem:[%s1 + $0x24] sm:$0xf]
  %v61 = vld [vmem:[%s1 + $0x28] sm:$0xf]
  %v62 = vld [vmem:[%s1 + $0x2c] sm:$0xf]
  %v63 = vld [vmem:[%s1 + $0x30] sm:$0xf]
  %v64 = vld [vmem:[%s1 + $0x34] sm:$0xf]
  %v65 = vld [vmem:[%s1 + $0x38] sm:$0xf]
  %v66 = vld [vmem:[%s1 + $0x3c] sm:$0xf]
  %v67 = vld [vmem:[%s1 + $0x40] sm:$0xf]
  %v68 = vld [vmem:[%s1 + $0x44] sm:$0xf]
  %v69 = vld [vmem:[%s4] sm:$0xf]
  %v70 = vld [vmem:[%s4 + $0x4] sm:$0xf]
  %v71 = vld [vmem:[%s4 + $0x8] sm:$0x3]
  %v72 = vld [vmem:[%s6] sm:$0x1]
  %v74 = vperm.slane %v72, 0
  %v94 = vunpack.c.l.b16 %v51
  %v95 = vunpack.c.l.b16 %v52
  %v96 = vunpack.c.l.b16 %v53
  %v97 = vunpack.c.l.b16 %v54
  %v98 = vunpack.c.l.b16 %v55
  %v99 = vunpack.c.l.b16 %v56
  %v100 = vunpack.c.l.b16 %v57
  %v101 = vunpack.c.l.b16 %v58
  %v102 = vunpack.c.l.b16 %v59
  %v103 = vunpack.c.l.b16 %v60
  %v104 = vunpack.c.l.b16 %v61
  %v105 = vunpack.c.l.b16 %v62
  %v106 = vunpack.c.l.b16 %v63
  %v107 = vunpack.c.l.b16 %v64
  %v108 = vunpack.c.l.b16 %v65
  %v109 = vunpack.c.l.b16 %v66
  %v110 = vunpack.c.l.b16 %v67
  %v111 = vunpack.c.l.b16 %v68
  %v112 = vpack.c.b16 %v95, %v94
  %v113 = vpack.c.b16 %v97, %v96
  %v114 = vpack.c.b16 %v99, %v98
  %v115 = vpack.c.b16 %v101, %v100
  %v116 = vpack.c.b16 %v103, %v102
  %v117 = vpack.c.b16 %v105, %v104
  %v118 = vpack.c.b16 %v107, %v106
  %v119 = vpack.c.b16 %v109, %v108
  %v120 = vpack.c.b16 %v111, %v110
  %v124 = vunpack.c.l.b16 %v69
  %v125 = vunpack.c.l.b16 %v70
  %v126 = vunpack.c.l.b16 %v71
  %v127 = vpack.c.b16 %v125, %v124
  %v128 = vpack.c.b16 %v126, %v126
  %vm130 = vcmask 162816
  %v132 = vsel %vm130, %v112, 0
  %v135 = vsel %vm130, %v113, 0
  %v138 = vsel %vm130, %v114, 0
  %v141 = vsel %vm130, %v115, 0
  %v144 = vsel %vm130, %v116, 0
  %v147 = vsel %vm130, %v117, 0
  %v150 = vsel %vm130, %v118, 0
  %v153 = vsel %vm130, %v119, 0
  %v156 = vsel %vm130, %v120, 0
  %vm158 = vcmask 1041408
  %v160 = vsel %vm158, %v128, 0
  %162 = vmatpush.bf16.msra.mxu0 0
  %163 = vmatpush.bf16.msra.mxu0 0
  %164 = vmatpush.bf16.msra.mxu0 0
  %165 = vmatpush.bf16.msra.mxu0 0
  %166 = vmatpush.bf16.msra.mxu0 0
  %167 = vmatpush.bf16.msra.mxu0 0
  %168 = vmatpush.bf16.msra.mxu0 %v160
  %169 = vmatpush.bf16.msra.mxu0 %v127
  %170 = vmatmul.bf16.gmra.mxu0 %v132
  %v171 = vpop.f32.mrf.mxu0
  %v172 = vadd.f32 %v74, %v171
  %v173 = vpop.f32.mrf.mxu0
  %v174 = vadd.f32 %v74, %v173
  %175 = vmatmul.bf16.gmra.mxu0 %v135
  %v176 = vpop.f32.mrf.mxu0
  %v177 = vadd.f32 %v74, %v176
  %v178 = vpop.f32.mrf.mxu0
  %v179 = vadd.f32 %v74, %v178
  %180 = vmatmul.bf16.gmra.mxu0 %v138
  %v181 = vpop.f32.mrf.mxu0
  %v182 = vadd.f32 %v74, %v181
  %v183 = vpop.f32.mrf.mxu0
  %v184 = vadd.f32 %v74, %v183
  %185 = vmatmul.bf16.gmra.mxu0 %v141
  %v186 = vpop.f32.mrf.mxu0
  %v187 = vadd.f32 %v74, %v186
  %v188 = vpop.f32.mrf.mxu0
  %v189 = vadd.f32 %v74, %v188
  %190 = vmatmul.bf16.gmra.mxu0 %v144
  %v191 = vpop.f32.mrf.mxu0
  %v192 = vadd.f32 %v74, %v191
  %v193 = vpop.f32.mrf.mxu0
  %v194 = vadd.f32 %v74, %v193
  %195 = vmatmul.bf16.gmra.mxu0 %v147
  %v196 = vpop.f32.mrf.mxu0
  %v197 = vadd.f32 %v74, %v196
  %v198 = vpop.f32.mrf.mxu0
  %v199 = vadd.f32 %v74, %v198
  %200 = vmatmul.bf16.gmra.mxu0 %v150
  %v201 = vpop.f32.mrf.mxu0
  %v202 = vadd.f32 %v74, %v201
  %v203 = vpop.f32.mrf.mxu0
  %v204 = vadd.f32 %v74, %v203
  %205 = vmatmul.bf16.gmra.mxu0 %v153
  %v206 = vpop.f32.mrf.mxu0
  %v207 = vadd.f32 %v74, %v206
  %v208 = vpop.f32.mrf.mxu0
  %v209 = vadd.f32 %v74, %v208
  %210 = vmatmul.bf16.gmra.mxu0 %v156
  %v211 = vpop.f32.mrf.mxu0
  %v212 = vadd.f32 %v74, %v211
  %v213 = vpop.f32.mrf.mxu0
  %v214 = vadd.f32 %v74, %v213
  %215 = vdwg.mxu0
  %216 = vst [vmem:[#allocation3] sm:$0xff] %v172
  %217 = vst [vmem:[#allocation3 + $0x8] sm:$0xff] %v174
  %218 = vst [vmem:[#allocation3 + $0x10] sm:$0xff] %v177
  %219 = vst [vmem:[#allocation3 + $0x18] sm:$0xff] %v179
  %220 = vst [vmem:[#allocation3 + $0x20] sm:$0xff] %v182
  %221 = vst [vmem:[#allocation3 + $0x28] sm:$0xff] %v184
  %222 = vst [vmem:[#allocation3 + $0x30] sm:$0xff] %v187
  %223 = vst [vmem:[#allocation3 + $0x38] sm:$0xff] %v189
  %224 = vst [vmem:[#allocation3 + $0x40] sm:$0xff] %v192
  %225 = vst [vmem:[#allocation3 + $0x48] sm:$0xff] %v194
  %226 = vst [vmem:[#allocation3 + $0x50] sm:$0xff] %v197
  %227 = vst [vmem:[#allocation3 + $0x58] sm:$0xff] %v199
  %228 = vst [vmem:[#allocation3 + $0x60] sm:$0xff] %v202
  %229 = vst [vmem:[#allocation3 + $0x68] sm:$0xff] %v204
  %230 = vst [vmem:[#allocation3 + $0x70] sm:$0xff] %v207
  %231 = vst [vmem:[#allocation3 + $0x78] sm:$0xff] %v209
  %232 = vst [vmem:[#allocation3 + $0x80] sm:$0xff] %v212
  %233 = vst [vmem:[#allocation3 + $0x88] sm:$0xff] %v214
  %v234 = vld [vmem:[%s5] sm:$0xf]
  %v235 = vld [vmem:[%s5 + $0x4] sm:$0xf]
  %v236 = vld [vmem:[%s5 + $0x8] sm:$0xf]
  %v237 = vld [vmem:[%s5 + $0xc] sm:$0xf]
  %v238 = vld [vmem:[%s2] sm:$0xff]
  %v239 = vld [vmem:[%s3] sm:$0xff]
  %v240 = vld [vmem:[#allocation3] sm:$0xff]
  %v241 = vpack.c.bf16 %v238, %v238
  %v246 = vunpack.c.l.b16 %v234
  %v247 = vunpack.c.l.b16 %v235
  %v248 = vunpack.c.l.b16 %v236
  %v249 = vunpack.c.l.b16 %v237
  %v250 = vpack.c.b16 %v247, %v246
  %v251 = vpack.c.b16 %v249, %v248
  %vm254 = vcmask 261120
  %v256 = vsel %vm254, %v241, 0
  %258 = vmatpush.bf16.msra.mxu0 0
  %259 = vmatpush.bf16.msra.mxu0 0
  %260 = vmatpush.bf16.msra.mxu0 0
  %261 = vmatpush.bf16.msra.mxu0 0
  %262 = vmatpush.bf16.msra.mxu0 0
  %263 = vmatpush.bf16.msra.mxu0 0
  %264 = vmatpush.bf16.msra.mxu0 %v251
  %265 = vmatpush.bf16.msra.mxu0 %v250
  %266 = vmatmul.bf16.gmra.mxu0 %v256
  %v267 = vpop.f32.mrf.mxu0
  %v268 = vadd.f32 0.0, %v267
  %v269 = vpop.f32.mrf.mxu0
  %270 = vdwg.mxu0
  %v271 = vadd.f32 %v240, %v268
  %v272 = vxor.u32 %v271, 2147483648
  %v273 = vmul.f32 %v272, 1.442695
  %v274 = vpow.pop %v273
  %v275 = vadd.f32 %v274, 1.0
  %v276 = vrcp.pop %v275
  %v277 = vmul.f32 %v275, %v276
  %v278 = vsub.f32 1.0, %v277
  %v279 = vmul.f32 %v276, %v278
  %v280 = vadd.f32 %v276, %v279
  %vm281 = vweird.f32 %v275
  %vm282 = vweird.f32 %v276
  %vm283 = vmor %vm281, %vm282
  %v284 = vsel %vm283, %v276, %v280
  %v285 = vand.u32 2147483647, %v275
  %vm286 = vcmp.eq.f32.partialorder %v285, 8.507059e+37
  %v287 = vand.u32 %v275, 2147483648
  %v288 = vor.u32 1.1754944e-38, %v287
  %v289 = vsel %vm286, %v288, %v284
  %v290 = vmul.f32 1.0, %v289
  %v291 = vtanh.pop %v271
  %293 = vrot.lane.b32.xlu0 %v239, 32
  %v294 = vpop.permute.xlu0 %293
  %v296 = vmul.f32 %v290, %v294
  %298 = vrot.lane.b32.xlu0 %v291, 32
  %v299 = vpop.permute.xlu0 %298
  %v301 = vmul.f32 %v290, %v299
  %303 = vrot.lane.b32.xlu0 %v301, 32
  %v304 = vpop.permute.xlu0 %303
  %v306 = vadd.f32 %v296, %v304
  %v307 = vtanh.pop %v306
  %309 = vrot.lane.b32.xlu0 %v307, 32
  %v310 = vpop.permute.xlu0 %309
  %v312 = vmul.f32 %v290, %v310
  %v313 = vld [vmem:[%s0] sm:$0xff]
  %vm314 = vcmp.gt.f32.partialorder %v313, 0.0
  %v315 = vsel %vm314, 1, 0
  %316 = vset.pattern.permute.xlu0 0
  %317 = vperm.xlu0 %316, %v315
  %v318 = vpop.permute.xlu0 %317
  %vm319 = vcmp.eq.s32.totalorder %v318, 1
  %v320 = vsel %vm319, %v312, 0.0
  %322 = vrot.lane.b32.xlu0 %v320, 64
  %v323 = vpop.permute.xlu0 %322
  %325 = vst.msk [vmem:[#allocation2] sm:$0xff] %vm254, %v323
  %327 = vrot.lane.b32.xlu0 %v238, 64
  %v328 = vpop.permute.xlu0 %327
  %v330 = vsel %vm319, %v312, %v328
  %v331 = vsel %vm319, %v306, %v294
  %v332 = vld [vmem:[#allocation3 + $0x8] sm:$0xff]
  %v333 = vpack.c.bf16 %v330, %v330
  %335 = vrot.lane.b32.xlu0 %v333, 64
  %v336 = vpop.permute.xlu0 %335
  %v338 = vsel %vm254, %v336, 0
  %340 = vmatpush.bf16.msra.mxu0 0
  %341 = vmatpush.bf16.msra.mxu0 0
  %342 = vmatpush.bf16.msra.mxu0 0
  %343 = vmatpush.bf16.msra.mxu0 0
  %344 = vmatpush.bf16.msra.mxu0 0
  %345 = vmatpush.bf16.msra.mxu0 0
  %346 = vmatpush.bf16.msra.mxu0 %v251
  %347 = vmatpush.bf16.msra.mxu0 %v250
  %348 = vmatmul.bf16.gmra.mxu0 %v338
  %v349 = vpop.f32.mrf.mxu0
  %v350 = vadd.f32 0.0, %v349
  %v351 = vpop.f32.mrf.mxu0
  %352 = vdwg.mxu0
  %v353 = vadd.f32 %v332, %v350
  %v354 = vxor.u32 %v353, 2147483648
  %v355 = vmul.f32 %v354, 1.442695
  %v356 = vpow.pop %v355
  %v357 = vadd.f32 %v356, 1.0
  %v358 = vrcp.pop %v357
  %v359 = vmul.f32 %v357, %v358
  %v360 = vsub.f32 1.0, %v359
  %v361 = vmul.f32 %v358, %v360
  %v362 = vadd.f32 %v358, %v361
  %vm363 = vweird.f32 %v357
  %vm364 = vweird.f32 %v358
  %vm365 = vmor %vm363, %vm364
  %v366 = vsel %vm365, %v358, %v362
  %v367 = vand.u32 2147483647, %v357
  %vm368 = vcmp.eq.f32.partialorder %v367, 8.507059e+37
  %v369 = vand.u32 %v357, 2147483648
  %v370 = vor.u32 1.1754944e-38, %v369
  %v371 = vsel %vm368, %v370, %v366
  %v372 = vmul.f32 1.0, %v371
  %v373 = vtanh.pop %v353
  %v374 = vmul.f32 %v372, %v331
  %376 = vrot.lane.b32.xlu0 %v373, 32
  %v377 = vpop.permute.xlu0 %376
  %v379 = vmul.f32 %v372, %v377
  %381 = vrot.lane.b32.xlu0 %v379, 32
  %v382 = vpop.permute.xlu0 %381
  %v384 = vadd.f32 %v374, %v382
  %v385 = vtanh.pop %v384
  %387 = vrot.lane.b32.xlu0 %v385, 32
  %v388 = vpop.permute.xlu0 %387
  %v390 = vmul.f32 %v372, %v388
  %v391 = vld [vmem:[%s0 + $0x8] sm:$0xff]
  %vm392 = vcmp.gt.f32.partialorder %v391, 0.0
  %v393 = vsel %vm392, 1, 0
  %394 = vset.pattern.permute.xlu0 0
  %395 = vperm.xlu0 %394, %v393
  %v396 = vpop.permute.xlu0 %395
  %vm397 = vcmp.eq.s32.totalorder %v396, 1
  %v398 = vsel %vm397, %v390, 0.0
  %400 = vrot.lane.b32.xlu0 %v398, 64
  %v401 = vpop.permute.xlu0 %400
  %403 = vst.msk [vmem:[#allocation2 + $0x8] sm:$0xff] %vm254, %v401
  %v404 = vsel %vm397, %v390, %v330
  %v405 = vsel %vm397, %v384, %v331
  %v406 = vld [vmem:[#allocation3 + $0x10] sm:$0xff]
  %v407 = vpack.c.bf16 %v404, %v404
  %409 = vrot.lane.b32.xlu0 %v407, 64
  %v410 = vpop.permute.xlu0 %409
  %v412 = vsel %vm254, %v410, 0
  %414 = vmatpush.bf16.msra.mxu0 0
  %415 = vmatpush.bf16.msra.mxu0 0
  %416 = vmatpush.bf16.msra.mxu0 0
  %417 = vmatpush.bf16.msra.mxu0 0
  %418 = vmatpush.bf16.msra.mxu0 0
  %419 = vmatpush.bf16.msra.mxu0 0
  %420 = vmatpush.bf16.msra.mxu0 %v251
  %421 = vmatpush.bf16.msra.mxu0 %v250
  %422 = vmatmul.bf16.gmra.mxu0 %v412
  %v423 = vpop.f32.mrf.mxu0
  %v424 = vadd.f32 0.0, %v423
  %v425 = vpop.f32.mrf.mxu0
  %426 = vdwg.mxu0
  %v427 = vadd.f32 %v406, %v424
  %v428 = vxor.u32 %v427, 2147483648
  %v429 = vmul.f32 %v428, 1.442695
  %v430 = vpow.pop %v429
  %v431 = vadd.f32 %v430, 1.0
  %v432 = vrcp.pop %v431
  %v433 = vmul.f32 %v431, %v432
  %v434 = vsub.f32 1.0, %v433
  %v435 = vmul.f32 %v432, %v434
  %v436 = vadd.f32 %v432, %v435
  %vm437 = vweird.f32 %v431
  %vm438 = vweird.f32 %v432
  %vm439 = vmor %vm437, %vm438
  %v440 = vsel %vm439, %v432, %v436
  %v441 = vand.u32 2147483647, %v431
  %vm442 = vcmp.eq.f32.partialorder %v441, 8.507059e+37
  %v443 = vand.u32 %v431, 2147483648
  %v444 = vor.u32 1.1754944e-38, %v443
  %v445 = vsel %vm442, %v444, %v440
  %v446 = vmul.f32 1.0, %v445
  %v447 = vtanh.pop %v427
  %v448 = vmul.f32 %v446, %v405
  %450 = vrot.lane.b32.xlu0 %v447, 32
  %v451 = vpop.permute.xlu0 %450
  %v453 = vmul.f32 %v446, %v451
  %455 = vrot.lane.b32.xlu0 %v453, 32
  %v456 = vpop.permute.xlu0 %455
  %v458 = vadd.f32 %v448, %v456
  %v459 = vtanh.pop %v458
  %461 = vrot.lane.b32.xlu0 %v459, 32
  %v462 = vpop.permute.xlu0 %461
  %v464 = vmul.f32 %v446, %v462
  %v465 = vld [vmem:[%s0 + $0x10] sm:$0xff]
  %vm466 = vcmp.gt.f32.partialorder %v465, 0.0
  %v467 = vsel %vm466, 1, 0
  %468 = vset.pattern.permute.xlu0 0
  %469 = vperm.xlu0 %468, %v467
  %v470 = vpop.permute.xlu0 %469
  %vm471 = vcmp.eq.s32.totalorder %v470, 1
  %v472 = vsel %vm471, %v464, 0.0
  %474 = vrot.lane.b32.xlu0 %v472, 64
  %v475 = vpop.permute.xlu0 %474
  %477 = vst.msk [vmem:[#allocation2 + $0x10] sm:$0xff] %vm254, %v475
  %v478 = vsel %vm471, %v464, %v404
  %v479 = vsel %vm471, %v458, %v405
  %v480 = vld [vmem:[#allocation3 + $0x18] sm:$0xff]
  %v481 = vpack.c.bf16 %v478, %v478
  %483 = vrot.lane.b32.xlu0 %v481, 64
  %v484 = vpop.permute.xlu0 %483
  %v486 = vsel %vm254, %v484, 0
  %488 = vmatpush.bf16.msra.mxu0 0
  %489 = vmatpush.bf16.msra.mxu0 0
  %490 = vmatpush.bf16.msra.mxu0 0
  %491 = vmatpush.bf16.msra.mxu0 0
  %492 = vmatpush.bf16.msra.mxu0 0
  %493 = vmatpush.bf16.msra.mxu0 0
  %494 = vmatpush.bf16.msra.mxu0 %v251
  %495 = vmatpush.bf16.msra.mxu0 %v250
  %496 = vmatmul.bf16.gmra.mxu0 %v486
  %v497 = vpop.f32.mrf.mxu0
  %v498 = vadd.f32 0.0, %v497
  %v499 = vpop.f32.mrf.mxu0
  %500 = vdwg.mxu0
  %v501 = vadd.f32 %v480, %v498
  %v502 = vxor.u32 %v501, 2147483648
  %v503 = vmul.f32 %v502, 1.442695
  %v504 = vpow.pop %v503
  %v505 = vadd.f32 %v504, 1.0
  %v506 = vrcp.pop %v505
  %v507 = vmul.f32 %v505, %v506
  %v508 = vsub.f32 1.0, %v507
  %v509 = vmul.f32 %v506, %v508
  %v510 = vadd.f32 %v506, %v509
  %vm511 = vweird.f32 %v505
  %vm512 = vweird.f32 %v506
  %vm513 = vmor %vm511, %vm512
  %v514 = vsel %vm513, %v506, %v510
  %v515 = vand.u32 2147483647, %v505
  %vm516 = vcmp.eq.f32.partialorder %v515, 8.507059e+37
  %v517 = vand.u32 %v505, 2147483648
  %v518 = vor.u32 1.1754944e-38, %v517
  %v519 = vsel %vm516, %v518, %v514
  %v520 = vmul.f32 1.0, %v519
  %v521 = vtanh.pop %v501
  %v522 = vmul.f32 %v520, %v479
  %524 = vrot.lane.b32.xlu0 %v521, 32
  %v525 = vpop.permute.xlu0 %524
  %v527 = vmul.f32 %v520, %v525
  %529 = vrot.lane.b32.xlu0 %v527, 32
  %v530 = vpop.permute.xlu0 %529
  %v532 = vadd.f32 %v522, %v530
  %v533 = vtanh.pop %v532
  %535 = vrot.lane.b32.xlu0 %v533, 32
  %v536 = vpop.permute.xlu0 %535
  %v538 = vmul.f32 %v520, %v536
  %v539 = vld [vmem:[%s0 + $0x18] sm:$0xff]
  %vm540 = vcmp.gt.f32.partialorder %v539, 0.0
  %v541 = vsel %vm540, 1, 0
  %542 = vset.pattern.permute.xlu0 0
  %543 = vperm.xlu0 %542, %v541
  %v544 = vpop.permute.xlu0 %543
  %vm545 = vcmp.eq.s32.totalorder %v544, 1
  %v546 = vsel %vm545, %v538, 0.0
  %548 = vrot.lane.b32.xlu0 %v546, 64
  %v549 = vpop.permute.xlu0 %548
  %551 = vst.msk [vmem:[#allocation2 + $0x18] sm:$0xff] %vm254, %v549
  %v552 = vsel %vm545, %v538, %v478
  %v553 = vsel %vm545, %v532, %v479
  %v554 = vld [vmem:[#allocation3 + $0x20] sm:$0xff]
  %v555 = vpack.c.bf16 %v552, %v552
  %557 = vrot.lane.b32.xlu0 %v555, 64
  %v558 = vpop.permute.xlu0 %557
  %v560 = vsel %vm254, %v558, 0
  %562 = vmatpush.bf16.msra.mxu0 0
  %563 = vmatpush.bf16.msra.mxu0 0
  %564 = vmatpush.bf16.msra.mxu0 0
  %565 = vmatpush.bf16.msra.mxu0 0
  %566 = vmatpush.bf16.msra.mxu0 0
  %567 = vmatpush.bf16.msra.mxu0 0
  %568 = vmatpush.bf16.msra.mxu0 %v251
  %569 = vmatpush.bf16.msra.mxu0 %v250
  %570 = vmatmul.bf16.gmra.mxu0 %v560
  %v571 = vpop.f32.mrf.mxu0
  %v572 = vadd.f32 0.0, %v571
  %v573 = vpop.f32.mrf.mxu0
  %574 = vdwg.mxu0
  %v575 = vadd.f32 %v554, %v572
  %v576 = vxor.u32 %v575, 2147483648
  %v577 = vmul.f32 %v576, 1.442695
  %v578 = vpow.pop %v577
  %v579 = vadd.f32 %v578, 1.0
  %v580 = vrcp.pop %v579
  %v581 = vmul.f32 %v579, %v580
  %v582 = vsub.f32 1.0, %v581
  %v583 = vmul.f32 %v580, %v582
  %v584 = vadd.f32 %v580, %v583
  %vm585 = vweird.f32 %v579
  %vm586 = vweird.f32 %v580
  %vm587 = vmor %vm585, %vm586
  %v588 = vsel %vm587, %v580, %v584
  %v589 = vand.u32 2147483647, %v579
  %vm590 = vcmp.eq.f32.partialorder %v589, 8.507059e+37
  %v591 = vand.u32 %v579, 2147483648
  %v592 = vor.u32 1.1754944e-38, %v591
  %v593 = vsel %vm590, %v592, %v588
  %v594 = vmul.f32 1.0, %v593
  %v595 = vtanh.pop %v575
  %v596 = vmul.f32 %v594, %v553
  %598 = vrot.lane.b32.xlu0 %v595, 32
  %v599 = vpop.permute.xlu0 %598
  %v601 = vmul.f32 %v594, %v599
  %603 = vrot.lane.b32.xlu0 %v601, 32
  %v604 = vpop.permute.xlu0 %603
  %v606 = vadd.f32 %v596, %v604
  %v607 = vtanh.pop %v606
  %609 = vrot.lane.b32.xlu0 %v607, 32
  %v610 = vpop.permute.xlu0 %609
  %v612 = vmul.f32 %v594, %v610
  %v613 = vld [vmem:[%s0 + $0x20] sm:$0xff]
  %vm614 = vcmp.gt.f32.partialorder %v613, 0.0
  %v615 = vsel %vm614, 1, 0
  %616 = vset.pattern.permute.xlu0 0
  %617 = vperm.xlu0 %616, %v615
  %v618 = vpop.permute.xlu0 %617
  %vm619 = vcmp.eq.s32.totalorder %v618, 1
  %v620 = vsel %vm619, %v612, 0.0
  %622 = vrot.lane.b32.xlu0 %v620, 64
  %v623 = vpop.permute.xlu0 %622
  %625 = vst.msk [vmem:[#allocation2 + $0x20] sm:$0xff] %vm254, %v623
  %v626 = vsel %vm619, %v612, %v552
  %v627 = vsel %vm619, %v606, %v553
  %v628 = vld [vmem:[#allocation3 + $0x28] sm:$0xff]
  %v629 = vpack.c.bf16 %v626, %v626
  %631 = vrot.lane.b32.xlu0 %v629, 64
  %v632 = vpop.permute.xlu0 %631
  %v634 = vsel %vm254, %v632, 0
  %636 = vmatpush.bf16.msra.mxu0 0
  %637 = vmatpush.bf16.msra.mxu0 0
  %638 = vmatpush.bf16.msra.mxu0 0
  %639 = vmatpush.bf16.msra.mxu0 0
  %640 = vmatpush.bf16.msra.mxu0 0
  %641 = vmatpush.bf16.msra.mxu0 0
  %642 = vmatpush.bf16.msra.mxu0 %v251
  %643 = vmatpush.bf16.msra.mxu0 %v250
  %644 = vmatmul.bf16.gmra.mxu0 %v634
  %v645 = vpop.f32.mrf.mxu0
  %v646 = vadd.f32 0.0, %v645
  %v647 = vpop.f32.mrf.mxu0
  %648 = vdwg.mxu0
  %v649 = vadd.f32 %v628, %v646
  %v650 = vxor.u32 %v649, 2147483648
  %v651 = vmul.f32 %v650, 1.442695
  %v652 = vpow.pop %v651
  %v653 = vadd.f32 %v652, 1.0
  %v654 = vrcp.pop %v653
  %v655 = vmul.f32 %v653, %v654
  %v656 = vsub.f32 1.0, %v655
  %v657 = vmul.f32 %v654, %v656
  %v658 = vadd.f32 %v654, %v657
  %vm659 = vweird.f32 %v653
  %vm660 = vweird.f32 %v654
  %vm661 = vmor %vm659, %vm660
  %v662 = vsel %vm661, %v654, %v658
  %v663 = vand.u32 2147483647, %v653
  %vm664 = vcmp.eq.f32.partialorder %v663, 8.507059e+37
  %v665 = vand.u32 %v653, 2147483648
  %v666 = vor.u32 1.1754944e-38, %v665
  %v667 = vsel %vm664, %v666, %v662
  %v668 = vmul.f32 1.0, %v667
  %v669 = vtanh.pop %v649
  %v670 = vmul.f32 %v668, %v627
  %672 = vrot.lane.b32.xlu0 %v669, 32
  %v673 = vpop.permute.xlu0 %672
  %v675 = vmul.f32 %v668, %v673
  %677 = vrot.lane.b32.xlu0 %v675, 32
  %v678 = vpop.permute.xlu0 %677
  %v680 = vadd.f32 %v670, %v678
  %v681 = vtanh.pop %v680
  %683 = vrot.lane.b32.xlu0 %v681, 32
  %v684 = vpop.permute.xlu0 %683
  %v686 = vmul.f32 %v668, %v684
  %v687 = vld [vmem:[%s0 + $0x28] sm:$0xff]
  %vm688 = vcmp.gt.f32.partialorder %v687, 0.0
  %v689 = vsel %vm688, 1, 0
  %690 = vset.pattern.permute.xlu0 0
  %691 = vperm.xlu0 %690, %v689
  %v692 = vpop.permute.xlu0 %691
  %vm693 = vcmp.eq.s32.totalorder %v692, 1
  %v694 = vsel %vm693, %v686, 0.0
  %696 = vrot.lane.b32.xlu0 %v694, 64
  %v697 = vpop.permute.xlu0 %696
  %699 = vst.msk [vmem:[#allocation2 + $0x28] sm:$0xff] %vm254, %v697
  %v700 = vsel %vm693, %v686, %v626
  %v701 = vsel %vm693, %v680, %v627
  %v702 = vld [vmem:[#allocation3 + $0x30] sm:$0xff]
  %v703 = vpack.c.bf16 %v700, %v700
  %705 = vrot.lane.b32.xlu0 %v703, 64
  %v706 = vpop.permute.xlu0 %705
  %v708 = vsel %vm254, %v706, 0
  %710 = vmatpush.bf16.msra.mxu0 0
  %711 = vmatpush.bf16.msra.mxu0 0
  %712 = vmatpush.bf16.msra.mxu0 0
  %713 = vmatpush.bf16.msra.mxu0 0
  %714 = vmatpush.bf16.msra.mxu0 0
  %715 = vmatpush.bf16.msra.mxu0 0
  %716 = vmatpush.bf16.msra.mxu0 %v251
  %717 = vmatpush.bf16.msra.mxu0 %v250
  %718 = vmatmul.bf16.gmra.mxu0 %v708
  %v719 = vpop.f32.mrf.mxu0
  %v720 = vadd.f32 0.0, %v719
  %v721 = vpop.f32.mrf.mxu0
  %722 = vdwg.mxu0
  %v723 = vadd.f32 %v702, %v720
  %v724 = vxor.u32 %v723, 2147483648
  %v725 = vmul.f32 %v724, 1.442695
  %v726 = vpow.pop %v725
  %v727 = vadd.f32 %v726, 1.0
  %v728 = vrcp.pop %v727
  %v729 = vmul.f32 %v727, %v728
  %v730 = vsub.f32 1.0, %v729
  %v731 = vmul.f32 %v728, %v730
  %v732 = vadd.f32 %v728, %v731
  %vm733 = vweird.f32 %v727
  %vm734 = vweird.f32 %v728
  %vm735 = vmor %vm733, %vm734
  %v736 = vsel %vm735, %v728, %v732
  %v737 = vand.u32 2147483647, %v727
  %vm738 = vcmp.eq.f32.partialorder %v737, 8.507059e+37
  %v739 = vand.u32 %v727, 2147483648
  %v740 = vor.u32 1.1754944e-38, %v739
  %v741 = vsel %vm738, %v740, %v736
  %v742 = vmul.f32 1.0, %v741
  %v743 = vtanh.pop %v723
  %v744 = vmul.f32 %v742, %v701
  %746 = vrot.lane.b32.xlu0 %v743, 32
  %v747 = vpop.permute.xlu0 %746
  %v749 = vmul.f32 %v742, %v747
  %751 = vrot.lane.b32.xlu0 %v749, 32
  %v752 = vpop.permute.xlu0 %751
  %v754 = vadd.f32 %v744, %v752
  %v755 = vtanh.pop %v754
  %757 = vrot.lane.b32.xlu0 %v755, 32
  %v758 = vpop.permute.xlu0 %757
  %v760 = vmul.f32 %v742, %v758
  %v761 = vld [vmem:[%s0 + $0x30] sm:$0xff]
  %vm762 = vcmp.gt.f32.partialorder %v761, 0.0
  %v763 = vsel %vm762, 1, 0
  %764 = vset.pattern.permute.xlu0 0
  %765 = vperm.xlu0 %764, %v763
  %v766 = vpop.permute.xlu0 %765
  %vm767 = vcmp.eq.s32.totalorder %v766, 1
  %v768 = vsel %vm767, %v760, 0.0
  %770 = vrot.lane.b32.xlu0 %v768, 64
  %v771 = vpop.permute.xlu0 %770
  %773 = vst.msk [vmem:[#allocation2 + $0x30] sm:$0xff] %vm254, %v771
  %v774 = vsel %vm767, %v760, %v700
  %v775 = vsel %vm767, %v754, %v701
  %v776 = vld [vmem:[#allocation3 + $0x38] sm:$0xff]
  %v777 = vpack.c.bf16 %v774, %v774
  %779 = vrot.lane.b32.xlu0 %v777, 64
  %v780 = vpop.permute.xlu0 %779
  %v782 = vsel %vm254, %v780, 0
  %784 = vmatpush.bf16.msra.mxu0 0
  %785 = vmatpush.bf16.msra.mxu0 0
  %786 = vmatpush.bf16.msra.mxu0 0
  %787 = vmatpush.bf16.msra.mxu0 0
  %788 = vmatpush.bf16.msra.mxu0 0
  %789 = vmatpush.bf16.msra.mxu0 0
  %790 = vmatpush.bf16.msra.mxu0 %v251
  %791 = vmatpush.bf16.msra.mxu0 %v250
  %792 = vmatmul.bf16.gmra.mxu0 %v782
  %v793 = vpop.f32.mrf.mxu0
  %v794 = vadd.f32 0.0, %v793
  %v795 = vpop.f32.mrf.mxu0
  %796 = vdwg.mxu0
  %v797 = vadd.f32 %v776, %v794
  %v798 = vxor.u32 %v797, 2147483648
  %v799 = vmul.f32 %v798, 1.442695
  %v800 = vpow.pop %v799
  %v801 = vadd.f32 %v800, 1.0
  %v802 = vrcp.pop %v801
  %v803 = vmul.f32 %v801, %v802
  %v804 = vsub.f32 1.0, %v803
  %v805 = vmul.f32 %v802, %v804
  %v806 = vadd.f32 %v802, %v805
  %vm807 = vweird.f32 %v801
  %vm808 = vweird.f32 %v802
  %vm809 = vmor %vm807, %vm808
  %v810 = vsel %vm809, %v802, %v806
  %v811 = vand.u32 2147483647, %v801
  %vm812 = vcmp.eq.f32.partialorder %v811, 8.507059e+37
  %v813 = vand.u32 %v801, 2147483648
  %v814 = vor.u32 1.1754944e-38, %v813
  %v815 = vsel %vm812, %v814, %v810
  %v816 = vmul.f32 1.0, %v815
  %v817 = vtanh.pop %v797
  %v818 = vmul.f32 %v816, %v775
  %820 = vrot.lane.b32.xlu0 %v817, 32
  %v821 = vpop.permute.xlu0 %820
  %v823 = vmul.f32 %v816, %v821
  %825 = vrot.lane.b32.xlu0 %v823, 32
  %v826 = vpop.permute.xlu0 %825
  %v828 = vadd.f32 %v818, %v826
  %v829 = vtanh.pop %v828
  %831 = vrot.lane.b32.xlu0 %v829, 32
  %v832 = vpop.permute.xlu0 %831
  %v834 = vmul.f32 %v816, %v832
  %v835 = vld [vmem:[%s0 + $0x38] sm:$0xff]
  %vm836 = vcmp.gt.f32.partialorder %v835, 0.0
  %v837 = vsel %vm836, 1, 0
  %838 = vset.pattern.permute.xlu0 0
  %839 = vperm.xlu0 %838, %v837
  %v840 = vpop.permute.xlu0 %839
  %vm841 = vcmp.eq.s32.totalorder %v840, 1
  %v842 = vsel %vm841, %v834, 0.0
  %844 = vrot.lane.b32.xlu0 %v842, 64
  %v845 = vpop.permute.xlu0 %844
  %847 = vst.msk [vmem:[#allocation2 + $0x38] sm:$0xff] %vm254, %v845
  %v848 = vsel %vm841, %v834, %v774
  %v849 = vsel %vm841, %v828, %v775
  %v850 = vld [vmem:[#allocation3 + $0x40] sm:$0xff]
  %v851 = vpack.c.bf16 %v848, %v848
  %853 = vrot.lane.b32.xlu0 %v851, 64
  %v854 = vpop.permute.xlu0 %853
  %v856 = vsel %vm254, %v854, 0
  %858 = vmatpush.bf16.msra.mxu0 0
  %859 = vmatpush.bf16.msra.mxu0 0
  %860 = vmatpush.bf16.msra.mxu0 0
  %861 = vmatpush.bf16.msra.mxu0 0
  %862 = vmatpush.bf16.msra.mxu0 0
  %863 = vmatpush.bf16.msra.mxu0 0
  %864 = vmatpush.bf16.msra.mxu0 %v251
  %865 = vmatpush.bf16.msra.mxu0 %v250
  %866 = vmatmul.bf16.gmra.mxu0 %v856
  %v867 = vpop.f32.mrf.mxu0
  %v868 = vadd.f32 0.0, %v867
  %v869 = vpop.f32.mrf.mxu0
  %870 = vdwg.mxu0
  %v871 = vadd.f32 %v850, %v868
  %v872 = vxor.u32 %v871, 2147483648
  %v873 = vmul.f32 %v872, 1.442695
  %v874 = vpow.pop %v873
  %v875 = vadd.f32 %v874, 1.0
  %v876 = vrcp.pop %v875
  %v877 = vmul.f32 %v875, %v876
  %v878 = vsub.f32 1.0, %v877
  %v879 = vmul.f32 %v876, %v878
  %v880 = vadd.f32 %v876, %v879
  %vm881 = vweird.f32 %v875
  %vm882 = vweird.f32 %v876
  %vm883 = vmor %vm881, %vm882
  %v884 = vsel %vm883, %v876, %v880
  %v885 = vand.u32 2147483647, %v875
  %vm886 = vcmp.eq.f32.partialorder %v885, 8.507059e+37
  %v887 = vand.u32 %v875, 2147483648
  %v888 = vor.u32 1.1754944e-38, %v887
  %v889 = vsel %vm886, %v888, %v884
  %v890 = vmul.f32 1.0, %v889
  %v891 = vtanh.pop %v871
  %v892 = vmul.f32 %v890, %v849
  %894 = vrot.lane.b32.xlu0 %v891, 32
  %v895 = vpop.permute.xlu0 %894
  %v897 = vmul.f32 %v890, %v895
  %899 = vrot.lane.b32.xlu0 %v897, 32
  %v900 = vpop.permute.xlu0 %899
  %v902 = vadd.f32 %v892, %v900
  %v903 = vtanh.pop %v902
  %905 = vrot.lane.b32.xlu0 %v903, 32
  %v906 = vpop.permute.xlu0 %905
  %v908 = vmul.f32 %v890, %v906
  %v909 = vld [vmem:[%s0 + $0x40] sm:$0xff]
  %vm910 = vcmp.gt.f32.partialorder %v909, 0.0
  %v911 = vsel %vm910, 1, 0
  %912 = vset.pattern.permute.xlu0 0
  %913 = vperm.xlu0 %912, %v911
  %v914 = vpop.permute.xlu0 %913
  %vm915 = vcmp.eq.s32.totalorder %v914, 1
  %v916 = vsel %vm915, %v908, 0.0
  %918 = vrot.lane.b32.xlu0 %v916, 64
  %v919 = vpop.permute.xlu0 %918
  %921 = vst.msk [vmem:[#allocation2 + $0x40] sm:$0xff] %vm254, %v919
  %v922 = vsel %vm915, %v908, %v848
  %v923 = vsel %vm915, %v902, %v849
  %v924 = vld [vmem:[#allocation3 + $0x48] sm:$0xff]
  %v925 = vpack.c.bf16 %v922, %v922
  %927 = vrot.lane.b32.xlu0 %v925, 64
  %v928 = vpop.permute.xlu0 %927
  %v930 = vsel %vm254, %v928, 0
  %932 = vmatpush.bf16.msra.mxu0 0
  %933 = vmatpush.bf16.msra.mxu0 0
  %934 = vmatpush.bf16.msra.mxu0 0
  %935 = vmatpush.bf16.msra.mxu0 0
  %936 = vmatpush.bf16.msra.mxu0 0
  %937 = vmatpush.bf16.msra.mxu0 0
  %938 = vmatpush.bf16.msra.mxu0 %v251
  %939 = vmatpush.bf16.msra.mxu0 %v250
  %940 = vmatmul.bf16.gmra.mxu0 %v930
  %v941 = vpop.f32.mrf.mxu0
  %v942 = vadd.f32 0.0, %v941
  %v943 = vpop.f32.mrf.mxu0
  %944 = vdwg.mxu0
  %v945 = vadd.f32 %v924, %v942
  %v946 = vxor.u32 %v945, 2147483648
  %v947 = vmul.f32 %v946, 1.442695
  %v948 = vpow.pop %v947
  %v949 = vadd.f32 %v948, 1.0
  %v950 = vrcp.pop %v949
  %v951 = vmul.f32 %v949, %v950
  %v952 = vsub.f32 1.0, %v951
  %v953 = vmul.f32 %v950, %v952
  %v954 = vadd.f32 %v950, %v953
  %vm955 = vweird.f32 %v949
  %vm956 = vweird.f32 %v950
  %vm957 = vmor %vm955, %vm956
  %v958 = vsel %vm957, %v950, %v954
  %v959 = vand.u32 2147483647, %v949
  %vm960 = vcmp.eq.f32.partialorder %v959, 8.507059e+37
  %v961 = vand.u32 %v949, 2147483648
  %v962 = vor.u32 1.1754944e-38, %v961
  %v963 = vsel %vm960, %v962, %v958
  %v964 = vmul.f32 1.0, %v963
  %v965 = vtanh.pop %v945
  %v966 = vmul.f32 %v964, %v923
  %968 = vrot.lane.b32.xlu0 %v965, 32
  %v969 = vpop.permute.xlu0 %968
  %v971 = vmul.f32 %v964, %v969
  %973 = vrot.lane.b32.xlu0 %v971, 32
  %v974 = vpop.permute.xlu0 %973
  %v976 = vadd.f32 %v966, %v974
  %v977 = vtanh.pop %v976
  %979 = vrot.lane.b32.xlu0 %v977, 32
  %v980 = vpop.permute.xlu0 %979
  %v982 = vmul.f32 %v964, %v980
  %v983 = vld [vmem:[%s0 + $0x48] sm:$0xff]
  %vm984 = vcmp.gt.f32.partialorder %v983, 0.0
  %v985 = vsel %vm984, 1, 0
  %986 = vset.pattern.permute.xlu0 0
  %987 = vperm.xlu0 %986, %v985
  %v988 = vpop.permute.xlu0 %987
  %vm989 = vcmp.eq.s32.totalorder %v988, 1
  %v990 = vsel %vm989, %v982, 0.0
  %992 = vrot.lane.b32.xlu0 %v990, 64
  %v993 = vpop.permute.xlu0 %992
  %995 = vst.msk [vmem:[#allocation2 + $0x48] sm:$0xff] %vm254, %v993
  %v996 = vsel %vm989, %v982, %v922
  %v997 = vsel %vm989, %v976, %v923
  %v998 = vld [vmem:[#allocation3 + $0x50] sm:$0xff]
  %v999 = vpack.c.bf16 %v996, %v996
  %1001 = vrot.lane.b32.xlu0 %v999, 64
  %v1002 = vpop.permute.xlu0 %1001
  %v1004 = vsel %vm254, %v1002, 0
  %1006 = vmatpush.bf16.msra.mxu0 0
  %1007 = vmatpush.bf16.msra.mxu0 0
  %1008 = vmatpush.bf16.msra.mxu0 0
  %1009 = vmatpush.bf16.msra.mxu0 0
  %1010 = vmatpush.bf16.msra.mxu0 0
  %1011 = vmatpush.bf16.msra.mxu0 0
  %1012 = vmatpush.bf16.msra.mxu0 %v251
  %1013 = vmatpush.bf16.msra.mxu0 %v250
  %1014 = vmatmul.bf16.gmra.mxu0 %v1004
  %v1015 = vpop.f32.mrf.mxu0
  %v1016 = vadd.f32 0.0, %v1015
  %v1017 = vpop.f32.mrf.mxu0
  %1018 = vdwg.mxu0
  %v1019 = vadd.f32 %v998, %v1016
  %v1020 = vxor.u32 %v1019, 2147483648
  %v1021 = vmul.f32 %v1020, 1.442695
  %v1022 = vpow.pop %v1021
  %v1023 = vadd.f32 %v1022, 1.0
  %v1024 = vrcp.pop %v1023
  %v1025 = vmul.f32 %v1023, %v1024
  %v1026 = vsub.f32 1.0, %v1025
  %v1027 = vmul.f32 %v1024, %v1026
  %v1028 = vadd.f32 %v1024, %v1027
  %vm1029 = vweird.f32 %v1023
  %vm1030 = vweird.f32 %v1024
  %vm1031 = vmor %vm1029, %vm1030
  %v1032 = vsel %vm1031, %v1024, %v1028
  %v1033 = vand.u32 2147483647, %v1023
  %vm1034 = vcmp.eq.f32.partialorder %v1033, 8.507059e+37
  %v1035 = vand.u32 %v1023, 2147483648
  %v1036 = vor.u32 1.1754944e-38, %v1035
  %v1037 = vsel %vm1034, %v1036, %v1032
  %v1038 = vmul.f32 1.0, %v1037
  %v1039 = vtanh.pop %v1019
  %v1040 = vmul.f32 %v1038, %v997
  %1042 = vrot.lane.b32.xlu0 %v1039, 32
  %v1043 = vpop.permute.xlu0 %1042
  %v1045 = vmul.f32 %v1038, %v1043
  %1047 = vrot.lane.b32.xlu0 %v1045, 32
  %v1048 = vpop.permute.xlu0 %1047
  %v1050 = vadd.f32 %v1040, %v1048
  %v1051 = vtanh.pop %v1050
  %1053 = vrot.lane.b32.xlu0 %v1051, 32
  %v1054 = vpop.permute.xlu0 %1053
  %v1056 = vmul.f32 %v1038, %v1054
  %v1057 = vld [vmem:[%s0 + $0x50] sm:$0xff]
  %vm1058 = vcmp.gt.f32.partialorder %v1057, 0.0
  %v1059 = vsel %vm1058, 1, 0
  %1060 = vset.pattern.permute.xlu0 0
  %1061 = vperm.xlu0 %1060, %v1059
  %v1062 = vpop.permute.xlu0 %1061
  %vm1063 = vcmp.eq.s32.totalorder %v1062, 1
  %v1064 = vsel %vm1063, %v1056, 0.0
  %1066 = vrot.lane.b32.xlu0 %v1064, 64
  %v1067 = vpop.permute.xlu0 %1066
  %1069 = vst.msk [vmem:[#allocation2 + $0x50] sm:$0xff] %vm254, %v1067
  %v1070 = vsel %vm1063, %v1056, %v996
  %v1071 = vsel %vm1063, %v1050, %v997
  %v1072 = vld [vmem:[#allocation3 + $0x58] sm:$0xff]
  %v1073 = vpack.c.bf16 %v1070, %v1070
  %1075 = vrot.lane.b32.xlu0 %v1073, 64
  %v1076 = vpop.permute.xlu0 %1075
  %v1078 = vsel %vm254, %v1076, 0
  %1080 = vmatpush.bf16.msra.mxu0 0
  %1081 = vmatpush.bf16.msra.mxu0 0
  %1082 = vmatpush.bf16.msra.mxu0 0
  %1083 = vmatpush.bf16.msra.mxu0 0
  %1084 = vmatpush.bf16.msra.mxu0 0
  %1085 = vmatpush.bf16.msra.mxu0 0
  %1086 = vmatpush.bf16.msra.mxu0 %v251
  %1087 = vmatpush.bf16.msra.mxu0 %v250
  %1088 = vmatmul.bf16.gmra.mxu0 %v1078
  %v1089 = vpop.f32.mrf.mxu0
  %v1090 = vadd.f32 0.0, %v1089
  %v1091 = vpop.f32.mrf.mxu0
  %1092 = vdwg.mxu0
  %v1093 = vadd.f32 %v1072, %v1090
  %v1094 = vxor.u32 %v1093, 2147483648
  %v1095 = vmul.f32 %v1094, 1.442695
  %v1096 = vpow.pop %v1095
  %v1097 = vadd.f32 %v1096, 1.0
  %v1098 = vrcp.pop %v1097
  %v1099 = vmul.f32 %v1097, %v1098
  %v1100 = vsub.f32 1.0, %v1099
  %v1101 = vmul.f32 %v1098, %v1100
  %v1102 = vadd.f32 %v1098, %v1101
  %vm1103 = vweird.f32 %v1097
  %vm1104 = vweird.f32 %v1098
  %vm1105 = vmor %vm1103, %vm1104
  %v1106 = vsel %vm1105, %v1098, %v1102
  %v1107 = vand.u32 2147483647, %v1097
  %vm1108 = vcmp.eq.f32.partialorder %v1107, 8.507059e+37
  %v1109 = vand.u32 %v1097, 2147483648
  %v1110 = vor.u32 1.1754944e-38, %v1109
  %v1111 = vsel %vm1108, %v1110, %v1106
  %v1112 = vmul.f32 1.0, %v1111
  %v1113 = vtanh.pop %v1093
  %v1114 = vmul.f32 %v1112, %v1071
  %1116 = vrot.lane.b32.xlu0 %v1113, 32
  %v1117 = vpop.permute.xlu0 %1116
  %v1119 = vmul.f32 %v1112, %v1117
  %1121 = vrot.lane.b32.xlu0 %v1119, 32
  %v1122 = vpop.permute.xlu0 %1121
  %v1124 = vadd.f32 %v1114, %v1122
  %v1125 = vtanh.pop %v1124
  %1127 = vrot.lane.b32.xlu0 %v1125, 32
  %v1128 = vpop.permute.xlu0 %1127
  %v1130 = vmul.f32 %v1112, %v1128
  %v1131 = vld [vmem:[%s0 + $0x58] sm:$0xff]
  %vm1132 = vcmp.gt.f32.partialorder %v1131, 0.0
  %v1133 = vsel %vm1132, 1, 0
  %1134 = vset.pattern.permute.xlu0 0
  %1135 = vperm.xlu0 %1134, %v1133
  %v1136 = vpop.permute.xlu0 %1135
  %vm1137 = vcmp.eq.s32.totalorder %v1136, 1
  %v1138 = vsel %vm1137, %v1130, 0.0
  %1140 = vrot.lane.b32.xlu0 %v1138, 64
  %v1141 = vpop.permute.xlu0 %1140
  %1143 = vst.msk [vmem:[#allocation2 + $0x58] sm:$0xff] %vm254, %v1141
  %v1144 = vsel %vm1137, %v1130, %v1070
  %v1145 = vsel %vm1137, %v1124, %v1071
  %v1146 = vld [vmem:[#allocation3 + $0x60] sm:$0xff]
  %v1147 = vpack.c.bf16 %v1144, %v1144
  %1149 = vrot.lane.b32.xlu0 %v1147, 64
  %v1150 = vpop.permute.xlu0 %1149
  %v1152 = vsel %vm254, %v1150, 0
  %1154 = vmatpush.bf16.msra.mxu0 0
  %1155 = vmatpush.bf16.msra.mxu0 0
  %1156 = vmatpush.bf16.msra.mxu0 0
  %1157 = vmatpush.bf16.msra.mxu0 0
  %1158 = vmatpush.bf16.msra.mxu0 0
  %1159 = vmatpush.bf16.msra.mxu0 0
  %1160 = vmatpush.bf16.msra.mxu0 %v251
  %1161 = vmatpush.bf16.msra.mxu0 %v250
  %1162 = vmatmul.bf16.gmra.mxu0 %v1152
  %v1163 = vpop.f32.mrf.mxu0
  %v1164 = vadd.f32 0.0, %v1163
  %v1165 = vpop.f32.mrf.mxu0
  %1166 = vdwg.mxu0
  %v1167 = vadd.f32 %v1146, %v1164
  %v1168 = vxor.u32 %v1167, 2147483648
  %v1169 = vmul.f32 %v1168, 1.442695
  %v1170 = vpow.pop %v1169
  %v1171 = vadd.f32 %v1170, 1.0
  %v1172 = vrcp.pop %v1171
  %v1173 = vmul.f32 %v1171, %v1172
  %v1174 = vsub.f32 1.0, %v1173
  %v1175 = vmul.f32 %v1172, %v1174
  %v1176 = vadd.f32 %v1172, %v1175
  %vm1177 = vweird.f32 %v1171
  %vm1178 = vweird.f32 %v1172
  %vm1179 = vmor %vm1177, %vm1178
  %v1180 = vsel %vm1179, %v1172, %v1176
  %v1181 = vand.u32 2147483647, %v1171
  %vm1182 = vcmp.eq.f32.partialorder %v1181, 8.507059e+37
  %v1183 = vand.u32 %v1171, 2147483648
  %v1184 = vor.u32 1.1754944e-38, %v1183
  %v1185 = vsel %vm1182, %v1184, %v1180
  %v1186 = vmul.f32 1.0, %v1185
  %v1187 = vtanh.pop %v1167
  %v1188 = vmul.f32 %v1186, %v1145
  %1190 = vrot.lane.b32.xlu0 %v1187, 32
  %v1191 = vpop.permute.xlu0 %1190
  %v1193 = vmul.f32 %v1186, %v1191
  %1195 = vrot.lane.b32.xlu0 %v1193, 32
  %v1196 = vpop.permute.xlu0 %1195
  %v1198 = vadd.f32 %v1188, %v1196
  %v1199 = vtanh.pop %v1198
  %1201 = vrot.lane.b32.xlu0 %v1199, 32
  %v1202 = vpop.permute.xlu0 %1201
  %v1204 = vmul.f32 %v1186, %v1202
  %v1205 = vld [vmem:[%s0 + $0x60] sm:$0xff]
  %vm1206 = vcmp.gt.f32.partialorder %v1205, 0.0
  %v1207 = vsel %vm1206, 1, 0
  %1208 = vset.pattern.permute.xlu0 0
  %1209 = vperm.xlu0 %1208, %v1207
  %v1210 = vpop.permute.xlu0 %1209
  %vm1211 = vcmp.eq.s32.totalorder %v1210, 1
  %v1212 = vsel %vm1211, %v1204, 0.0
  %1214 = vrot.lane.b32.xlu0 %v1212, 64
  %v1215 = vpop.permute.xlu0 %1214
  %1217 = vst.msk [vmem:[#allocation2 + $0x60] sm:$0xff] %vm254, %v1215
  %v1218 = vsel %vm1211, %v1204, %v1144
  %v1219 = vsel %vm1211, %v1198, %v1145
  %v1220 = vld [vmem:[#allocation3 + $0x68] sm:$0xff]
  %v1221 = vpack.c.bf16 %v1218, %v1218
  %1223 = vrot.lane.b32.xlu0 %v1221, 64
  %v1224 = vpop.permute.xlu0 %1223
  %v1226 = vsel %vm254, %v1224, 0
  %1228 = vmatpush.bf16.msra.mxu0 0
  %1229 = vmatpush.bf16.msra.mxu0 0
  %1230 = vmatpush.bf16.msra.mxu0 0
  %1231 = vmatpush.bf16.msra.mxu0 0
  %1232 = vmatpush.bf16.msra.mxu0 0
  %1233 = vmatpush.bf16.msra.mxu0 0
  %1234 = vmatpush.bf16.msra.mxu0 %v251
  %1235 = vmatpush.bf16.msra.mxu0 %v250
  %1236 = vmatmul.bf16.gmra.mxu0 %v1226
  %v1237 = vpop.f32.mrf.mxu0
  %v1238 = vadd.f32 0.0, %v1237
  %v1239 = vpop.f32.mrf.mxu0
  %1240 = vdwg.mxu0
  %v1241 = vadd.f32 %v1220, %v1238
  %v1242 = vxor.u32 %v1241, 2147483648
  %v1243 = vmul.f32 %v1242, 1.442695
  %v1244 = vpow.pop %v1243
  %v1245 = vadd.f32 %v1244, 1.0
  %v1246 = vrcp.pop %v1245
  %v1247 = vmul.f32 %v1245, %v1246
  %v1248 = vsub.f32 1.0, %v1247
  %v1249 = vmul.f32 %v1246, %v1248
  %v1250 = vadd.f32 %v1246, %v1249
  %vm1251 = vweird.f32 %v1245
  %vm1252 = vweird.f32 %v1246
  %vm1253 = vmor %vm1251, %vm1252
  %v1254 = vsel %vm1253, %v1246, %v1250
  %v1255 = vand.u32 2147483647, %v1245
  %vm1256 = vcmp.eq.f32.partialorder %v1255, 8.507059e+37
  %v1257 = vand.u32 %v1245, 2147483648
  %v1258 = vor.u32 1.1754944e-38, %v1257
  %v1259 = vsel %vm1256, %v1258, %v1254
  %v1260 = vmul.f32 1.0, %v1259
  %v1261 = vtanh.pop %v1241
  %v1262 = vmul.f32 %v1260, %v1219
  %1264 = vrot.lane.b32.xlu0 %v1261, 32
  %v1265 = vpop.permute.xlu0 %1264
  %v1267 = vmul.f32 %v1260, %v1265
  %1269 = vrot.lane.b32.xlu0 %v1267, 32
  %v1270 = vpop.permute.xlu0 %1269
  %v1272 = vadd.f32 %v1262, %v1270
  %v1273 = vtanh.pop %v1272
  %1275 = vrot.lane.b32.xlu0 %v1273, 32
  %v1276 = vpop.permute.xlu0 %1275
  %v1278 = vmul.f32 %v1260, %v1276
  %v1279 = vld [vmem:[%s0 + $0x68] sm:$0xff]
  %vm1280 = vcmp.gt.f32.partialorder %v1279, 0.0
  %v1281 = vsel %vm1280, 1, 0
  %1282 = vset.pattern.permute.xlu0 0
  %1283 = vperm.xlu0 %1282, %v1281
  %v1284 = vpop.permute.xlu0 %1283
  %vm1285 = vcmp.eq.s32.totalorder %v1284, 1
  %v1286 = vsel %vm1285, %v1278, 0.0
  %1288 = vrot.lane.b32.xlu0 %v1286, 64
  %v1289 = vpop.permute.xlu0 %1288
  %1291 = vst.msk [vmem:[#allocation2 + $0x68] sm:$0xff] %vm254, %v1289
  %v1292 = vsel %vm1285, %v1278, %v1218
  %v1293 = vsel %vm1285, %v1272, %v1219
  %v1294 = vld [vmem:[#allocation3 + $0x70] sm:$0xff]
  %v1295 = vpack.c.bf16 %v1292, %v1292
  %1297 = vrot.lane.b32.xlu0 %v1295, 64
  %v1298 = vpop.permute.xlu0 %1297
  %v1300 = vsel %vm254, %v1298, 0
  %1302 = vmatpush.bf16.msra.mxu0 0
  %1303 = vmatpush.bf16.msra.mxu0 0
  %1304 = vmatpush.bf16.msra.mxu0 0
  %1305 = vmatpush.bf16.msra.mxu0 0
  %1306 = vmatpush.bf16.msra.mxu0 0
  %1307 = vmatpush.bf16.msra.mxu0 0
  %1308 = vmatpush.bf16.msra.mxu0 %v251
  %1309 = vmatpush.bf16.msra.mxu0 %v250
  %1310 = vmatmul.bf16.gmra.mxu0 %v1300
  %v1311 = vpop.f32.mrf.mxu0
  %v1312 = vadd.f32 0.0, %v1311
  %v1313 = vpop.f32.mrf.mxu0
  %1314 = vdwg.mxu0
  %v1315 = vadd.f32 %v1294, %v1312
  %v1316 = vxor.u32 %v1315, 2147483648
  %v1317 = vmul.f32 %v1316, 1.442695
  %v1318 = vpow.pop %v1317
  %v1319 = vadd.f32 %v1318, 1.0
  %v1320 = vrcp.pop %v1319
  %v1321 = vmul.f32 %v1319, %v1320
  %v1322 = vsub.f32 1.0, %v1321
  %v1323 = vmul.f32 %v1320, %v1322
  %v1324 = vadd.f32 %v1320, %v1323
  %vm1325 = vweird.f32 %v1319
  %vm1326 = vweird.f32 %v1320
  %vm1327 = vmor %vm1325, %vm1326
  %v1328 = vsel %vm1327, %v1320, %v1324
  %v1329 = vand.u32 2147483647, %v1319
  %vm1330 = vcmp.eq.f32.partialorder %v1329, 8.507059e+37
  %v1331 = vand.u32 %v1319, 2147483648
  %v1332 = vor.u32 1.1754944e-38, %v1331
  %v1333 = vsel %vm1330, %v1332, %v1328
  %v1334 = vmul.f32 1.0, %v1333
  %v1335 = vtanh.pop %v1315
  %v1336 = vmul.f32 %v1334, %v1293
  %1338 = vrot.lane.b32.xlu0 %v1335, 32
  %v1339 = vpop.permute.xlu0 %1338
  %v1341 = vmul.f32 %v1334, %v1339
  %1343 = vrot.lane.b32.xlu0 %v1341, 32
  %v1344 = vpop.permute.xlu0 %1343
  %v1346 = vadd.f32 %v1336, %v1344
  %v1347 = vtanh.pop %v1346
  %1349 = vrot.lane.b32.xlu0 %v1347, 32
  %v1350 = vpop.permute.xlu0 %1349
  %v1352 = vmul.f32 %v1334, %v1350
  %v1353 = vld [vmem:[%s0 + $0x70] sm:$0xff]
  %vm1354 = vcmp.gt.f32.partialorder %v1353, 0.0
  %v1355 = vsel %vm1354, 1, 0
  %1356 = vset.pattern.permute.xlu0 0
  %1357 = vperm.xlu0 %1356, %v1355
  %v1358 = vpop.permute.xlu0 %1357
  %vm1359 = vcmp.eq.s32.totalorder %v1358, 1
  %v1360 = vsel %vm1359, %v1352, 0.0
  %1362 = vrot.lane.b32.xlu0 %v1360, 64
  %v1363 = vpop.permute.xlu0 %1362
  %1365 = vst.msk [vmem:[#allocation2 + $0x70] sm:$0xff] %vm254, %v1363
  %v1366 = vsel %vm1359, %v1352, %v1292
  %v1367 = vsel %vm1359, %v1346, %v1293
  %v1368 = vld [vmem:[#allocation3 + $0x78] sm:$0xff]
  %v1369 = vpack.c.bf16 %v1366, %v1366
  %1371 = vrot.lane.b32.xlu0 %v1369, 64
  %v1372 = vpop.permute.xlu0 %1371
  %v1374 = vsel %vm254, %v1372, 0
  %1376 = vmatpush.bf16.msra.mxu0 0
  %1377 = vmatpush.bf16.msra.mxu0 0
  %1378 = vmatpush.bf16.msra.mxu0 0
  %1379 = vmatpush.bf16.msra.mxu0 0
  %1380 = vmatpush.bf16.msra.mxu0 0
  %1381 = vmatpush.bf16.msra.mxu0 0
  %1382 = vmatpush.bf16.msra.mxu0 %v251
  %1383 = vmatpush.bf16.msra.mxu0 %v250
  %1384 = vmatmul.bf16.gmra.mxu0 %v1374
  %v1385 = vpop.f32.mrf.mxu0
  %v1386 = vadd.f32 0.0, %v1385
  %v1387 = vpop.f32.mrf.mxu0
  %1388 = vdwg.mxu0
  %v1389 = vadd.f32 %v1368, %v1386
  %v1390 = vxor.u32 %v1389, 2147483648
  %v1391 = vmul.f32 %v1390, 1.442695
  %v1392 = vpow.pop %v1391
  %v1393 = vadd.f32 %v1392, 1.0
  %v1394 = vrcp.pop %v1393
  %v1395 = vmul.f32 %v1393, %v1394
  %v1396 = vsub.f32 1.0, %v1395
  %v1397 = vmul.f32 %v1394, %v1396
  %v1398 = vadd.f32 %v1394, %v1397
  %vm1399 = vweird.f32 %v1393
  %vm1400 = vweird.f32 %v1394
  %vm1401 = vmor %vm1399, %vm1400
  %v1402 = vsel %vm1401, %v1394, %v1398
  %v1403 = vand.u32 2147483647, %v1393
  %vm1404 = vcmp.eq.f32.partialorder %v1403, 8.507059e+37
  %v1405 = vand.u32 %v1393, 2147483648
  %v1406 = vor.u32 1.1754944e-38, %v1405
  %v1407 = vsel %vm1404, %v1406, %v1402
  %v1408 = vmul.f32 1.0, %v1407
  %v1409 = vtanh.pop %v1389
  %v1410 = vmul.f32 %v1408, %v1367
  %1412 = vrot.lane.b32.xlu0 %v1409, 32
  %v1413 = vpop.permute.xlu0 %1412
  %v1415 = vmul.f32 %v1408, %v1413
  %1417 = vrot.lane.b32.xlu0 %v1415, 32
  %v1418 = vpop.permute.xlu0 %1417
  %v1420 = vadd.f32 %v1410, %v1418
  %v1421 = vtanh.pop %v1420
  %1423 = vrot.lane.b32.xlu0 %v1421, 32
  %v1424 = vpop.permute.xlu0 %1423
  %v1426 = vmul.f32 %v1408, %v1424
  %v1427 = vld [vmem:[%s0 + $0x78] sm:$0xff]
  %vm1428 = vcmp.gt.f32.partialorder %v1427, 0.0
  %v1429 = vsel %vm1428, 1, 0
  %1430 = vset.pattern.permute.xlu0 0
  %1431 = vperm.xlu0 %1430, %v1429
  %v1432 = vpop.permute.xlu0 %1431
  %vm1433 = vcmp.eq.s32.totalorder %v1432, 1
  %v1434 = vsel %vm1433, %v1426, 0.0
  %1436 = vrot.lane.b32.xlu0 %v1434, 64
  %v1437 = vpop.permute.xlu0 %1436
  %1439 = vst.msk [vmem:[#allocation2 + $0x78] sm:$0xff] %vm254, %v1437
  %v1440 = vsel %vm1433, %v1426, %v1366
  %v1441 = vsel %vm1433, %v1420, %v1367
  %v1442 = vld [vmem:[#allocation3 + $0x80] sm:$0xff]
  %v1443 = vpack.c.bf16 %v1440, %v1440
  %1445 = vrot.lane.b32.xlu0 %v1443, 64
  %v1446 = vpop.permute.xlu0 %1445
  %v1448 = vsel %vm254, %v1446, 0
  %1450 = vmatpush.bf16.msra.mxu0 0
  %1451 = vmatpush.bf16.msra.mxu0 0
  %1452 = vmatpush.bf16.msra.mxu0 0
  %1453 = vmatpush.bf16.msra.mxu0 0
  %1454 = vmatpush.bf16.msra.mxu0 0
  %1455 = vmatpush.bf16.msra.mxu0 0
  %1456 = vmatpush.bf16.msra.mxu0 %v251
  %1457 = vmatpush.bf16.msra.mxu0 %v250
  %1458 = vmatmul.bf16.gmra.mxu0 %v1448
  %v1459 = vpop.f32.mrf.mxu0
  %v1460 = vadd.f32 0.0, %v1459
  %v1461 = vpop.f32.mrf.mxu0
  %1462 = vdwg.mxu0
  %v1463 = vadd.f32 %v1442, %v1460
  %v1464 = vxor.u32 %v1463, 2147483648
  %v1465 = vmul.f32 %v1464, 1.442695
  %v1466 = vpow.pop %v1465
  %v1467 = vadd.f32 %v1466, 1.0
  %v1468 = vrcp.pop %v1467
  %v1469 = vmul.f32 %v1467, %v1468
  %v1470 = vsub.f32 1.0, %v1469
  %v1471 = vmul.f32 %v1468, %v1470
  %v1472 = vadd.f32 %v1468, %v1471
  %vm1473 = vweird.f32 %v1467
  %vm1474 = vweird.f32 %v1468
  %vm1475 = vmor %vm1473, %vm1474
  %v1476 = vsel %vm1475, %v1468, %v1472
  %v1477 = vand.u32 2147483647, %v1467
  %vm1478 = vcmp.eq.f32.partialorder %v1477, 8.507059e+37
  %v1479 = vand.u32 %v1467, 2147483648
  %v1480 = vor.u32 1.1754944e-38, %v1479
  %v1481 = vsel %vm1478, %v1480, %v1476
  %v1482 = vmul.f32 1.0, %v1481
  %v1483 = vtanh.pop %v1463
  %v1484 = vmul.f32 %v1482, %v1441
  %1486 = vrot.lane.b32.xlu0 %v1483, 32
  %v1487 = vpop.permute.xlu0 %1486
  %v1489 = vmul.f32 %v1482, %v1487
  %1491 = vrot.lane.b32.xlu0 %v1489, 32
  %v1492 = vpop.permute.xlu0 %1491
  %v1494 = vadd.f32 %v1484, %v1492
  %v1495 = vtanh.pop %v1494
  %1497 = vrot.lane.b32.xlu0 %v1495, 32
  %v1498 = vpop.permute.xlu0 %1497
  %v1500 = vmul.f32 %v1482, %v1498
  %v1501 = vld [vmem:[%s0 + $0x80] sm:$0xff]
  %vm1502 = vcmp.gt.f32.partialorder %v1501, 0.0
  %v1503 = vsel %vm1502, 1, 0
  %1504 = vset.pattern.permute.xlu0 0
  %1505 = vperm.xlu0 %1504, %v1503
  %v1506 = vpop.permute.xlu0 %1505
  %vm1507 = vcmp.eq.s32.totalorder %v1506, 1
  %v1508 = vsel %vm1507, %v1500, 0.0
  %1510 = vrot.lane.b32.xlu0 %v1508, 64
  %v1511 = vpop.permute.xlu0 %1510
  %1513 = vst.msk [vmem:[#allocation2 + $0x80] sm:$0xff] %vm254, %v1511
  %v1514 = vsel %vm1507, %v1500, %v1440
  %v1515 = vsel %vm1507, %v1494, %v1441
  %v1516 = vld [vmem:[#allocation3 + $0x88] sm:$0xff]
  %v1517 = vpack.c.bf16 %v1514, %v1514
  %1519 = vrot.lane.b32.xlu0 %v1517, 64
  %v1520 = vpop.permute.xlu0 %1519
  %v1522 = vsel %vm254, %v1520, 0
  %1524 = vmatpush.bf16.msra.mxu0 0
  %1525 = vmatpush.bf16.msra.mxu0 0
  %1526 = vmatpush.bf16.msra.mxu0 0
  %1527 = vmatpush.bf16.msra.mxu0 0
  %1528 = vmatpush.bf16.msra.mxu0 0
  %1529 = vmatpush.bf16.msra.mxu0 0
  %1530 = vmatpush.bf16.msra.mxu0 %v251
  %1531 = vmatpush.bf16.msra.mxu0 %v250
  %1532 = vmatmul.bf16.gmra.mxu0 %v1522
  %v1533 = vpop.f32.mrf.mxu0
  %v1534 = vadd.f32 0.0, %v1533
  %v1535 = vpop.f32.mrf.mxu0
  %1536 = vdwg.mxu0
  %v1537 = vadd.f32 %v1516, %v1534
  %v1538 = vxor.u32 %v1537, 2147483648
  %v1539 = vmul.f32 %v1538, 1.442695
  %v1540 = vpow.pop %v1539
  %v1541 = vadd.f32 %v1540, 1.0
  %v1542 = vrcp.pop %v1541
  %v1543 = vmul.f32 %v1541, %v1542
  %v1544 = vsub.f32 1.0, %v1543
  %v1545 = vmul.f32 %v1542, %v1544
  %v1546 = vadd.f32 %v1542, %v1545
  %vm1547 = vweird.f32 %v1541
  %vm1548 = vweird.f32 %v1542
  %vm1549 = vmor %vm1547, %vm1548
  %v1550 = vsel %vm1549, %v1542, %v1546
  %v1551 = vand.u32 2147483647, %v1541
  %vm1552 = vcmp.eq.f32.partialorder %v1551, 8.507059e+37
  %v1553 = vand.u32 %v1541, 2147483648
  %v1554 = vor.u32 1.1754944e-38, %v1553
  %v1555 = vsel %vm1552, %v1554, %v1550
  %v1556 = vmul.f32 1.0, %v1555
  %v1557 = vtanh.pop %v1537
  %v1558 = vmul.f32 %v1556, %v1515
  %1560 = vrot.lane.b32.xlu0 %v1557, 32
  %v1561 = vpop.permute.xlu0 %1560
  %v1563 = vmul.f32 %v1556, %v1561
  %1565 = vrot.lane.b32.xlu0 %v1563, 32
  %v1566 = vpop.permute.xlu0 %1565
  %v1568 = vadd.f32 %v1558, %v1566
  %v1569 = vtanh.pop %v1568
  %1571 = vrot.lane.b32.xlu0 %v1569, 32
  %v1572 = vpop.permute.xlu0 %1571
  %v1574 = vmul.f32 %v1556, %v1572
  %v1575 = vld [vmem:[%s0 + $0x88] sm:$0xff]
  %vm1576 = vcmp.gt.f32.partialorder %v1575, 0.0
  %v1577 = vsel %vm1576, 1, 0
  %1578 = vset.pattern.permute.xlu0 0
  %1579 = vperm.xlu0 %1578, %v1577
  %v1580 = vpop.permute.xlu0 %1579
  %vm1581 = vcmp.eq.s32.totalorder %v1580, 1
  %v1582 = vsel %vm1581, %v1574, 0.0
  %1584 = vrot.lane.b32.xlu0 %v1582, 64
  %v1585 = vpop.permute.xlu0 %1584
  %1587 = vst.msk [vmem:[#allocation2 + $0x88] sm:$0xff] %vm254, %v1585
  %v1588 = vld [vmem:[#allocation2] sm:$0xff]
  %v1589 = vld [vmem:[#allocation2 + $0x8] sm:$0xff]
  %v1590 = vld [vmem:[#allocation2 + $0x10] sm:$0xff]
  %v1591 = vld [vmem:[#allocation2 + $0x18] sm:$0xff]
  %v1592 = vld [vmem:[#allocation2 + $0x20] sm:$0xff]
  %v1593 = vld [vmem:[#allocation2 + $0x28] sm:$0xff]
  %v1594 = vld [vmem:[#allocation2 + $0x30] sm:$0xff]
  %v1595 = vld [vmem:[#allocation2 + $0x38] sm:$0xff]
  %v1596 = vld [vmem:[#allocation2 + $0x40] sm:$0xff]
  %v1597 = vld [vmem:[#allocation2 + $0x48] sm:$0xff]
  %v1598 = vld [vmem:[#allocation2 + $0x50] sm:$0xff]
  %v1599 = vld [vmem:[#allocation2 + $0x58] sm:$0xff]
  %v1600 = vld [vmem:[#allocation2 + $0x60] sm:$0xff]
  %v1601 = vld [vmem:[#allocation2 + $0x68] sm:$0xff]
  %v1602 = vld [vmem:[#allocation2 + $0x70] sm:$0xff]
  %v1603 = vld [vmem:[#allocation2 + $0x78] sm:$0xff]
  %v1604 = vld [vmem:[#allocation2 + $0x80] sm:$0xff]
  %v1605 = vld [vmem:[#allocation2 + $0x88] sm:$0xff]
  %v1606 = vpack.c.bf16 %v1589, %v1588
  %v1607 = vpack.c.bf16 %v1591, %v1590
  %v1608 = vpack.c.bf16 %v1593, %v1592
  %v1609 = vpack.c.bf16 %v1595, %v1594
  %v1610 = vpack.c.bf16 %v1597, %v1596
  %v1611 = vpack.c.bf16 %v1599, %v1598
  %v1612 = vpack.c.bf16 %v1601, %v1600
  %v1613 = vpack.c.bf16 %v1603, %v1602
  %v1614 = vpack.c.bf16 %v1605, %v1604
  %v1615 = vld [vmem:[%s7] sm:$0xf]
  %v1616 = vld [vmem:[%s7 + $0x4] sm:$0xf]
  %v1617 = vld [vmem:[%s7 + $0x8] sm:$0xf]
  %v1618 = vld [vmem:[%s7 + $0xc] sm:$0xf]
  %v1619 = vld [vmem:[%s9] sm:$0x1]
  %v1621 = vperm.slane %v1619, 0
  %v1627 = vunpack.c.l.b16 %v1615
  %v1628 = vunpack.c.l.b16 %v1616
  %v1629 = vunpack.c.l.b16 %v1617
  %v1630 = vunpack.c.l.b16 %v1618
  %v1631 = vpack.c.b16 %v1628, %v1627
  %v1632 = vpack.c.b16 %v1630, %v1629
  %v1636 = vsel %vm254, %v1606, 0
  %v1639 = vsel %vm254, %v1607, 0
  %v1642 = vsel %vm254, %v1608, 0
  %v1645 = vsel %vm254, %v1609, 0
  %v1648 = vsel %vm254, %v1610, 0
  %v1651 = vsel %vm254, %v1611, 0
  %v1654 = vsel %vm254, %v1612, 0
  %v1657 = vsel %vm254, %v1613, 0
  %v1660 = vsel %vm254, %v1614, 0
  %1662 = vmatpush.bf16.msra.mxu0 0
  %1663 = vmatpush.bf16.msra.mxu0 0
  %1664 = vmatpush.bf16.msra.mxu0 0
  %1665 = vmatpush.bf16.msra.mxu0 0
  %1666 = vmatpush.bf16.msra.mxu0 0
  %1667 = vmatpush.bf16.msra.mxu0 0
  %1668 = vmatpush.bf16.msra.mxu0 %v1632
  %1669 = vmatpush.bf16.msra.mxu0 %v1631
  %1670 = vmatmul.bf16.gmra.mxu0 %v1636
  %v1671 = vpop.f32.mrf.mxu0
  %v1672 = vadd.f32 %v1621, %v1671
  %v1673 = vpop.f32.mrf.mxu0
  %v1674 = vadd.f32 %v1621, %v1673
  %1675 = vmatmul.bf16.gmra.mxu0 %v1639
  %v1676 = vpop.f32.mrf.mxu0
  %v1677 = vadd.f32 %v1621, %v1676
  %v1678 = vpop.f32.mrf.mxu0
  %v1679 = vadd.f32 %v1621, %v1678
  %1680 = vmatmul.bf16.gmra.mxu0 %v1642
  %v1681 = vpop.f32.mrf.mxu0
  %v1682 = vadd.f32 %v1621, %v1681
  %v1683 = vpop.f32.mrf.mxu0
  %v1684 = vadd.f32 %v1621, %v1683
  %1685 = vmatmul.bf16.gmra.mxu0 %v1645
  %v1686 = vpop.f32.mrf.mxu0
  %v1687 = vadd.f32 %v1621, %v1686
  %v1688 = vpop.f32.mrf.mxu0
  %v1689 = vadd.f32 %v1621, %v1688
  %1690 = vmatmul.bf16.gmra.mxu0 %v1648
  %v1691 = vpop.f32.mrf.mxu0
  %v1692 = vadd.f32 %v1621, %v1691
  %v1693 = vpop.f32.mrf.mxu0
  %v1694 = vadd.f32 %v1621, %v1693
  %1695 = vmatmul.bf16.gmra.mxu0 %v1651
  %v1696 = vpop.f32.mrf.mxu0
  %v1697 = vadd.f32 %v1621, %v1696
  %v1698 = vpop.f32.mrf.mxu0
  %v1699 = vadd.f32 %v1621, %v1698
  %1700 = vmatmul.bf16.gmra.mxu0 %v1654
  %v1701 = vpop.f32.mrf.mxu0
  %v1702 = vadd.f32 %v1621, %v1701
  %v1703 = vpop.f32.mrf.mxu0
  %v1704 = vadd.f32 %v1621, %v1703
  %1705 = vmatmul.bf16.gmra.mxu0 %v1657
  %v1706 = vpop.f32.mrf.mxu0
  %v1707 = vadd.f32 %v1621, %v1706
  %v1708 = vpop.f32.mrf.mxu0
  %v1709 = vadd.f32 %v1621, %v1708
  %1710 = vmatmul.bf16.gmra.mxu0 %v1660
  %v1711 = vpop.f32.mrf.mxu0
  %v1712 = vadd.f32 %v1621, %v1711
  %v1713 = vpop.f32.mrf.mxu0
  %v1714 = vadd.f32 %v1621, %v1713
  %1715 = vdwg.mxu0
  %1716 = vst [vmem:[#allocation3] sm:$0xff] %v1672
  %1717 = vst [vmem:[#allocation3 + $0x8] sm:$0xff] %v1674
  %1718 = vst [vmem:[#allocation3 + $0x10] sm:$0xff] %v1677
  %1719 = vst [vmem:[#allocation3 + $0x18] sm:$0xff] %v1679
  %1720 = vst [vmem:[#allocation3 + $0x20] sm:$0xff] %v1682
  %1721 = vst [vmem:[#allocation3 + $0x28] sm:$0xff] %v1684
  %1722 = vst [vmem:[#allocation3 + $0x30] sm:$0xff] %v1687
  %1723 = vst [vmem:[#allocation3 + $0x38] sm:$0xff] %v1689
  %1724 = vst [vmem:[#allocation3 + $0x40] sm:$0xff] %v1692
  %1725 = vst [vmem:[#allocation3 + $0x48] sm:$0xff] %v1694
  %1726 = vst [vmem:[#allocation3 + $0x50] sm:$0xff] %v1697
  %1727 = vst [vmem:[#allocation3 + $0x58] sm:$0xff] %v1699
  %1728 = vst [vmem:[#allocation3 + $0x60] sm:$0xff] %v1702
  %1729 = vst [vmem:[#allocation3 + $0x68] sm:$0xff] %v1704
  %1730 = vst [vmem:[#allocation3 + $0x70] sm:$0xff] %v1707
  %1731 = vst [vmem:[#allocation3 + $0x78] sm:$0xff] %v1709
  %1732 = vst [vmem:[#allocation3 + $0x80] sm:$0xff] %v1712
  %1733 = vst [vmem:[#allocation3 + $0x88] sm:$0xff] %v1714
  %v1734 = vld [vmem:[%s8] sm:$0xf]
  %v1735 = vld [vmem:[%s8 + $0x4] sm:$0xf]
  %v1736 = vld [vmem:[%s8 + $0x8] sm:$0xf]
  %v1737 = vld [vmem:[%s8 + $0xc] sm:$0xf]
  %s1738 = scalar_lea.vmem %s2, 8
  %v1739 = vld [vmem:[%s1738] sm:$0xff]
  %s1740 = scalar_lea.vmem %s3, 8
  %v1741 = vld [vmem:[%s1740] sm:$0xff]
  %v1742 = vld [vmem:[#allocation3] sm:$0xff]
  %v1743 = vpack.c.bf16 %v1739, %v1739
  %v1748 = vunpack.c.l.b16 %v1734
  %v1749 = vunpack.c.l.b16 %v1735
  %v1750 = vunpack.c.l.b16 %v1736
  %v1751 = vunpack.c.l.b16 %v1737
  %v1752 = vpack.c.b16 %v1749, %v1748
  %v1753 = vpack.c.b16 %v1751, %v1750
  %v1757 = vsel %vm254, %v1743, 0
  %1759 = vmatpush.bf16.msra.mxu0 0
  %1760 = vmatpush.bf16.msra.mxu0 0
  %1761 = vmatpush.bf16.msra.mxu0 0
  %1762 = vmatpush.bf16.msra.mxu0 0
  %1763 = vmatpush.bf16.msra.mxu0 0
  %1764 = vmatpush.bf16.msra.mxu0 0
  %1765 = vmatpush.bf16.msra.mxu0 %v1753
  %1766 = vmatpush.bf16.msra.mxu0 %v1752
  %1767 = vmatmul.bf16.gmra.mxu0 %v1757
  %v1768 = vpop.f32.mrf.mxu0
  %v1769 = vadd.f32 0.0, %v1768
  %v1770 = vpop.f32.mrf.mxu0
  %1771 = vdwg.mxu0
  %v1772 = vadd.f32 %v1742, %v1769
  %v1773 = vxor.u32 %v1772, 2147483648
  %v1774 = vmul.f32 %v1773, 1.442695
  %v1775 = vpow.pop %v1774
  %v1776 = vadd.f32 %v1775, 1.0
  %v1777 = vrcp.pop %v1776
  %v1778 = vmul.f32 %v1776, %v1777
  %v1779 = vsub.f32 1.0, %v1778
  %v1780 = vmul.f32 %v1777, %v1779
  %v1781 = vadd.f32 %v1777, %v1780
  %vm1782 = vweird.f32 %v1776
  %vm1783 = vweird.f32 %v1777
  %vm1784 = vmor %vm1782, %vm1783
  %v1785 = vsel %vm1784, %v1777, %v1781
  %v1786 = vand.u32 2147483647, %v1776
  %vm1787 = vcmp.eq.f32.partialorder %v1786, 8.507059e+37
  %v1788 = vand.u32 %v1776, 2147483648
  %v1789 = vor.u32 1.1754944e-38, %v1788
  %v1790 = vsel %vm1787, %v1789, %v1785
  %v1791 = vmul.f32 1.0, %v1790
  %v1792 = vtanh.pop %v1772
  %1794 = vrot.lane.b32.xlu0 %v1741, 32
  %v1795 = vpop.permute.xlu0 %1794
  %v1797 = vmul.f32 %v1791, %v1795
  %1799 = vrot.lane.b32.xlu0 %v1792, 32
  %v1800 = vpop.permute.xlu0 %1799
  %v1802 = vmul.f32 %v1791, %v1800
  %1804 = vrot.lane.b32.xlu0 %v1802, 32
  %v1805 = vpop.permute.xlu0 %1804
  %v1807 = vadd.f32 %v1797, %v1805
  %v1808 = vtanh.pop %v1807
  %1810 = vrot.lane.b32.xlu0 %v1808, 32
  %v1811 = vpop.permute.xlu0 %1810
  %v1813 = vmul.f32 %v1791, %v1811
  %v1814 = vld [vmem:[%s0] sm:$0xff]
  %vm1815 = vcmp.gt.f32.partialorder %v1814, 0.0
  %v1816 = vsel %vm1815, 1, 0
  %1817 = vset.pattern.permute.xlu0 0
  %1818 = vperm.xlu0 %1817, %v1816
  %v1819 = vpop.permute.xlu0 %1818
  %vm1820 = vcmp.eq.s32.totalorder %v1819, 1
  %v1821 = vsel %vm1820, %v1813, 0.0
  %1823 = vrot.lane.b32.xlu0 %v1821, 64
  %v1824 = vpop.permute.xlu0 %1823
  %1826 = vst.msk [vmem:[#allocation2] sm:$0xff] %vm254, %v1824
  %1828 = vrot.lane.b32.xlu0 %v1739, 64
  %v1829 = vpop.permute.xlu0 %1828
  %v1831 = vsel %vm1820, %v1813, %v1829
  %v1832 = vsel %vm1820, %v1807, %v1795
  %v1833 = vld [vmem:[#allocation3 + $0x8] sm:$0xff]
  %v1834 = vpack.c.bf16 %v1831, %v1831
  %1836 = vrot.lane.b32.xlu0 %v1834, 64
  %v1837 = vpop.permute.xlu0 %1836
  %v1839 = vsel %vm254, %v1837, 0
  %1841 = vmatpush.bf16.msra.mxu0 0
  %1842 = vmatpush.bf16.msra.mxu0 0
  %1843 = vmatpush.bf16.msra.mxu0 0
  %1844 = vmatpush.bf16.msra.mxu0 0
  %1845 = vmatpush.bf16.msra.mxu0 0
  %1846 = vmatpush.bf16.msra.mxu0 0
  %1847 = vmatpush.bf16.msra.mxu0 %v1753
  %1848 = vmatpush.bf16.msra.mxu0 %v1752
  %1849 = vmatmul.bf16.gmra.mxu0 %v1839
  %v1850 = vpop.f32.mrf.mxu0
  %v1851 = vadd.f32 0.0, %v1850
  %v1852 = vpop.f32.mrf.mxu0
  %1853 = vdwg.mxu0
  %v1854 = vadd.f32 %v1833, %v1851
  %v1855 = vxor.u32 %v1854, 2147483648
  %v1856 = vmul.f32 %v1855, 1.442695
  %v1857 = vpow.pop %v1856
  %v1858 = vadd.f32 %v1857, 1.0
  %v1859 = vrcp.pop %v1858
  %v1860 = vmul.f32 %v1858, %v1859
  %v1861 = vsub.f32 1.0, %v1860
  %v1862 = vmul.f32 %v1859, %v1861
  %v1863 = vadd.f32 %v1859, %v1862
  %vm1864 = vweird.f32 %v1858
  %vm1865 = vweird.f32 %v1859
  %vm1866 = vmor %vm1864, %vm1865
  %v1867 = vsel %vm1866, %v1859, %v1863
  %v1868 = vand.u32 2147483647, %v1858
  %vm1869 = vcmp.eq.f32.partialorder %v1868, 8.507059e+37
  %v1870 = vand.u32 %v1858, 2147483648
  %v1871 = vor.u32 1.1754944e-38, %v1870
  %v1872 = vsel %vm1869, %v1871, %v1867
  %v1873 = vmul.f32 1.0, %v1872
  %v1874 = vtanh.pop %v1854
  %v1875 = vmul.f32 %v1873, %v1832
  %1877 = vrot.lane.b32.xlu0 %v1874, 32
  %v1878 = vpop.permute.xlu0 %1877
  %v1880 = vmul.f32 %v1873, %v1878
  %1882 = vrot.lane.b32.xlu0 %v1880, 32
  %v1883 = vpop.permute.xlu0 %1882
  %v1885 = vadd.f32 %v1875, %v1883
  %v1886 = vtanh.pop %v1885
  %1888 = vrot.lane.b32.xlu0 %v1886, 32
  %v1889 = vpop.permute.xlu0 %1888
  %v1891 = vmul.f32 %v1873, %v1889
  %v1892 = vld [vmem:[%s0 + $0x8] sm:$0xff]
  %vm1893 = vcmp.gt.f32.partialorder %v1892, 0.0
  %v1894 = vsel %vm1893, 1, 0
  %1895 = vset.pattern.permute.xlu0 0
  %1896 = vperm.xlu0 %1895, %v1894
  %v1897 = vpop.permute.xlu0 %1896
  %vm1898 = vcmp.eq.s32.totalorder %v1897, 1
  %v1899 = vsel %vm1898, %v1891, 0.0
  %1901 = vrot.lane.b32.xlu0 %v1899, 64
  %v1902 = vpop.permute.xlu0 %1901
  %1904 = vst.msk [vmem:[#allocation2 + $0x8] sm:$0xff] %vm254, %v1902
  %v1905 = vsel %vm1898, %v1891, %v1831
  %v1906 = vsel %vm1898, %v1885, %v1832
  %v1907 = vld [vmem:[#allocation3 + $0x10] sm:$0xff]
  %v1908 = vpack.c.bf16 %v1905, %v1905
  %1910 = vrot.lane.b32.xlu0 %v1908, 64
  %v1911 = vpop.permute.xlu0 %1910
  %v1913 = vsel %vm254, %v1911, 0
  %1915 = vmatpush.bf16.msra.mxu0 0
  %1916 = vmatpush.bf16.msra.mxu0 0
  %1917 = vmatpush.bf16.msra.mxu0 0
  %1918 = vmatpush.bf16.msra.mxu0 0
  %1919 = vmatpush.bf16.msra.mxu0 0
  %1920 = vmatpush.bf16.msra.mxu0 0
  %1921 = vmatpush.bf16.msra.mxu0 %v1753
  %1922 = vmatpush.bf16.msra.mxu0 %v1752
  %1923 = vmatmul.bf16.gmra.mxu0 %v1913
  %v1924 = vpop.f32.mrf.mxu0
  %v1925 = vadd.f32 0.0, %v1924
  %v1926 = vpop.f32.mrf.mxu0
  %1927 = vdwg.mxu0
  %v1928 = vadd.f32 %v1907, %v1925
  %v1929 = vxor.u32 %v1928, 2147483648
  %v1930 = vmul.f32 %v1929, 1.442695
  %v1931 = vpow.pop %v1930
  %v1932 = vadd.f32 %v1931, 1.0
  %v1933 = vrcp.pop %v1932
  %v1934 = vmul.f32 %v1932, %v1933
  %v1935 = vsub.f32 1.0, %v1934
  %v1936 = vmul.f32 %v1933, %v1935
  %v1937 = vadd.f32 %v1933, %v1936
  %vm1938 = vweird.f32 %v1932
  %vm1939 = vweird.f32 %v1933
  %vm1940 = vmor %vm1938, %vm1939
  %v1941 = vsel %vm1940, %v1933, %v1937
  %v1942 = vand.u32 2147483647, %v1932
  %vm1943 = vcmp.eq.f32.partialorder %v1942, 8.507059e+37
  %v1944 = vand.u32 %v1932, 2147483648
  %v1945 = vor.u32 1.1754944e-38, %v1944
  %v1946 = vsel %vm1943, %v1945, %v1941
  %v1947 = vmul.f32 1.0, %v1946
  %v1948 = vtanh.pop %v1928
  %v1949 = vmul.f32 %v1947, %v1906
  %1951 = vrot.lane.b32.xlu0 %v1948, 32
  %v1952 = vpop.permute.xlu0 %1951
  %v1954 = vmul.f32 %v1947, %v1952
  %1956 = vrot.lane.b32.xlu0 %v1954, 32
  %v1957 = vpop.permute.xlu0 %1956
  %v1959 = vadd.f32 %v1949, %v1957
  %v1960 = vtanh.pop %v1959
  %1962 = vrot.lane.b32.xlu0 %v1960, 32
  %v1963 = vpop.permute.xlu0 %1962
  %v1965 = vmul.f32 %v1947, %v1963
  %v1966 = vld [vmem:[%s0 + $0x10] sm:$0xff]
  %vm1967 = vcmp.gt.f32.partialorder %v1966, 0.0
  %v1968 = vsel %vm1967, 1, 0
  %1969 = vset.pattern.permute.xlu0 0
  %1970 = vperm.xlu0 %1969, %v1968
  %v1971 = vpop.permute.xlu0 %1970
  %vm1972 = vcmp.eq.s32.totalorder %v1971, 1
  %v1973 = vsel %vm1972, %v1965, 0.0
  %1975 = vrot.lane.b32.xlu0 %v1973, 64
  %v1976 = vpop.permute.xlu0 %1975
  %1978 = vst.msk [vmem:[#allocation2 + $0x10] sm:$0xff] %vm254, %v1976
  %v1979 = vsel %vm1972, %v1965, %v1905
  %v1980 = vsel %vm1972, %v1959, %v1906
  %v1981 = vld [vmem:[#allocation3 + $0x18] sm:$0xff]
  %v1982 = vpack.c.bf16 %v1979, %v1979
  %1984 = vrot.lane.b32.xlu0 %v1982, 64
  %v1985 = vpop.permute.xlu0 %1984
  %v1987 = vsel %vm254, %v1985, 0
  %1989 = vmatpush.bf16.msra.mxu0 0
  %1990 = vmatpush.bf16.msra.mxu0 0
  %1991 = vmatpush.bf16.msra.mxu0 0
  %1992 = vmatpush.bf16.msra.mxu0 0
  %1993 = vmatpush.bf16.msra.mxu0 0
  %1994 = vmatpush.bf16.msra.mxu0 0
  %1995 = vmatpush.bf16.msra.mxu0 %v1753
  %1996 = vmatpush.bf16.msra.mxu0 %v1752
  %1997 = vmatmul.bf16.gmra.mxu0 %v1987
  %v1998 = vpop.f32.mrf.mxu0
  %v1999 = vadd.f32 0.0, %v1998
  %v2000 = vpop.f32.mrf.mxu0
  %2001 = vdwg.mxu0
  %v2002 = vadd.f32 %v1981, %v1999
  %v2003 = vxor.u32 %v2002, 2147483648
  %v2004 = vmul.f32 %v2003, 1.442695
  %v2005 = vpow.pop %v2004
  %v2006 = vadd.f32 %v2005, 1.0
  %v2007 = vrcp.pop %v2006
  %v2008 = vmul.f32 %v2006, %v2007
  %v2009 = vsub.f32 1.0, %v2008
  %v2010 = vmul.f32 %v2007, %v2009
  %v2011 = vadd.f32 %v2007, %v2010
  %vm2012 = vweird.f32 %v2006
  %vm2013 = vweird.f32 %v2007
  %vm2014 = vmor %vm2012, %vm2013
  %v2015 = vsel %vm2014, %v2007, %v2011
  %v2016 = vand.u32 2147483647, %v2006
  %vm2017 = vcmp.eq.f32.partialorder %v2016, 8.507059e+37
  %v2018 = vand.u32 %v2006, 2147483648
  %v2019 = vor.u32 1.1754944e-38, %v2018
  %v2020 = vsel %vm2017, %v2019, %v2015
  %v2021 = vmul.f32 1.0, %v2020
  %v2022 = vtanh.pop %v2002
  %v2023 = vmul.f32 %v2021, %v1980
  %2025 = vrot.lane.b32.xlu0 %v2022, 32
  %v2026 = vpop.permute.xlu0 %2025
  %v2028 = vmul.f32 %v2021, %v2026
  %2030 = vrot.lane.b32.xlu0 %v2028, 32
  %v2031 = vpop.permute.xlu0 %2030
  %v2033 = vadd.f32 %v2023, %v2031
  %v2034 = vtanh.pop %v2033
  %2036 = vrot.lane.b32.xlu0 %v2034, 32
  %v2037 = vpop.permute.xlu0 %2036
  %v2039 = vmul.f32 %v2021, %v2037
  %v2040 = vld [vmem:[%s0 + $0x18] sm:$0xff]
  %vm2041 = vcmp.gt.f32.partialorder %v2040, 0.0
  %v2042 = vsel %vm2041, 1, 0
  %2043 = vset.pattern.permute.xlu0 0
  %2044 = vperm.xlu0 %2043, %v2042
  %v2045 = vpop.permute.xlu0 %2044
  %vm2046 = vcmp.eq.s32.totalorder %v2045, 1
  %v2047 = vsel %vm2046, %v2039, 0.0
  %2049 = vrot.lane.b32.xlu0 %v2047, 64
  %v2050 = vpop.permute.xlu0 %2049
  %2052 = vst.msk [vmem:[#allocation2 + $0x18] sm:$0xff] %vm254, %v2050
  %v2053 = vsel %vm2046, %v2039, %v1979
  %v2054 = vsel %vm2046, %v2033, %v1980
  %v2055 = vld [vmem:[#allocation3 + $0x20] sm:$0xff]
  %v2056 = vpack.c.bf16 %v2053, %v2053
  %2058 = vrot.lane.b32.xlu0 %v2056, 64
  %v2059 = vpop.permute.xlu0 %2058
  %v2061 = vsel %vm254, %v2059, 0
  %2063 = vmatpush.bf16.msra.mxu0 0
  %2064 = vmatpush.bf16.msra.mxu0 0
  %2065 = vmatpush.bf16.msra.mxu0 0
  %2066 = vmatpush.bf16.msra.mxu0 0
  %2067 = vmatpush.bf16.msra.mxu0 0
  %2068 = vmatpush.bf16.msra.mxu0 0
  %2069 = vmatpush.bf16.msra.mxu0 %v1753
  %2070 = vmatpush.bf16.msra.mxu0 %v1752
  %2071 = vmatmul.bf16.gmra.mxu0 %v2061
  %v2072 = vpop.f32.mrf.mxu0
  %v2073 = vadd.f32 0.0, %v2072
  %v2074 = vpop.f32.mrf.mxu0
  %2075 = vdwg.mxu0
  %v2076 = vadd.f32 %v2055, %v2073
  %v2077 = vxor.u32 %v2076, 2147483648
  %v2078 = vmul.f32 %v2077, 1.442695
  %v2079 = vpow.pop %v2078
  %v2080 = vadd.f32 %v2079, 1.0
  %v2081 = vrcp.pop %v2080
  %v2082 = vmul.f32 %v2080, %v2081
  %v2083 = vsub.f32 1.0, %v2082
  %v2084 = vmul.f32 %v2081, %v2083
  %v2085 = vadd.f32 %v2081, %v2084
  %vm2086 = vweird.f32 %v2080
  %vm2087 = vweird.f32 %v2081
  %vm2088 = vmor %vm2086, %vm2087
  %v2089 = vsel %vm2088, %v2081, %v2085
  %v2090 = vand.u32 2147483647, %v2080
  %vm2091 = vcmp.eq.f32.partialorder %v2090, 8.507059e+37
  %v2092 = vand.u32 %v2080, 2147483648
  %v2093 = vor.u32 1.1754944e-38, %v2092
  %v2094 = vsel %vm2091, %v2093, %v2089
  %v2095 = vmul.f32 1.0, %v2094
  %v2096 = vtanh.pop %v2076
  %v2097 = vmul.f32 %v2095, %v2054
  %2099 = vrot.lane.b32.xlu0 %v2096, 32
  %v2100 = vpop.permute.xlu0 %2099
  %v2102 = vmul.f32 %v2095, %v2100
  %2104 = vrot.lane.b32.xlu0 %v2102, 32
  %v2105 = vpop.permute.xlu0 %2104
  %v2107 = vadd.f32 %v2097, %v2105
  %v2108 = vtanh.pop %v2107
  %2110 = vrot.lane.b32.xlu0 %v2108, 32
  %v2111 = vpop.permute.xlu0 %2110
  %v2113 = vmul.f32 %v2095, %v2111
  %v2114 = vld [vmem:[%s0 + $0x20] sm:$0xff]
  %vm2115 = vcmp.gt.f32.partialorder %v2114, 0.0
  %v2116 = vsel %vm2115, 1, 0
  %2117 = vset.pattern.permute.xlu0 0
  %2118 = vperm.xlu0 %2117, %v2116
  %v2119 = vpop.permute.xlu0 %2118
  %vm2120 = vcmp.eq.s32.totalorder %v2119, 1
  %v2121 = vsel %vm2120, %v2113, 0.0
  %2123 = vrot.lane.b32.xlu0 %v2121, 64
  %v2124 = vpop.permute.xlu0 %2123
  %2126 = vst.msk [vmem:[#allocation2 + $0x20] sm:$0xff] %vm254, %v2124
  %v2127 = vsel %vm2120, %v2113, %v2053
  %v2128 = vsel %vm2120, %v2107, %v2054
  %v2129 = vld [vmem:[#allocation3 + $0x28] sm:$0xff]
  %v2130 = vpack.c.bf16 %v2127, %v2127
  %2132 = vrot.lane.b32.xlu0 %v2130, 64
  %v2133 = vpop.permute.xlu0 %2132
  %v2135 = vsel %vm254, %v2133, 0
  %2137 = vmatpush.bf16.msra.mxu0 0
  %2138 = vmatpush.bf16.msra.mxu0 0
  %2139 = vmatpush.bf16.msra.mxu0 0
  %2140 = vmatpush.bf16.msra.mxu0 0
  %2141 = vmatpush.bf16.msra.mxu0 0
  %2142 = vmatpush.bf16.msra.mxu0 0
  %2143 = vmatpush.bf16.msra.mxu0 %v1753
  %2144 = vmatpush.bf16.msra.mxu0 %v1752
  %2145 = vmatmul.bf16.gmra.mxu0 %v2135
  %v2146 = vpop.f32.mrf.mxu0
  %v2147 = vadd.f32 0.0, %v2146
  %v2148 = vpop.f32.mrf.mxu0
  %2149 = vdwg.mxu0
  %v2150 = vadd.f32 %v2129, %v2147
  %v2151 = vxor.u32 %v2150, 2147483648
  %v2152 = vmul.f32 %v2151, 1.442695
  %v2153 = vpow.pop %v2152
  %v2154 = vadd.f32 %v2153, 1.0
  %v2155 = vrcp.pop %v2154
  %v2156 = vmul.f32 %v2154, %v2155
  %v2157 = vsub.f32 1.0, %v2156
  %v2158 = vmul.f32 %v2155, %v2157
  %v2159 = vadd.f32 %v2155, %v2158
  %vm2160 = vweird.f32 %v2154
  %vm2161 = vweird.f32 %v2155
  %vm2162 = vmor %vm2160, %vm2161
  %v2163 = vsel %vm2162, %v2155, %v2159
  %v2164 = vand.u32 2147483647, %v2154
  %vm2165 = vcmp.eq.f32.partialorder %v2164, 8.507059e+37
  %v2166 = vand.u32 %v2154, 2147483648
  %v2167 = vor.u32 1.1754944e-38, %v2166
  %v2168 = vsel %vm2165, %v2167, %v2163
  %v2169 = vmul.f32 1.0, %v2168
  %v2170 = vtanh.pop %v2150
  %v2171 = vmul.f32 %v2169, %v2128
  %2173 = vrot.lane.b32.xlu0 %v2170, 32
  %v2174 = vpop.permute.xlu0 %2173
  %v2176 = vmul.f32 %v2169, %v2174
  %2178 = vrot.lane.b32.xlu0 %v2176, 32
  %v2179 = vpop.permute.xlu0 %2178
  %v2181 = vadd.f32 %v2171, %v2179
  %v2182 = vtanh.pop %v2181
  %2184 = vrot.lane.b32.xlu0 %v2182, 32
  %v2185 = vpop.permute.xlu0 %2184
  %v2187 = vmul.f32 %v2169, %v2185
  %v2188 = vld [vmem:[%s0 + $0x28] sm:$0xff]
  %vm2189 = vcmp.gt.f32.partialorder %v2188, 0.0
  %v2190 = vsel %vm2189, 1, 0
  %2191 = vset.pattern.permute.xlu0 0
  %2192 = vperm.xlu0 %2191, %v2190
  %v2193 = vpop.permute.xlu0 %2192
  %vm2194 = vcmp.eq.s32.totalorder %v2193, 1
  %v2195 = vsel %vm2194, %v2187, 0.0
  %2197 = vrot.lane.b32.xlu0 %v2195, 64
  %v2198 = vpop.permute.xlu0 %2197
  %2200 = vst.msk [vmem:[#allocation2 + $0x28] sm:$0xff] %vm254, %v2198
  %v2201 = vsel %vm2194, %v2187, %v2127
  %v2202 = vsel %vm2194, %v2181, %v2128
  %v2203 = vld [vmem:[#allocation3 + $0x30] sm:$0xff]
  %v2204 = vpack.c.bf16 %v2201, %v2201
  %2206 = vrot.lane.b32.xlu0 %v2204, 64
  %v2207 = vpop.permute.xlu0 %2206
  %v2209 = vsel %vm254, %v2207, 0
  %2211 = vmatpush.bf16.msra.mxu0 0
  %2212 = vmatpush.bf16.msra.mxu0 0
  %2213 = vmatpush.bf16.msra.mxu0 0
  %2214 = vmatpush.bf16.msra.mxu0 0
  %2215 = vmatpush.bf16.msra.mxu0 0
  %2216 = vmatpush.bf16.msra.mxu0 0
  %2217 = vmatpush.bf16.msra.mxu0 %v1753
  %2218 = vmatpush.bf16.msra.mxu0 %v1752
  %2219 = vmatmul.bf16.gmra.mxu0 %v2209
  %v2220 = vpop.f32.mrf.mxu0
  %v2221 = vadd.f32 0.0, %v2220
  %v2222 = vpop.f32.mrf.mxu0
  %2223 = vdwg.mxu0
  %v2224 = vadd.f32 %v2203, %v2221
  %v2225 = vxor.u32 %v2224, 2147483648
  %v2226 = vmul.f32 %v2225, 1.442695
  %v2227 = vpow.pop %v2226
  %v2228 = vadd.f32 %v2227, 1.0
  %v2229 = vrcp.pop %v2228
  %v2230 = vmul.f32 %v2228, %v2229
  %v2231 = vsub.f32 1.0, %v2230
  %v2232 = vmul.f32 %v2229, %v2231
  %v2233 = vadd.f32 %v2229, %v2232
  %vm2234 = vweird.f32 %v2228
  %vm2235 = vweird.f32 %v2229
  %vm2236 = vmor %vm2234, %vm2235
  %v2237 = vsel %vm2236, %v2229, %v2233
  %v2238 = vand.u32 2147483647, %v2228
  %vm2239 = vcmp.eq.f32.partialorder %v2238, 8.507059e+37
  %v2240 = vand.u32 %v2228, 2147483648
  %v2241 = vor.u32 1.1754944e-38, %v2240
  %v2242 = vsel %vm2239, %v2241, %v2237
  %v2243 = vmul.f32 1.0, %v2242
  %v2244 = vtanh.pop %v2224
  %v2245 = vmul.f32 %v2243, %v2202
  %2247 = vrot.lane.b32.xlu0 %v2244, 32
  %v2248 = vpop.permute.xlu0 %2247
  %v2250 = vmul.f32 %v2243, %v2248
  %2252 = vrot.lane.b32.xlu0 %v2250, 32
  %v2253 = vpop.permute.xlu0 %2252
  %v2255 = vadd.f32 %v2245, %v2253
  %v2256 = vtanh.pop %v2255
  %2258 = vrot.lane.b32.xlu0 %v2256, 32
  %v2259 = vpop.permute.xlu0 %2258
  %v2261 = vmul.f32 %v2243, %v2259
  %v2262 = vld [vmem:[%s0 + $0x30] sm:$0xff]
  %vm2263 = vcmp.gt.f32.partialorder %v2262, 0.0
  %v2264 = vsel %vm2263, 1, 0
  %2265 = vset.pattern.permute.xlu0 0
  %2266 = vperm.xlu0 %2265, %v2264
  %v2267 = vpop.permute.xlu0 %2266
  %vm2268 = vcmp.eq.s32.totalorder %v2267, 1
  %v2269 = vsel %vm2268, %v2261, 0.0
  %2271 = vrot.lane.b32.xlu0 %v2269, 64
  %v2272 = vpop.permute.xlu0 %2271
  %2274 = vst.msk [vmem:[#allocation2 + $0x30] sm:$0xff] %vm254, %v2272
  %v2275 = vsel %vm2268, %v2261, %v2201
  %v2276 = vsel %vm2268, %v2255, %v2202
  %v2277 = vld [vmem:[#allocation3 + $0x38] sm:$0xff]
  %v2278 = vpack.c.bf16 %v2275, %v2275
  %2280 = vrot.lane.b32.xlu0 %v2278, 64
  %v2281 = vpop.permute.xlu0 %2280
  %v2283 = vsel %vm254, %v2281, 0
  %2285 = vmatpush.bf16.msra.mxu0 0
  %2286 = vmatpush.bf16.msra.mxu0 0
  %2287 = vmatpush.bf16.msra.mxu0 0
  %2288 = vmatpush.bf16.msra.mxu0 0
  %2289 = vmatpush.bf16.msra.mxu0 0
  %2290 = vmatpush.bf16.msra.mxu0 0
  %2291 = vmatpush.bf16.msra.mxu0 %v1753
  %2292 = vmatpush.bf16.msra.mxu0 %v1752
  %2293 = vmatmul.bf16.gmra.mxu0 %v2283
  %v2294 = vpop.f32.mrf.mxu0
  %v2295 = vadd.f32 0.0, %v2294
  %v2296 = vpop.f32.mrf.mxu0
  %2297 = vdwg.mxu0
  %v2298 = vadd.f32 %v2277, %v2295
  %v2299 = vxor.u32 %v2298, 2147483648
  %v2300 = vmul.f32 %v2299, 1.442695
  %v2301 = vpow.pop %v2300
  %v2302 = vadd.f32 %v2301, 1.0
  %v2303 = vrcp.pop %v2302
  %v2304 = vmul.f32 %v2302, %v2303
  %v2305 = vsub.f32 1.0, %v2304
  %v2306 = vmul.f32 %v2303, %v2305
  %v2307 = vadd.f32 %v2303, %v2306
  %vm2308 = vweird.f32 %v2302
  %vm2309 = vweird.f32 %v2303
  %vm2310 = vmor %vm2308, %vm2309
  %v2311 = vsel %vm2310, %v2303, %v2307
  %v2312 = vand.u32 2147483647, %v2302
  %vm2313 = vcmp.eq.f32.partialorder %v2312, 8.507059e+37
  %v2314 = vand.u32 %v2302, 2147483648
  %v2315 = vor.u32 1.1754944e-38, %v2314
  %v2316 = vsel %vm2313, %v2315, %v2311
  %v2317 = vmul.f32 1.0, %v2316
  %v2318 = vtanh.pop %v2298
  %v2319 = vmul.f32 %v2317, %v2276
  %2321 = vrot.lane.b32.xlu0 %v2318, 32
  %v2322 = vpop.permute.xlu0 %2321
  %v2324 = vmul.f32 %v2317, %v2322
  %2326 = vrot.lane.b32.xlu0 %v2324, 32
  %v2327 = vpop.permute.xlu0 %2326
  %v2329 = vadd.f32 %v2319, %v2327
  %v2330 = vtanh.pop %v2329
  %2332 = vrot.lane.b32.xlu0 %v2330, 32
  %v2333 = vpop.permute.xlu0 %2332
  %v2335 = vmul.f32 %v2317, %v2333
  %v2336 = vld [vmem:[%s0 + $0x38] sm:$0xff]
  %vm2337 = vcmp.gt.f32.partialorder %v2336, 0.0
  %v2338 = vsel %vm2337, 1, 0
  %2339 = vset.pattern.permute.xlu0 0
  %2340 = vperm.xlu0 %2339, %v2338
  %v2341 = vpop.permute.xlu0 %2340
  %vm2342 = vcmp.eq.s32.totalorder %v2341, 1
  %v2343 = vsel %vm2342, %v2335, 0.0
  %2345 = vrot.lane.b32.xlu0 %v2343, 64
  %v2346 = vpop.permute.xlu0 %2345
  %2348 = vst.msk [vmem:[#allocation2 + $0x38] sm:$0xff] %vm254, %v2346
  %v2349 = vsel %vm2342, %v2335, %v2275
  %v2350 = vsel %vm2342, %v2329, %v2276
  %v2351 = vld [vmem:[#allocation3 + $0x40] sm:$0xff]
  %v2352 = vpack.c.bf16 %v2349, %v2349
  %2354 = vrot.lane.b32.xlu0 %v2352, 64
  %v2355 = vpop.permute.xlu0 %2354
  %v2357 = vsel %vm254, %v2355, 0
  %2359 = vmatpush.bf16.msra.mxu0 0
  %2360 = vmatpush.bf16.msra.mxu0 0
  %2361 = vmatpush.bf16.msra.mxu0 0
  %2362 = vmatpush.bf16.msra.mxu0 0
  %2363 = vmatpush.bf16.msra.mxu0 0
  %2364 = vmatpush.bf16.msra.mxu0 0
  %2365 = vmatpush.bf16.msra.mxu0 %v1753
  %2366 = vmatpush.bf16.msra.mxu0 %v1752
  %2367 = vmatmul.bf16.gmra.mxu0 %v2357
  %v2368 = vpop.f32.mrf.mxu0
  %v2369 = vadd.f32 0.0, %v2368
  %v2370 = vpop.f32.mrf.mxu0
  %2371 = vdwg.mxu0
  %v2372 = vadd.f32 %v2351, %v2369
  %v2373 = vxor.u32 %v2372, 2147483648
  %v2374 = vmul.f32 %v2373, 1.442695
  %v2375 = vpow.pop %v2374
  %v2376 = vadd.f32 %v2375, 1.0
  %v2377 = vrcp.pop %v2376
  %v2378 = vmul.f32 %v2376, %v2377
  %v2379 = vsub.f32 1.0, %v2378
  %v2380 = vmul.f32 %v2377, %v2379
  %v2381 = vadd.f32 %v2377, %v2380
  %vm2382 = vweird.f32 %v2376
  %vm2383 = vweird.f32 %v2377
  %vm2384 = vmor %vm2382, %vm2383
  %v2385 = vsel %vm2384, %v2377, %v2381
  %v2386 = vand.u32 2147483647, %v2376
  %vm2387 = vcmp.eq.f32.partialorder %v2386, 8.507059e+37
  %v2388 = vand.u32 %v2376, 2147483648
  %v2389 = vor.u32 1.1754944e-38, %v2388
  %v2390 = vsel %vm2387, %v2389, %v2385
  %v2391 = vmul.f32 1.0, %v2390
  %v2392 = vtanh.pop %v2372
  %v2393 = vmul.f32 %v2391, %v2350
  %2395 = vrot.lane.b32.xlu0 %v2392, 32
  %v2396 = vpop.permute.xlu0 %2395
  %v2398 = vmul.f32 %v2391, %v2396
  %2400 = vrot.lane.b32.xlu0 %v2398, 32
  %v2401 = vpop.permute.xlu0 %2400
  %v2403 = vadd.f32 %v2393, %v2401
  %v2404 = vtanh.pop %v2403
  %2406 = vrot.lane.b32.xlu0 %v2404, 32
  %v2407 = vpop.permute.xlu0 %2406
  %v2409 = vmul.f32 %v2391, %v2407
  %v2410 = vld [vmem:[%s0 + $0x40] sm:$0xff]
  %vm2411 = vcmp.gt.f32.partialorder %v2410, 0.0
  %v2412 = vsel %vm2411, 1, 0
  %2413 = vset.pattern.permute.xlu0 0
  %2414 = vperm.xlu0 %2413, %v2412
  %v2415 = vpop.permute.xlu0 %2414
  %vm2416 = vcmp.eq.s32.totalorder %v2415, 1
  %v2417 = vsel %vm2416, %v2409, 0.0
  %2419 = vrot.lane.b32.xlu0 %v2417, 64
  %v2420 = vpop.permute.xlu0 %2419
  %2422 = vst.msk [vmem:[#allocation2 + $0x40] sm:$0xff] %vm254, %v2420
  %v2423 = vsel %vm2416, %v2409, %v2349
  %v2424 = vsel %vm2416, %v2403, %v2350
  %v2425 = vld [vmem:[#allocation3 + $0x48] sm:$0xff]
  %v2426 = vpack.c.bf16 %v2423, %v2423
  %2428 = vrot.lane.b32.xlu0 %v2426, 64
  %v2429 = vpop.permute.xlu0 %2428
  %v2431 = vsel %vm254, %v2429, 0
  %2433 = vmatpush.bf16.msra.mxu0 0
  %2434 = vmatpush.bf16.msra.mxu0 0
  %2435 = vmatpush.bf16.msra.mxu0 0
  %2436 = vmatpush.bf16.msra.mxu0 0
  %2437 = vmatpush.bf16.msra.mxu0 0
  %2438 = vmatpush.bf16.msra.mxu0 0
  %2439 = vmatpush.bf16.msra.mxu0 %v1753
  %2440 = vmatpush.bf16.msra.mxu0 %v1752
  %2441 = vmatmul.bf16.gmra.mxu0 %v2431
  %v2442 = vpop.f32.mrf.mxu0
  %v2443 = vadd.f32 0.0, %v2442
  %v2444 = vpop.f32.mrf.mxu0
  %2445 = vdwg.mxu0
  %v2446 = vadd.f32 %v2425, %v2443
  %v2447 = vxor.u32 %v2446, 2147483648
  %v2448 = vmul.f32 %v2447, 1.442695
  %v2449 = vpow.pop %v2448
  %v2450 = vadd.f32 %v2449, 1.0
  %v2451 = vrcp.pop %v2450
  %v2452 = vmul.f32 %v2450, %v2451
  %v2453 = vsub.f32 1.0, %v2452
  %v2454 = vmul.f32 %v2451, %v2453
  %v2455 = vadd.f32 %v2451, %v2454
  %vm2456 = vweird.f32 %v2450
  %vm2457 = vweird.f32 %v2451
  %vm2458 = vmor %vm2456, %vm2457
  %v2459 = vsel %vm2458, %v2451, %v2455
  %v2460 = vand.u32 2147483647, %v2450
  %vm2461 = vcmp.eq.f32.partialorder %v2460, 8.507059e+37
  %v2462 = vand.u32 %v2450, 2147483648
  %v2463 = vor.u32 1.1754944e-38, %v2462
  %v2464 = vsel %vm2461, %v2463, %v2459
  %v2465 = vmul.f32 1.0, %v2464
  %v2466 = vtanh.pop %v2446
  %v2467 = vmul.f32 %v2465, %v2424
  %2469 = vrot.lane.b32.xlu0 %v2466, 32
  %v2470 = vpop.permute.xlu0 %2469
  %v2472 = vmul.f32 %v2465, %v2470
  %2474 = vrot.lane.b32.xlu0 %v2472, 32
  %v2475 = vpop.permute.xlu0 %2474
  %v2477 = vadd.f32 %v2467, %v2475
  %v2478 = vtanh.pop %v2477
  %2480 = vrot.lane.b32.xlu0 %v2478, 32
  %v2481 = vpop.permute.xlu0 %2480
  %v2483 = vmul.f32 %v2465, %v2481
  %v2484 = vld [vmem:[%s0 + $0x48] sm:$0xff]
  %vm2485 = vcmp.gt.f32.partialorder %v2484, 0.0
  %v2486 = vsel %vm2485, 1, 0
  %2487 = vset.pattern.permute.xlu0 0
  %2488 = vperm.xlu0 %2487, %v2486
  %v2489 = vpop.permute.xlu0 %2488
  %vm2490 = vcmp.eq.s32.totalorder %v2489, 1
  %v2491 = vsel %vm2490, %v2483, 0.0
  %2493 = vrot.lane.b32.xlu0 %v2491, 64
  %v2494 = vpop.permute.xlu0 %2493
  %2496 = vst.msk [vmem:[#allocation2 + $0x48] sm:$0xff] %vm254, %v2494
  %v2497 = vsel %vm2490, %v2483, %v2423
  %v2498 = vsel %vm2490, %v2477, %v2424
  %v2499 = vld [vmem:[#allocation3 + $0x50] sm:$0xff]
  %v2500 = vpack.c.bf16 %v2497, %v2497
  %2502 = vrot.lane.b32.xlu0 %v2500, 64
  %v2503 = vpop.permute.xlu0 %2502
  %v2505 = vsel %vm254, %v2503, 0
  %2507 = vmatpush.bf16.msra.mxu0 0
  %2508 = vmatpush.bf16.msra.mxu0 0
  %2509 = vmatpush.bf16.msra.mxu0 0
  %2510 = vmatpush.bf16.msra.mxu0 0
  %2511 = vmatpush.bf16.msra.mxu0 0
  %2512 = vmatpush.bf16.msra.mxu0 0
  %2513 = vmatpush.bf16.msra.mxu0 %v1753
  %2514 = vmatpush.bf16.msra.mxu0 %v1752
  %2515 = vmatmul.bf16.gmra.mxu0 %v2505
  %v2516 = vpop.f32.mrf.mxu0
  %v2517 = vadd.f32 0.0, %v2516
  %v2518 = vpop.f32.mrf.mxu0
  %2519 = vdwg.mxu0
  %v2520 = vadd.f32 %v2499, %v2517
  %v2521 = vxor.u32 %v2520, 2147483648
  %v2522 = vmul.f32 %v2521, 1.442695
  %v2523 = vpow.pop %v2522
  %v2524 = vadd.f32 %v2523, 1.0
  %v2525 = vrcp.pop %v2524
  %v2526 = vmul.f32 %v2524, %v2525
  %v2527 = vsub.f32 1.0, %v2526
  %v2528 = vmul.f32 %v2525, %v2527
  %v2529 = vadd.f32 %v2525, %v2528
  %vm2530 = vweird.f32 %v2524
  %vm2531 = vweird.f32 %v2525
  %vm2532 = vmor %vm2530, %vm2531
  %v2533 = vsel %vm2532, %v2525, %v2529
  %v2534 = vand.u32 2147483647, %v2524
  %vm2535 = vcmp.eq.f32.partialorder %v2534, 8.507059e+37
  %v2536 = vand.u32 %v2524, 2147483648
  %v2537 = vor.u32 1.1754944e-38, %v2536
  %v2538 = vsel %vm2535, %v2537, %v2533
  %v2539 = vmul.f32 1.0, %v2538
  %v2540 = vtanh.pop %v2520
  %v2541 = vmul.f32 %v2539, %v2498
  %2543 = vrot.lane.b32.xlu0 %v2540, 32
  %v2544 = vpop.permute.xlu0 %2543
  %v2546 = vmul.f32 %v2539, %v2544
  %2548 = vrot.lane.b32.xlu0 %v2546, 32
  %v2549 = vpop.permute.xlu0 %2548
  %v2551 = vadd.f32 %v2541, %v2549
  %v2552 = vtanh.pop %v2551
  %2554 = vrot.lane.b32.xlu0 %v2552, 32
  %v2555 = vpop.permute.xlu0 %2554
  %v2557 = vmul.f32 %v2539, %v2555
  %v2558 = vld [vmem:[%s0 + $0x50] sm:$0xff]
  %vm2559 = vcmp.gt.f32.partialorder %v2558, 0.0
  %v2560 = vsel %vm2559, 1, 0
  %2561 = vset.pattern.permute.xlu0 0
  %2562 = vperm.xlu0 %2561, %v2560
  %v2563 = vpop.permute.xlu0 %2562
  %vm2564 = vcmp.eq.s32.totalorder %v2563, 1
  %v2565 = vsel %vm2564, %v2557, 0.0
  %2567 = vrot.lane.b32.xlu0 %v2565, 64
  %v2568 = vpop.permute.xlu0 %2567
  %2570 = vst.msk [vmem:[#allocation2 + $0x50] sm:$0xff] %vm254, %v2568
  %v2571 = vsel %vm2564, %v2557, %v2497
  %v2572 = vsel %vm2564, %v2551, %v2498
  %v2573 = vld [vmem:[#allocation3 + $0x58] sm:$0xff]
  %v2574 = vpack.c.bf16 %v2571, %v2571
  %2576 = vrot.lane.b32.xlu0 %v2574, 64
  %v2577 = vpop.permute.xlu0 %2576
  %v2579 = vsel %vm254, %v2577, 0
  %2581 = vmatpush.bf16.msra.mxu0 0
  %2582 = vmatpush.bf16.msra.mxu0 0
  %2583 = vmatpush.bf16.msra.mxu0 0
  %2584 = vmatpush.bf16.msra.mxu0 0
  %2585 = vmatpush.bf16.msra.mxu0 0
  %2586 = vmatpush.bf16.msra.mxu0 0
  %2587 = vmatpush.bf16.msra.mxu0 %v1753
  %2588 = vmatpush.bf16.msra.mxu0 %v1752
  %2589 = vmatmul.bf16.gmra.mxu0 %v2579
  %v2590 = vpop.f32.mrf.mxu0
  %v2591 = vadd.f32 0.0, %v2590
  %v2592 = vpop.f32.mrf.mxu0
  %2593 = vdwg.mxu0
  %v2594 = vadd.f32 %v2573, %v2591
  %v2595 = vxor.u32 %v2594, 2147483648
  %v2596 = vmul.f32 %v2595, 1.442695
  %v2597 = vpow.pop %v2596
  %v2598 = vadd.f32 %v2597, 1.0
  %v2599 = vrcp.pop %v2598
  %v2600 = vmul.f32 %v2598, %v2599
  %v2601 = vsub.f32 1.0, %v2600
  %v2602 = vmul.f32 %v2599, %v2601
  %v2603 = vadd.f32 %v2599, %v2602
  %vm2604 = vweird.f32 %v2598
  %vm2605 = vweird.f32 %v2599
  %vm2606 = vmor %vm2604, %vm2605
  %v2607 = vsel %vm2606, %v2599, %v2603
  %v2608 = vand.u32 2147483647, %v2598
  %vm2609 = vcmp.eq.f32.partialorder %v2608, 8.507059e+37
  %v2610 = vand.u32 %v2598, 2147483648
  %v2611 = vor.u32 1.1754944e-38, %v2610
  %v2612 = vsel %vm2609, %v2611, %v2607
  %v2613 = vmul.f32 1.0, %v2612
  %v2614 = vtanh.pop %v2594
  %v2615 = vmul.f32 %v2613, %v2572
  %2617 = vrot.lane.b32.xlu0 %v2614, 32
  %v2618 = vpop.permute.xlu0 %2617
  %v2620 = vmul.f32 %v2613, %v2618
  %2622 = vrot.lane.b32.xlu0 %v2620, 32
  %v2623 = vpop.permute.xlu0 %2622
  %v2625 = vadd.f32 %v2615, %v2623
  %v2626 = vtanh.pop %v2625
  %2628 = vrot.lane.b32.xlu0 %v2626, 32
  %v2629 = vpop.permute.xlu0 %2628
  %v2631 = vmul.f32 %v2613, %v2629
  %v2632 = vld [vmem:[%s0 + $0x58] sm:$0xff]
  %vm2633 = vcmp.gt.f32.partialorder %v2632, 0.0
  %v2634 = vsel %vm2633, 1, 0
  %2635 = vset.pattern.permute.xlu0 0
  %2636 = vperm.xlu0 %2635, %v2634
  %v2637 = vpop.permute.xlu0 %2636
  %vm2638 = vcmp.eq.s32.totalorder %v2637, 1
  %v2639 = vsel %vm2638, %v2631, 0.0
  %2641 = vrot.lane.b32.xlu0 %v2639, 64
  %v2642 = vpop.permute.xlu0 %2641
  %2644 = vst.msk [vmem:[#allocation2 + $0x58] sm:$0xff] %vm254, %v2642
  %v2645 = vsel %vm2638, %v2631, %v2571
  %v2646 = vsel %vm2638, %v2625, %v2572
  %v2647 = vld [vmem:[#allocation3 + $0x60] sm:$0xff]
  %v2648 = vpack.c.bf16 %v2645, %v2645
  %2650 = vrot.lane.b32.xlu0 %v2648, 64
  %v2651 = vpop.permute.xlu0 %2650
  %v2653 = vsel %vm254, %v2651, 0
  %2655 = vmatpush.bf16.msra.mxu0 0
  %2656 = vmatpush.bf16.msra.mxu0 0
  %2657 = vmatpush.bf16.msra.mxu0 0
  %2658 = vmatpush.bf16.msra.mxu0 0
  %2659 = vmatpush.bf16.msra.mxu0 0
  %2660 = vmatpush.bf16.msra.mxu0 0
  %2661 = vmatpush.bf16.msra.mxu0 %v1753
  %2662 = vmatpush.bf16.msra.mxu0 %v1752
  %2663 = vmatmul.bf16.gmra.mxu0 %v2653
  %v2664 = vpop.f32.mrf.mxu0
  %v2665 = vadd.f32 0.0, %v2664
  %v2666 = vpop.f32.mrf.mxu0
  %2667 = vdwg.mxu0
  %v2668 = vadd.f32 %v2647, %v2665
  %v2669 = vxor.u32 %v2668, 2147483648
  %v2670 = vmul.f32 %v2669, 1.442695
  %v2671 = vpow.pop %v2670
  %v2672 = vadd.f32 %v2671, 1.0
  %v2673 = vrcp.pop %v2672
  %v2674 = vmul.f32 %v2672, %v2673
  %v2675 = vsub.f32 1.0, %v2674
  %v2676 = vmul.f32 %v2673, %v2675
  %v2677 = vadd.f32 %v2673, %v2676
  %vm2678 = vweird.f32 %v2672
  %vm2679 = vweird.f32 %v2673
  %vm2680 = vmor %vm2678, %vm2679
  %v2681 = vsel %vm2680, %v2673, %v2677
  %v2682 = vand.u32 2147483647, %v2672
  %vm2683 = vcmp.eq.f32.partialorder %v2682, 8.507059e+37
  %v2684 = vand.u32 %v2672, 2147483648
  %v2685 = vor.u32 1.1754944e-38, %v2684
  %v2686 = vsel %vm2683, %v2685, %v2681
  %v2687 = vmul.f32 1.0, %v2686
  %v2688 = vtanh.pop %v2668
  %v2689 = vmul.f32 %v2687, %v2646
  %2691 = vrot.lane.b32.xlu0 %v2688, 32
  %v2692 = vpop.permute.xlu0 %2691
  %v2694 = vmul.f32 %v2687, %v2692
  %2696 = vrot.lane.b32.xlu0 %v2694, 32
  %v2697 = vpop.permute.xlu0 %2696
  %v2699 = vadd.f32 %v2689, %v2697
  %v2700 = vtanh.pop %v2699
  %2702 = vrot.lane.b32.xlu0 %v2700, 32
  %v2703 = vpop.permute.xlu0 %2702
  %v2705 = vmul.f32 %v2687, %v2703
  %v2706 = vld [vmem:[%s0 + $0x60] sm:$0xff]
  %vm2707 = vcmp.gt.f32.partialorder %v2706, 0.0
  %v2708 = vsel %vm2707, 1, 0
  %2709 = vset.pattern.permute.xlu0 0
  %2710 = vperm.xlu0 %2709, %v2708
  %v2711 = vpop.permute.xlu0 %2710
  %vm2712 = vcmp.eq.s32.totalorder %v2711, 1
  %v2713 = vsel %vm2712, %v2705, 0.0
  %2715 = vrot.lane.b32.xlu0 %v2713, 64
  %v2716 = vpop.permute.xlu0 %2715
  %2718 = vst.msk [vmem:[#allocation2 + $0x60] sm:$0xff] %vm254, %v2716
  %v2719 = vsel %vm2712, %v2705, %v2645
  %v2720 = vsel %vm2712, %v2699, %v2646
  %v2721 = vld [vmem:[#allocation3 + $0x68] sm:$0xff]
  %v2722 = vpack.c.bf16 %v2719, %v2719
  %2724 = vrot.lane.b32.xlu0 %v2722, 64
  %v2725 = vpop.permute.xlu0 %2724
  %v2727 = vsel %vm254, %v2725, 0
  %2729 = vmatpush.bf16.msra.mxu0 0
  %2730 = vmatpush.bf16.msra.mxu0 0
  %2731 = vmatpush.bf16.msra.mxu0 0
  %2732 = vmatpush.bf16.msra.mxu0 0
  %2733 = vmatpush.bf16.msra.mxu0 0
  %2734 = vmatpush.bf16.msra.mxu0 0
  %2735 = vmatpush.bf16.msra.mxu0 %v1753
  %2736 = vmatpush.bf16.msra.mxu0 %v1752
  %2737 = vmatmul.bf16.gmra.mxu0 %v2727
  %v2738 = vpop.f32.mrf.mxu0
  %v2739 = vadd.f32 0.0, %v2738
  %v2740 = vpop.f32.mrf.mxu0
  %2741 = vdwg.mxu0
  %v2742 = vadd.f32 %v2721, %v2739
  %v2743 = vxor.u32 %v2742, 2147483648
  %v2744 = vmul.f32 %v2743, 1.442695
  %v2745 = vpow.pop %v2744
  %v2746 = vadd.f32 %v2745, 1.0
  %v2747 = vrcp.pop %v2746
  %v2748 = vmul.f32 %v2746, %v2747
  %v2749 = vsub.f32 1.0, %v2748
  %v2750 = vmul.f32 %v2747, %v2749
  %v2751 = vadd.f32 %v2747, %v2750
  %vm2752 = vweird.f32 %v2746
  %vm2753 = vweird.f32 %v2747
  %vm2754 = vmor %vm2752, %vm2753
  %v2755 = vsel %vm2754, %v2747, %v2751
  %v2756 = vand.u32 2147483647, %v2746
  %vm2757 = vcmp.eq.f32.partialorder %v2756, 8.507059e+37
  %v2758 = vand.u32 %v2746, 2147483648
  %v2759 = vor.u32 1.1754944e-38, %v2758
  %v2760 = vsel %vm2757, %v2759, %v2755
  %v2761 = vmul.f32 1.0, %v2760
  %v2762 = vtanh.pop %v2742
  %v2763 = vmul.f32 %v2761, %v2720
  %2765 = vrot.lane.b32.xlu0 %v2762, 32
  %v2766 = vpop.permute.xlu0 %2765
  %v2768 = vmul.f32 %v2761, %v2766
  %2770 = vrot.lane.b32.xlu0 %v2768, 32
  %v2771 = vpop.permute.xlu0 %2770
  %v2773 = vadd.f32 %v2763, %v2771
  %v2774 = vtanh.pop %v2773
  %2776 = vrot.lane.b32.xlu0 %v2774, 32
  %v2777 = vpop.permute.xlu0 %2776
  %v2779 = vmul.f32 %v2761, %v2777
  %v2780 = vld [vmem:[%s0 + $0x68] sm:$0xff]
  %vm2781 = vcmp.gt.f32.partialorder %v2780, 0.0
  %v2782 = vsel %vm2781, 1, 0
  %2783 = vset.pattern.permute.xlu0 0
  %2784 = vperm.xlu0 %2783, %v2782
  %v2785 = vpop.permute.xlu0 %2784
  %vm2786 = vcmp.eq.s32.totalorder %v2785, 1
  %v2787 = vsel %vm2786, %v2779, 0.0
  %2789 = vrot.lane.b32.xlu0 %v2787, 64
  %v2790 = vpop.permute.xlu0 %2789
  %2792 = vst.msk [vmem:[#allocation2 + $0x68] sm:$0xff] %vm254, %v2790
  %v2793 = vsel %vm2786, %v2779, %v2719
  %v2794 = vsel %vm2786, %v2773, %v2720
  %v2795 = vld [vmem:[#allocation3 + $0x70] sm:$0xff]
  %v2796 = vpack.c.bf16 %v2793, %v2793
  %2798 = vrot.lane.b32.xlu0 %v2796, 64
  %v2799 = vpop.permute.xlu0 %2798
  %v2801 = vsel %vm254, %v2799, 0
  %2803 = vmatpush.bf16.msra.mxu0 0
  %2804 = vmatpush.bf16.msra.mxu0 0
  %2805 = vmatpush.bf16.msra.mxu0 0
  %2806 = vmatpush.bf16.msra.mxu0 0
  %2807 = vmatpush.bf16.msra.mxu0 0
  %2808 = vmatpush.bf16.msra.mxu0 0
  %2809 = vmatpush.bf16.msra.mxu0 %v1753
  %2810 = vmatpush.bf16.msra.mxu0 %v1752
  %2811 = vmatmul.bf16.gmra.mxu0 %v2801
  %v2812 = vpop.f32.mrf.mxu0
  %v2813 = vadd.f32 0.0, %v2812
  %v2814 = vpop.f32.mrf.mxu0
  %2815 = vdwg.mxu0
  %v2816 = vadd.f32 %v2795, %v2813
  %v2817 = vxor.u32 %v2816, 2147483648
  %v2818 = vmul.f32 %v2817, 1.442695
  %v2819 = vpow.pop %v2818
  %v2820 = vadd.f32 %v2819, 1.0
  %v2821 = vrcp.pop %v2820
  %v2822 = vmul.f32 %v2820, %v2821
  %v2823 = vsub.f32 1.0, %v2822
  %v2824 = vmul.f32 %v2821, %v2823
  %v2825 = vadd.f32 %v2821, %v2824
  %vm2826 = vweird.f32 %v2820
  %vm2827 = vweird.f32 %v2821
  %vm2828 = vmor %vm2826, %vm2827
  %v2829 = vsel %vm2828, %v2821, %v2825
  %v2830 = vand.u32 2147483647, %v2820
  %vm2831 = vcmp.eq.f32.partialorder %v2830, 8.507059e+37
  %v2832 = vand.u32 %v2820, 2147483648
  %v2833 = vor.u32 1.1754944e-38, %v2832
  %v2834 = vsel %vm2831, %v2833, %v2829
  %v2835 = vmul.f32 1.0, %v2834
  %v2836 = vtanh.pop %v2816
  %v2837 = vmul.f32 %v2835, %v2794
  %2839 = vrot.lane.b32.xlu0 %v2836, 32
  %v2840 = vpop.permute.xlu0 %2839
  %v2842 = vmul.f32 %v2835, %v2840
  %2844 = vrot.lane.b32.xlu0 %v2842, 32
  %v2845 = vpop.permute.xlu0 %2844
  %v2847 = vadd.f32 %v2837, %v2845
  %v2848 = vtanh.pop %v2847
  %2850 = vrot.lane.b32.xlu0 %v2848, 32
  %v2851 = vpop.permute.xlu0 %2850
  %v2853 = vmul.f32 %v2835, %v2851
  %v2854 = vld [vmem:[%s0 + $0x70] sm:$0xff]
  %vm2855 = vcmp.gt.f32.partialorder %v2854, 0.0
  %v2856 = vsel %vm2855, 1, 0
  %2857 = vset.pattern.permute.xlu0 0
  %2858 = vperm.xlu0 %2857, %v2856
  %v2859 = vpop.permute.xlu0 %2858
  %vm2860 = vcmp.eq.s32.totalorder %v2859, 1
  %v2861 = vsel %vm2860, %v2853, 0.0
  %2863 = vrot.lane.b32.xlu0 %v2861, 64
  %v2864 = vpop.permute.xlu0 %2863
  %2866 = vst.msk [vmem:[#allocation2 + $0x70] sm:$0xff] %vm254, %v2864
  %v2867 = vsel %vm2860, %v2853, %v2793
  %v2868 = vsel %vm2860, %v2847, %v2794
  %v2869 = vld [vmem:[#allocation3 + $0x78] sm:$0xff]
  %v2870 = vpack.c.bf16 %v2867, %v2867
  %2872 = vrot.lane.b32.xlu0 %v2870, 64
  %v2873 = vpop.permute.xlu0 %2872
  %v2875 = vsel %vm254, %v2873, 0
  %2877 = vmatpush.bf16.msra.mxu0 0
  %2878 = vmatpush.bf16.msra.mxu0 0
  %2879 = vmatpush.bf16.msra.mxu0 0
  %2880 = vmatpush.bf16.msra.mxu0 0
  %2881 = vmatpush.bf16.msra.mxu0 0
  %2882 = vmatpush.bf16.msra.mxu0 0
  %2883 = vmatpush.bf16.msra.mxu0 %v1753
  %2884 = vmatpush.bf16.msra.mxu0 %v1752
  %2885 = vmatmul.bf16.gmra.mxu0 %v2875
  %v2886 = vpop.f32.mrf.mxu0
  %v2887 = vadd.f32 0.0, %v2886
  %v2888 = vpop.f32.mrf.mxu0
  %2889 = vdwg.mxu0
  %v2890 = vadd.f32 %v2869, %v2887
  %v2891 = vxor.u32 %v2890, 2147483648
  %v2892 = vmul.f32 %v2891, 1.442695
  %v2893 = vpow.pop %v2892
  %v2894 = vadd.f32 %v2893, 1.0
  %v2895 = vrcp.pop %v2894
  %v2896 = vmul.f32 %v2894, %v2895
  %v2897 = vsub.f32 1.0, %v2896
  %v2898 = vmul.f32 %v2895, %v2897
  %v2899 = vadd.f32 %v2895, %v2898
  %vm2900 = vweird.f32 %v2894
  %vm2901 = vweird.f32 %v2895
  %vm2902 = vmor %vm2900, %vm2901
  %v2903 = vsel %vm2902, %v2895, %v2899
  %v2904 = vand.u32 2147483647, %v2894
  %vm2905 = vcmp.eq.f32.partialorder %v2904, 8.507059e+37
  %v2906 = vand.u32 %v2894, 2147483648
  %v2907 = vor.u32 1.1754944e-38, %v2906
  %v2908 = vsel %vm2905, %v2907, %v2903
  %v2909 = vmul.f32 1.0, %v2908
  %v2910 = vtanh.pop %v2890
  %v2911 = vmul.f32 %v2909, %v2868
  %2913 = vrot.lane.b32.xlu0 %v2910, 32
  %v2914 = vpop.permute.xlu0 %2913
  %v2916 = vmul.f32 %v2909, %v2914
  %2918 = vrot.lane.b32.xlu0 %v2916, 32
  %v2919 = vpop.permute.xlu0 %2918
  %v2921 = vadd.f32 %v2911, %v2919
  %v2922 = vtanh.pop %v2921
  %2924 = vrot.lane.b32.xlu0 %v2922, 32
  %v2925 = vpop.permute.xlu0 %2924
  %v2927 = vmul.f32 %v2909, %v2925
  %v2928 = vld [vmem:[%s0 + $0x78] sm:$0xff]
  %vm2929 = vcmp.gt.f32.partialorder %v2928, 0.0
  %v2930 = vsel %vm2929, 1, 0
  %2931 = vset.pattern.permute.xlu0 0
  %2932 = vperm.xlu0 %2931, %v2930
  %v2933 = vpop.permute.xlu0 %2932
  %vm2934 = vcmp.eq.s32.totalorder %v2933, 1
  %v2935 = vsel %vm2934, %v2927, 0.0
  %2937 = vrot.lane.b32.xlu0 %v2935, 64
  %v2938 = vpop.permute.xlu0 %2937
  %2940 = vst.msk [vmem:[#allocation2 + $0x78] sm:$0xff] %vm254, %v2938
  %v2941 = vsel %vm2934, %v2927, %v2867
  %v2942 = vsel %vm2934, %v2921, %v2868
  %v2943 = vld [vmem:[#allocation3 + $0x80] sm:$0xff]
  %v2944 = vpack.c.bf16 %v2941, %v2941
  %2946 = vrot.lane.b32.xlu0 %v2944, 64
  %v2947 = vpop.permute.xlu0 %2946
  %v2949 = vsel %vm254, %v2947, 0
  %2951 = vmatpush.bf16.msra.mxu0 0
  %2952 = vmatpush.bf16.msra.mxu0 0
  %2953 = vmatpush.bf16.msra.mxu0 0
  %2954 = vmatpush.bf16.msra.mxu0 0
  %2955 = vmatpush.bf16.msra.mxu0 0
  %2956 = vmatpush.bf16.msra.mxu0 0
  %2957 = vmatpush.bf16.msra.mxu0 %v1753
  %2958 = vmatpush.bf16.msra.mxu0 %v1752
  %2959 = vmatmul.bf16.gmra.mxu0 %v2949
  %v2960 = vpop.f32.mrf.mxu0
  %v2961 = vadd.f32 0.0, %v2960
  %v2962 = vpop.f32.mrf.mxu0
  %2963 = vdwg.mxu0
  %v2964 = vadd.f32 %v2943, %v2961
  %v2965 = vxor.u32 %v2964, 2147483648
  %v2966 = vmul.f32 %v2965, 1.442695
  %v2967 = vpow.pop %v2966
  %v2968 = vadd.f32 %v2967, 1.0
  %v2969 = vrcp.pop %v2968
  %v2970 = vmul.f32 %v2968, %v2969
  %v2971 = vsub.f32 1.0, %v2970
  %v2972 = vmul.f32 %v2969, %v2971
  %v2973 = vadd.f32 %v2969, %v2972
  %vm2974 = vweird.f32 %v2968
  %vm2975 = vweird.f32 %v2969
  %vm2976 = vmor %vm2974, %vm2975
  %v2977 = vsel %vm2976, %v2969, %v2973
  %v2978 = vand.u32 2147483647, %v2968
  %vm2979 = vcmp.eq.f32.partialorder %v2978, 8.507059e+37
  %v2980 = vand.u32 %v2968, 2147483648
  %v2981 = vor.u32 1.1754944e-38, %v2980
  %v2982 = vsel %vm2979, %v2981, %v2977
  %v2983 = vmul.f32 1.0, %v2982
  %v2984 = vtanh.pop %v2964
  %v2985 = vmul.f32 %v2983, %v2942
  %2987 = vrot.lane.b32.xlu0 %v2984, 32
  %v2988 = vpop.permute.xlu0 %2987
  %v2990 = vmul.f32 %v2983, %v2988
  %2992 = vrot.lane.b32.xlu0 %v2990, 32
  %v2993 = vpop.permute.xlu0 %2992
  %v2995 = vadd.f32 %v2985, %v2993
  %v2996 = vtanh.pop %v2995
  %2998 = vrot.lane.b32.xlu0 %v2996, 32
  %v2999 = vpop.permute.xlu0 %2998
  %v3001 = vmul.f32 %v2983, %v2999
  %v3002 = vld [vmem:[%s0 + $0x80] sm:$0xff]
  %vm3003 = vcmp.gt.f32.partialorder %v3002, 0.0
  %v3004 = vsel %vm3003, 1, 0
  %3005 = vset.pattern.permute.xlu0 0
  %3006 = vperm.xlu0 %3005, %v3004
  %v3007 = vpop.permute.xlu0 %3006
  %vm3008 = vcmp.eq.s32.totalorder %v3007, 1
  %v3009 = vsel %vm3008, %v3001, 0.0
  %3011 = vrot.lane.b32.xlu0 %v3009, 64
  %v3012 = vpop.permute.xlu0 %3011
  %3014 = vst.msk [vmem:[#allocation2 + $0x80] sm:$0xff] %vm254, %v3012
  %v3015 = vsel %vm3008, %v3001, %v2941
  %v3016 = vsel %vm3008, %v2995, %v2942
  %v3017 = vld [vmem:[#allocation3 + $0x88] sm:$0xff]
  %v3018 = vpack.c.bf16 %v3015, %v3015
  %3020 = vrot.lane.b32.xlu0 %v3018, 64
  %v3021 = vpop.permute.xlu0 %3020
  %v3023 = vsel %vm254, %v3021, 0
  %3025 = vmatpush.bf16.msra.mxu0 0
  %3026 = vmatpush.bf16.msra.mxu0 0
  %3027 = vmatpush.bf16.msra.mxu0 0
  %3028 = vmatpush.bf16.msra.mxu0 0
  %3029 = vmatpush.bf16.msra.mxu0 0
  %3030 = vmatpush.bf16.msra.mxu0 0
  %3031 = vmatpush.bf16.msra.mxu0 %v1753
  %3032 = vmatpush.bf16.msra.mxu0 %v1752
  %3033 = vmatmul.bf16.gmra.mxu0 %v3023
  %v3034 = vpop.f32.mrf.mxu0
  %v3035 = vadd.f32 0.0, %v3034
  %v3036 = vpop.f32.mrf.mxu0
  %3037 = vdwg.mxu0
  %v3038 = vadd.f32 %v3017, %v3035
  %v3039 = vxor.u32 %v3038, 2147483648
  %v3040 = vmul.f32 %v3039, 1.442695
  %v3041 = vpow.pop %v3040
  %v3042 = vadd.f32 %v3041, 1.0
  %v3043 = vrcp.pop %v3042
  %v3044 = vmul.f32 %v3042, %v3043
  %v3045 = vsub.f32 1.0, %v3044
  %v3046 = vmul.f32 %v3043, %v3045
  %v3047 = vadd.f32 %v3043, %v3046
  %vm3048 = vweird.f32 %v3042
  %vm3049 = vweird.f32 %v3043
  %vm3050 = vmor %vm3048, %vm3049
  %v3051 = vsel %vm3050, %v3043, %v3047
  %v3052 = vand.u32 2147483647, %v3042
  %vm3053 = vcmp.eq.f32.partialorder %v3052, 8.507059e+37
  %v3054 = vand.u32 %v3042, 2147483648
  %v3055 = vor.u32 1.1754944e-38, %v3054
  %v3056 = vsel %vm3053, %v3055, %v3051
  %v3057 = vmul.f32 1.0, %v3056
  %v3058 = vtanh.pop %v3038
  %v3059 = vmul.f32 %v3057, %v3016
  %3061 = vrot.lane.b32.xlu0 %v3058, 32
  %v3062 = vpop.permute.xlu0 %3061
  %v3064 = vmul.f32 %v3057, %v3062
  %3066 = vrot.lane.b32.xlu0 %v3064, 32
  %v3067 = vpop.permute.xlu0 %3066
  %v3069 = vadd.f32 %v3059, %v3067
  %v3070 = vtanh.pop %v3069
  %3072 = vrot.lane.b32.xlu0 %v3070, 32
  %v3073 = vpop.permute.xlu0 %3072
  %v3075 = vmul.f32 %v3057, %v3073
  %v3076 = vld [vmem:[%s0 + $0x88] sm:$0xff]
  %vm3077 = vcmp.gt.f32.partialorder %v3076, 0.0
  %v3078 = vsel %vm3077, 1, 0
  %3079 = vset.pattern.permute.xlu0 0
  %3080 = vperm.xlu0 %3079, %v3078
  %v3081 = vpop.permute.xlu0 %3080
  %vm3082 = vcmp.eq.s32.totalorder %v3081, 1
  %v3083 = vsel %vm3082, %v3075, 0.0
  %3085 = vrot.lane.b32.xlu0 %v3083, 64
  %v3086 = vpop.permute.xlu0 %3085
  %3088 = vst.msk [vmem:[#allocation2 + $0x88] sm:$0xff] %vm254, %v3086
  %v3089 = vld [vmem:[#allocation2] sm:$0xff]
  %v3090 = vld [vmem:[#allocation2 + $0x8] sm:$0xff]
  %v3091 = vld [vmem:[#allocation2 + $0x10] sm:$0xff]
  %v3092 = vld [vmem:[#allocation2 + $0x18] sm:$0xff]
  %v3093 = vld [vmem:[#allocation2 + $0x20] sm:$0xff]
  %v3094 = vld [vmem:[#allocation2 + $0x28] sm:$0xff]
  %v3095 = vld [vmem:[#allocation2 + $0x30] sm:$0xff]
  %v3096 = vld [vmem:[#allocation2 + $0x38] sm:$0xff]
  %v3097 = vld [vmem:[#allocation2 + $0x40] sm:$0xff]
  %v3098 = vld [vmem:[#allocation2 + $0x48] sm:$0xff]
  %v3099 = vld [vmem:[#allocation2 + $0x50] sm:$0xff]
  %v3100 = vld [vmem:[#allocation2 + $0x58] sm:$0xff]
  %v3101 = vld [vmem:[#allocation2 + $0x60] sm:$0xff]
  %v3102 = vld [vmem:[#allocation2 + $0x68] sm:$0xff]
  %v3103 = vld [vmem:[#allocation2 + $0x70] sm:$0xff]
  %v3104 = vld [vmem:[#allocation2 + $0x78] sm:$0xff]
  %v3105 = vld [vmem:[#allocation2 + $0x80] sm:$0xff]
  %v3106 = vld [vmem:[#allocation2 + $0x88] sm:$0xff]
  %v3107 = vpack.c.bf16 %v3090, %v3089
  %v3108 = vpack.c.bf16 %v3092, %v3091
  %v3109 = vpack.c.bf16 %v3094, %v3093
  %v3110 = vpack.c.bf16 %v3096, %v3095
  %v3111 = vpack.c.bf16 %v3098, %v3097
  %v3112 = vpack.c.bf16 %v3100, %v3099
  %v3113 = vpack.c.bf16 %v3102, %v3101
  %v3114 = vpack.c.bf16 %v3104, %v3103
  %v3115 = vpack.c.bf16 %v3106, %v3105
  %v3116 = vld [vmem:[%s10] sm:$0xf]
  %v3117 = vld [vmem:[%s10 + $0x4] sm:$0xf]
  %v3118 = vld [vmem:[%s10 + $0x8] sm:$0xf]
  %v3119 = vld [vmem:[%s10 + $0xc] sm:$0xf]
  %v3120 = vld [vmem:[%s12] sm:$0x1]
  %v3122 = vperm.slane %v3120, 0
  %v3128 = vunpack.c.l.b16 %v3116
  %v3129 = vunpack.c.l.b16 %v3117
  %v3130 = vunpack.c.l.b16 %v3118
  %v3131 = vunpack.c.l.b16 %v3119
  %v3132 = vpack.c.b16 %v3129, %v3128
  %v3133 = vpack.c.b16 %v3131, %v3130
  %v3137 = vsel %vm254, %v3107, 0
  %v3140 = vsel %vm254, %v3108, 0
  %v3143 = vsel %vm254, %v3109, 0
  %v3146 = vsel %vm254, %v3110, 0
  %v3149 = vsel %vm254, %v3111, 0
  %v3152 = vsel %vm254, %v3112, 0
  %v3155 = vsel %vm254, %v3113, 0
  %v3158 = vsel %vm254, %v3114, 0
  %v3161 = vsel %vm254, %v3115, 0
  %3163 = vmatpush.bf16.msra.mxu0 0
  %3164 = vmatpush.bf16.msra.mxu0 0
  %3165 = vmatpush.bf16.msra.mxu0 0
  %3166 = vmatpush.bf16.msra.mxu0 0
  %3167 = vmatpush.bf16.msra.mxu0 0
  %3168 = vmatpush.bf16.msra.mxu0 0
  %3169 = vmatpush.bf16.msra.mxu0 %v3133
  %3170 = vmatpush.bf16.msra.mxu0 %v3132
  %3171 = vmatmul.bf16.gmra.mxu0 %v3137
  %v3172 = vpop.f32.mrf.mxu0
  %v3173 = vadd.f32 %v3122, %v3172
  %v3174 = vpop.f32.mrf.mxu0
  %v3175 = vadd.f32 %v3122, %v3174
  %3176 = vmatmul.bf16.gmra.mxu0 %v3140
  %v3177 = vpop.f32.mrf.mxu0
  %v3178 = vadd.f32 %v3122, %v3177
  %v3179 = vpop.f32.mrf.mxu0
  %v3180 = vadd.f32 %v3122, %v3179
  %3181 = vmatmul.bf16.gmra.mxu0 %v3143
  %v3182 = vpop.f32.mrf.mxu0
  %v3183 = vadd.f32 %v3122, %v3182
  %v3184 = vpop.f32.mrf.mxu0
  %v3185 = vadd.f32 %v3122, %v3184
  %3186 = vmatmul.bf16.gmra.mxu0 %v3146
  %v3187 = vpop.f32.mrf.mxu0
  %v3188 = vadd.f32 %v3122, %v3187
  %v3189 = vpop.f32.mrf.mxu0
  %v3190 = vadd.f32 %v3122, %v3189
  %3191 = vmatmul.bf16.gmra.mxu0 %v3149
  %v3192 = vpop.f32.mrf.mxu0
  %v3193 = vadd.f32 %v3122, %v3192
  %v3194 = vpop.f32.mrf.mxu0
  %v3195 = vadd.f32 %v3122, %v3194
  %3196 = vmatmul.bf16.gmra.mxu0 %v3152
  %v3197 = vpop.f32.mrf.mxu0
  %v3198 = vadd.f32 %v3122, %v3197
  %v3199 = vpop.f32.mrf.mxu0
  %v3200 = vadd.f32 %v3122, %v3199
  %3201 = vmatmul.bf16.gmra.mxu0 %v3155
  %v3202 = vpop.f32.mrf.mxu0
  %v3203 = vadd.f32 %v3122, %v3202
  %v3204 = vpop.f32.mrf.mxu0
  %v3205 = vadd.f32 %v3122, %v3204
  %3206 = vmatmul.bf16.gmra.mxu0 %v3158
  %v3207 = vpop.f32.mrf.mxu0
  %v3208 = vadd.f32 %v3122, %v3207
  %v3209 = vpop.f32.mrf.mxu0
  %v3210 = vadd.f32 %v3122, %v3209
  %3211 = vmatmul.bf16.gmra.mxu0 %v3161
  %v3212 = vpop.f32.mrf.mxu0
  %v3213 = vadd.f32 %v3122, %v3212
  %v3214 = vpop.f32.mrf.mxu0
  %v3215 = vadd.f32 %v3122, %v3214
  %3216 = vdwg.mxu0
  %3217 = vst [vmem:[#allocation3] sm:$0xff] %v3173
  %3218 = vst [vmem:[#allocation3 + $0x8] sm:$0xff] %v3175
  %3219 = vst [vmem:[#allocation3 + $0x10] sm:$0xff] %v3178
  %3220 = vst [vmem:[#allocation3 + $0x18] sm:$0xff] %v3180
  %3221 = vst [vmem:[#allocation3 + $0x20] sm:$0xff] %v3183
  %3222 = vst [vmem:[#allocation3 + $0x28] sm:$0xff] %v3185
  %3223 = vst [vmem:[#allocation3 + $0x30] sm:$0xff] %v3188
  %3224 = vst [vmem:[#allocation3 + $0x38] sm:$0xff] %v3190
  %3225 = vst [vmem:[#allocation3 + $0x40] sm:$0xff] %v3193
  %3226 = vst [vmem:[#allocation3 + $0x48] sm:$0xff] %v3195
  %3227 = vst [vmem:[#allocation3 + $0x50] sm:$0xff] %v3198
  %3228 = vst [vmem:[#allocation3 + $0x58] sm:$0xff] %v3200
  %3229 = vst [vmem:[#allocation3 + $0x60] sm:$0xff] %v3203
  %3230 = vst [vmem:[#allocation3 + $0x68] sm:$0xff] %v3205
  %3231 = vst [vmem:[#allocation3 + $0x70] sm:$0xff] %v3208
  %3232 = vst [vmem:[#allocation3 + $0x78] sm:$0xff] %v3210
  %3233 = vst [vmem:[#allocation3 + $0x80] sm:$0xff] %v3213
  %3234 = vst [vmem:[#allocation3 + $0x88] sm:$0xff] %v3215
  %v3235 = vld [vmem:[%s11] sm:$0xf]
  %v3236 = vld [vmem:[%s11 + $0x4] sm:$0xf]
  %v3237 = vld [vmem:[%s11 + $0x8] sm:$0xf]
  %v3238 = vld [vmem:[%s11 + $0xc] sm:$0xf]
  %s3239 = scalar_lea.vmem %s2, 16
  %v3240 = vld [vmem:[%s3239] sm:$0xff]
  %s3241 = scalar_lea.vmem %s3, 16
  %v3242 = vld [vmem:[%s3241] sm:$0xff]
  %v3243 = vld [vmem:[#allocation3] sm:$0xff]
  %v3244 = vpack.c.bf16 %v3240, %v3240
  %v3249 = vunpack.c.l.b16 %v3235
  %v3250 = vunpack.c.l.b16 %v3236
  %v3251 = vunpack.c.l.b16 %v3237
  %v3252 = vunpack.c.l.b16 %v3238
  %v3253 = vpack.c.b16 %v3250, %v3249
  %v3254 = vpack.c.b16 %v3252, %v3251
  %v3258 = vsel %vm254, %v3244, 0
  %3260 = vmatpush.bf16.msra.mxu0 0
  %3261 = vmatpush.bf16.msra.mxu0 0
  %3262 = vmatpush.bf16.msra.mxu0 0
  %3263 = vmatpush.bf16.msra.mxu0 0
  %3264 = vmatpush.bf16.msra.mxu0 0
  %3265 = vmatpush.bf16.msra.mxu0 0
  %3266 = vmatpush.bf16.msra.mxu0 %v3254
  %3267 = vmatpush.bf16.msra.mxu0 %v3253
  %3268 = vmatmul.bf16.gmra.mxu0 %v3258
  %v3269 = vpop.f32.mrf.mxu0
  %v3270 = vadd.f32 0.0, %v3269
  %v3271 = vpop.f32.mrf.mxu0
  %3272 = vdwg.mxu0
  %v3273 = vadd.f32 %v3243, %v3270
  %v3274 = vxor.u32 %v3273, 2147483648
  %v3275 = vmul.f32 %v3274, 1.442695
  %v3276 = vpow.pop %v3275
  %v3277 = vadd.f32 %v3276, 1.0
  %v3278 = vrcp.pop %v3277
  %v3279 = vmul.f32 %v3277, %v3278
  %v3280 = vsub.f32 1.0, %v3279
  %v3281 = vmul.f32 %v3278, %v3280
  %v3282 = vadd.f32 %v3278, %v3281
  %vm3283 = vweird.f32 %v3277
  %vm3284 = vweird.f32 %v3278
  %vm3285 = vmor %vm3283, %vm3284
  %v3286 = vsel %vm3285, %v3278, %v3282
  %v3287 = vand.u32 2147483647, %v3277
  %vm3288 = vcmp.eq.f32.partialorder %v3287, 8.507059e+37
  %v3289 = vand.u32 %v3277, 2147483648
  %v3290 = vor.u32 1.1754944e-38, %v3289
  %v3291 = vsel %vm3288, %v3290, %v3286
  %v3292 = vmul.f32 1.0, %v3291
  %v3293 = vtanh.pop %v3273
  %3295 = vrot.lane.b32.xlu0 %v3242, 32
  %v3296 = vpop.permute.xlu0 %3295
  %v3298 = vmul.f32 %v3292, %v3296
  %3300 = vrot.lane.b32.xlu0 %v3293, 32
  %v3301 = vpop.permute.xlu0 %3300
  %v3303 = vmul.f32 %v3292, %v3301
  %3305 = vrot.lane.b32.xlu0 %v3303, 32
  %v3306 = vpop.permute.xlu0 %3305
  %v3308 = vadd.f32 %v3298, %v3306
  %v3309 = vtanh.pop %v3308
  %3311 = vrot.lane.b32.xlu0 %v3309, 32
  %v3312 = vpop.permute.xlu0 %3311
  %v3314 = vmul.f32 %v3292, %v3312
  %v3315 = vld [vmem:[%s0] sm:$0xff]
  %vm3316 = vcmp.gt.f32.partialorder %v3315, 0.0
  %v3317 = vsel %vm3316, 1, 0
  %3318 = vset.pattern.permute.xlu0 0
  %3319 = vperm.xlu0 %3318, %v3317
  %v3320 = vpop.permute.xlu0 %3319
  %vm3321 = vcmp.eq.s32.totalorder %v3320, 1
  %v3322 = vsel %vm3321, %v3314, 0.0
  %3324 = vrot.lane.b32.xlu0 %v3322, 64
  %v3325 = vpop.permute.xlu0 %3324
  %3327 = vst.msk [vmem:[#allocation2] sm:$0xff] %vm254, %v3325
  %3329 = vrot.lane.b32.xlu0 %v3240, 64
  %v3330 = vpop.permute.xlu0 %3329
  %v3332 = vsel %vm3321, %v3314, %v3330
  %v3333 = vsel %vm3321, %v3308, %v3296
  %v3334 = vld [vmem:[#allocation3 + $0x8] sm:$0xff]
  %v3335 = vpack.c.bf16 %v3332, %v3332
  %3337 = vrot.lane.b32.xlu0 %v3335, 64
  %v3338 = vpop.permute.xlu0 %3337
  %v3340 = vsel %vm254, %v3338, 0
  %3342 = vmatpush.bf16.msra.mxu0 0
  %3343 = vmatpush.bf16.msra.mxu0 0
  %3344 = vmatpush.bf16.msra.mxu0 0
  %3345 = vmatpush.bf16.msra.mxu0 0
  %3346 = vmatpush.bf16.msra.mxu0 0
  %3347 = vmatpush.bf16.msra.mxu0 0
  %3348 = vmatpush.bf16.msra.mxu0 %v3254
  %3349 = vmatpush.bf16.msra.mxu0 %v3253
  %3350 = vmatmul.bf16.gmra.mxu0 %v3340
  %v3351 = vpop.f32.mrf.mxu0
  %v3352 = vadd.f32 0.0, %v3351
  %v3353 = vpop.f32.mrf.mxu0
  %3354 = vdwg.mxu0
  %v3355 = vadd.f32 %v3334, %v3352
  %v3356 = vxor.u32 %v3355, 2147483648
  %v3357 = vmul.f32 %v3356, 1.442695
  %v3358 = vpow.pop %v3357
  %v3359 = vadd.f32 %v3358, 1.0
  %v3360 = vrcp.pop %v3359
  %v3361 = vmul.f32 %v3359, %v3360
  %v3362 = vsub.f32 1.0, %v3361
  %v3363 = vmul.f32 %v3360, %v3362
  %v3364 = vadd.f32 %v3360, %v3363
  %vm3365 = vweird.f32 %v3359
  %vm3366 = vweird.f32 %v3360
  %vm3367 = vmor %vm3365, %vm3366
  %v3368 = vsel %vm3367, %v3360, %v3364
  %v3369 = vand.u32 2147483647, %v3359
  %vm3370 = vcmp.eq.f32.partialorder %v3369, 8.507059e+37
  %v3371 = vand.u32 %v3359, 2147483648
  %v3372 = vor.u32 1.1754944e-38, %v3371
  %v3373 = vsel %vm3370, %v3372, %v3368
  %v3374 = vmul.f32 1.0, %v3373
  %v3375 = vtanh.pop %v3355
  %v3376 = vmul.f32 %v3374, %v3333
  %3378 = vrot.lane.b32.xlu0 %v3375, 32
  %v3379 = vpop.permute.xlu0 %3378
  %v3381 = vmul.f32 %v3374, %v3379
  %3383 = vrot.lane.b32.xlu0 %v3381, 32
  %v3384 = vpop.permute.xlu0 %3383
  %v3386 = vadd.f32 %v3376, %v3384
  %v3387 = vtanh.pop %v3386
  %3389 = vrot.lane.b32.xlu0 %v3387, 32
  %v3390 = vpop.permute.xlu0 %3389
  %v3392 = vmul.f32 %v3374, %v3390
  %v3393 = vld [vmem:[%s0 + $0x8] sm:$0xff]
  %vm3394 = vcmp.gt.f32.partialorder %v3393, 0.0
  %v3395 = vsel %vm3394, 1, 0
  %3396 = vset.pattern.permute.xlu0 0
  %3397 = vperm.xlu0 %3396, %v3395
  %v3398 = vpop.permute.xlu0 %3397
  %vm3399 = vcmp.eq.s32.totalorder %v3398, 1
  %v3400 = vsel %vm3399, %v3392, 0.0
  %3402 = vrot.lane.b32.xlu0 %v3400, 64
  %v3403 = vpop.permute.xlu0 %3402
  %3405 = vst.msk [vmem:[#allocation2 + $0x8] sm:$0xff] %vm254, %v3403
  %v3406 = vsel %vm3399, %v3392, %v3332
  %v3407 = vsel %vm3399, %v3386, %v3333
  %v3408 = vld [vmem:[#allocation3 + $0x10] sm:$0xff]
  %v3409 = vpack.c.bf16 %v3406, %v3406
  %3411 = vrot.lane.b32.xlu0 %v3409, 64
  %v3412 = vpop.permute.xlu0 %3411
  %v3414 = vsel %vm254, %v3412, 0
  %3416 = vmatpush.bf16.msra.mxu0 0
  %3417 = vmatpush.bf16.msra.mxu0 0
  %3418 = vmatpush.bf16.msra.mxu0 0
  %3419 = vmatpush.bf16.msra.mxu0 0
  %3420 = vmatpush.bf16.msra.mxu0 0
  %3421 = vmatpush.bf16.msra.mxu0 0
  %3422 = vmatpush.bf16.msra.mxu0 %v3254
  %3423 = vmatpush.bf16.msra.mxu0 %v3253
  %3424 = vmatmul.bf16.gmra.mxu0 %v3414
  %v3425 = vpop.f32.mrf.mxu0
  %v3426 = vadd.f32 0.0, %v3425
  %v3427 = vpop.f32.mrf.mxu0
  %3428 = vdwg.mxu0
  %v3429 = vadd.f32 %v3408, %v3426
  %v3430 = vxor.u32 %v3429, 2147483648
  %v3431 = vmul.f32 %v3430, 1.442695
  %v3432 = vpow.pop %v3431
  %v3433 = vadd.f32 %v3432, 1.0
  %v3434 = vrcp.pop %v3433
  %v3435 = vmul.f32 %v3433, %v3434
  %v3436 = vsub.f32 1.0, %v3435
  %v3437 = vmul.f32 %v3434, %v3436
  %v3438 = vadd.f32 %v3434, %v3437
  %vm3439 = vweird.f32 %v3433
  %vm3440 = vweird.f32 %v3434
  %vm3441 = vmor %vm3439, %vm3440
  %v3442 = vsel %vm3441, %v3434, %v3438
  %v3443 = vand.u32 2147483647, %v3433
  %vm3444 = vcmp.eq.f32.partialorder %v3443, 8.507059e+37
  %v3445 = vand.u32 %v3433, 2147483648
  %v3446 = vor.u32 1.1754944e-38, %v3445
  %v3447 = vsel %vm3444, %v3446, %v3442
  %v3448 = vmul.f32 1.0, %v3447
  %v3449 = vtanh.pop %v3429
  %v3450 = vmul.f32 %v3448, %v3407
  %3452 = vrot.lane.b32.xlu0 %v3449, 32
  %v3453 = vpop.permute.xlu0 %3452
  %v3455 = vmul.f32 %v3448, %v3453
  %3457 = vrot.lane.b32.xlu0 %v3455, 32
  %v3458 = vpop.permute.xlu0 %3457
  %v3460 = vadd.f32 %v3450, %v3458
  %v3461 = vtanh.pop %v3460
  %3463 = vrot.lane.b32.xlu0 %v3461, 32
  %v3464 = vpop.permute.xlu0 %3463
  %v3466 = vmul.f32 %v3448, %v3464
  %v3467 = vld [vmem:[%s0 + $0x10] sm:$0xff]
  %vm3468 = vcmp.gt.f32.partialorder %v3467, 0.0
  %v3469 = vsel %vm3468, 1, 0
  %3470 = vset.pattern.permute.xlu0 0
  %3471 = vperm.xlu0 %3470, %v3469
  %v3472 = vpop.permute.xlu0 %3471
  %vm3473 = vcmp.eq.s32.totalorder %v3472, 1
  %v3474 = vsel %vm3473, %v3466, 0.0
  %3476 = vrot.lane.b32.xlu0 %v3474, 64
  %v3477 = vpop.permute.xlu0 %3476
  %3479 = vst.msk [vmem:[#allocation2 + $0x10] sm:$0xff] %vm254, %v3477
  %v3480 = vsel %vm3473, %v3466, %v3406
  %v3481 = vsel %vm3473, %v3460, %v3407
  %v3482 = vld [vmem:[#allocation3 + $0x18] sm:$0xff]
  %v3483 = vpack.c.bf16 %v3480, %v3480
  %3485 = vrot.lane.b32.xlu0 %v3483, 64
  %v3486 = vpop.permute.xlu0 %3485
  %v3488 = vsel %vm254, %v3486, 0
  %3490 = vmatpush.bf16.msra.mxu0 0
  %3491 = vmatpush.bf16.msra.mxu0 0
  %3492 = vmatpush.bf16.msra.mxu0 0
  %3493 = vmatpush.bf16.msra.mxu0 0
  %3494 = vmatpush.bf16.msra.mxu0 0
  %3495 = vmatpush.bf16.msra.mxu0 0
  %3496 = vmatpush.bf16.msra.mxu0 %v3254
  %3497 = vmatpush.bf16.msra.mxu0 %v3253
  %3498 = vmatmul.bf16.gmra.mxu0 %v3488
  %v3499 = vpop.f32.mrf.mxu0
  %v3500 = vadd.f32 0.0, %v3499
  %v3501 = vpop.f32.mrf.mxu0
  %3502 = vdwg.mxu0
  %v3503 = vadd.f32 %v3482, %v3500
  %v3504 = vxor.u32 %v3503, 2147483648
  %v3505 = vmul.f32 %v3504, 1.442695
  %v3506 = vpow.pop %v3505
  %v3507 = vadd.f32 %v3506, 1.0
  %v3508 = vrcp.pop %v3507
  %v3509 = vmul.f32 %v3507, %v3508
  %v3510 = vsub.f32 1.0, %v3509
  %v3511 = vmul.f32 %v3508, %v3510
  %v3512 = vadd.f32 %v3508, %v3511
  %vm3513 = vweird.f32 %v3507
  %vm3514 = vweird.f32 %v3508
  %vm3515 = vmor %vm3513, %vm3514
  %v3516 = vsel %vm3515, %v3508, %v3512
  %v3517 = vand.u32 2147483647, %v3507
  %vm3518 = vcmp.eq.f32.partialorder %v3517, 8.507059e+37
  %v3519 = vand.u32 %v3507, 2147483648
  %v3520 = vor.u32 1.1754944e-38, %v3519
  %v3521 = vsel %vm3518, %v3520, %v3516
  %v3522 = vmul.f32 1.0, %v3521
  %v3523 = vtanh.pop %v3503
  %v3524 = vmul.f32 %v3522, %v3481
  %3526 = vrot.lane.b32.xlu0 %v3523, 32
  %v3527 = vpop.permute.xlu0 %3526
  %v3529 = vmul.f32 %v3522, %v3527
  %3531 = vrot.lane.b32.xlu0 %v3529, 32
  %v3532 = vpop.permute.xlu0 %3531
  %v3534 = vadd.f32 %v3524, %v3532
  %v3535 = vtanh.pop %v3534
  %3537 = vrot.lane.b32.xlu0 %v3535, 32
  %v3538 = vpop.permute.xlu0 %3537
  %v3540 = vmul.f32 %v3522, %v3538
  %v3541 = vld [vmem:[%s0 + $0x18] sm:$0xff]
  %vm3542 = vcmp.gt.f32.partialorder %v3541, 0.0
  %v3543 = vsel %vm3542, 1, 0
  %3544 = vset.pattern.permute.xlu0 0
  %3545 = vperm.xlu0 %3544, %v3543
  %v3546 = vpop.permute.xlu0 %3545
  %vm3547 = vcmp.eq.s32.totalorder %v3546, 1
  %v3548 = vsel %vm3547, %v3540, 0.0
  %3550 = vrot.lane.b32.xlu0 %v3548, 64
  %v3551 = vpop.permute.xlu0 %3550
  %3553 = vst.msk [vmem:[#allocation2 + $0x18] sm:$0xff] %vm254, %v3551
  %v3554 = vsel %vm3547, %v3540, %v3480
  %v3555 = vsel %vm3547, %v3534, %v3481
  %v3556 = vld [vmem:[#allocation3 + $0x20] sm:$0xff]
  %v3557 = vpack.c.bf16 %v3554, %v3554
  %3559 = vrot.lane.b32.xlu0 %v3557, 64
  %v3560 = vpop.permute.xlu0 %3559
  %v3562 = vsel %vm254, %v3560, 0
  %3564 = vmatpush.bf16.msra.mxu0 0
  %3565 = vmatpush.bf16.msra.mxu0 0
  %3566 = vmatpush.bf16.msra.mxu0 0
  %3567 = vmatpush.bf16.msra.mxu0 0
  %3568 = vmatpush.bf16.msra.mxu0 0
  %3569 = vmatpush.bf16.msra.mxu0 0
  %3570 = vmatpush.bf16.msra.mxu0 %v3254
  %3571 = vmatpush.bf16.msra.mxu0 %v3253
  %3572 = vmatmul.bf16.gmra.mxu0 %v3562
  %v3573 = vpop.f32.mrf.mxu0
  %v3574 = vadd.f32 0.0, %v3573
  %v3575 = vpop.f32.mrf.mxu0
  %3576 = vdwg.mxu0
  %v3577 = vadd.f32 %v3556, %v3574
  %v3578 = vxor.u32 %v3577, 2147483648
  %v3579 = vmul.f32 %v3578, 1.442695
  %v3580 = vpow.pop %v3579
  %v3581 = vadd.f32 %v3580, 1.0
  %v3582 = vrcp.pop %v3581
  %v3583 = vmul.f32 %v3581, %v3582
  %v3584 = vsub.f32 1.0, %v3583
  %v3585 = vmul.f32 %v3582, %v3584
  %v3586 = vadd.f32 %v3582, %v3585
  %vm3587 = vweird.f32 %v3581
  %vm3588 = vweird.f32 %v3582
  %vm3589 = vmor %vm3587, %vm3588
  %v3590 = vsel %vm3589, %v3582, %v3586
  %v3591 = vand.u32 2147483647, %v3581
  %vm3592 = vcmp.eq.f32.partialorder %v3591, 8.507059e+37
  %v3593 = vand.u32 %v3581, 2147483648
  %v3594 = vor.u32 1.1754944e-38, %v3593
  %v3595 = vsel %vm3592, %v3594, %v3590
  %v3596 = vmul.f32 1.0, %v3595
  %v3597 = vtanh.pop %v3577
  %v3598 = vmul.f32 %v3596, %v3555
  %3600 = vrot.lane.b32.xlu0 %v3597, 32
  %v3601 = vpop.permute.xlu0 %3600
  %v3603 = vmul.f32 %v3596, %v3601
  %3605 = vrot.lane.b32.xlu0 %v3603, 32
  %v3606 = vpop.permute.xlu0 %3605
  %v3608 = vadd.f32 %v3598, %v3606
  %v3609 = vtanh.pop %v3608
  %3611 = vrot.lane.b32.xlu0 %v3609, 32
  %v3612 = vpop.permute.xlu0 %3611
  %v3614 = vmul.f32 %v3596, %v3612
  %v3615 = vld [vmem:[%s0 + $0x20] sm:$0xff]
  %vm3616 = vcmp.gt.f32.partialorder %v3615, 0.0
  %v3617 = vsel %vm3616, 1, 0
  %3618 = vset.pattern.permute.xlu0 0
  %3619 = vperm.xlu0 %3618, %v3617
  %v3620 = vpop.permute.xlu0 %3619
  %vm3621 = vcmp.eq.s32.totalorder %v3620, 1
  %v3622 = vsel %vm3621, %v3614, 0.0
  %3624 = vrot.lane.b32.xlu0 %v3622, 64
  %v3625 = vpop.permute.xlu0 %3624
  %3627 = vst.msk [vmem:[#allocation2 + $0x20] sm:$0xff] %vm254, %v3625
  %v3628 = vsel %vm3621, %v3614, %v3554
  %v3629 = vsel %vm3621, %v3608, %v3555
  %v3630 = vld [vmem:[#allocation3 + $0x28] sm:$0xff]
  %v3631 = vpack.c.bf16 %v3628, %v3628
  %3633 = vrot.lane.b32.xlu0 %v3631, 64
  %v3634 = vpop.permute.xlu0 %3633
  %v3636 = vsel %vm254, %v3634, 0
  %3638 = vmatpush.bf16.msra.mxu0 0
  %3639 = vmatpush.bf16.msra.mxu0 0
  %3640 = vmatpush.bf16.msra.mxu0 0
  %3641 = vmatpush.bf16.msra.mxu0 0
  %3642 = vmatpush.bf16.msra.mxu0 0
  %3643 = vmatpush.bf16.msra.mxu0 0
  %3644 = vmatpush.bf16.msra.mxu0 %v3254
  %3645 = vmatpush.bf16.msra.mxu0 %v3253
  %3646 = vmatmul.bf16.gmra.mxu0 %v3636
  %v3647 = vpop.f32.mrf.mxu0
  %v3648 = vadd.f32 0.0, %v3647
  %v3649 = vpop.f32.mrf.mxu0
  %3650 = vdwg.mxu0
  %v3651 = vadd.f32 %v3630, %v3648
  %v3652 = vxor.u32 %v3651, 2147483648
  %v3653 = vmul.f32 %v3652, 1.442695
  %v3654 = vpow.pop %v3653
  %v3655 = vadd.f32 %v3654, 1.0
  %v3656 = vrcp.pop %v3655
  %v3657 = vmul.f32 %v3655, %v3656
  %v3658 = vsub.f32 1.0, %v3657
  %v3659 = vmul.f32 %v3656, %v3658
  %v3660 = vadd.f32 %v3656, %v3659
  %vm3661 = vweird.f32 %v3655
  %vm3662 = vweird.f32 %v3656
  %vm3663 = vmor %vm3661, %vm3662
  %v3664 = vsel %vm3663, %v3656, %v3660
  %v3665 = vand.u32 2147483647, %v3655
  %vm3666 = vcmp.eq.f32.partialorder %v3665, 8.507059e+37
  %v3667 = vand.u32 %v3655, 2147483648
  %v3668 = vor.u32 1.1754944e-38, %v3667
  %v3669 = vsel %vm3666, %v3668, %v3664
  %v3670 = vmul.f32 1.0, %v3669
  %v3671 = vtanh.pop %v3651
  %v3672 = vmul.f32 %v3670, %v3629
  %3674 = vrot.lane.b32.xlu0 %v3671, 32
  %v3675 = vpop.permute.xlu0 %3674
  %v3677 = vmul.f32 %v3670, %v3675
  %3679 = vrot.lane.b32.xlu0 %v3677, 32
  %v3680 = vpop.permute.xlu0 %3679
  %v3682 = vadd.f32 %v3672, %v3680
  %v3683 = vtanh.pop %v3682
  %3685 = vrot.lane.b32.xlu0 %v3683, 32
  %v3686 = vpop.permute.xlu0 %3685
  %v3688 = vmul.f32 %v3670, %v3686
  %v3689 = vld [vmem:[%s0 + $0x28] sm:$0xff]
  %vm3690 = vcmp.gt.f32.partialorder %v3689, 0.0
  %v3691 = vsel %vm3690, 1, 0
  %3692 = vset.pattern.permute.xlu0 0
  %3693 = vperm.xlu0 %3692, %v3691
  %v3694 = vpop.permute.xlu0 %3693
  %vm3695 = vcmp.eq.s32.totalorder %v3694, 1
  %v3696 = vsel %vm3695, %v3688, 0.0
  %3698 = vrot.lane.b32.xlu0 %v3696, 64
  %v3699 = vpop.permute.xlu0 %3698
  %3701 = vst.msk [vmem:[#allocation2 + $0x28] sm:$0xff] %vm254, %v3699
  %v3702 = vsel %vm3695, %v3688, %v3628
  %v3703 = vsel %vm3695, %v3682, %v3629
  %v3704 = vld [vmem:[#allocation3 + $0x30] sm:$0xff]
  %v3705 = vpack.c.bf16 %v3702, %v3702
  %3707 = vrot.lane.b32.xlu0 %v3705, 64
  %v3708 = vpop.permute.xlu0 %3707
  %v3710 = vsel %vm254, %v3708, 0
  %3712 = vmatpush.bf16.msra.mxu0 0
  %3713 = vmatpush.bf16.msra.mxu0 0
  %3714 = vmatpush.bf16.msra.mxu0 0
  %3715 = vmatpush.bf16.msra.mxu0 0
  %3716 = vmatpush.bf16.msra.mxu0 0
  %3717 = vmatpush.bf16.msra.mxu0 0
  %3718 = vmatpush.bf16.msra.mxu0 %v3254
  %3719 = vmatpush.bf16.msra.mxu0 %v3253
  %3720 = vmatmul.bf16.gmra.mxu0 %v3710
  %v3721 = vpop.f32.mrf.mxu0
  %v3722 = vadd.f32 0.0, %v3721
  %v3723 = vpop.f32.mrf.mxu0
  %3724 = vdwg.mxu0
  %v3725 = vadd.f32 %v3704, %v3722
  %v3726 = vxor.u32 %v3725, 2147483648
  %v3727 = vmul.f32 %v3726, 1.442695
  %v3728 = vpow.pop %v3727
  %v3729 = vadd.f32 %v3728, 1.0
  %v3730 = vrcp.pop %v3729
  %v3731 = vmul.f32 %v3729, %v3730
  %v3732 = vsub.f32 1.0, %v3731
  %v3733 = vmul.f32 %v3730, %v3732
  %v3734 = vadd.f32 %v3730, %v3733
  %vm3735 = vweird.f32 %v3729
  %vm3736 = vweird.f32 %v3730
  %vm3737 = vmor %vm3735, %vm3736
  %v3738 = vsel %vm3737, %v3730, %v3734
  %v3739 = vand.u32 2147483647, %v3729
  %vm3740 = vcmp.eq.f32.partialorder %v3739, 8.507059e+37
  %v3741 = vand.u32 %v3729, 2147483648
  %v3742 = vor.u32 1.1754944e-38, %v3741
  %v3743 = vsel %vm3740, %v3742, %v3738
  %v3744 = vmul.f32 1.0, %v3743
  %v3745 = vtanh.pop %v3725
  %v3746 = vmul.f32 %v3744, %v3703
  %3748 = vrot.lane.b32.xlu0 %v3745, 32
  %v3749 = vpop.permute.xlu0 %3748
  %v3751 = vmul.f32 %v3744, %v3749
  %3753 = vrot.lane.b32.xlu0 %v3751, 32
  %v3754 = vpop.permute.xlu0 %3753
  %v3756 = vadd.f32 %v3746, %v3754
  %v3757 = vtanh.pop %v3756
  %3759 = vrot.lane.b32.xlu0 %v3757, 32
  %v3760 = vpop.permute.xlu0 %3759
  %v3762 = vmul.f32 %v3744, %v3760
  %v3763 = vld [vmem:[%s0 + $0x30] sm:$0xff]
  %vm3764 = vcmp.gt.f32.partialorder %v3763, 0.0
  %v3765 = vsel %vm3764, 1, 0
  %3766 = vset.pattern.permute.xlu0 0
  %3767 = vperm.xlu0 %3766, %v3765
  %v3768 = vpop.permute.xlu0 %3767
  %vm3769 = vcmp.eq.s32.totalorder %v3768, 1
  %v3770 = vsel %vm3769, %v3762, 0.0
  %3772 = vrot.lane.b32.xlu0 %v3770, 64
  %v3773 = vpop.permute.xlu0 %3772
  %3775 = vst.msk [vmem:[#allocation2 + $0x30] sm:$0xff] %vm254, %v3773
  %v3776 = vsel %vm3769, %v3762, %v3702
  %v3777 = vsel %vm3769, %v3756, %v3703
  %v3778 = vld [vmem:[#allocation3 + $0x38] sm:$0xff]
  %v3779 = vpack.c.bf16 %v3776, %v3776
  %3781 = vrot.lane.b32.xlu0 %v3779, 64
  %v3782 = vpop.permute.xlu0 %3781
  %v3784 = vsel %vm254, %v3782, 0
  %3786 = vmatpush.bf16.msra.mxu0 0
  %3787 = vmatpush.bf16.msra.mxu0 0
  %3788 = vmatpush.bf16.msra.mxu0 0
  %3789 = vmatpush.bf16.msra.mxu0 0
  %3790 = vmatpush.bf16.msra.mxu0 0
  %3791 = vmatpush.bf16.msra.mxu0 0
  %3792 = vmatpush.bf16.msra.mxu0 %v3254
  %3793 = vmatpush.bf16.msra.mxu0 %v3253
  %3794 = vmatmul.bf16.gmra.mxu0 %v3784
  %v3795 = vpop.f32.mrf.mxu0
  %v3796 = vadd.f32 0.0, %v3795
  %v3797 = vpop.f32.mrf.mxu0
  %3798 = vdwg.mxu0
  %v3799 = vadd.f32 %v3778, %v3796
  %v3800 = vxor.u32 %v3799, 2147483648
  %v3801 = vmul.f32 %v3800, 1.442695
  %v3802 = vpow.pop %v3801
  %v3803 = vadd.f32 %v3802, 1.0
  %v3804 = vrcp.pop %v3803
  %v3805 = vmul.f32 %v3803, %v3804
  %v3806 = vsub.f32 1.0, %v3805
  %v3807 = vmul.f32 %v3804, %v3806
  %v3808 = vadd.f32 %v3804, %v3807
  %vm3809 = vweird.f32 %v3803
  %vm3810 = vweird.f32 %v3804
  %vm3811 = vmor %vm3809, %vm3810
  %v3812 = vsel %vm3811, %v3804, %v3808
  %v3813 = vand.u32 2147483647, %v3803
  %vm3814 = vcmp.eq.f32.partialorder %v3813, 8.507059e+37
  %v3815 = vand.u32 %v3803, 2147483648
  %v3816 = vor.u32 1.1754944e-38, %v3815
  %v3817 = vsel %vm3814, %v3816, %v3812
  %v3818 = vmul.f32 1.0, %v3817
  %v3819 = vtanh.pop %v3799
  %v3820 = vmul.f32 %v3818, %v3777
  %3822 = vrot.lane.b32.xlu0 %v3819, 32
  %v3823 = vpop.permute.xlu0 %3822
  %v3825 = vmul.f32 %v3818, %v3823
  %3827 = vrot.lane.b32.xlu0 %v3825, 32
  %v3828 = vpop.permute.xlu0 %3827
  %v3830 = vadd.f32 %v3820, %v3828
  %v3831 = vtanh.pop %v3830
  %3833 = vrot.lane.b32.xlu0 %v3831, 32
  %v3834 = vpop.permute.xlu0 %3833
  %v3836 = vmul.f32 %v3818, %v3834
  %v3837 = vld [vmem:[%s0 + $0x38] sm:$0xff]
  %vm3838 = vcmp.gt.f32.partialorder %v3837, 0.0
  %v3839 = vsel %vm3838, 1, 0
  %3840 = vset.pattern.permute.xlu0 0
  %3841 = vperm.xlu0 %3840, %v3839
  %v3842 = vpop.permute.xlu0 %3841
  %vm3843 = vcmp.eq.s32.totalorder %v3842, 1
  %v3844 = vsel %vm3843, %v3836, 0.0
  %3846 = vrot.lane.b32.xlu0 %v3844, 64
  %v3847 = vpop.permute.xlu0 %3846
  %3849 = vst.msk [vmem:[#allocation2 + $0x38] sm:$0xff] %vm254, %v3847
  %v3850 = vsel %vm3843, %v3836, %v3776
  %v3851 = vsel %vm3843, %v3830, %v3777
  %v3852 = vld [vmem:[#allocation3 + $0x40] sm:$0xff]
  %v3853 = vpack.c.bf16 %v3850, %v3850
  %3855 = vrot.lane.b32.xlu0 %v3853, 64
  %v3856 = vpop.permute.xlu0 %3855
  %v3858 = vsel %vm254, %v3856, 0
  %3860 = vmatpush.bf16.msra.mxu0 0
  %3861 = vmatpush.bf16.msra.mxu0 0
  %3862 = vmatpush.bf16.msra.mxu0 0
  %3863 = vmatpush.bf16.msra.mxu0 0
  %3864 = vmatpush.bf16.msra.mxu0 0
  %3865 = vmatpush.bf16.msra.mxu0 0
  %3866 = vmatpush.bf16.msra.mxu0 %v3254
  %3867 = vmatpush.bf16.msra.mxu0 %v3253
  %3868 = vmatmul.bf16.gmra.mxu0 %v3858
  %v3869 = vpop.f32.mrf.mxu0
  %v3870 = vadd.f32 0.0, %v3869
  %v3871 = vpop.f32.mrf.mxu0
  %3872 = vdwg.mxu0
  %v3873 = vadd.f32 %v3852, %v3870
  %v3874 = vxor.u32 %v3873, 2147483648
  %v3875 = vmul.f32 %v3874, 1.442695
  %v3876 = vpow.pop %v3875
  %v3877 = vadd.f32 %v3876, 1.0
  %v3878 = vrcp.pop %v3877
  %v3879 = vmul.f32 %v3877, %v3878
  %v3880 = vsub.f32 1.0, %v3879
  %v3881 = vmul.f32 %v3878, %v3880
  %v3882 = vadd.f32 %v3878, %v3881
  %vm3883 = vweird.f32 %v3877
  %vm3884 = vweird.f32 %v3878
  %vm3885 = vmor %vm3883, %vm3884
  %v3886 = vsel %vm3885, %v3878, %v3882
  %v3887 = vand.u32 2147483647, %v3877
  %vm3888 = vcmp.eq.f32.partialorder %v3887, 8.507059e+37
  %v3889 = vand.u32 %v3877, 2147483648
  %v3890 = vor.u32 1.1754944e-38, %v3889
  %v3891 = vsel %vm3888, %v3890, %v3886
  %v3892 = vmul.f32 1.0, %v3891
  %v3893 = vtanh.pop %v3873
  %v3894 = vmul.f32 %v3892, %v3851
  %3896 = vrot.lane.b32.xlu0 %v3893, 32
  %v3897 = vpop.permute.xlu0 %3896
  %v3899 = vmul.f32 %v3892, %v3897
  %3901 = vrot.lane.b32.xlu0 %v3899, 32
  %v3902 = vpop.permute.xlu0 %3901
  %v3904 = vadd.f32 %v3894, %v3902
  %v3905 = vtanh.pop %v3904
  %3907 = vrot.lane.b32.xlu0 %v3905, 32
  %v3908 = vpop.permute.xlu0 %3907
  %v3910 = vmul.f32 %v3892, %v3908
  %v3911 = vld [vmem:[%s0 + $0x40] sm:$0xff]
  %vm3912 = vcmp.gt.f32.partialorder %v3911, 0.0
  %v3913 = vsel %vm3912, 1, 0
  %3914 = vset.pattern.permute.xlu0 0
  %3915 = vperm.xlu0 %3914, %v3913
  %v3916 = vpop.permute.xlu0 %3915
  %vm3917 = vcmp.eq.s32.totalorder %v3916, 1
  %v3918 = vsel %vm3917, %v3910, 0.0
  %3920 = vrot.lane.b32.xlu0 %v3918, 64
  %v3921 = vpop.permute.xlu0 %3920
  %3923 = vst.msk [vmem:[#allocation2 + $0x40] sm:$0xff] %vm254, %v3921
  %v3924 = vsel %vm3917, %v3910, %v3850
  %v3925 = vsel %vm3917, %v3904, %v3851
  %v3926 = vld [vmem:[#allocation3 + $0x48] sm:$0xff]
  %v3927 = vpack.c.bf16 %v3924, %v3924
  %3929 = vrot.lane.b32.xlu0 %v3927, 64
  %v3930 = vpop.permute.xlu0 %3929
  %v3932 = vsel %vm254, %v3930, 0
  %3934 = vmatpush.bf16.msra.mxu0 0
  %3935 = vmatpush.bf16.msra.mxu0 0
  %3936 = vmatpush.bf16.msra.mxu0 0
  %3937 = vmatpush.bf16.msra.mxu0 0
  %3938 = vmatpush.bf16.msra.mxu0 0
  %3939 = vmatpush.bf16.msra.mxu0 0
  %3940 = vmatpush.bf16.msra.mxu0 %v3254
  %3941 = vmatpush.bf16.msra.mxu0 %v3253
  %3942 = vmatmul.bf16.gmra.mxu0 %v3932
  %v3943 = vpop.f32.mrf.mxu0
  %v3944 = vadd.f32 0.0, %v3943
  %v3945 = vpop.f32.mrf.mxu0
  %3946 = vdwg.mxu0
  %v3947 = vadd.f32 %v3926, %v3944
  %v3948 = vxor.u32 %v3947, 2147483648
  %v3949 = vmul.f32 %v3948, 1.442695
  %v3950 = vpow.pop %v3949
  %v3951 = vadd.f32 %v3950, 1.0
  %v3952 = vrcp.pop %v3951
  %v3953 = vmul.f32 %v3951, %v3952
  %v3954 = vsub.f32 1.0, %v3953
  %v3955 = vmul.f32 %v3952, %v3954
  %v3956 = vadd.f32 %v3952, %v3955
  %vm3957 = vweird.f32 %v3951
  %vm3958 = vweird.f32 %v3952
  %vm3959 = vmor %vm3957, %vm3958
  %v3960 = vsel %vm3959, %v3952, %v3956
  %v3961 = vand.u32 2147483647, %v3951
  %vm3962 = vcmp.eq.f32.partialorder %v3961, 8.507059e+37
  %v3963 = vand.u32 %v3951, 2147483648
  %v3964 = vor.u32 1.1754944e-38, %v3963
  %v3965 = vsel %vm3962, %v3964, %v3960
  %v3966 = vmul.f32 1.0, %v3965
  %v3967 = vtanh.pop %v3947
  %v3968 = vmul.f32 %v3966, %v3925
  %3970 = vrot.lane.b32.xlu0 %v3967, 32
  %v3971 = vpop.permute.xlu0 %3970
  %v3973 = vmul.f32 %v3966, %v3971
  %3975 = vrot.lane.b32.xlu0 %v3973, 32
  %v3976 = vpop.permute.xlu0 %3975
  %v3978 = vadd.f32 %v3968, %v3976
  %v3979 = vtanh.pop %v3978
  %3981 = vrot.lane.b32.xlu0 %v3979, 32
  %v3982 = vpop.permute.xlu0 %3981
  %v3984 = vmul.f32 %v3966, %v3982
  %v3985 = vld [vmem:[%s0 + $0x48] sm:$0xff]
  %vm3986 = vcmp.gt.f32.partialorder %v3985, 0.0
  %v3987 = vsel %vm3986, 1, 0
  %3988 = vset.pattern.permute.xlu0 0
  %3989 = vperm.xlu0 %3988, %v3987
  %v3990 = vpop.permute.xlu0 %3989
  %vm3991 = vcmp.eq.s32.totalorder %v3990, 1
  %v3992 = vsel %vm3991, %v3984, 0.0
  %3994 = vrot.lane.b32.xlu0 %v3992, 64
  %v3995 = vpop.permute.xlu0 %3994
  %3997 = vst.msk [vmem:[#allocation2 + $0x48] sm:$0xff] %vm254, %v3995
  %v3998 = vsel %vm3991, %v3984, %v3924
  %v3999 = vsel %vm3991, %v3978, %v3925
  %v4000 = vld [vmem:[#allocation3 + $0x50] sm:$0xff]
  %v4001 = vpack.c.bf16 %v3998, %v3998
  %4003 = vrot.lane.b32.xlu0 %v4001, 64
  %v4004 = vpop.permute.xlu0 %4003
  %v4006 = vsel %vm254, %v4004, 0
  %4008 = vmatpush.bf16.msra.mxu0 0
  %4009 = vmatpush.bf16.msra.mxu0 0
  %4010 = vmatpush.bf16.msra.mxu0 0
  %4011 = vmatpush.bf16.msra.mxu0 0
  %4012 = vmatpush.bf16.msra.mxu0 0
  %4013 = vmatpush.bf16.msra.mxu0 0
  %4014 = vmatpush.bf16.msra.mxu0 %v3254
  %4015 = vmatpush.bf16.msra.mxu0 %v3253
  %4016 = vmatmul.bf16.gmra.mxu0 %v4006
  %v4017 = vpop.f32.mrf.mxu0
  %v4018 = vadd.f32 0.0, %v4017
  %v4019 = vpop.f32.mrf.mxu0
  %4020 = vdwg.mxu0
  %v4021 = vadd.f32 %v4000, %v4018
  %v4022 = vxor.u32 %v4021, 2147483648
  %v4023 = vmul.f32 %v4022, 1.442695
  %v4024 = vpow.pop %v4023
  %v4025 = vadd.f32 %v4024, 1.0
  %v4026 = vrcp.pop %v4025
  %v4027 = vmul.f32 %v4025, %v4026
  %v4028 = vsub.f32 1.0, %v4027
  %v4029 = vmul.f32 %v4026, %v4028
  %v4030 = vadd.f32 %v4026, %v4029
  %vm4031 = vweird.f32 %v4025
  %vm4032 = vweird.f32 %v4026
  %vm4033 = vmor %vm4031, %vm4032
  %v4034 = vsel %vm4033, %v4026, %v4030
  %v4035 = vand.u32 2147483647, %v4025
  %vm4036 = vcmp.eq.f32.partialorder %v4035, 8.507059e+37
  %v4037 = vand.u32 %v4025, 2147483648
  %v4038 = vor.u32 1.1754944e-38, %v4037
  %v4039 = vsel %vm4036, %v4038, %v4034
  %v4040 = vmul.f32 1.0, %v4039
  %v4041 = vtanh.pop %v4021
  %v4042 = vmul.f32 %v4040, %v3999
  %4044 = vrot.lane.b32.xlu0 %v4041, 32
  %v4045 = vpop.permute.xlu0 %4044
  %v4047 = vmul.f32 %v4040, %v4045
  %4049 = vrot.lane.b32.xlu0 %v4047, 32
  %v4050 = vpop.permute.xlu0 %4049
  %v4052 = vadd.f32 %v4042, %v4050
  %v4053 = vtanh.pop %v4052
  %4055 = vrot.lane.b32.xlu0 %v4053, 32
  %v4056 = vpop.permute.xlu0 %4055
  %v4058 = vmul.f32 %v4040, %v4056
  %v4059 = vld [vmem:[%s0 + $0x50] sm:$0xff]
  %vm4060 = vcmp.gt.f32.partialorder %v4059, 0.0
  %v4061 = vsel %vm4060, 1, 0
  %4062 = vset.pattern.permute.xlu0 0
  %4063 = vperm.xlu0 %4062, %v4061
  %v4064 = vpop.permute.xlu0 %4063
  %vm4065 = vcmp.eq.s32.totalorder %v4064, 1
  %v4066 = vsel %vm4065, %v4058, 0.0
  %4068 = vrot.lane.b32.xlu0 %v4066, 64
  %v4069 = vpop.permute.xlu0 %4068
  %4071 = vst.msk [vmem:[#allocation2 + $0x50] sm:$0xff] %vm254, %v4069
  %v4072 = vsel %vm4065, %v4058, %v3998
  %v4073 = vsel %vm4065, %v4052, %v3999
  %v4074 = vld [vmem:[#allocation3 + $0x58] sm:$0xff]
  %v4075 = vpack.c.bf16 %v4072, %v4072
  %4077 = vrot.lane.b32.xlu0 %v4075, 64
  %v4078 = vpop.permute.xlu0 %4077
  %v4080 = vsel %vm254, %v4078, 0
  %4082 = vmatpush.bf16.msra.mxu0 0
  %4083 = vmatpush.bf16.msra.mxu0 0
  %4084 = vmatpush.bf16.msra.mxu0 0
  %4085 = vmatpush.bf16.msra.mxu0 0
  %4086 = vmatpush.bf16.msra.mxu0 0
  %4087 = vmatpush.bf16.msra.mxu0 0
  %4088 = vmatpush.bf16.msra.mxu0 %v3254
  %4089 = vmatpush.bf16.msra.mxu0 %v3253
  %4090 = vmatmul.bf16.gmra.mxu0 %v4080
  %v4091 = vpop.f32.mrf.mxu0
  %v4092 = vadd.f32 0.0, %v4091
  %v4093 = vpop.f32.mrf.mxu0
  %4094 = vdwg.mxu0
  %v4095 = vadd.f32 %v4074, %v4092
  %v4096 = vxor.u32 %v4095, 2147483648
  %v4097 = vmul.f32 %v4096, 1.442695
  %v4098 = vpow.pop %v4097
  %v4099 = vadd.f32 %v4098, 1.0
  %v4100 = vrcp.pop %v4099
  %v4101 = vmul.f32 %v4099, %v4100
  %v4102 = vsub.f32 1.0, %v4101
  %v4103 = vmul.f32 %v4100, %v4102
  %v4104 = vadd.f32 %v4100, %v4103
  %vm4105 = vweird.f32 %v4099
  %vm4106 = vweird.f32 %v4100
  %vm4107 = vmor %vm4105, %vm4106
  %v4108 = vsel %vm4107, %v4100, %v4104
  %v4109 = vand.u32 2147483647, %v4099
  %vm4110 = vcmp.eq.f32.partialorder %v4109, 8.507059e+37
  %v4111 = vand.u32 %v4099, 2147483648
  %v4112 = vor.u32 1.1754944e-38, %v4111
  %v4113 = vsel %vm4110, %v4112, %v4108
  %v4114 = vmul.f32 1.0, %v4113
  %v4115 = vtanh.pop %v4095
  %v4116 = vmul.f32 %v4114, %v4073
  %4118 = vrot.lane.b32.xlu0 %v4115, 32
  %v4119 = vpop.permute.xlu0 %4118
  %v4121 = vmul.f32 %v4114, %v4119
  %4123 = vrot.lane.b32.xlu0 %v4121, 32
  %v4124 = vpop.permute.xlu0 %4123
  %v4126 = vadd.f32 %v4116, %v4124
  %v4127 = vtanh.pop %v4126
  %4129 = vrot.lane.b32.xlu0 %v4127, 32
  %v4130 = vpop.permute.xlu0 %4129
  %v4132 = vmul.f32 %v4114, %v4130
  %v4133 = vld [vmem:[%s0 + $0x58] sm:$0xff]
  %vm4134 = vcmp.gt.f32.partialorder %v4133, 0.0
  %v4135 = vsel %vm4134, 1, 0
  %4136 = vset.pattern.permute.xlu0 0
  %4137 = vperm.xlu0 %4136, %v4135
  %v4138 = vpop.permute.xlu0 %4137
  %vm4139 = vcmp.eq.s32.totalorder %v4138, 1
  %v4140 = vsel %vm4139, %v4132, 0.0
  %4142 = vrot.lane.b32.xlu0 %v4140, 64
  %v4143 = vpop.permute.xlu0 %4142
  %4145 = vst.msk [vmem:[#allocation2 + $0x58] sm:$0xff] %vm254, %v4143
  %v4146 = vsel %vm4139, %v4132, %v4072
  %v4147 = vsel %vm4139, %v4126, %v4073
  %v4148 = vld [vmem:[#allocation3 + $0x60] sm:$0xff]
  %v4149 = vpack.c.bf16 %v4146, %v4146
  %4151 = vrot.lane.b32.xlu0 %v4149, 64
  %v4152 = vpop.permute.xlu0 %4151
  %v4154 = vsel %vm254, %v4152, 0
  %4156 = vmatpush.bf16.msra.mxu0 0
  %4157 = vmatpush.bf16.msra.mxu0 0
  %4158 = vmatpush.bf16.msra.mxu0 0
  %4159 = vmatpush.bf16.msra.mxu0 0
  %4160 = vmatpush.bf16.msra.mxu0 0
  %4161 = vmatpush.bf16.msra.mxu0 0
  %4162 = vmatpush.bf16.msra.mxu0 %v3254
  %4163 = vmatpush.bf16.msra.mxu0 %v3253
  %4164 = vmatmul.bf16.gmra.mxu0 %v4154
  %v4165 = vpop.f32.mrf.mxu0
  %v4166 = vadd.f32 0.0, %v4165
  %v4167 = vpop.f32.mrf.mxu0
  %4168 = vdwg.mxu0
  %v4169 = vadd.f32 %v4148, %v4166
  %v4170 = vxor.u32 %v4169, 2147483648
  %v4171 = vmul.f32 %v4170, 1.442695
  %v4172 = vpow.pop %v4171
  %v4173 = vadd.f32 %v4172, 1.0
  %v4174 = vrcp.pop %v4173
  %v4175 = vmul.f32 %v4173, %v4174
  %v4176 = vsub.f32 1.0, %v4175
  %v4177 = vmul.f32 %v4174, %v4176
  %v4178 = vadd.f32 %v4174, %v4177
  %vm4179 = vweird.f32 %v4173
  %vm4180 = vweird.f32 %v4174
  %vm4181 = vmor %vm4179, %vm4180
  %v4182 = vsel %vm4181, %v4174, %v4178
  %v4183 = vand.u32 2147483647, %v4173
  %vm4184 = vcmp.eq.f32.partialorder %v4183, 8.507059e+37
  %v4185 = vand.u32 %v4173, 2147483648
  %v4186 = vor.u32 1.1754944e-38, %v4185
  %v4187 = vsel %vm4184, %v4186, %v4182
  %v4188 = vmul.f32 1.0, %v4187
  %v4189 = vtanh.pop %v4169
  %v4190 = vmul.f32 %v4188, %v4147
  %4192 = vrot.lane.b32.xlu0 %v4189, 32
  %v4193 = vpop.permute.xlu0 %4192
  %v4195 = vmul.f32 %v4188, %v4193
  %4197 = vrot.lane.b32.xlu0 %v4195, 32
  %v4198 = vpop.permute.xlu0 %4197
  %v4200 = vadd.f32 %v4190, %v4198
  %v4201 = vtanh.pop %v4200
  %4203 = vrot.lane.b32.xlu0 %v4201, 32
  %v4204 = vpop.permute.xlu0 %4203
  %v4206 = vmul.f32 %v4188, %v4204
  %v4207 = vld [vmem:[%s0 + $0x60] sm:$0xff]
  %vm4208 = vcmp.gt.f32.partialorder %v4207, 0.0
  %v4209 = vsel %vm4208, 1, 0
  %4210 = vset.pattern.permute.xlu0 0
  %4211 = vperm.xlu0 %4210, %v4209
  %v4212 = vpop.permute.xlu0 %4211
  %vm4213 = vcmp.eq.s32.totalorder %v4212, 1
  %v4214 = vsel %vm4213, %v4206, 0.0
  %4216 = vrot.lane.b32.xlu0 %v4214, 64
  %v4217 = vpop.permute.xlu0 %4216
  %4219 = vst.msk [vmem:[#allocation2 + $0x60] sm:$0xff] %vm254, %v4217
  %v4220 = vsel %vm4213, %v4206, %v4146
  %v4221 = vsel %vm4213, %v4200, %v4147
  %v4222 = vld [vmem:[#allocation3 + $0x68] sm:$0xff]
  %v4223 = vpack.c.bf16 %v4220, %v4220
  %4225 = vrot.lane.b32.xlu0 %v4223, 64
  %v4226 = vpop.permute.xlu0 %4225
  %v4228 = vsel %vm254, %v4226, 0
  %4230 = vmatpush.bf16.msra.mxu0 0
  %4231 = vmatpush.bf16.msra.mxu0 0
  %4232 = vmatpush.bf16.msra.mxu0 0
  %4233 = vmatpush.bf16.msra.mxu0 0
  %4234 = vmatpush.bf16.msra.mxu0 0
  %4235 = vmatpush.bf16.msra.mxu0 0
  %4236 = vmatpush.bf16.msra.mxu0 %v3254
  %4237 = vmatpush.bf16.msra.mxu0 %v3253
  %4238 = vmatmul.bf16.gmra.mxu0 %v4228
  %v4239 = vpop.f32.mrf.mxu0
  %v4240 = vadd.f32 0.0, %v4239
  %v4241 = vpop.f32.mrf.mxu0
  %4242 = vdwg.mxu0
  %v4243 = vadd.f32 %v4222, %v4240
  %v4244 = vxor.u32 %v4243, 2147483648
  %v4245 = vmul.f32 %v4244, 1.442695
  %v4246 = vpow.pop %v4245
  %v4247 = vadd.f32 %v4246, 1.0
  %v4248 = vrcp.pop %v4247
  %v4249 = vmul.f32 %v4247, %v4248
  %v4250 = vsub.f32 1.0, %v4249
  %v4251 = vmul.f32 %v4248, %v4250
  %v4252 = vadd.f32 %v4248, %v4251
  %vm4253 = vweird.f32 %v4247
  %vm4254 = vweird.f32 %v4248
  %vm4255 = vmor %vm4253, %vm4254
  %v4256 = vsel %vm4255, %v4248, %v4252
  %v4257 = vand.u32 2147483647, %v4247
  %vm4258 = vcmp.eq.f32.partialorder %v4257, 8.507059e+37
  %v4259 = vand.u32 %v4247, 2147483648
  %v4260 = vor.u32 1.1754944e-38, %v4259
  %v4261 = vsel %vm4258, %v4260, %v4256
  %v4262 = vmul.f32 1.0, %v4261
  %v4263 = vtanh.pop %v4243
  %v4264 = vmul.f32 %v4262, %v4221
  %4266 = vrot.lane.b32.xlu0 %v4263, 32
  %v4267 = vpop.permute.xlu0 %4266
  %v4269 = vmul.f32 %v4262, %v4267
  %4271 = vrot.lane.b32.xlu0 %v4269, 32
  %v4272 = vpop.permute.xlu0 %4271
  %v4274 = vadd.f32 %v4264, %v4272
  %v4275 = vtanh.pop %v4274
  %4277 = vrot.lane.b32.xlu0 %v4275, 32
  %v4278 = vpop.permute.xlu0 %4277
  %v4280 = vmul.f32 %v4262, %v4278
  %v4281 = vld [vmem:[%s0 + $0x68] sm:$0xff]
  %vm4282 = vcmp.gt.f32.partialorder %v4281, 0.0
  %v4283 = vsel %vm4282, 1, 0
  %4284 = vset.pattern.permute.xlu0 0
  %4285 = vperm.xlu0 %4284, %v4283
  %v4286 = vpop.permute.xlu0 %4285
  %vm4287 = vcmp.eq.s32.totalorder %v4286, 1
  %v4288 = vsel %vm4287, %v4280, 0.0
  %4290 = vrot.lane.b32.xlu0 %v4288, 64
  %v4291 = vpop.permute.xlu0 %4290
  %4293 = vst.msk [vmem:[#allocation2 + $0x68] sm:$0xff] %vm254, %v4291
  %v4294 = vsel %vm4287, %v4280, %v4220
  %v4295 = vsel %vm4287, %v4274, %v4221
  %v4296 = vld [vmem:[#allocation3 + $0x70] sm:$0xff]
  %v4297 = vpack.c.bf16 %v4294, %v4294
  %4299 = vrot.lane.b32.xlu0 %v4297, 64
  %v4300 = vpop.permute.xlu0 %4299
  %v4302 = vsel %vm254, %v4300, 0
  %4304 = vmatpush.bf16.msra.mxu0 0
  %4305 = vmatpush.bf16.msra.mxu0 0
  %4306 = vmatpush.bf16.msra.mxu0 0
  %4307 = vmatpush.bf16.msra.mxu0 0
  %4308 = vmatpush.bf16.msra.mxu0 0
  %4309 = vmatpush.bf16.msra.mxu0 0
  %4310 = vmatpush.bf16.msra.mxu0 %v3254
  %4311 = vmatpush.bf16.msra.mxu0 %v3253
  %4312 = vmatmul.bf16.gmra.mxu0 %v4302
  %v4313 = vpop.f32.mrf.mxu0
  %v4314 = vadd.f32 0.0, %v4313
  %v4315 = vpop.f32.mrf.mxu0
  %4316 = vdwg.mxu0
  %v4317 = vadd.f32 %v4296, %v4314
  %v4318 = vxor.u32 %v4317, 2147483648
  %v4319 = vmul.f32 %v4318, 1.442695
  %v4320 = vpow.pop %v4319
  %v4321 = vadd.f32 %v4320, 1.0
  %v4322 = vrcp.pop %v4321
  %v4323 = vmul.f32 %v4321, %v4322
  %v4324 = vsub.f32 1.0, %v4323
  %v4325 = vmul.f32 %v4322, %v4324
  %v4326 = vadd.f32 %v4322, %v4325
  %vm4327 = vweird.f32 %v4321
  %vm4328 = vweird.f32 %v4322
  %vm4329 = vmor %vm4327, %vm4328
  %v4330 = vsel %vm4329, %v4322, %v4326
  %v4331 = vand.u32 2147483647, %v4321
  %vm4332 = vcmp.eq.f32.partialorder %v4331, 8.507059e+37
  %v4333 = vand.u32 %v4321, 2147483648
  %v4334 = vor.u32 1.1754944e-38, %v4333
  %v4335 = vsel %vm4332, %v4334, %v4330
  %v4336 = vmul.f32 1.0, %v4335
  %v4337 = vtanh.pop %v4317
  %v4338 = vmul.f32 %v4336, %v4295
  %4340 = vrot.lane.b32.xlu0 %v4337, 32
  %v4341 = vpop.permute.xlu0 %4340
  %v4343 = vmul.f32 %v4336, %v4341
  %4345 = vrot.lane.b32.xlu0 %v4343, 32
  %v4346 = vpop.permute.xlu0 %4345
  %v4348 = vadd.f32 %v4338, %v4346
  %v4349 = vtanh.pop %v4348
  %4351 = vrot.lane.b32.xlu0 %v4349, 32
  %v4352 = vpop.permute.xlu0 %4351
  %v4354 = vmul.f32 %v4336, %v4352
  %v4355 = vld [vmem:[%s0 + $0x70] sm:$0xff]
  %vm4356 = vcmp.gt.f32.partialorder %v4355, 0.0
  %v4357 = vsel %vm4356, 1, 0
  %4358 = vset.pattern.permute.xlu0 0
  %4359 = vperm.xlu0 %4358, %v4357
  %v4360 = vpop.permute.xlu0 %4359
  %vm4361 = vcmp.eq.s32.totalorder %v4360, 1
  %v4362 = vsel %vm4361, %v4354, 0.0
  %4364 = vrot.lane.b32.xlu0 %v4362, 64
  %v4365 = vpop.permute.xlu0 %4364
  %4367 = vst.msk [vmem:[#allocation2 + $0x70] sm:$0xff] %vm254, %v4365
  %v4368 = vsel %vm4361, %v4354, %v4294
  %v4369 = vsel %vm4361, %v4348, %v4295
  %v4370 = vld [vmem:[#allocation3 + $0x78] sm:$0xff]
  %v4371 = vpack.c.bf16 %v4368, %v4368
  %4373 = vrot.lane.b32.xlu0 %v4371, 64
  %v4374 = vpop.permute.xlu0 %4373
  %v4376 = vsel %vm254, %v4374, 0
  %4378 = vmatpush.bf16.msra.mxu0 0
  %4379 = vmatpush.bf16.msra.mxu0 0
  %4380 = vmatpush.bf16.msra.mxu0 0
  %4381 = vmatpush.bf16.msra.mxu0 0
  %4382 = vmatpush.bf16.msra.mxu0 0
  %4383 = vmatpush.bf16.msra.mxu0 0
  %4384 = vmatpush.bf16.msra.mxu0 %v3254
  %4385 = vmatpush.bf16.msra.mxu0 %v3253
  %4386 = vmatmul.bf16.gmra.mxu0 %v4376
  %v4387 = vpop.f32.mrf.mxu0
  %v4388 = vadd.f32 0.0, %v4387
  %v4389 = vpop.f32.mrf.mxu0
  %4390 = vdwg.mxu0
  %v4391 = vadd.f32 %v4370, %v4388
  %v4392 = vxor.u32 %v4391, 2147483648
  %v4393 = vmul.f32 %v4392, 1.442695
  %v4394 = vpow.pop %v4393
  %v4395 = vadd.f32 %v4394, 1.0
  %v4396 = vrcp.pop %v4395
  %v4397 = vmul.f32 %v4395, %v4396
  %v4398 = vsub.f32 1.0, %v4397
  %v4399 = vmul.f32 %v4396, %v4398
  %v4400 = vadd.f32 %v4396, %v4399
  %vm4401 = vweird.f32 %v4395
  %vm4402 = vweird.f32 %v4396
  %vm4403 = vmor %vm4401, %vm4402
  %v4404 = vsel %vm4403, %v4396, %v4400
  %v4405 = vand.u32 2147483647, %v4395
  %vm4406 = vcmp.eq.f32.partialorder %v4405, 8.507059e+37
  %v4407 = vand.u32 %v4395, 2147483648
  %v4408 = vor.u32 1.1754944e-38, %v4407
  %v4409 = vsel %vm4406, %v4408, %v4404
  %v4410 = vmul.f32 1.0, %v4409
  %v4411 = vtanh.pop %v4391
  %v4412 = vmul.f32 %v4410, %v4369
  %4414 = vrot.lane.b32.xlu0 %v4411, 32
  %v4415 = vpop.permute.xlu0 %4414
  %v4417 = vmul.f32 %v4410, %v4415
  %4419 = vrot.lane.b32.xlu0 %v4417, 32
  %v4420 = vpop.permute.xlu0 %4419
  %v4422 = vadd.f32 %v4412, %v4420
  %v4423 = vtanh.pop %v4422
  %4425 = vrot.lane.b32.xlu0 %v4423, 32
  %v4426 = vpop.permute.xlu0 %4425
  %v4428 = vmul.f32 %v4410, %v4426
  %v4429 = vld [vmem:[%s0 + $0x78] sm:$0xff]
  %vm4430 = vcmp.gt.f32.partialorder %v4429, 0.0
  %v4431 = vsel %vm4430, 1, 0
  %4432 = vset.pattern.permute.xlu0 0
  %4433 = vperm.xlu0 %4432, %v4431
  %v4434 = vpop.permute.xlu0 %4433
  %vm4435 = vcmp.eq.s32.totalorder %v4434, 1
  %v4436 = vsel %vm4435, %v4428, 0.0
  %4438 = vrot.lane.b32.xlu0 %v4436, 64
  %v4439 = vpop.permute.xlu0 %4438
  %4441 = vst.msk [vmem:[#allocation2 + $0x78] sm:$0xff] %vm254, %v4439
  %v4442 = vsel %vm4435, %v4428, %v4368
  %v4443 = vsel %vm4435, %v4422, %v4369
  %v4444 = vld [vmem:[#allocation3 + $0x80] sm:$0xff]
  %v4445 = vpack.c.bf16 %v4442, %v4442
  %4447 = vrot.lane.b32.xlu0 %v4445, 64
  %v4448 = vpop.permute.xlu0 %4447
  %v4450 = vsel %vm254, %v4448, 0
  %4452 = vmatpush.bf16.msra.mxu0 0
  %4453 = vmatpush.bf16.msra.mxu0 0
  %4454 = vmatpush.bf16.msra.mxu0 0
  %4455 = vmatpush.bf16.msra.mxu0 0
  %4456 = vmatpush.bf16.msra.mxu0 0
  %4457 = vmatpush.bf16.msra.mxu0 0
  %4458 = vmatpush.bf16.msra.mxu0 %v3254
  %4459 = vmatpush.bf16.msra.mxu0 %v3253
  %4460 = vmatmul.bf16.gmra.mxu0 %v4450
  %v4461 = vpop.f32.mrf.mxu0
  %v4462 = vadd.f32 0.0, %v4461
  %v4463 = vpop.f32.mrf.mxu0
  %4464 = vdwg.mxu0
  %v4465 = vadd.f32 %v4444, %v4462
  %v4466 = vxor.u32 %v4465, 2147483648
  %v4467 = vmul.f32 %v4466, 1.442695
  %v4468 = vpow.pop %v4467
  %v4469 = vadd.f32 %v4468, 1.0
  %v4470 = vrcp.pop %v4469
  %v4471 = vmul.f32 %v4469, %v4470
  %v4472 = vsub.f32 1.0, %v4471
  %v4473 = vmul.f32 %v4470, %v4472
  %v4474 = vadd.f32 %v4470, %v4473
  %vm4475 = vweird.f32 %v4469
  %vm4476 = vweird.f32 %v4470
  %vm4477 = vmor %vm4475, %vm4476
  %v4478 = vsel %vm4477, %v4470, %v4474
  %v4479 = vand.u32 2147483647, %v4469
  %vm4480 = vcmp.eq.f32.partialorder %v4479, 8.507059e+37
  %v4481 = vand.u32 %v4469, 2147483648
  %v4482 = vor.u32 1.1754944e-38, %v4481
  %v4483 = vsel %vm4480, %v4482, %v4478
  %v4484 = vmul.f32 1.0, %v4483
  %v4485 = vtanh.pop %v4465
  %v4486 = vmul.f32 %v4484, %v4443
  %4488 = vrot.lane.b32.xlu0 %v4485, 32
  %v4489 = vpop.permute.xlu0 %4488
  %v4491 = vmul.f32 %v4484, %v4489
  %4493 = vrot.lane.b32.xlu0 %v4491, 32
  %v4494 = vpop.permute.xlu0 %4493
  %v4496 = vadd.f32 %v4486, %v4494
  %v4497 = vtanh.pop %v4496
  %4499 = vrot.lane.b32.xlu0 %v4497, 32
  %v4500 = vpop.permute.xlu0 %4499
  %v4502 = vmul.f32 %v4484, %v4500
  %v4503 = vld [vmem:[%s0 + $0x80] sm:$0xff]
  %vm4504 = vcmp.gt.f32.partialorder %v4503, 0.0
  %v4505 = vsel %vm4504, 1, 0
  %4506 = vset.pattern.permute.xlu0 0
  %4507 = vperm.xlu0 %4506, %v4505
  %v4508 = vpop.permute.xlu0 %4507
  %vm4509 = vcmp.eq.s32.totalorder %v4508, 1
  %v4510 = vsel %vm4509, %v4502, 0.0
  %4512 = vrot.lane.b32.xlu0 %v4510, 64
  %v4513 = vpop.permute.xlu0 %4512
  %4515 = vst.msk [vmem:[#allocation2 + $0x80] sm:$0xff] %vm254, %v4513
  %v4516 = vsel %vm4509, %v4502, %v4442
  %v4517 = vsel %vm4509, %v4496, %v4443
  %v4518 = vld [vmem:[#allocation3 + $0x88] sm:$0xff]
  %v4519 = vpack.c.bf16 %v4516, %v4516
  %4521 = vrot.lane.b32.xlu0 %v4519, 64
  %v4522 = vpop.permute.xlu0 %4521
  %v4524 = vsel %vm254, %v4522, 0
  %4526 = vmatpush.bf16.msra.mxu0 0
  %4527 = vmatpush.bf16.msra.mxu0 0
  %4528 = vmatpush.bf16.msra.mxu0 0
  %4529 = vmatpush.bf16.msra.mxu0 0
  %4530 = vmatpush.bf16.msra.mxu0 0
  %4531 = vmatpush.bf16.msra.mxu0 0
  %4532 = vmatpush.bf16.msra.mxu0 %v3254
  %4533 = vmatpush.bf16.msra.mxu0 %v3253
  %4534 = vmatmul.bf16.gmra.mxu0 %v4524
  %v4535 = vpop.f32.mrf.mxu0
  %v4536 = vadd.f32 0.0, %v4535
  %v4537 = vpop.f32.mrf.mxu0
  %4538 = vdwg.mxu0
  %v4539 = vadd.f32 %v4518, %v4536
  %v4540 = vxor.u32 %v4539, 2147483648
  %v4541 = vmul.f32 %v4540, 1.442695
  %v4542 = vpow.pop %v4541
  %v4543 = vadd.f32 %v4542, 1.0
  %v4544 = vrcp.pop %v4543
  %v4545 = vmul.f32 %v4543, %v4544
  %v4546 = vsub.f32 1.0, %v4545
  %v4547 = vmul.f32 %v4544, %v4546
  %v4548 = vadd.f32 %v4544, %v4547
  %vm4549 = vweird.f32 %v4543
  %vm4550 = vweird.f32 %v4544
  %vm4551 = vmor %vm4549, %vm4550
  %v4552 = vsel %vm4551, %v4544, %v4548
  %v4553 = vand.u32 2147483647, %v4543
  %vm4554 = vcmp.eq.f32.partialorder %v4553, 8.507059e+37
  %v4555 = vand.u32 %v4543, 2147483648
  %v4556 = vor.u32 1.1754944e-38, %v4555
  %v4557 = vsel %vm4554, %v4556, %v4552
  %v4558 = vmul.f32 1.0, %v4557
  %v4559 = vtanh.pop %v4539
  %v4560 = vmul.f32 %v4558, %v4517
  %4562 = vrot.lane.b32.xlu0 %v4559, 32
  %v4563 = vpop.permute.xlu0 %4562
  %v4565 = vmul.f32 %v4558, %v4563
  %4567 = vrot.lane.b32.xlu0 %v4565, 32
  %v4568 = vpop.permute.xlu0 %4567
  %v4570 = vadd.f32 %v4560, %v4568
  %v4571 = vtanh.pop %v4570
  %4573 = vrot.lane.b32.xlu0 %v4571, 32
  %v4574 = vpop.permute.xlu0 %4573
  %v4576 = vmul.f32 %v4558, %v4574
  %v4577 = vld [vmem:[%s0 + $0x88] sm:$0xff]
  %vm4578 = vcmp.gt.f32.partialorder %v4577, 0.0
  %v4579 = vsel %vm4578, 1, 0
  %4580 = vset.pattern.permute.xlu0 0
  %4581 = vperm.xlu0 %4580, %v4579
  %v4582 = vpop.permute.xlu0 %4581
  %vm4583 = vcmp.eq.s32.totalorder %v4582, 1
  %v4584 = vsel %vm4583, %v4576, 0.0
  %4586 = vrot.lane.b32.xlu0 %v4584, 64
  %v4587 = vpop.permute.xlu0 %4586
  %4589 = vst.msk [vmem:[#allocation2 + $0x88] sm:$0xff] %vm254, %v4587
  %v4590 = vld [vmem:[#allocation2] sm:$0xff]
  %v4591 = vld [vmem:[#allocation2 + $0x8] sm:$0xff]
  %v4592 = vld [vmem:[#allocation2 + $0x10] sm:$0xff]
  %v4593 = vld [vmem:[#allocation2 + $0x18] sm:$0xff]
  %v4594 = vld [vmem:[#allocation2 + $0x20] sm:$0xff]
  %v4595 = vld [vmem:[#allocation2 + $0x28] sm:$0xff]
  %v4596 = vld [vmem:[#allocation2 + $0x30] sm:$0xff]
  %v4597 = vld [vmem:[#allocation2 + $0x38] sm:$0xff]
  %v4598 = vld [vmem:[#allocation2 + $0x40] sm:$0xff]
  %v4599 = vld [vmem:[#allocation2 + $0x48] sm:$0xff]
  %v4600 = vld [vmem:[#allocation2 + $0x50] sm:$0xff]
  %v4601 = vld [vmem:[#allocation2 + $0x58] sm:$0xff]
  %v4602 = vld [vmem:[#allocation2 + $0x60] sm:$0xff]
  %v4603 = vld [vmem:[#allocation2 + $0x68] sm:$0xff]
  %v4604 = vld [vmem:[#allocation2 + $0x70] sm:$0xff]
  %v4605 = vld [vmem:[#allocation2 + $0x78] sm:$0xff]
  %v4606 = vld [vmem:[#allocation2 + $0x80] sm:$0xff]
  %v4607 = vld [vmem:[#allocation2 + $0x88] sm:$0xff]
  %v4608 = vpack.c.bf16 %v4591, %v4590
  %v4609 = vpack.c.bf16 %v4593, %v4592
  %v4610 = vpack.c.bf16 %v4595, %v4594
  %v4611 = vpack.c.bf16 %v4597, %v4596
  %v4612 = vpack.c.bf16 %v4599, %v4598
  %v4613 = vpack.c.bf16 %v4601, %v4600
  %v4614 = vpack.c.bf16 %v4603, %v4602
  %v4615 = vpack.c.bf16 %v4605, %v4604
  %v4616 = vpack.c.bf16 %v4607, %v4606
  %v4617 = vld [vmem:[%s13] sm:$0xf]
  %v4618 = vld [vmem:[%s13 + $0x4] sm:$0xf]
  %v4619 = vld [vmem:[%s13 + $0x8] sm:$0xf]
  %v4620 = vld [vmem:[%s13 + $0xc] sm:$0xf]
  %v4621 = vld [vmem:[%s14] sm:$0x1]
  %v4623 = vperm.slane %v4621, 0
  %v4629 = vunpack.c.l.b16 %v4617
  %v4630 = vunpack.c.l.b16 %v4618
  %v4631 = vunpack.c.l.b16 %v4619
  %v4632 = vunpack.c.l.b16 %v4620
  %v4633 = vpack.c.b16 %v4630, %v4629
  %v4634 = vpack.c.b16 %v4632, %v4631
  %v4638 = vsel %vm254, %v4608, 0
  %v4641 = vsel %vm254, %v4609, 0
  %v4644 = vsel %vm254, %v4610, 0
  %v4647 = vsel %vm254, %v4611, 0
  %v4650 = vsel %vm254, %v4612, 0
  %v4653 = vsel %vm254, %v4613, 0
  %v4656 = vsel %vm254, %v4614, 0
  %v4659 = vsel %vm254, %v4615, 0
  %v4662 = vsel %vm254, %v4616, 0
  %4664 = vmatpush.bf16.msra.mxu0 0
  %4665 = vmatpush.bf16.msra.mxu0 0
  %4666 = vmatpush.bf16.msra.mxu0 0
  %4667 = vmatpush.bf16.msra.mxu0 0
  %4668 = vmatpush.bf16.msra.mxu0 0
  %4669 = vmatpush.bf16.msra.mxu0 0
  %4670 = vmatpush.bf16.msra.mxu0 %v4634
  %4671 = vmatpush.bf16.msra.mxu0 %v4633
  %4672 = vmatmul.bf16.gmra.mxu0 %v4638
  %v4673 = vpop.f32.mrf.mxu0
  %v4674 = vadd.f32 %v4623, %v4673
  %v4675 = vpop.f32.mrf.mxu0
  %v4676 = vadd.f32 %v4623, %v4675
  %4677 = vmatmul.bf16.gmra.mxu0 %v4641
  %v4678 = vpop.f32.mrf.mxu0
  %v4679 = vadd.f32 %v4623, %v4678
  %v4680 = vpop.f32.mrf.mxu0
  %v4681 = vadd.f32 %v4623, %v4680
  %4682 = vmatmul.bf16.gmra.mxu0 %v4644
  %v4683 = vpop.f32.mrf.mxu0
  %v4684 = vadd.f32 %v4623, %v4683
  %v4685 = vpop.f32.mrf.mxu0
  %v4686 = vadd.f32 %v4623, %v4685
  %4687 = vmatmul.bf16.gmra.mxu0 %v4647
  %v4688 = vpop.f32.mrf.mxu0
  %v4689 = vadd.f32 %v4623, %v4688
  %v4690 = vpop.f32.mrf.mxu0
  %v4691 = vadd.f32 %v4623, %v4690
  %4692 = vmatmul.bf16.gmra.mxu0 %v4650
  %v4693 = vpop.f32.mrf.mxu0
  %v4694 = vadd.f32 %v4623, %v4693
  %v4695 = vpop.f32.mrf.mxu0
  %v4696 = vadd.f32 %v4623, %v4695
  %4697 = vmatmul.bf16.gmra.mxu0 %v4653
  %v4698 = vpop.f32.mrf.mxu0
  %v4699 = vadd.f32 %v4623, %v4698
  %v4700 = vpop.f32.mrf.mxu0
  %v4701 = vadd.f32 %v4623, %v4700
  %4702 = vmatmul.bf16.gmra.mxu0 %v4656
  %v4703 = vpop.f32.mrf.mxu0
  %v4704 = vadd.f32 %v4623, %v4703
  %v4705 = vpop.f32.mrf.mxu0
  %v4706 = vadd.f32 %v4623, %v4705
  %4707 = vmatmul.bf16.gmra.mxu0 %v4659
  %v4708 = vpop.f32.mrf.mxu0
  %v4709 = vadd.f32 %v4623, %v4708
  %v4710 = vpop.f32.mrf.mxu0
  %v4711 = vadd.f32 %v4623, %v4710
  %4712 = vmatmul.bf16.gmra.mxu0 %v4662
  %v4713 = vpop.f32.mrf.mxu0
  %v4714 = vadd.f32 %v4623, %v4713
  %v4715 = vpop.f32.mrf.mxu0
  %v4716 = vadd.f32 %v4623, %v4715
  %4717 = vdwg.mxu0
  %vm4718 = vcmask 64512
  %v4719 = vsel %vm4718, %v4674, -inf
  %4720 = vmax.xlane.f32.xlu0 %v4719
  %v4721 = vpop.xlane.xlu0 %4720
  %v4722 = vsel %vm4718, %v4676, -inf
  %4723 = vmax.xlane.f32.xlu0 %v4722
  %v4724 = vpop.xlane.xlu0 %4723
  %v4725 = vsel %vm4718, %v4679, -inf
  %4726 = vmax.xlane.f32.xlu0 %v4725
  %v4727 = vpop.xlane.xlu0 %4726
  %v4728 = vsel %vm4718, %v4681, -inf
  %4729 = vmax.xlane.f32.xlu0 %v4728
  %v4730 = vpop.xlane.xlu0 %4729
  %v4731 = vsel %vm4718, %v4684, -inf
  %4732 = vmax.xlane.f32.xlu0 %v4731
  %v4733 = vpop.xlane.xlu0 %4732
  %v4734 = vsel %vm4718, %v4686, -inf
  %4735 = vmax.xlane.f32.xlu0 %v4734
  %v4736 = vpop.xlane.xlu0 %4735
  %v4737 = vsel %vm4718, %v4689, -inf
  %4738 = vmax.xlane.f32.xlu0 %v4737
  %v4739 = vpop.xlane.xlu0 %4738
  %v4740 = vsel %vm4718, %v4691, -inf
  %4741 = vmax.xlane.f32.xlu0 %v4740
  %v4742 = vpop.xlane.xlu0 %4741
  %v4743 = vsel %vm4718, %v4694, -inf
  %4744 = vmax.xlane.f32.xlu0 %v4743
  %v4745 = vpop.xlane.xlu0 %4744
  %v4746 = vsel %vm4718, %v4696, -inf
  %4747 = vmax.xlane.f32.xlu0 %v4746
  %v4748 = vpop.xlane.xlu0 %4747
  %v4749 = vsel %vm4718, %v4699, -inf
  %4750 = vmax.xlane.f32.xlu0 %v4749
  %v4751 = vpop.xlane.xlu0 %4750
  %v4752 = vsel %vm4718, %v4701, -inf
  %4753 = vmax.xlane.f32.xlu0 %v4752
  %v4754 = vpop.xlane.xlu0 %4753
  %v4755 = vsel %vm4718, %v4704, -inf
  %4756 = vmax.xlane.f32.xlu0 %v4755
  %v4757 = vpop.xlane.xlu0 %4756
  %v4758 = vsel %vm4718, %v4706, -inf
  %4759 = vmax.xlane.f32.xlu0 %v4758
  %v4760 = vpop.xlane.xlu0 %4759
  %v4761 = vsel %vm4718, %v4709, -inf
  %4762 = vmax.xlane.f32.xlu0 %v4761
  %v4763 = vpop.xlane.xlu0 %4762
  %v4764 = vsel %vm4718, %v4711, -inf
  %4765 = vmax.xlane.f32.xlu0 %v4764
  %v4766 = vpop.xlane.xlu0 %4765
  %v4767 = vsel %vm4718, %v4714, -inf
  %4768 = vmax.xlane.f32.xlu0 %v4767
  %v4769 = vpop.xlane.xlu0 %4768
  %v4770 = vsel %vm4718, %v4716, -inf
  %4771 = vmax.xlane.f32.xlu0 %v4770
  %v4772 = vpop.xlane.xlu0 %4771
  %v4773 = vsub.f32 %v4674, %v4721
  %v4774 = vsub.f32 %v4676, %v4724
  %v4775 = vsub.f32 %v4679, %v4727
  %v4776 = vsub.f32 %v4681, %v4730
  %v4777 = vsub.f32 %v4684, %v4733
  %v4778 = vsub.f32 %v4686, %v4736
  %v4779 = vsub.f32 %v4689, %v4739
  %v4780 = vsub.f32 %v4691, %v4742
  %v4781 = vsub.f32 %v4694, %v4745
  %v4782 = vsub.f32 %v4696, %v4748
  %v4783 = vsub.f32 %v4699, %v4751
  %v4784 = vsub.f32 %v4701, %v4754
  %v4785 = vsub.f32 %v4704, %v4757
  %v4786 = vsub.f32 %v4706, %v4760
  %v4787 = vsub.f32 %v4709, %v4763
  %v4788 = vsub.f32 %v4711, %v4766
  %v4789 = vsub.f32 %v4714, %v4769
  %v4790 = vsub.f32 %v4716, %v4772
  %v4791 = vmul.f32 %v4773, 1.442695
  %v4792 = vpow.pop %v4791
  %v4793 = vmul.f32 %v4774, 1.442695
  %v4794 = vpow.pop %v4793
  %v4795 = vmul.f32 %v4775, 1.442695
  %v4796 = vpow.pop %v4795
  %v4797 = vmul.f32 %v4776, 1.442695
  %v4798 = vpow.pop %v4797
  %v4799 = vmul.f32 %v4777, 1.442695
  %v4800 = vpow.pop %v4799
  %v4801 = vmul.f32 %v4778, 1.442695
  %v4802 = vpow.pop %v4801
  %v4803 = vmul.f32 %v4779, 1.442695
  %v4804 = vpow.pop %v4803
  %v4805 = vmul.f32 %v4780, 1.442695
  %v4806 = vpow.pop %v4805
  %v4807 = vmul.f32 %v4781, 1.442695
  %v4808 = vpow.pop %v4807
  %v4809 = vmul.f32 %v4782, 1.442695
  %v4810 = vpow.pop %v4809
  %v4811 = vmul.f32 %v4783, 1.442695
  %v4812 = vpow.pop %v4811
  %v4813 = vmul.f32 %v4784, 1.442695
  %v4814 = vpow.pop %v4813
  %v4815 = vmul.f32 %v4785, 1.442695
  %v4816 = vpow.pop %v4815
  %v4817 = vmul.f32 %v4786, 1.442695
  %v4818 = vpow.pop %v4817
  %v4819 = vmul.f32 %v4787, 1.442695
  %v4820 = vpow.pop %v4819
  %v4821 = vmul.f32 %v4788, 1.442695
  %v4822 = vpow.pop %v4821
  %v4823 = vmul.f32 %v4789, 1.442695
  %v4824 = vpow.pop %v4823
  %v4825 = vmul.f32 %v4790, 1.442695
  %v4826 = vpow.pop %v4825
  %v4827 = vsel %vm4718, %v4792, 0.0
  %4828 = vadd.xlane.f32.xlu0 %v4827
  %v4829 = vpop.xlane.xlu0 %4828
  %v4830 = vsel %vm4718, %v4794, 0.0
  %4831 = vadd.xlane.f32.xlu0 %v4830
  %v4832 = vpop.xlane.xlu0 %4831
  %v4833 = vsel %vm4718, %v4796, 0.0
  %4834 = vadd.xlane.f32.xlu0 %v4833
  %v4835 = vpop.xlane.xlu0 %4834
  %v4836 = vsel %vm4718, %v4798, 0.0
  %4837 = vadd.xlane.f32.xlu0 %v4836
  %v4838 = vpop.xlane.xlu0 %4837
  %v4839 = vsel %vm4718, %v4800, 0.0
  %4840 = vadd.xlane.f32.xlu0 %v4839
  %v4841 = vpop.xlane.xlu0 %4840
  %v4842 = vsel %vm4718, %v4802, 0.0
  %4843 = vadd.xlane.f32.xlu0 %v4842
  %v4844 = vpop.xlane.xlu0 %4843
  %v4845 = vsel %vm4718, %v4804, 0.0
  %4846 = vadd.xlane.f32.xlu0 %v4845
  %v4847 = vpop.xlane.xlu0 %4846
  %v4848 = vsel %vm4718, %v4806, 0.0
  %4849 = vadd.xlane.f32.xlu0 %v4848
  %v4850 = vpop.xlane.xlu0 %4849
  %v4851 = vsel %vm4718, %v4808, 0.0
  %4852 = vadd.xlane.f32.xlu0 %v4851
  %v4853 = vpop.xlane.xlu0 %4852
  %v4854 = vsel %vm4718, %v4810, 0.0
  %4855 = vadd.xlane.f32.xlu0 %v4854
  %v4856 = vpop.xlane.xlu0 %4855
  %v4857 = vsel %vm4718, %v4812, 0.0
  %4858 = vadd.xlane.f32.xlu0 %v4857
  %v4859 = vpop.xlane.xlu0 %4858
  %v4860 = vsel %vm4718, %v4814, 0.0
  %4861 = vadd.xlane.f32.xlu0 %v4860
  %v4862 = vpop.xlane.xlu0 %4861
  %v4863 = vsel %vm4718, %v4816, 0.0
  %4864 = vadd.xlane.f32.xlu0 %v4863
  %v4865 = vpop.xlane.xlu0 %4864
  %v4866 = vsel %vm4718, %v4818, 0.0
  %4867 = vadd.xlane.f32.xlu0 %v4866
  %v4868 = vpop.xlane.xlu0 %4867
  %v4869 = vsel %vm4718, %v4820, 0.0
  %4870 = vadd.xlane.f32.xlu0 %v4869
  %v4871 = vpop.xlane.xlu0 %4870
  %v4872 = vsel %vm4718, %v4822, 0.0
  %4873 = vadd.xlane.f32.xlu0 %v4872
  %v4874 = vpop.xlane.xlu0 %4873
  %v4875 = vsel %vm4718, %v4824, 0.0
  %4876 = vadd.xlane.f32.xlu0 %v4875
  %v4877 = vpop.xlane.xlu0 %4876
  %v4878 = vsel %vm4718, %v4826, 0.0
  %4879 = vadd.xlane.f32.xlu0 %v4878
  %v4880 = vpop.xlane.xlu0 %4879
  %v4881 = vlog2.pop %v4829
  %v4882 = vmul.f32 %v4881, 0.6931472
  %v4883 = vlog2.pop %v4832
  %v4884 = vmul.f32 %v4883, 0.6931472
  %v4885 = vlog2.pop %v4835
  %v4886 = vmul.f32 %v4885, 0.6931472
  %v4887 = vlog2.pop %v4838
  %v4888 = vmul.f32 %v4887, 0.6931472
  %v4889 = vlog2.pop %v4841
  %v4890 = vmul.f32 %v4889, 0.6931472
  %v4891 = vlog2.pop %v4844
  %v4892 = vmul.f32 %v4891, 0.6931472
  %v4893 = vlog2.pop %v4847
  %v4894 = vmul.f32 %v4893, 0.6931472
  %v4895 = vlog2.pop %v4850
  %v4896 = vmul.f32 %v4895, 0.6931472
  %v4897 = vlog2.pop %v4853
  %v4898 = vmul.f32 %v4897, 0.6931472
  %v4899 = vlog2.pop %v4856
  %v4900 = vmul.f32 %v4899, 0.6931472
  %v4901 = vlog2.pop %v4859
  %v4902 = vmul.f32 %v4901, 0.6931472
  %v4903 = vlog2.pop %v4862
  %v4904 = vmul.f32 %v4903, 0.6931472
  %v4905 = vlog2.pop %v4865
  %v4906 = vmul.f32 %v4905, 0.6931472
  %v4907 = vlog2.pop %v4868
  %v4908 = vmul.f32 %v4907, 0.6931472
  %v4909 = vlog2.pop %v4871
  %v4910 = vmul.f32 %v4909, 0.6931472
  %v4911 = vlog2.pop %v4874
  %v4912 = vmul.f32 %v4911, 0.6931472
  %v4913 = vlog2.pop %v4877
  %v4914 = vmul.f32 %v4913, 0.6931472
  %v4915 = vlog2.pop %v4880
  %v4916 = vmul.f32 %v4915, 0.6931472
  %v4917 = vadd.f32 %v4721, %v4882
  %v4918 = vadd.f32 %v4724, %v4884
  %v4919 = vadd.f32 %v4727, %v4886
  %v4920 = vadd.f32 %v4730, %v4888
  %v4921 = vadd.f32 %v4733, %v4890
  %v4922 = vadd.f32 %v4736, %v4892
  %v4923 = vadd.f32 %v4739, %v4894
  %v4924 = vadd.f32 %v4742, %v4896
  %v4925 = vadd.f32 %v4745, %v4898
  %v4926 = vadd.f32 %v4748, %v4900
  %v4927 = vadd.f32 %v4751, %v4902
  %v4928 = vadd.f32 %v4754, %v4904
  %v4929 = vadd.f32 %v4757, %v4906
  %v4930 = vadd.f32 %v4760, %v4908
  %v4931 = vadd.f32 %v4763, %v4910
  %v4932 = vadd.f32 %v4766, %v4912
  %v4933 = vadd.f32 %v4769, %v4914
  %v4934 = vadd.f32 %v4772, %v4916
  %v4935 = vsub.f32 %v4674, %v4917
  %v4936 = vsub.f32 %v4676, %v4918
  %v4937 = vsub.f32 %v4679, %v4919
  %v4938 = vsub.f32 %v4681, %v4920
  %v4939 = vsub.f32 %v4684, %v4921
  %v4940 = vsub.f32 %v4686, %v4922
  %v4941 = vsub.f32 %v4689, %v4923
  %v4942 = vsub.f32 %v4691, %v4924
  %v4943 = vsub.f32 %v4694, %v4925
  %v4944 = vsub.f32 %v4696, %v4926
  %v4945 = vsub.f32 %v4699, %v4927
  %v4946 = vsub.f32 %v4701, %v4928
  %v4947 = vsub.f32 %v4704, %v4929
  %v4948 = vsub.f32 %v4706, %v4930
  %v4949 = vsub.f32 %v4709, %v4931
  %v4950 = vsub.f32 %v4711, %v4932
  %v4951 = vsub.f32 %v4714, %v4933
  %v4952 = vsub.f32 %v4716, %v4934
  %4953 = vst.msk [vmem:[%s15] sm:$0xff] %vm4718, %v4935
  %4954 = vst.msk [vmem:[%s15 + $0x8] sm:$0xff] %vm4718, %v4936
  %4955 = vst.msk [vmem:[%s15 + $0x10] sm:$0xff] %vm4718, %v4937
  %4956 = vst.msk [vmem:[%s15 + $0x18] sm:$0xff] %vm4718, %v4938
  %4957 = vst.msk [vmem:[%s15 + $0x20] sm:$0xff] %vm4718, %v4939
  %4958 = vst.msk [vmem:[%s15 + $0x28] sm:$0xff] %vm4718, %v4940
  %4959 = vst.msk [vmem:[%s15 + $0x30] sm:$0xff] %vm4718, %v4941
  %4960 = vst.msk [vmem:[%s15 + $0x38] sm:$0xff] %vm4718, %v4942
  %4961 = vst.msk [vmem:[%s15 + $0x40] sm:$0xff] %vm4718, %v4943
  %4962 = vst.msk [vmem:[%s15 + $0x48] sm:$0xff] %vm4718, %v4944
  %4963 = vst.msk [vmem:[%s15 + $0x50] sm:$0xff] %vm4718, %v4945
  %4964 = vst.msk [vmem:[%s15 + $0x58] sm:$0xff] %vm4718, %v4946
  %4965 = vst.msk [vmem:[%s15 + $0x60] sm:$0xff] %vm4718, %v4947
  %4966 = vst.msk [vmem:[%s15 + $0x68] sm:$0xff] %vm4718, %v4948
  %4967 = vst.msk [vmem:[%s15 + $0x70] sm:$0xff] %vm4718, %v4949
  %4968 = vst.msk [vmem:[%s15 + $0x78] sm:$0xff] %vm4718, %v4950
  %4969 = vst.msk [vmem:[%s15 + $0x80] sm:$0xff] %vm4718, %v4951
  %4970 = vst.msk [vmem:[%s15 + $0x88] sm:$0xff] %vm4718, %v4952
  // Predicated region
  $region62: #{tpu_custom_call.1} parent=0 // pred_check
    _
  $region63: #{tpu_custom_call.1} parent=0 // pred_check_branch
    %4972 = sbr.rel (0) target = $region65
  $region64: #{tpu_custom_call.1} parent=0 // pred_region
    _
  $region65: #{tpu_custom_call.1} parent=0 // pred_fallthru
    _
  // Predicated region
  $region66: #{tpu_custom_call.1} parent=0 // pred_check
    _
  $region67: #{tpu_custom_call.1} parent=0 // pred_check_branch
    %4974 = sbr.rel (0) target = $region69
  $region68: #{tpu_custom_call.1} parent=0 // pred_region
    _
  $region69: #{tpu_custom_call.1} parent=0 // pred_fallthru
    _

</llo_original>
